<compile_context>
chip_gen: v6e
topology: v6e:2x2x1
jax: 0.10.0
libtpu: 0.0.40
codegen_flags: <defaults>
</compile_context>

<pallas_src>
import jax
import jax.numpy as jnp
from jax.experimental import pallas as pl
from jax.experimental.pallas import tpu as pltpu

F32 = jnp.float32

_LAYER_KEYS = ("wedge", "w4a", "w4b", "tilem", "repm", "wcf", "bc", "w1112", "b1112")
_HEAD_KEYS = ("w1a", "w1b", "b1", "w2", "b2")
_N_LAYER_PARAMS = len(_LAYER_KEYS)


# ----------------------------------------------------------------------------
# Fused Pallas kernel: 4 x ML3Layer + readout head in one program.
# ----------------------------------------------------------------------------
def gnnml3_kernel(*refs):
    h_ref = refs[-1]                 # VMEM scratch (N, nout1 + nout2), persistent h
    out_ref = refs[-2]               # (B, nclass) log-probabilities
    in_refs = refs[:-2]

    (x_ref, ea_ref, src_ref, dst_ref, bm_ref, bmt_ref, invc_ref) = in_refs[:7]
    head_refs = in_refs[-5:]
    layer_refs = in_refs[7:-5]
    n_layers = len(layer_refs) // _N_LAYER_PARAMS

    ea = ea_ref[...]                 # (E, ne)   edge_attr2 (shared across layers)
    src = src_ref[...]               # (E, N)    one-hot(src)
    dst = dst_ref[...]               # (N, E)    one-hot(dst).T
    ne = ea.shape[1]

    h = x_ref[...]                   # (N, ninp) layer-1 input

    for li in range(n_layers):
        (wedge_ref, w4a_ref, w4b_ref, tilem_ref, repm_ref,
         wcf_ref, bc_ref, w1112_ref, b1112_ref) = layer_refs[
            _N_LAYER_PARAMS * li:_N_LAYER_PARAMS * (li + 1)]

        # --- learned edge MLP:  fc1_1|fc1_2|fc1_3 fused into one matmul ------
        e123 = jnp.maximum(
            jnp.dot(ea, wedge_ref[...], preferred_element_type=F32), 0.0)     # (E, 6*ne)
        e1 = e123[:, :2 * ne]
        e23 = e123[:, 2 * ne:4 * ne] * e123[:, 4 * ne:6 * ne]
        # fc1_4 on cat([e1, e2*e3])  ==  e1 @ W4a + (e2*e3) @ W4b
        enew = jnp.maximum(
            jnp.dot(e1, w4a_ref[...], preferred_element_type=F32)
            + jnp.dot(e23, w4b_ref[...], preferred_element_type=F32), 0.0)    # (E, ne)

        # --- SpectConv (aggr='add') as ONE flattened matmul -------------------
        # y[e,o] = sum_{k,f} enew[e,k] * x[src[e],f] * Wc[k,f,o]
        #        = ((xsrc @ Tile) * (enew @ Rep)) @ Wc_flat
        xsrc = jnp.dot(src, h, preferred_element_type=F32)                    # (E, Fin)
        xrep = jnp.dot(xsrc, tilem_ref[...], preferred_element_type=F32)      # (E, ne*Fin)
        gate = jnp.dot(enew, repm_ref[...], preferred_element_type=F32)       # (E, ne*Fin)
        y = jnp.dot(xrep * gate, wcf_ref[...], preferred_element_type=F32)    # (E, nout1)
        out1 = jnp.maximum(
            jnp.dot(dst, y, preferred_element_type=F32) + bc_ref[...], 0.0)   # (N, nout1)

        # --- tanh gate branch: fc11|fc12 fused into one matmul ----------------
        tt = jnp.tanh(
            jnp.dot(h, w1112_ref[...], preferred_element_type=F32) + b1112_ref[...])
        nout2 = tt.shape[1] // 2
        out2 = tt[:, :nout2] * tt[:, nout2:]                                  # (N, nout2)

        # --- single lane-dense hidden slab in VMEM ----------------------------
        nout1c = out1.shape[1]
        h_ref[:, :nout1c] = out1
        h_ref[:, nout1c:] = out2
        h = h_ref[...]                                                        # (N, nin)

    # ----------------------------- readout head ------------------------------
    w1a_ref, w1b_ref, b1_ref, w2_ref, b2_ref = head_refs
    bm = bm_ref[...]                                                          # (B, N)
    bmt = bmt_ref[...]                                                        # (N, B)

    meanp = jnp.dot(bm, h, preferred_element_type=F32) * invc_ref[...]        # (B, nin)

    nb = bm.shape[0]
    rows = []
    for b in range(nb):                                                       # static, B is tiny
        mask_b = bmt[:, b:b + 1] > 0.5                                        # (N, 1)
        rows.append(jnp.max(jnp.where(mask_b, h, -jnp.inf), axis=0, keepdims=True))
    maxp = jnp.concatenate(rows, axis=0)                                      # (B, nin)

    # fc1 on cat([meanp, maxp]) == meanp @ W1a + maxp @ W1b + b1
    hf = jnp.maximum(
        jnp.dot(meanp, w1a_ref[...], preferred_element_type=F32)
        + jnp.dot(maxp, w1b_ref[...], preferred_element_type=F32)
        + b1_ref[...], 0.0)                                                   # (B, nhid)
    logits = jnp.dot(hf, w2_ref[...], preferred_element_type=F32) + b2_ref[...]

    m = jnp.max(logits, axis=1, keepdims=True)
    lse = m + jnp.log(jnp.sum(jnp.exp(logits - m), axis=1, keepdims=True))
    out_ref[...] = logits - lse                                               # log_softmax


# ----------------------------------------------------------------------------
# Wrapper: single pallas_call for the whole forward pass.
# ----------------------------------------------------------------------------
_VMEM = pltpu.MemorySpace.VMEM


@jax.jit
def gnnml3_forward(x, edge_attr, src_oh, dst_oh, bm, bmt, inv_counts, layers, head):
    # F.dropout(p=0.2, training=False) -> identity (inference mode)
    n_nodes = x.shape[0]
    nout1 = layers[0]["bc"].shape[1]
    nout2 = layers[0]["b1112"].shape[1] // 2
    nin = nout1 + nout2
    nclass = head["b2"].shape[1]
    nb = bm.shape[0]

    args = [x, edge_attr, src_oh, dst_oh, bm, bmt, inv_counts]
    for lp in layers:
        args += [lp[k] for k in _LAYER_KEYS]
    args += [head[k] for k in _HEAD_KEYS]

    return pl.pallas_call(
        gnnml3_kernel,
        out_shape=jax.ShapeDtypeStruct((nb, nclass), F32),
        in_specs=[pl.BlockSpec(memory_space=_VMEM) for _ in args],
        out_specs=pl.BlockSpec(memory_space=_VMEM),
        scratch_shapes=[pltpu.VMEM((n_nodes, nin), F32)],
    )(*args)


# ----------------------------------------------------------------------------
# Deterministic parameter init (shapes follow the module's __init__), with the
# host-side restructuring (weight stacking / SpectConv flattening / 0-1 expand mats).
# ----------------------------------------------------------------------------
def _w(key, shape, scale=0.1):
    return (scale * jax.random.normal(key, shape)).astype(F32)


def _expand_mats(ne, fin):
    # tilem (fin, ne*fin):  x @ tilem  repeats x's features ne times along lanes.
    tilem = jnp.tile(jnp.eye(fin, dtype=F32), (1, ne))
    # repm  (ne, ne*fin):   e @ repm   repeats each edge channel fin times along lanes.
    repm = jnp.repeat(jnp.eye(ne, dtype=F32), fin, axis=1)
    return tilem, repm


def init_ml3_params(key, fin, ne, nout1, nout2):
    ks = jax.random.split(key, 11)
    w1 = _w(ks[0], (ne, 2 * ne))            # fc1_1 (bias=False)
    w2 = _w(ks[1], (ne, 2 * ne))            # fc1_2
    w3 = _w(ks[2], (ne, 2 * ne))            # fc1_3
    w4a = _w(ks[3], (2 * ne, ne))           # fc1_4 split over cat([e1, e2*e3])
    w4b = _w(ks[4], (2 * ne, ne))
    wc = _w(ks[5], (ne, fin, nout1))        # SpectConv per-edge-channel weights
    bc = _w(ks[6], (1, nout1))              # SpectConv bias
    w11 = _w(ks[7], (fin, nout2))
    b11 = _w(ks[8], (1, nout2))
    w12 = _w(ks[9], (fin, nout2))
    b12 = _w(ks[10], (1, nout2))
    tilem, repm = _expand_mats(ne, fin)
    return dict(
        wedge=jnp.concatenate([w1, w2, w3], axis=1),     # (ne, 6*ne)
        w4a=w4a, w4b=w4b,
        tilem=tilem, repm=repm,                          # 0/1 expansion matrices
        wcf=wc.reshape(ne * fin, nout1),                 # flattened SpectConv weight
        bc=bc,
        w1112=jnp.concatenate([w11, w12], axis=1),       # (fin, 2*nout2)
        b1112=jnp.concatenate([b11, b12], axis=1),       # (1, 2*nout2)
    )


def init_head_params(key, nin, nhid=100, nclass=2):
    ks = jax.random.split(key, 5)
    return dict(
        w1a=_w(ks[0], (nin, nhid)),          # fc1 split over cat([mean_pool, max_pool])
        w1b=_w(ks[1], (nin, nhid)),
        b1=_w(ks[2], (1, nhid)),
        w2=_w(ks[3], (nhid, nclass)),
        b2=_w(ks[4], (1, nclass)),
    )


# ----------------------------------------------------------------------------
if __name__ == "__main__":
    key = jax.random.PRNGKey(0)
    ks = jax.random.split(key, 10)

    # Small synthetic "PTC-like" graph batch.
    N, E, B = 16, 48, 2          # nodes, edges, graphs in the batch
    ninp, ne = 8, 10             # node features, edge_attr2 channels (dv/nfreq=10)
    nout1, nout2 = 64, 16
    nin = nout1 + nout2          # 80

    x = jax.random.normal(ks[0], (N, ninp), F32)
    edge_attr = jax.random.normal(ks[1], (E, ne), F32)            # data.edge_attr2
    src = jax.random.randint(ks[2], (E,), 0, N)                   # data.edge_index2[0]
    dst = jax.random.randint(ks[3], (E,), 0, N)                   # data.edge_index2[1]
    batch = (jnp.arange(N) >= N // 2).astype(jnp.int32)           # data.batch

    # One-hot graph-structure matrices (turn gather/scatter into matmuls).
    src_oh = jax.nn.one_hot(src, N, dtype=F32)                    # (E, N)
    dst_oh = jax.nn.one_hot(dst, N, dtype=F32).T                  # (N, E)
    bm = jax.nn.one_hot(batch, B, dtype=F32).T                    # (B, N)
    bmt = bm.T                                                    # (N, B)
    inv_counts = 1.0 / jnp.sum(bm, axis=1, keepdims=True)         # (B, 1)

    layers = (
        init_ml3_params(ks[4], ninp, ne, nout1, nout2),           # conv1
        init_ml3_params(ks[5], nin, ne, nout1, nout2),            # conv2
        init_ml3_params(ks[6], nin, ne, nout1, nout2),            # conv3
        init_ml3_params(ks[7], nin, ne, nout1, nout2),            # conv4
    )
    head = init_head_params(ks[8], nin, nhid=100, nclass=2)       # fc1, fc2

    out = gnnml3_forward(x, edge_attr, src_oh, dst_oh, bm, bmt, inv_counts, layers, head)
    jax.block_until_ready(out)
    assert out.shape == (B, 2) and out.dtype == F32
    assert bool(jnp.all(jnp.isfinite(out)))
    print("KERNEL_OK")
</pallas_src>

<mosaic_0001>
module attributes {stable_mosaic.version = 11 : i64} {
  func.func @gnnml3_kernel(%arg0: memref<16x8xf32, #tpu.memory_space<vmem>>, %arg1: memref<48x10xf32, #tpu.memory_space<vmem>>, %arg2: memref<48x16xf32, #tpu.memory_space<vmem>>, %arg3: memref<16x48xf32, #tpu.memory_space<vmem>>, %arg4: memref<2x16xf32, #tpu.memory_space<vmem>>, %arg5: memref<16x2xf32, #tpu.memory_space<vmem>>, %arg6: memref<2x1xf32, #tpu.memory_space<vmem>>, %arg7: memref<10x60xf32, #tpu.memory_space<vmem>>, %arg8: memref<20x10xf32, #tpu.memory_space<vmem>>, %arg9: memref<20x10xf32, #tpu.memory_space<vmem>>, %arg10: memref<8x80xf32, #tpu.memory_space<vmem>>, %arg11: memref<10x80xf32, #tpu.memory_space<vmem>>, %arg12: memref<80x64xf32, #tpu.memory_space<vmem>>, %arg13: memref<1x64xf32, #tpu.memory_space<vmem>>, %arg14: memref<8x32xf32, #tpu.memory_space<vmem>>, %arg15: memref<1x32xf32, #tpu.memory_space<vmem>>, %arg16: memref<10x60xf32, #tpu.memory_space<vmem>>, %arg17: memref<20x10xf32, #tpu.memory_space<vmem>>, %arg18: memref<20x10xf32, #tpu.memory_space<vmem>>, %arg19: memref<80x800xf32, #tpu.memory_space<vmem>>, %arg20: memref<10x800xf32, #tpu.memory_space<vmem>>, %arg21: memref<800x64xf32, #tpu.memory_space<vmem>>, %arg22: memref<1x64xf32, #tpu.memory_space<vmem>>, %arg23: memref<80x32xf32, #tpu.memory_space<vmem>>, %arg24: memref<1x32xf32, #tpu.memory_space<vmem>>, %arg25: memref<10x60xf32, #tpu.memory_space<vmem>>, %arg26: memref<20x10xf32, #tpu.memory_space<vmem>>, %arg27: memref<20x10xf32, #tpu.memory_space<vmem>>, %arg28: memref<80x800xf32, #tpu.memory_space<vmem>>, %arg29: memref<10x800xf32, #tpu.memory_space<vmem>>, %arg30: memref<800x64xf32, #tpu.memory_space<vmem>>, %arg31: memref<1x64xf32, #tpu.memory_space<vmem>>, %arg32: memref<80x32xf32, #tpu.memory_space<vmem>>, %arg33: memref<1x32xf32, #tpu.memory_space<vmem>>, %arg34: memref<10x60xf32, #tpu.memory_space<vmem>>, %arg35: memref<20x10xf32, #tpu.memory_space<vmem>>, %arg36: memref<20x10xf32, #tpu.memory_space<vmem>>, %arg37: memref<80x800xf32, #tpu.memory_space<vmem>>, %arg38: memref<10x800xf32, #tpu.memory_space<vmem>>, %arg39: memref<800x64xf32, #tpu.memory_space<vmem>>, %arg40: memref<1x64xf32, #tpu.memory_space<vmem>>, %arg41: memref<80x32xf32, #tpu.memory_space<vmem>>, %arg42: memref<1x32xf32, #tpu.memory_space<vmem>>, %arg43: memref<80x100xf32, #tpu.memory_space<vmem>>, %arg44: memref<80x100xf32, #tpu.memory_space<vmem>>, %arg45: memref<1x100xf32, #tpu.memory_space<vmem>>, %arg46: memref<100x2xf32, #tpu.memory_space<vmem>>, %arg47: memref<1x2xf32, #tpu.memory_space<vmem>>, %arg48: memref<2x2xf32, #tpu.memory_space<vmem>>, %arg49: memref<16x80xf32, #tpu.memory_space<vmem>>) attributes {dimension_semantics = [], scalar_prefetch = 0 : i64, scratch_operands = 1 : i64, tpu.core_type = #tpu.core_type<tc>} {
    %c0 = arith.constant 0 : index
    %c0_0 = arith.constant 0 : index
    %0 = vector.load %arg1[%c0, %c0_0] : memref<48x10xf32, #tpu.memory_space<vmem>>, vector<48x10xf32>
    %c0_1 = arith.constant 0 : index
    %c0_2 = arith.constant 0 : index
    %1 = vector.load %arg2[%c0_1, %c0_2] : memref<48x16xf32, #tpu.memory_space<vmem>>, vector<48x16xf32>
    %c0_3 = arith.constant 0 : index
    %c0_4 = arith.constant 0 : index
    %2 = vector.load %arg3[%c0_3, %c0_4] : memref<16x48xf32, #tpu.memory_space<vmem>>, vector<16x48xf32>
    %c0_5 = arith.constant 0 : index
    %c0_6 = arith.constant 0 : index
    %3 = vector.load %arg0[%c0_5, %c0_6] : memref<16x8xf32, #tpu.memory_space<vmem>>, vector<16x8xf32>
    %c0_7 = arith.constant 0 : index
    %c0_8 = arith.constant 0 : index
    %4 = vector.load %arg7[%c0_7, %c0_8] : memref<10x60xf32, #tpu.memory_space<vmem>>, vector<10x60xf32>
    %cst = arith.constant dense<0.000000e+00> : vector<48x60xf32>
    %5 = tpu.matmul %0, %4, %cst {dimension_numbers = #tpu.dot_dimension_numbers<[1], [0], [0], [1], [0, 0, 1, 1], [], []>} : vector<48x10xf32>, vector<10x60xf32>, vector<48x60xf32> -> vector<48x60xf32>
    %cst_9 = arith.constant 0.000000e+00 : f32
    %6 = vector.broadcast %cst_9 : f32 to vector<48x60xf32>
    %7 = arith.maximumf %5, %6 : vector<48x60xf32>
    %8 = vector.extract_strided_slice %7 {offsets = [0, 0], sizes = [48, 20], strides = [1, 1]} : vector<48x60xf32> to vector<48x20xf32>
    %9 = vector.extract_strided_slice %7 {offsets = [0, 20], sizes = [48, 20], strides = [1, 1]} : vector<48x60xf32> to vector<48x20xf32>
    %10 = vector.extract_strided_slice %7 {offsets = [0, 40], sizes = [48, 20], strides = [1, 1]} : vector<48x60xf32> to vector<48x20xf32>
    %11 = arith.mulf %9, %10 : vector<48x20xf32>
    %c0_10 = arith.constant 0 : index
    %c0_11 = arith.constant 0 : index
    %12 = vector.load %arg8[%c0_10, %c0_11] : memref<20x10xf32, #tpu.memory_space<vmem>>, vector<20x10xf32>
    %cst_12 = arith.constant dense<0.000000e+00> : vector<48x10xf32>
    %13 = tpu.matmul %8, %12, %cst_12 {dimension_numbers = #tpu.dot_dimension_numbers<[1], [0], [0], [1], [0, 0, 1, 1], [], []>} : vector<48x20xf32>, vector<20x10xf32>, vector<48x10xf32> -> vector<48x10xf32>
    %c0_13 = arith.constant 0 : index
    %c0_14 = arith.constant 0 : index
    %14 = vector.load %arg9[%c0_13, %c0_14] : memref<20x10xf32, #tpu.memory_space<vmem>>, vector<20x10xf32>
    %cst_15 = arith.constant dense<0.000000e+00> : vector<48x10xf32>
    %15 = tpu.matmul %11, %14, %cst_15 {dimension_numbers = #tpu.dot_dimension_numbers<[1], [0], [0], [1], [0, 0, 1, 1], [], []>} : vector<48x20xf32>, vector<20x10xf32>, vector<48x10xf32> -> vector<48x10xf32>
    %16 = arith.addf %13, %15 : vector<48x10xf32>
    %cst_16 = arith.constant 0.000000e+00 : f32
    %17 = vector.broadcast %cst_16 : f32 to vector<48x10xf32>
    %18 = arith.maximumf %16, %17 : vector<48x10xf32>
    %cst_17 = arith.constant dense<0.000000e+00> : vector<48x8xf32>
    %19 = tpu.matmul %1, %3, %cst_17 {dimension_numbers = #tpu.dot_dimension_numbers<[1], [0], [0], [1], [0, 0, 1, 1], [], []>} : vector<48x16xf32>, vector<16x8xf32>, vector<48x8xf32> -> vector<48x8xf32>
    %c0_18 = arith.constant 0 : index
    %c0_19 = arith.constant 0 : index
    %20 = vector.load %arg10[%c0_18, %c0_19] : memref<8x80xf32, #tpu.memory_space<vmem>>, vector<8x80xf32>
    %cst_20 = arith.constant dense<0.000000e+00> : vector<48x80xf32>
    %21 = tpu.matmul %19, %20, %cst_20 {dimension_numbers = #tpu.dot_dimension_numbers<[1], [0], [0], [1], [0, 0, 1, 1], [], []>} : vector<48x8xf32>, vector<8x80xf32>, vector<48x80xf32> -> vector<48x80xf32>
    %c0_21 = arith.constant 0 : index
    %c0_22 = arith.constant 0 : index
    %22 = vector.load %arg11[%c0_21, %c0_22] : memref<10x80xf32, #tpu.memory_space<vmem>>, vector<10x80xf32>
    %cst_23 = arith.constant dense<0.000000e+00> : vector<48x80xf32>
    %23 = tpu.matmul %18, %22, %cst_23 {dimension_numbers = #tpu.dot_dimension_numbers<[1], [0], [0], [1], [0, 0, 1, 1], [], []>} : vector<48x10xf32>, vector<10x80xf32>, vector<48x80xf32> -> vector<48x80xf32>
    %24 = arith.mulf %21, %23 : vector<48x80xf32>
    %c0_24 = arith.constant 0 : index
    %c0_25 = arith.constant 0 : index
    %25 = vector.load %arg12[%c0_24, %c0_25] : memref<80x64xf32, #tpu.memory_space<vmem>>, vector<80x64xf32>
    %cst_26 = arith.constant dense<0.000000e+00> : vector<48x64xf32>
    %26 = tpu.matmul %24, %25, %cst_26 {dimension_numbers = #tpu.dot_dimension_numbers<[1], [0], [0], [1], [0, 0, 1, 1], [], []>} : vector<48x80xf32>, vector<80x64xf32>, vector<48x64xf32> -> vector<48x64xf32>
    %cst_27 = arith.constant dense<0.000000e+00> : vector<16x64xf32>
    %27 = tpu.matmul %2, %26, %cst_27 {dimension_numbers = #tpu.dot_dimension_numbers<[1], [0], [0], [1], [0, 0, 1, 1], [], []>} : vector<16x48xf32>, vector<48x64xf32>, vector<16x64xf32> -> vector<16x64xf32>
    %c0_28 = arith.constant 0 : index
    %c0_29 = arith.constant 0 : index
    %28 = vector.load %arg13[%c0_28, %c0_29] : memref<1x64xf32, #tpu.memory_space<vmem>>, vector<1x64xf32>
    %29 = vector.broadcast %28 : vector<1x64xf32> to vector<16x64xf32>
    %30 = arith.addf %27, %29 : vector<16x64xf32>
    %cst_30 = arith.constant 0.000000e+00 : f32
    %31 = vector.broadcast %cst_30 : f32 to vector<16x64xf32>
    %32 = arith.maximumf %30, %31 : vector<16x64xf32>
    %c0_31 = arith.constant 0 : index
    %c0_32 = arith.constant 0 : index
    %33 = vector.load %arg14[%c0_31, %c0_32] : memref<8x32xf32, #tpu.memory_space<vmem>>, vector<8x32xf32>
    %cst_33 = arith.constant dense<0.000000e+00> : vector<16x32xf32>
    %34 = tpu.matmul %3, %33, %cst_33 {dimension_numbers = #tpu.dot_dimension_numbers<[1], [0], [0], [1], [0, 0, 1, 1], [], []>} : vector<16x8xf32>, vector<8x32xf32>, vector<16x32xf32> -> vector<16x32xf32>
    %c0_34 = arith.constant 0 : index
    %c0_35 = arith.constant 0 : index
    %35 = vector.load %arg15[%c0_34, %c0_35] : memref<1x32xf32, #tpu.memory_space<vmem>>, vector<1x32xf32>
    %36 = vector.broadcast %35 : vector<1x32xf32> to vector<16x32xf32>
    %37 = arith.addf %34, %36 : vector<16x32xf32>
    %38 = math.tanh %37 : vector<16x32xf32>
    %39 = vector.extract_strided_slice %38 {offsets = [0, 0], sizes = [16, 16], strides = [1, 1]} : vector<16x32xf32> to vector<16x16xf32>
    %40 = vector.extract_strided_slice %38 {offsets = [0, 16], sizes = [16, 16], strides = [1, 1]} : vector<16x32xf32> to vector<16x16xf32>
    %41 = arith.mulf %39, %40 : vector<16x16xf32>
    %c0_36 = arith.constant 0 : index
    %c0_37 = arith.constant 0 : index
    %42 = vector.load %arg49[%c0_36, %c0_37] : memref<16x80xf32, #tpu.memory_space<vmem>>, vector<16x64xf32>
    tpu.vector_store %arg49[%c0_36, %c0_37], %32 {strides = array<i32>} : memref<16x80xf32, #tpu.memory_space<vmem>>, vector<16x64xf32>,
    %c0_38 = arith.constant 0 : index
    %c64 = arith.constant 64 : index
    %43 = vector.load %arg49[%c0_38, %c64] : memref<16x80xf32, #tpu.memory_space<vmem>>, vector<16x16xf32>
    tpu.vector_store %arg49[%c0_38, %c64], %41 {strides = array<i32>} : memref<16x80xf32, #tpu.memory_space<vmem>>, vector<16x16xf32>,
    %c0_39 = arith.constant 0 : index
    %c0_40 = arith.constant 0 : index
    %44 = vector.load %arg49[%c0_39, %c0_40] : memref<16x80xf32, #tpu.memory_space<vmem>>, vector<16x80xf32>
    %c0_41 = arith.constant 0 : index
    %c0_42 = arith.constant 0 : index
    %45 = vector.load %arg16[%c0_41, %c0_42] : memref<10x60xf32, #tpu.memory_space<vmem>>, vector<10x60xf32>
    %cst_43 = arith.constant dense<0.000000e+00> : vector<48x60xf32>
    %46 = tpu.matmul %0, %45, %cst_43 {dimension_numbers = #tpu.dot_dimension_numbers<[1], [0], [0], [1], [0, 0, 1, 1], [], []>} : vector<48x10xf32>, vector<10x60xf32>, vector<48x60xf32> -> vector<48x60xf32>
    %cst_44 = arith.constant 0.000000e+00 : f32
    %47 = vector.broadcast %cst_44 : f32 to vector<48x60xf32>
    %48 = arith.maximumf %46, %47 : vector<48x60xf32>
    %49 = vector.extract_strided_slice %48 {offsets = [0, 0], sizes = [48, 20], strides = [1, 1]} : vector<48x60xf32> to vector<48x20xf32>
    %50 = vector.extract_strided_slice %48 {offsets = [0, 20], sizes = [48, 20], strides = [1, 1]} : vector<48x60xf32> to vector<48x20xf32>
    %51 = vector.extract_strided_slice %48 {offsets = [0, 40], sizes = [48, 20], strides = [1, 1]} : vector<48x60xf32> to vector<48x20xf32>
    %52 = arith.mulf %50, %51 : vector<48x20xf32>
    %c0_45 = arith.constant 0 : index
    %c0_46 = arith.constant 0 : index
    %53 = vector.load %arg17[%c0_45, %c0_46] : memref<20x10xf32, #tpu.memory_space<vmem>>, vector<20x10xf32>
    %cst_47 = arith.constant dense<0.000000e+00> : vector<48x10xf32>
    %54 = tpu.matmul %49, %53, %cst_47 {dimension_numbers = #tpu.dot_dimension_numbers<[1], [0], [0], [1], [0, 0, 1, 1], [], []>} : vector<48x20xf32>, vector<20x10xf32>, vector<48x10xf32> -> vector<48x10xf32>
    %c0_48 = arith.constant 0 : index
    %c0_49 = arith.constant 0 : index
    %55 = vector.load %arg18[%c0_48, %c0_49] : memref<20x10xf32, #tpu.memory_space<vmem>>, vector<20x10xf32>
    %cst_50 = arith.constant dense<0.000000e+00> : vector<48x10xf32>
    %56 = tpu.matmul %52, %55, %cst_50 {dimension_numbers = #tpu.dot_dimension_numbers<[1], [0], [0], [1], [0, 0, 1, 1], [], []>} : vector<48x20xf32>, vector<20x10xf32>, vector<48x10xf32> -> vector<48x10xf32>
    %57 = arith.addf %54, %56 : vector<48x10xf32>
    %cst_51 = arith.constant 0.000000e+00 : f32
    %58 = vector.broadcast %cst_51 : f32 to vector<48x10xf32>
    %59 = arith.maximumf %57, %58 : vector<48x10xf32>
    %cst_52 = arith.constant dense<0.000000e+00> : vector<48x80xf32>
    %60 = tpu.matmul %1, %44, %cst_52 {dimension_numbers = #tpu.dot_dimension_numbers<[1], [0], [0], [1], [0, 0, 1, 1], [], []>} : vector<48x16xf32>, vector<16x80xf32>, vector<48x80xf32> -> vector<48x80xf32>
    %c0_53 = arith.constant 0 : index
    %c0_54 = arith.constant 0 : index
    %61 = vector.load %arg19[%c0_53, %c0_54] : memref<80x800xf32, #tpu.memory_space<vmem>>, vector<80x800xf32>
    %cst_55 = arith.constant dense<0.000000e+00> : vector<48x800xf32>
    %62 = tpu.matmul %60, %61, %cst_55 {dimension_numbers = #tpu.dot_dimension_numbers<[1], [0], [0], [1], [0, 0, 1, 1], [], []>} : vector<48x80xf32>, vector<80x800xf32>, vector<48x800xf32> -> vector<48x800xf32>
    %c0_56 = arith.constant 0 : index
    %c0_57 = arith.constant 0 : index
    %63 = vector.load %arg20[%c0_56, %c0_57] : memref<10x800xf32, #tpu.memory_space<vmem>>, vector<10x800xf32>
    %cst_58 = arith.constant dense<0.000000e+00> : vector<48x800xf32>
    %64 = tpu.matmul %59, %63, %cst_58 {dimension_numbers = #tpu.dot_dimension_numbers<[1], [0], [0], [1], [0, 0, 1, 1], [], []>} : vector<48x10xf32>, vector<10x800xf32>, vector<48x800xf32> -> vector<48x800xf32>
    %65 = arith.mulf %62, %64 : vector<48x800xf32>
    %c0_59 = arith.constant 0 : index
    %c0_60 = arith.constant 0 : index
    %66 = vector.load %arg21[%c0_59, %c0_60] : memref<800x64xf32, #tpu.memory_space<vmem>>, vector<800x64xf32>
    %cst_61 = arith.constant dense<0.000000e+00> : vector<48x64xf32>
    %67 = tpu.matmul %65, %66, %cst_61 {dimension_numbers = #tpu.dot_dimension_numbers<[1], [0], [0], [1], [0, 0, 1, 1], [], []>} : vector<48x800xf32>, vector<800x64xf32>, vector<48x64xf32> -> vector<48x64xf32>
    %cst_62 = arith.constant dense<0.000000e+00> : vector<16x64xf32>
    %68 = tpu.matmul %2, %67, %cst_62 {dimension_numbers = #tpu.dot_dimension_numbers<[1], [0], [0], [1], [0, 0, 1, 1], [], []>} : vector<16x48xf32>, vector<48x64xf32>, vector<16x64xf32> -> vector<16x64xf32>
    %c0_63 = arith.constant 0 : index
    %c0_64 = arith.constant 0 : index
    %69 = vector.load %arg22[%c0_63, %c0_64] : memref<1x64xf32, #tpu.memory_space<vmem>>, vector<1x64xf32>
    %70 = vector.broadcast %69 : vector<1x64xf32> to vector<16x64xf32>
    %71 = arith.addf %68, %70 : vector<16x64xf32>
    %cst_65 = arith.constant 0.000000e+00 : f32
    %72 = vector.broadcast %cst_65 : f32 to vector<16x64xf32>
    %73 = arith.maximumf %71, %72 : vector<16x64xf32>
    %c0_66 = arith.constant 0 : index
    %c0_67 = arith.constant 0 : index
    %74 = vector.load %arg23[%c0_66, %c0_67] : memref<80x32xf32, #tpu.memory_space<vmem>>, vector<80x32xf32>
    %cst_68 = arith.constant dense<0.000000e+00> : vector<16x32xf32>
    %75 = tpu.matmul %44, %74, %cst_68 {dimension_numbers = #tpu.dot_dimension_numbers<[1], [0], [0], [1], [0, 0, 1, 1], [], []>} : vector<16x80xf32>, vector<80x32xf32>, vector<16x32xf32> -> vector<16x32xf32>
    %c0_69 = arith.constant 0 : index
    %c0_70 = arith.constant 0 : index
    %76 = vector.load %arg24[%c0_69, %c0_70] : memref<1x32xf32, #tpu.memory_space<vmem>>, vector<1x32xf32>
    %77 = vector.broadcast %76 : vector<1x32xf32> to vector<16x32xf32>
    %78 = arith.addf %75, %77 : vector<16x32xf32>
    %79 = math.tanh %78 : vector<16x32xf32>
    %80 = vector.extract_strided_slice %79 {offsets = [0, 0], sizes = [16, 16], strides = [1, 1]} : vector<16x32xf32> to vector<16x16xf32>
    %81 = vector.extract_strided_slice %79 {offsets = [0, 16], sizes = [16, 16], strides = [1, 1]} : vector<16x32xf32> to vector<16x16xf32>
    %82 = arith.mulf %80, %81 : vector<16x16xf32>
    %c0_71 = arith.constant 0 : index
    %c0_72 = arith.constant 0 : index
    %83 = vector.load %arg49[%c0_71, %c0_72] : memref<16x80xf32, #tpu.memory_space<vmem>>, vector<16x64xf32>
    tpu.vector_store %arg49[%c0_71, %c0_72], %73 {strides = array<i32>} : memref<16x80xf32, #tpu.memory_space<vmem>>, vector<16x64xf32>,
    %c0_73 = arith.constant 0 : index
    %c64_74 = arith.constant 64 : index
    %84 = vector.load %arg49[%c0_73, %c64_74] : memref<16x80xf32, #tpu.memory_space<vmem>>, vector<16x16xf32>
    tpu.vector_store %arg49[%c0_73, %c64_74], %82 {strides = array<i32>} : memref<16x80xf32, #tpu.memory_space<vmem>>, vector<16x16xf32>,
    %c0_75 = arith.constant 0 : index
    %c0_76 = arith.constant 0 : index
    %85 = vector.load %arg49[%c0_75, %c0_76] : memref<16x80xf32, #tpu.memory_space<vmem>>, vector<16x80xf32>
    %c0_77 = arith.constant 0 : index
    %c0_78 = arith.constant 0 : index
    %86 = vector.load %arg25[%c0_77, %c0_78] : memref<10x60xf32, #tpu.memory_space<vmem>>, vector<10x60xf32>
    %cst_79 = arith.constant dense<0.000000e+00> : vector<48x60xf32>
    %87 = tpu.matmul %0, %86, %cst_79 {dimension_numbers = #tpu.dot_dimension_numbers<[1], [0], [0], [1], [0, 0, 1, 1], [], []>} : vector<48x10xf32>, vector<10x60xf32>, vector<48x60xf32> -> vector<48x60xf32>
    %cst_80 = arith.constant 0.000000e+00 : f32
    %88 = vector.broadcast %cst_80 : f32 to vector<48x60xf32>
    %89 = arith.maximumf %87, %88 : vector<48x60xf32>
    %90 = vector.extract_strided_slice %89 {offsets = [0, 0], sizes = [48, 20], strides = [1, 1]} : vector<48x60xf32> to vector<48x20xf32>
    %91 = vector.extract_strided_slice %89 {offsets = [0, 20], sizes = [48, 20], strides = [1, 1]} : vector<48x60xf32> to vector<48x20xf32>
    %92 = vector.extract_strided_slice %89 {offsets = [0, 40], sizes = [48, 20], strides = [1, 1]} : vector<48x60xf32> to vector<48x20xf32>
    %93 = arith.mulf %91, %92 : vector<48x20xf32>
    %c0_81 = arith.constant 0 : index
    %c0_82 = arith.constant 0 : index
    %94 = vector.load %arg26[%c0_81, %c0_82] : memref<20x10xf32, #tpu.memory_space<vmem>>, vector<20x10xf32>
    %cst_83 = arith.constant dense<0.000000e+00> : vector<48x10xf32>
    %95 = tpu.matmul %90, %94, %cst_83 {dimension_numbers = #tpu.dot_dimension_numbers<[1], [0], [0], [1], [0, 0, 1, 1], [], []>} : vector<48x20xf32>, vector<20x10xf32>, vector<48x10xf32> -> vector<48x10xf32>
    %c0_84 = arith.constant 0 : index
    %c0_85 = arith.constant 0 : index
    %96 = vector.load %arg27[%c0_84, %c0_85] : memref<20x10xf32, #tpu.memory_space<vmem>>, vector<20x10xf32>
    %cst_86 = arith.constant dense<0.000000e+00> : vector<48x10xf32>
    %97 = tpu.matmul %93, %96, %cst_86 {dimension_numbers = #tpu.dot_dimension_numbers<[1], [0], [0], [1], [0, 0, 1, 1], [], []>} : vector<48x20xf32>, vector<20x10xf32>, vector<48x10xf32> -> vector<48x10xf32>
    %98 = arith.addf %95, %97 : vector<48x10xf32>
    %cst_87 = arith.constant 0.000000e+00 : f32
    %99 = vector.broadcast %cst_87 : f32 to vector<48x10xf32>
    %100 = arith.maximumf %98, %99 : vector<48x10xf32>
    %cst_88 = arith.constant dense<0.000000e+00> : vector<48x80xf32>
    %101 = tpu.matmul %1, %85, %cst_88 {dimension_numbers = #tpu.dot_dimension_numbers<[1], [0], [0], [1], [0, 0, 1, 1], [], []>} : vector<48x16xf32>, vector<16x80xf32>, vector<48x80xf32> -> vector<48x80xf32>
    %c0_89 = arith.constant 0 : index
    %c0_90 = arith.constant 0 : index
    %102 = vector.load %arg28[%c0_89, %c0_90] : memref<80x800xf32, #tpu.memory_space<vmem>>, vector<80x800xf32>
    %cst_91 = arith.constant dense<0.000000e+00> : vector<48x800xf32>
    %103 = tpu.matmul %101, %102, %cst_91 {dimension_numbers = #tpu.dot_dimension_numbers<[1], [0], [0], [1], [0, 0, 1, 1], [], []>} : vector<48x80xf32>, vector<80x800xf32>, vector<48x800xf32> -> vector<48x800xf32>
    %c0_92 = arith.constant 0 : index
    %c0_93 = arith.constant 0 : index
    %104 = vector.load %arg29[%c0_92, %c0_93] : memref<10x800xf32, #tpu.memory_space<vmem>>, vector<10x800xf32>
    %cst_94 = arith.constant dense<0.000000e+00> : vector<48x800xf32>
    %105 = tpu.matmul %100, %104, %cst_94 {dimension_numbers = #tpu.dot_dimension_numbers<[1], [0], [0], [1], [0, 0, 1, 1], [], []>} : vector<48x10xf32>, vector<10x800xf32>, vector<48x800xf32> -> vector<48x800xf32>
    %106 = arith.mulf %103, %105 : vector<48x800xf32>
    %c0_95 = arith.constant 0 : index
    %c0_96 = arith.constant 0 : index
    %107 = vector.load %arg30[%c0_95, %c0_96] : memref<800x64xf32, #tpu.memory_space<vmem>>, vector<800x64xf32>
    %cst_97 = arith.constant dense<0.000000e+00> : vector<48x64xf32>
    %108 = tpu.matmul %106, %107, %cst_97 {dimension_numbers = #tpu.dot_dimension_numbers<[1], [0], [0], [1], [0, 0, 1, 1], [], []>} : vector<48x800xf32>, vector<800x64xf32>, vector<48x64xf32> -> vector<48x64xf32>
    %cst_98 = arith.constant dense<0.000000e+00> : vector<16x64xf32>
    %109 = tpu.matmul %2, %108, %cst_98 {dimension_numbers = #tpu.dot_dimension_numbers<[1], [0], [0], [1], [0, 0, 1, 1], [], []>} : vector<16x48xf32>, vector<48x64xf32>, vector<16x64xf32> -> vector<16x64xf32>
    %c0_99 = arith.constant 0 : index
    %c0_100 = arith.constant 0 : index
    %110 = vector.load %arg31[%c0_99, %c0_100] : memref<1x64xf32, #tpu.memory_space<vmem>>, vector<1x64xf32>
    %111 = vector.broadcast %110 : vector<1x64xf32> to vector<16x64xf32>
    %112 = arith.addf %109, %111 : vector<16x64xf32>
    %cst_101 = arith.constant 0.000000e+00 : f32
    %113 = vector.broadcast %cst_101 : f32 to vector<16x64xf32>
    %114 = arith.maximumf %112, %113 : vector<16x64xf32>
    %c0_102 = arith.constant 0 : index
    %c0_103 = arith.constant 0 : index
    %115 = vector.load %arg32[%c0_102, %c0_103] : memref<80x32xf32, #tpu.memory_space<vmem>>, vector<80x32xf32>
    %cst_104 = arith.constant dense<0.000000e+00> : vector<16x32xf32>
    %116 = tpu.matmul %85, %115, %cst_104 {dimension_numbers = #tpu.dot_dimension_numbers<[1], [0], [0], [1], [0, 0, 1, 1], [], []>} : vector<16x80xf32>, vector<80x32xf32>, vector<16x32xf32> -> vector<16x32xf32>
    %c0_105 = arith.constant 0 : index
    %c0_106 = arith.constant 0 : index
    %117 = vector.load %arg33[%c0_105, %c0_106] : memref<1x32xf32, #tpu.memory_space<vmem>>, vector<1x32xf32>
    %118 = vector.broadcast %117 : vector<1x32xf32> to vector<16x32xf32>
    %119 = arith.addf %116, %118 : vector<16x32xf32>
    %120 = math.tanh %119 : vector<16x32xf32>
    %121 = vector.extract_strided_slice %120 {offsets = [0, 0], sizes = [16, 16], strides = [1, 1]} : vector<16x32xf32> to vector<16x16xf32>
    %122 = vector.extract_strided_slice %120 {offsets = [0, 16], sizes = [16, 16], strides = [1, 1]} : vector<16x32xf32> to vector<16x16xf32>
    %123 = arith.mulf %121, %122 : vector<16x16xf32>
    %c0_107 = arith.constant 0 : index
    %c0_108 = arith.constant 0 : index
    %124 = vector.load %arg49[%c0_107, %c0_108] : memref<16x80xf32, #tpu.memory_space<vmem>>, vector<16x64xf32>
    tpu.vector_store %arg49[%c0_107, %c0_108], %114 {strides = array<i32>} : memref<16x80xf32, #tpu.memory_space<vmem>>, vector<16x64xf32>,
    %c0_109 = arith.constant 0 : index
    %c64_110 = arith.constant 64 : index
    %125 = vector.load %arg49[%c0_109, %c64_110] : memref<16x80xf32, #tpu.memory_space<vmem>>, vector<16x16xf32>
    tpu.vector_store %arg49[%c0_109, %c64_110], %123 {strides = array<i32>} : memref<16x80xf32, #tpu.memory_space<vmem>>, vector<16x16xf32>,
    %c0_111 = arith.constant 0 : index
    %c0_112 = arith.constant 0 : index
    %126 = vector.load %arg49[%c0_111, %c0_112] : memref<16x80xf32, #tpu.memory_space<vmem>>, vector<16x80xf32>
    %c0_113 = arith.constant 0 : index
    %c0_114 = arith.constant 0 : index
    %127 = vector.load %arg34[%c0_113, %c0_114] : memref<10x60xf32, #tpu.memory_space<vmem>>, vector<10x60xf32>
    %cst_115 = arith.constant dense<0.000000e+00> : vector<48x60xf32>
    %128 = tpu.matmul %0, %127, %cst_115 {dimension_numbers = #tpu.dot_dimension_numbers<[1], [0], [0], [1], [0, 0, 1, 1], [], []>} : vector<48x10xf32>, vector<10x60xf32>, vector<48x60xf32> -> vector<48x60xf32>
    %cst_116 = arith.constant 0.000000e+00 : f32
    %129 = vector.broadcast %cst_116 : f32 to vector<48x60xf32>
    %130 = arith.maximumf %128, %129 : vector<48x60xf32>
    %131 = vector.extract_strided_slice %130 {offsets = [0, 0], sizes = [48, 20], strides = [1, 1]} : vector<48x60xf32> to vector<48x20xf32>
    %132 = vector.extract_strided_slice %130 {offsets = [0, 20], sizes = [48, 20], strides = [1, 1]} : vector<48x60xf32> to vector<48x20xf32>
    %133 = vector.extract_strided_slice %130 {offsets = [0, 40], sizes = [48, 20], strides = [1, 1]} : vector<48x60xf32> to vector<48x20xf32>
    %134 = arith.mulf %132, %133 : vector<48x20xf32>
    %c0_117 = arith.constant 0 : index
    %c0_118 = arith.constant 0 : index
    %135 = vector.load %arg35[%c0_117, %c0_118] : memref<20x10xf32, #tpu.memory_space<vmem>>, vector<20x10xf32>
    %cst_119 = arith.constant dense<0.000000e+00> : vector<48x10xf32>
    %136 = tpu.matmul %131, %135, %cst_119 {dimension_numbers = #tpu.dot_dimension_numbers<[1], [0], [0], [1], [0, 0, 1, 1], [], []>} : vector<48x20xf32>, vector<20x10xf32>, vector<48x10xf32> -> vector<48x10xf32>
    %c0_120 = arith.constant 0 : index
    %c0_121 = arith.constant 0 : index
    %137 = vector.load %arg36[%c0_120, %c0_121] : memref<20x10xf32, #tpu.memory_space<vmem>>, vector<20x10xf32>
    %cst_122 = arith.constant dense<0.000000e+00> : vector<48x10xf32>
    %138 = tpu.matmul %134, %137, %cst_122 {dimension_numbers = #tpu.dot_dimension_numbers<[1], [0], [0], [1], [0, 0, 1, 1], [], []>} : vector<48x20xf32>, vector<20x10xf32>, vector<48x10xf32> -> vector<48x10xf32>
    %139 = arith.addf %136, %138 : vector<48x10xf32>
    %cst_123 = arith.constant 0.000000e+00 : f32
    %140 = vector.broadcast %cst_123 : f32 to vector<48x10xf32>
    %141 = arith.maximumf %139, %140 : vector<48x10xf32>
    %cst_124 = arith.constant dense<0.000000e+00> : vector<48x80xf32>
    %142 = tpu.matmul %1, %126, %cst_124 {dimension_numbers = #tpu.dot_dimension_numbers<[1], [0], [0], [1], [0, 0, 1, 1], [], []>} : vector<48x16xf32>, vector<16x80xf32>, vector<48x80xf32> -> vector<48x80xf32>
    %c0_125 = arith.constant 0 : index
    %c0_126 = arith.constant 0 : index
    %143 = vector.load %arg37[%c0_125, %c0_126] : memref<80x800xf32, #tpu.memory_space<vmem>>, vector<80x800xf32>
    %cst_127 = arith.constant dense<0.000000e+00> : vector<48x800xf32>
    %144 = tpu.matmul %142, %143, %cst_127 {dimension_numbers = #tpu.dot_dimension_numbers<[1], [0], [0], [1], [0, 0, 1, 1], [], []>} : vector<48x80xf32>, vector<80x800xf32>, vector<48x800xf32> -> vector<48x800xf32>
    %c0_128 = arith.constant 0 : index
    %c0_129 = arith.constant 0 : index
    %145 = vector.load %arg38[%c0_128, %c0_129] : memref<10x800xf32, #tpu.memory_space<vmem>>, vector<10x800xf32>
    %cst_130 = arith.constant dense<0.000000e+00> : vector<48x800xf32>
    %146 = tpu.matmul %141, %145, %cst_130 {dimension_numbers = #tpu.dot_dimension_numbers<[1], [0], [0], [1], [0, 0, 1, 1], [], []>} : vector<48x10xf32>, vector<10x800xf32>, vector<48x800xf32> -> vector<48x800xf32>
    %147 = arith.mulf %144, %146 : vector<48x800xf32>
    %c0_131 = arith.constant 0 : index
    %c0_132 = arith.constant 0 : index
    %148 = vector.load %arg39[%c0_131, %c0_132] : memref<800x64xf32, #tpu.memory_space<vmem>>, vector<800x64xf32>
    %cst_133 = arith.constant dense<0.000000e+00> : vector<48x64xf32>
    %149 = tpu.matmul %147, %148, %cst_133 {dimension_numbers = #tpu.dot_dimension_numbers<[1], [0], [0], [1], [0, 0, 1, 1], [], []>} : vector<48x800xf32>, vector<800x64xf32>, vector<48x64xf32> -> vector<48x64xf32>
    %cst_134 = arith.constant dense<0.000000e+00> : vector<16x64xf32>
    %150 = tpu.matmul %2, %149, %cst_134 {dimension_numbers = #tpu.dot_dimension_numbers<[1], [0], [0], [1], [0, 0, 1, 1], [], []>} : vector<16x48xf32>, vector<48x64xf32>, vector<16x64xf32> -> vector<16x64xf32>
    %c0_135 = arith.constant 0 : index
    %c0_136 = arith.constant 0 : index
    %151 = vector.load %arg40[%c0_135, %c0_136] : memref<1x64xf32, #tpu.memory_space<vmem>>, vector<1x64xf32>
    %152 = vector.broadcast %151 : vector<1x64xf32> to vector<16x64xf32>
    %153 = arith.addf %150, %152 : vector<16x64xf32>
    %cst_137 = arith.constant 0.000000e+00 : f32
    %154 = vector.broadcast %cst_137 : f32 to vector<16x64xf32>
    %155 = arith.maximumf %153, %154 : vector<16x64xf32>
    %c0_138 = arith.constant 0 : index
    %c0_139 = arith.constant 0 : index
    %156 = vector.load %arg41[%c0_138, %c0_139] : memref<80x32xf32, #tpu.memory_space<vmem>>, vector<80x32xf32>
    %cst_140 = arith.constant dense<0.000000e+00> : vector<16x32xf32>
    %157 = tpu.matmul %126, %156, %cst_140 {dimension_numbers = #tpu.dot_dimension_numbers<[1], [0], [0], [1], [0, 0, 1, 1], [], []>} : vector<16x80xf32>, vector<80x32xf32>, vector<16x32xf32> -> vector<16x32xf32>
    %c0_141 = arith.constant 0 : index
    %c0_142 = arith.constant 0 : index
    %158 = vector.load %arg42[%c0_141, %c0_142] : memref<1x32xf32, #tpu.memory_space<vmem>>, vector<1x32xf32>
    %159 = vector.broadcast %158 : vector<1x32xf32> to vector<16x32xf32>
    %160 = arith.addf %157, %159 : vector<16x32xf32>
    %161 = math.tanh %160 : vector<16x32xf32>
    %162 = vector.extract_strided_slice %161 {offsets = [0, 0], sizes = [16, 16], strides = [1, 1]} : vector<16x32xf32> to vector<16x16xf32>
    %163 = vector.extract_strided_slice %161 {offsets = [0, 16], sizes = [16, 16], strides = [1, 1]} : vector<16x32xf32> to vector<16x16xf32>
    %164 = arith.mulf %162, %163 : vector<16x16xf32>
    %c0_143 = arith.constant 0 : index
    %c0_144 = arith.constant 0 : index
    %165 = vector.load %arg49[%c0_143, %c0_144] : memref<16x80xf32, #tpu.memory_space<vmem>>, vector<16x64xf32>
    tpu.vector_store %arg49[%c0_143, %c0_144], %155 {strides = array<i32>} : memref<16x80xf32, #tpu.memory_space<vmem>>, vector<16x64xf32>,
    %c0_145 = arith.constant 0 : index
    %c64_146 = arith.constant 64 : index
    %166 = vector.load %arg49[%c0_145, %c64_146] : memref<16x80xf32, #tpu.memory_space<vmem>>, vector<16x16xf32>
    tpu.vector_store %arg49[%c0_145, %c64_146], %164 {strides = array<i32>} : memref<16x80xf32, #tpu.memory_space<vmem>>, vector<16x16xf32>,
    %c0_147 = arith.constant 0 : index
    %c0_148 = arith.constant 0 : index
    %167 = vector.load %arg49[%c0_147, %c0_148] : memref<16x80xf32, #tpu.memory_space<vmem>>, vector<16x80xf32>
    %c0_149 = arith.constant 0 : index
    %c0_150 = arith.constant 0 : index
    %168 = vector.load %arg4[%c0_149, %c0_150] : memref<2x16xf32, #tpu.memory_space<vmem>>, vector<2x16xf32>
    %c0_151 = arith.constant 0 : index
    %c0_152 = arith.constant 0 : index
    %169 = vector.load %arg5[%c0_151, %c0_152] : memref<16x2xf32, #tpu.memory_space<vmem>>, vector<16x2xf32>
    %cst_153 = arith.constant dense<0.000000e+00> : vector<2x80xf32>
    %170 = tpu.matmul %168, %167, %cst_153 {dimension_numbers = #tpu.dot_dimension_numbers<[1], [0], [0], [1], [0, 0, 1, 1], [], []>} : vector<2x16xf32>, vector<16x80xf32>, vector<2x80xf32> -> vector<2x80xf32>
    %c0_154 = arith.constant 0 : index
    %c0_155 = arith.constant 0 : index
    %171 = vector.load %arg6[%c0_154, %c0_155] : memref<2x1xf32, #tpu.memory_space<vmem>>, vector<2x1xf32>
    %172 = vector.broadcast %171 : vector<2x1xf32> to vector<2x80xf32>
    %173 = arith.mulf %170, %172 : vector<2x80xf32>
    %174 = vector.extract_strided_slice %169 {offsets = [0, 0], sizes = [16, 1], strides = [1, 1]} : vector<16x2xf32> to vector<16x1xf32>
    %cst_156 = arith.constant 5.000000e-01 : f32
    %175 = vector.broadcast %cst_156 : f32 to vector<16x1xf32>
    %176 = arith.cmpf ogt, %174, %175 : vector<16x1xf32>
    %cst_157 = arith.constant 0xFF800000 : f32
    %177 = vector.shape_cast %176 : vector<16x1xi1> to vector<16x1xi1>
    %178 = vector.broadcast %177 : vector<16x1xi1> to vector<16x80xi1>
    %179 = vector.broadcast %cst_157 : f32 to vector<16x80xf32>
    %180 = arith.select %178, %167, %179 : vector<16x80xi1>, vector<16x80xf32>
    %cst_158 = arith.constant dense<0xFF800000> : vector<80xf32>
    %181 = vector.multi_reduction <maximumf>, %180, %cst_158 [0] : vector<16x80xf32> to vector<80xf32>
    %182 = vector.shape_cast %181 : vector<80xf32> to vector<1x80xf32>
    %183 = vector.extract_strided_slice %169 {offsets = [0, 1], sizes = [16, 1], strides = [1, 1]} : vector<16x2xf32> to vector<16x1xf32>
    %cst_159 = arith.constant 5.000000e-01 : f32
    %184 = vector.broadcast %cst_159 : f32 to vector<16x1xf32>
    %185 = arith.cmpf ogt, %183, %184 : vector<16x1xf32>
    %cst_160 = arith.constant 0xFF800000 : f32
    %186 = vector.shape_cast %185 : vector<16x1xi1> to vector<16x1xi1>
    %187 = vector.broadcast %186 : vector<16x1xi1> to vector<16x80xi1>
    %188 = vector.broadcast %cst_160 : f32 to vector<16x80xf32>
    %189 = arith.select %187, %167, %188 : vector<16x80xi1>, vector<16x80xf32>
    %cst_161 = arith.constant dense<0xFF800000> : vector<80xf32>
    %190 = vector.multi_reduction <maximumf>, %189, %cst_161 [0] : vector<16x80xf32> to vector<80xf32>
    %191 = vector.shape_cast %190 : vector<80xf32> to vector<1x80xf32>
    %192 = tpu.concatenate %182, %191 in 0 : vector<1x80xf32>, vector<1x80xf32> -> vector<2x80xf32>
    %c0_162 = arith.constant 0 : index
    %c0_163 = arith.constant 0 : index
    %193 = vector.load %arg43[%c0_162, %c0_163] : memref<80x100xf32, #tpu.memory_space<vmem>>, vector<80x100xf32>
    %cst_164 = arith.constant dense<0.000000e+00> : vector<2x100xf32>
    %194 = tpu.matmul %173, %193, %cst_164 {dimension_numbers = #tpu.dot_dimension_numbers<[1], [0], [0], [1], [0, 0, 1, 1], [], []>} : vector<2x80xf32>, vector<80x100xf32>, vector<2x100xf32> -> vector<2x100xf32>
    %c0_165 = arith.constant 0 : index
    %c0_166 = arith.constant 0 : index
    %195 = vector.load %arg44[%c0_165, %c0_166] : memref<80x100xf32, #tpu.memory_space<vmem>>, vector<80x100xf32>
    %cst_167 = arith.constant dense<0.000000e+00> : vector<2x100xf32>
    %196 = tpu.matmul %192, %195, %cst_167 {dimension_numbers = #tpu.dot_dimension_numbers<[1], [0], [0], [1], [0, 0, 1, 1], [], []>} : vector<2x80xf32>, vector<80x100xf32>, vector<2x100xf32> -> vector<2x100xf32>
    %197 = arith.addf %194, %196 : vector<2x100xf32>
    %c0_168 = arith.constant 0 : index
    %c0_169 = arith.constant 0 : index
    %198 = vector.load %arg45[%c0_168, %c0_169] : memref<1x100xf32, #tpu.memory_space<vmem>>, vector<1x100xf32>
    %199 = vector.broadcast %198 : vector<1x100xf32> to vector<2x100xf32>
    %200 = arith.addf %197, %199 : vector<2x100xf32>
    %cst_170 = arith.constant 0.000000e+00 : f32
    %201 = vector.broadcast %cst_170 : f32 to vector<2x100xf32>
    %202 = arith.maximumf %200, %201 : vector<2x100xf32>
    %c0_171 = arith.constant 0 : index
    %c0_172 = arith.constant 0 : index
    %203 = vector.load %arg46[%c0_171, %c0_172] : memref<100x2xf32, #tpu.memory_space<vmem>>, vector<100x2xf32>
    %cst_173 = arith.constant dense<0.000000e+00> : vector<2x2xf32>
    %204 = tpu.matmul %202, %203, %cst_173 {dimension_numbers = #tpu.dot_dimension_numbers<[1], [0], [0], [1], [0, 0, 1, 1], [], []>} : vector<2x100xf32>, vector<100x2xf32>, vector<2x2xf32> -> vector<2x2xf32>
    %c0_174 = arith.constant 0 : index
    %c0_175 = arith.constant 0 : index
    %205 = vector.load %arg47[%c0_174, %c0_175] : memref<1x2xf32, #tpu.memory_space<vmem>>, vector<1x2xf32>
    %206 = vector.broadcast %205 : vector<1x2xf32> to vector<2x2xf32>
    %207 = arith.addf %204, %206 : vector<2x2xf32>
    %cst_176 = arith.constant dense<0xFF800000> : vector<2xf32>
    %208 = vector.multi_reduction <maximumf>, %207, %cst_176 [1] : vector<2x2xf32> to vector<2xf32>
    %209 = vector.shape_cast %208 : vector<2xf32> to vector<2x1xf32>
    %210 = vector.broadcast %209 : vector<2x1xf32> to vector<2x2xf32>
    %211 = arith.subf %207, %210 : vector<2x2xf32>
    %212 = math.exp %211 : vector<2x2xf32>
    %cst_177 = arith.constant dense<0.000000e+00> : vector<2xf32>
    %213 = vector.multi_reduction <add>, %212, %cst_177 [1] : vector<2x2xf32> to vector<2xf32>
    %214 = vector.shape_cast %213 : vector<2xf32> to vector<2x1xf32>
    %215 = math.log %214 : vector<2x1xf32>
    %216 = arith.addf %209, %215 : vector<2x1xf32>
    %217 = vector.broadcast %216 : vector<2x1xf32> to vector<2x2xf32>
    %218 = arith.subf %207, %217 : vector<2x2xf32>
    %c0_178 = arith.constant 0 : index
    %c0_179 = arith.constant 0 : index
    %219 = vector.load %arg48[%c0_178, %c0_179] : memref<2x2xf32, #tpu.memory_space<vmem>>, vector<2x2xf32>
    tpu.vector_store %arg48[%c0_178, %c0_179], %218 {strides = array<i32>} : memref<2x2xf32, #tpu.memory_space<vmem>>, vector<2x2xf32>,
    return
  }
}

</mosaic_0001>

<llo_original>
// kernel: gnnml3_forward.1
$region0: #{gnnml3_forward.1}
  #allocation0 [shape = 'u32[]', space=smem, size = 0x4, offset = 0x4, fixed_abs, tag = 'smem constant byte address 0x4 - core index']
  #allocation1 [shape = 'u32[144,128]{1,0:T(1,128)}', space=vmem, size = 0x12000, scoped, tag = 'internal scratch']
  #allocation2 [shape = 'f32[16,80]{1,0:T(8,128)}', space=vmem, size = 0x2000, scoped, tag = 'scratch operand']
  %s0 = inlined_call_operand.smem [shape: u32[49], index: -1, kind: input, shape index: {}]
  %s1 = sld [smem:[%s0]]
  %s2 = scalar_lea.smem %s0, 1
  %s3 = sld [smem:[%s2]]
  %s4 = scalar_lea.smem %s0, 2
  %s5 = sld [smem:[%s4]]
  %s6 = scalar_lea.smem %s0, 3
  %s7 = sld [smem:[%s6]]
  %s8 = scalar_lea.smem %s0, 4
  %s9 = sld [smem:[%s8]]
  %s10 = scalar_lea.smem %s0, 5
  %s11 = sld [smem:[%s10]]
  %s12 = scalar_lea.smem %s0, 6
  %s13 = sld [smem:[%s12]]
  %s14 = scalar_lea.smem %s0, 7
  %s15 = sld [smem:[%s14]]
  %s16 = scalar_lea.smem %s0, 8
  %s17 = sld [smem:[%s16]]
  %s18 = scalar_lea.smem %s0, 9
  %s19 = sld [smem:[%s18]]
  %s20 = scalar_lea.smem %s0, 10
  %s21 = sld [smem:[%s20]]
  %s22 = scalar_lea.smem %s0, 11
  %s23 = sld [smem:[%s22]]
  %s24 = scalar_lea.smem %s0, 12
  %s25 = sld [smem:[%s24]]
  %s26 = scalar_lea.smem %s0, 13
  %s27 = sld [smem:[%s26]]
  %s28 = scalar_lea.smem %s0, 14
  %s29 = sld [smem:[%s28]]
  %s30 = scalar_lea.smem %s0, 15
  %s31 = sld [smem:[%s30]]
  %s32 = scalar_lea.smem %s0, 16
  %s33 = sld [smem:[%s32]]
  %s34 = scalar_lea.smem %s0, 17
  %s35 = sld [smem:[%s34]]
  %s36 = scalar_lea.smem %s0, 18
  %s37 = sld [smem:[%s36]]
  %s38 = scalar_lea.smem %s0, 19
  %s39 = sld [smem:[%s38]]
  %s40 = scalar_lea.smem %s0, 20
  %s41 = sld [smem:[%s40]]
  %s42 = scalar_lea.smem %s0, 21
  %s43 = sld [smem:[%s42]]
  %s44 = scalar_lea.smem %s0, 22
  %s45 = sld [smem:[%s44]]
  %s46 = scalar_lea.smem %s0, 23
  %s47 = sld [smem:[%s46]]
  %s48 = scalar_lea.smem %s0, 24
  %s49 = sld [smem:[%s48]]
  %s50 = scalar_lea.smem %s0, 25
  %s51 = sld [smem:[%s50]]
  %s52 = scalar_lea.smem %s0, 26
  %s53 = sld [smem:[%s52]]
  %s54 = scalar_lea.smem %s0, 27
  %s55 = sld [smem:[%s54]]
  %s56 = scalar_lea.smem %s0, 28
  %s57 = sld [smem:[%s56]]
  %s58 = scalar_lea.smem %s0, 29
  %s59 = sld [smem:[%s58]]
  %s60 = scalar_lea.smem %s0, 30
  %s61 = sld [smem:[%s60]]
  %s62 = scalar_lea.smem %s0, 31
  %s63 = sld [smem:[%s62]]
  %s64 = scalar_lea.smem %s0, 32
  %s65 = sld [smem:[%s64]]
  %s66 = scalar_lea.smem %s0, 33
  %s67 = sld [smem:[%s66]]
  %s68 = scalar_lea.smem %s0, 34
  %s69 = sld [smem:[%s68]]
  %s70 = scalar_lea.smem %s0, 35
  %s71 = sld [smem:[%s70]]
  %s72 = scalar_lea.smem %s0, 36
  %s73 = sld [smem:[%s72]]
  %s74 = scalar_lea.smem %s0, 37
  %s75 = sld [smem:[%s74]]
  %s76 = scalar_lea.smem %s0, 38
  %s77 = sld [smem:[%s76]]
  %s78 = scalar_lea.smem %s0, 39
  %s79 = sld [smem:[%s78]]
  %s80 = scalar_lea.smem %s0, 40
  %s81 = sld [smem:[%s80]]
  %s82 = scalar_lea.smem %s0, 41
  %s83 = sld [smem:[%s82]]
  %s84 = scalar_lea.smem %s0, 42
  %s85 = sld [smem:[%s84]]
  %s86 = scalar_lea.smem %s0, 43
  %s87 = sld [smem:[%s86]]
  %s88 = scalar_lea.smem %s0, 44
  %s89 = sld [smem:[%s88]]
  %s90 = scalar_lea.smem %s0, 45
  %s91 = sld [smem:[%s90]]
  %s92 = scalar_lea.smem %s0, 46
  %s93 = sld [smem:[%s92]]
  %s94 = scalar_lea.smem %s0, 47
  %s95 = sld [smem:[%s94]]
  %s96 = scalar_lea.smem %s0, 48
  %s97 = sld [smem:[%s96]]
  %s98 = sld [smem:[#allocation0]]
  $region202: #{gnnml3_forward.1} parent=0
    _
  %s100 = ssub.s32 1, %s98
  %s101 = scalar_select 0, %s100, %s98
  $region1: #{gnnml3_forward.1} parent=0
    #allocation3 [shape = 'u8[1024]{0}', space=vmem, size = 0x400, scoped, tag = 'output window, operand 0, single buffered']
    #allocation4 [shape = 's32[1]{0}', space=sflag, size = 0x4, scoped, tag = 'scoped memory for gnnml3_forward.1']
    %102 = vsyncpa [#allocation4], 0
    // Predicated region
    $region2: #{gnnml3_forward.1} parent=1 // pred_check
      _
    $region3: #{gnnml3_forward.1} parent=1 // pred_check_branch
      %104 = sbr.rel (0) target = $region5
    $region4: #{gnnml3_forward.1} parent=1 // pred_region
      _
    $region5: #{gnnml3_forward.1} parent=1 // pred_fallthru
      _
    // Predicated region
    $region6: #{gnnml3_forward.1} parent=1 // pred_check
      _
    $region7: #{gnnml3_forward.1} parent=1 // pred_check_branch
      %106 = sbr.rel (0) target = $region9
    $region8: #{gnnml3_forward.1} parent=1 // pred_region
      _
    $region9: #{gnnml3_forward.1} parent=1 // pred_fallthru
      _
    // Predicated region
    $region10: #{gnnml3_forward.1} parent=1 // pred_check
      _
    $region11: #{gnnml3_forward.1} parent=1 // pred_check_branch
      %108 = sbr.rel (0) target = $region13
    $region12: #{gnnml3_forward.1} parent=1 // pred_region
      _
    $region13: #{gnnml3_forward.1} parent=1 // pred_fallthru
      _
    // Predicated region
    $region14: #{gnnml3_forward.1} parent=1 // pred_check
      _
    $region15: #{gnnml3_forward.1} parent=1 // pred_check_branch
      %110 = sbr.rel (0) target = $region17
    $region16: #{gnnml3_forward.1} parent=1 // pred_region
      _
    $region17: #{gnnml3_forward.1} parent=1 // pred_fallthru
      _
    // Predicated region
    $region18: #{gnnml3_forward.1} parent=1 // pred_check
      _
    $region19: #{gnnml3_forward.1} parent=1 // pred_check_branch
      %112 = sbr.rel (0) target = $region21
    $region20: #{gnnml3_forward.1} parent=1 // pred_region
      _
    $region21: #{gnnml3_forward.1} parent=1 // pred_fallthru
      _
    // Predicated region
    $region22: #{gnnml3_forward.1} parent=1 // pred_check
      _
    $region23: #{gnnml3_forward.1} parent=1 // pred_check_branch
      %114 = sbr.rel (0) target = $region25
    $region24: #{gnnml3_forward.1} parent=1 // pred_region
      _
    $region25: #{gnnml3_forward.1} parent=1 // pred_fallthru
      _
    // Predicated region
    $region26: #{gnnml3_forward.1} parent=1 // pred_check
      _
    $region27: #{gnnml3_forward.1} parent=1 // pred_check_branch
      %116 = sbr.rel (0) target = $region29
    $region28: #{gnnml3_forward.1} parent=1 // pred_region
      _
    $region29: #{gnnml3_forward.1} parent=1 // pred_fallthru
      _
    // Predicated region
    $region30: #{gnnml3_forward.1} parent=1 // pred_check
      _
    $region31: #{gnnml3_forward.1} parent=1 // pred_check_branch
      %118 = sbr.rel (0) target = $region33
    $region32: #{gnnml3_forward.1} parent=1 // pred_region
      _
    $region33: #{gnnml3_forward.1} parent=1 // pred_fallthru
      _
    // Predicated region
    $region34: #{gnnml3_forward.1} parent=1 // pred_check
      _
    $region35: #{gnnml3_forward.1} parent=1 // pred_check_branch
      %120 = sbr.rel (0) target = $region37
    $region36: #{gnnml3_forward.1} parent=1 // pred_region
      _
    $region37: #{gnnml3_forward.1} parent=1 // pred_fallthru
      _
    // Predicated region
    $region38: #{gnnml3_forward.1} parent=1 // pred_check
      _
    $region39: #{gnnml3_forward.1} parent=1 // pred_check_branch
      %122 = sbr.rel (0) target = $region41
    $region40: #{gnnml3_forward.1} parent=1 // pred_region
      _
    $region41: #{gnnml3_forward.1} parent=1 // pred_fallthru
      _
    // Predicated region
    $region42: #{gnnml3_forward.1} parent=1 // pred_check
      _
    $region43: #{gnnml3_forward.1} parent=1 // pred_check_branch
      %124 = sbr.rel (0) target = $region45
    $region44: #{gnnml3_forward.1} parent=1 // pred_region
      _
    $region45: #{gnnml3_forward.1} parent=1 // pred_fallthru
      _
    // Predicated region
    $region46: #{gnnml3_forward.1} parent=1 // pred_check
      _
    $region47: #{gnnml3_forward.1} parent=1 // pred_check_branch
      %126 = sbr.rel (0) target = $region49
    $region48: #{gnnml3_forward.1} parent=1 // pred_region
      _
    $region49: #{gnnml3_forward.1} parent=1 // pred_fallthru
      _
    // Predicated region
    $region50: #{gnnml3_forward.1} parent=1 // pred_check
      _
    $region51: #{gnnml3_forward.1} parent=1 // pred_check_branch
      %128 = sbr.rel (0) target = $region53
    $region52: #{gnnml3_forward.1} parent=1 // pred_region
      _
    $region53: #{gnnml3_forward.1} parent=1 // pred_fallthru
      _
    // Predicated region
    $region54: #{gnnml3_forward.1} parent=1 // pred_check
      _
    $region55: #{gnnml3_forward.1} parent=1 // pred_check_branch
      %130 = sbr.rel (0) target = $region57
    $region56: #{gnnml3_forward.1} parent=1 // pred_region
      _
    $region57: #{gnnml3_forward.1} parent=1 // pred_fallthru
      _
    // Predicated region
    $region58: #{gnnml3_forward.1} parent=1 // pred_check
      _
    $region59: #{gnnml3_forward.1} parent=1 // pred_check_branch
      %132 = sbr.rel (0) target = $region61
    $region60: #{gnnml3_forward.1} parent=1 // pred_region
      _
    $region61: #{gnnml3_forward.1} parent=1 // pred_fallthru
      _
    // Predicated region
    $region62: #{gnnml3_forward.1} parent=1 // pred_check
      _
    $region63: #{gnnml3_forward.1} parent=1 // pred_check_branch
      %134 = sbr.rel (0) target = $region65
    $region64: #{gnnml3_forward.1} parent=1 // pred_region
      _
    $region65: #{gnnml3_forward.1} parent=1 // pred_fallthru
      _
    // Predicated region
    $region66: #{gnnml3_forward.1} parent=1 // pred_check
      _
    $region67: #{gnnml3_forward.1} parent=1 // pred_check_branch
      %136 = sbr.rel (0) target = $region69
    $region68: #{gnnml3_forward.1} parent=1 // pred_region
      _
    $region69: #{gnnml3_forward.1} parent=1 // pred_fallthru
      _
    // Predicated region
    $region70: #{gnnml3_forward.1} parent=1 // pred_check
      _
    $region71: #{gnnml3_forward.1} parent=1 // pred_check_branch
      %138 = sbr.rel (0) target = $region73
    $region72: #{gnnml3_forward.1} parent=1 // pred_region
      _
    $region73: #{gnnml3_forward.1} parent=1 // pred_fallthru
      _
    // Predicated region
    $region74: #{gnnml3_forward.1} parent=1 // pred_check
      _
    $region75: #{gnnml3_forward.1} parent=1 // pred_check_branch
      %140 = sbr.rel (0) target = $region77
    $region76: #{gnnml3_forward.1} parent=1 // pred_region
      _
    $region77: #{gnnml3_forward.1} parent=1 // pred_fallthru
      _
    // Predicated region
    $region78: #{gnnml3_forward.1} parent=1 // pred_check
      _
    $region79: #{gnnml3_forward.1} parent=1 // pred_check_branch
      %142 = sbr.rel (0) target = $region81
    $region80: #{gnnml3_forward.1} parent=1 // pred_region
      _
    $region81: #{gnnml3_forward.1} parent=1 // pred_fallthru
      _
    // Predicated region
    $region82: #{gnnml3_forward.1} parent=1 // pred_check
      _
    $region83: #{gnnml3_forward.1} parent=1 // pred_check_branch
      %144 = sbr.rel (0) target = $region85
    $region84: #{gnnml3_forward.1} parent=1 // pred_region
      _
    $region85: #{gnnml3_forward.1} parent=1 // pred_fallthru
      _
    // Predicated region
    $region86: #{gnnml3_forward.1} parent=1 // pred_check
      _
    $region87: #{gnnml3_forward.1} parent=1 // pred_check_branch
      %146 = sbr.rel (0) target = $region89
    $region88: #{gnnml3_forward.1} parent=1 // pred_region
      _
    $region89: #{gnnml3_forward.1} parent=1 // pred_fallthru
      _
    // Predicated region
    $region90: #{gnnml3_forward.1} parent=1 // pred_check
      _
    $region91: #{gnnml3_forward.1} parent=1 // pred_check_branch
      %148 = sbr.rel (0) target = $region93
    $region92: #{gnnml3_forward.1} parent=1 // pred_region
      _
    $region93: #{gnnml3_forward.1} parent=1 // pred_fallthru
      _
    // Predicated region
    $region94: #{gnnml3_forward.1} parent=1 // pred_check
      _
    $region95: #{gnnml3_forward.1} parent=1 // pred_check_branch
      %150 = sbr.rel (0) target = $region97
    $region96: #{gnnml3_forward.1} parent=1 // pred_region
      _
    $region97: #{gnnml3_forward.1} parent=1 // pred_fallthru
      _
    // Predicated region
    $region98: #{gnnml3_forward.1} parent=1 // pred_check
      _
    $region99: #{gnnml3_forward.1} parent=1 // pred_check_branch
      %152 = sbr.rel (0) target = $region101
    $region100: #{gnnml3_forward.1} parent=1 // pred_region
      _
    $region101: #{gnnml3_forward.1} parent=1 // pred_fallthru
      _
    // Predicated region
    $region102: #{gnnml3_forward.1} parent=1 // pred_check
      _
    $region103: #{gnnml3_forward.1} parent=1 // pred_check_branch
      %154 = sbr.rel (0) target = $region105
    $region104: #{gnnml3_forward.1} parent=1 // pred_region
      _
    $region105: #{gnnml3_forward.1} parent=1 // pred_fallthru
      _
    // Predicated region
    $region106: #{gnnml3_forward.1} parent=1 // pred_check
      _
    $region107: #{gnnml3_forward.1} parent=1 // pred_check_branch
      %156 = sbr.rel (0) target = $region109
    $region108: #{gnnml3_forward.1} parent=1 // pred_region
      _
    $region109: #{gnnml3_forward.1} parent=1 // pred_fallthru
      _
    // Predicated region
    $region110: #{gnnml3_forward.1} parent=1 // pred_check
      _
    $region111: #{gnnml3_forward.1} parent=1 // pred_check_branch
      %158 = sbr.rel (0) target = $region113
    $region112: #{gnnml3_forward.1} parent=1 // pred_region
      _
    $region113: #{gnnml3_forward.1} parent=1 // pred_fallthru
      _
    // Predicated region
    $region114: #{gnnml3_forward.1} parent=1 // pred_check
      _
    $region115: #{gnnml3_forward.1} parent=1 // pred_check_branch
      %160 = sbr.rel (0) target = $region117
    $region116: #{gnnml3_forward.1} parent=1 // pred_region
      _
    $region117: #{gnnml3_forward.1} parent=1 // pred_fallthru
      _
    // Predicated region
    $region118: #{gnnml3_forward.1} parent=1 // pred_check
      _
    $region119: #{gnnml3_forward.1} parent=1 // pred_check_branch
      %162 = sbr.rel (0) target = $region121
    $region120: #{gnnml3_forward.1} parent=1 // pred_region
      _
    $region121: #{gnnml3_forward.1} parent=1 // pred_fallthru
      _
    // Predicated region
    $region122: #{gnnml3_forward.1} parent=1 // pred_check
      _
    $region123: #{gnnml3_forward.1} parent=1 // pred_check_branch
      %164 = sbr.rel (0) target = $region125
    $region124: #{gnnml3_forward.1} parent=1 // pred_region
      _
    $region125: #{gnnml3_forward.1} parent=1 // pred_fallthru
      _
    // Predicated region
    $region126: #{gnnml3_forward.1} parent=1 // pred_check
      _
    $region127: #{gnnml3_forward.1} parent=1 // pred_check_branch
      %166 = sbr.rel (0) target = $region129
    $region128: #{gnnml3_forward.1} parent=1 // pred_region
      _
    $region129: #{gnnml3_forward.1} parent=1 // pred_fallthru
      _
    // Predicated region
    $region130: #{gnnml3_forward.1} parent=1 // pred_check
      _
    $region131: #{gnnml3_forward.1} parent=1 // pred_check_branch
      %168 = sbr.rel (0) target = $region133
    $region132: #{gnnml3_forward.1} parent=1 // pred_region
      _
    $region133: #{gnnml3_forward.1} parent=1 // pred_fallthru
      _
    // Predicated region
    $region134: #{gnnml3_forward.1} parent=1 // pred_check
      _
    $region135: #{gnnml3_forward.1} parent=1 // pred_check_branch
      %170 = sbr.rel (0) target = $region137
    $region136: #{gnnml3_forward.1} parent=1 // pred_region
      _
    $region137: #{gnnml3_forward.1} parent=1 // pred_fallthru
      _
    // Predicated region
    $region138: #{gnnml3_forward.1} parent=1 // pred_check
      _
    $region139: #{gnnml3_forward.1} parent=1 // pred_check_branch
      %172 = sbr.rel (0) target = $region141
    $region140: #{gnnml3_forward.1} parent=1 // pred_region
      _
    $region141: #{gnnml3_forward.1} parent=1 // pred_fallthru
      _
    // Predicated region
    $region142: #{gnnml3_forward.1} parent=1 // pred_check
      _
    $region143: #{gnnml3_forward.1} parent=1 // pred_check_branch
      %174 = sbr.rel (0) target = $region145
    $region144: #{gnnml3_forward.1} parent=1 // pred_region
      _
    $region145: #{gnnml3_forward.1} parent=1 // pred_fallthru
      _
    // Predicated region
    $region146: #{gnnml3_forward.1} parent=1 // pred_check
      _
    $region147: #{gnnml3_forward.1} parent=1 // pred_check_branch
      %176 = sbr.rel (0) target = $region149
    $region148: #{gnnml3_forward.1} parent=1 // pred_region
      _
    $region149: #{gnnml3_forward.1} parent=1 // pred_fallthru
      _
    // Predicated region
    $region150: #{gnnml3_forward.1} parent=1 // pred_check
      _
    $region151: #{gnnml3_forward.1} parent=1 // pred_check_branch
      %178 = sbr.rel (0) target = $region153
    $region152: #{gnnml3_forward.1} parent=1 // pred_region
      _
    $region153: #{gnnml3_forward.1} parent=1 // pred_fallthru
      _
    // Predicated region
    $region154: #{gnnml3_forward.1} parent=1 // pred_check
      _
    $region155: #{gnnml3_forward.1} parent=1 // pred_check_branch
      %180 = sbr.rel (0) target = $region157
    $region156: #{gnnml3_forward.1} parent=1 // pred_region
      _
    $region157: #{gnnml3_forward.1} parent=1 // pred_fallthru
      _
    // Predicated region
    $region158: #{gnnml3_forward.1} parent=1 // pred_check
      _
    $region159: #{gnnml3_forward.1} parent=1 // pred_check_branch
      %182 = sbr.rel (0) target = $region161
    $region160: #{gnnml3_forward.1} parent=1 // pred_region
      _
    $region161: #{gnnml3_forward.1} parent=1 // pred_fallthru
      _
    // Predicated region
    $region162: #{gnnml3_forward.1} parent=1 // pred_check
      _
    $region163: #{gnnml3_forward.1} parent=1 // pred_check_branch
      %184 = sbr.rel (0) target = $region165
    $region164: #{gnnml3_forward.1} parent=1 // pred_region
      _
    $region165: #{gnnml3_forward.1} parent=1 // pred_fallthru
      _
    // Predicated region
    $region166: #{gnnml3_forward.1} parent=1 // pred_check
      _
    $region167: #{gnnml3_forward.1} parent=1 // pred_check_branch
      %186 = sbr.rel (0) target = $region169
    $region168: #{gnnml3_forward.1} parent=1 // pred_region
      _
    $region169: #{gnnml3_forward.1} parent=1 // pred_fallthru
      _
    // Predicated region
    $region170: #{gnnml3_forward.1} parent=1 // pred_check
      _
    $region171: #{gnnml3_forward.1} parent=1 // pred_check_branch
      %188 = sbr.rel (0) target = $region173
    $region172: #{gnnml3_forward.1} parent=1 // pred_region
      _
    $region173: #{gnnml3_forward.1} parent=1 // pred_fallthru
      _
    // Predicated region
    $region174: #{gnnml3_forward.1} parent=1 // pred_check
      _
    $region175: #{gnnml3_forward.1} parent=1 // pred_check_branch
      %190 = sbr.rel (0) target = $region177
    $region176: #{gnnml3_forward.1} parent=1 // pred_region
      _
    $region177: #{gnnml3_forward.1} parent=1 // pred_fallthru
      _
    // Predicated region
    $region178: #{gnnml3_forward.1} parent=1 // pred_check
      _
    $region179: #{gnnml3_forward.1} parent=1 // pred_check_branch
      %192 = sbr.rel (0) target = $region181
    $region180: #{gnnml3_forward.1} parent=1 // pred_region
      _
    $region181: #{gnnml3_forward.1} parent=1 // pred_fallthru
      _
    // Predicated region
    $region182: #{gnnml3_forward.1} parent=1 // pred_check
      _
    $region183: #{gnnml3_forward.1} parent=1 // pred_check_branch
      %194 = sbr.rel (0) target = $region185
    $region184: #{gnnml3_forward.1} parent=1 // pred_region
      _
    $region185: #{gnnml3_forward.1} parent=1 // pred_fallthru
      _
    // Predicated region
    $region186: #{gnnml3_forward.1} parent=1 // pred_check
      _
    $region187: #{gnnml3_forward.1} parent=1 // pred_check_branch
      %196 = sbr.rel (0) target = $region189
    $region188: #{gnnml3_forward.1} parent=1 // pred_region
      _
    $region189: #{gnnml3_forward.1} parent=1 // pred_fallthru
      _
    // Predicated region
    $region190: #{gnnml3_forward.1} parent=1 // pred_check
      _
    $region191: #{gnnml3_forward.1} parent=1 // pred_check_branch
      %198 = sbr.rel (0) target = $region193
    $region192: #{gnnml3_forward.1} parent=1 // pred_region
      _
    $region193: #{gnnml3_forward.1} parent=1 // pred_fallthru
      _
    %v199 = vld [vmem:[%s3] sm:$0xff]
    %v200 = vld [vmem:[%s3 + $0x8] sm:$0xff]
    %v201 = vld [vmem:[%s3 + $0x10] sm:$0xff]
    %v202 = vld [vmem:[%s3 + $0x18] sm:$0xff]
    %v203 = vld [vmem:[%s3 + $0x20] sm:$0xff]
    %v204 = vld [vmem:[%s3 + $0x28] sm:$0xff]
    %v205 = vld [vmem:[%s5] sm:$0xff]
    %v206 = vld [vmem:[%s5 + $0x8] sm:$0xff]
    %v207 = vld [vmem:[%s5 + $0x10] sm:$0xff]
    %v208 = vld [vmem:[%s5 + $0x18] sm:$0xff]
    %v209 = vld [vmem:[%s5 + $0x20] sm:$0xff]
    %v210 = vld [vmem:[%s5 + $0x28] sm:$0xff]
    %v211 = vld [vmem:[%s7] sm:$0xff]
    %v212 = vld [vmem:[%s7 + $0x8] sm:$0xff]
    %v213 = vld [vmem:[%s1] sm:$0xff]
    %v214 = vld [vmem:[%s1 + $0x8] sm:$0xff]
    %v215 = vld [vmem:[%s15] sm:$0xff]
    %v216 = vld [vmem:[%s15 + $0x8] sm:$0x3]
    %vm217 = vcmask 80896
    %v219 = vsel %vm217, %v199, 0
    %v222 = vsel %vm217, %v200, 0
    %v225 = vsel %vm217, %v201, 0
    %v228 = vsel %vm217, %v202, 0
    %v231 = vsel %vm217, %v203, 0
    %v234 = vsel %vm217, %v204, 0
    %vm236 = vcmask 1041408
    %v238 = vsel %vm236, %v216, 0
    %240 = vmatprep.subr.mxu0 0.0
    %241 = vmatpush1.msra.mxu0 0.0
    %242 = vmatprep.subr.mxu0 0.0
    %243 = vmatpush1.msra.mxu0 0.0
    %244 = vmatprep.subr.mxu0 0.0
    %245 = vmatpush1.msra.mxu0 0.0
    %246 = vmatprep.subr.mxu0 0.0
    %247 = vmatpush1.msra.mxu0 0.0
    %248 = vmatprep.subr.mxu0 0.0
    %249 = vmatpush1.msra.mxu0 0.0
    %250 = vmatprep.subr.mxu0 0.0
    %251 = vmatpush1.msra.mxu0 0.0
    %252 = vmatprep.subr.mxu0 0.0
    %253 = vmatpush1.msra.mxu0 0.0
    %254 = vmatprep.subr.mxu0 0.0
    %255 = vmatpush1.msra.mxu0 0.0
    %256 = vmatprep.subr.mxu0 0.0
    %257 = vmatpush1.msra.mxu0 0.0
    %258 = vmatprep.subr.mxu0 0.0
    %259 = vmatpush1.msra.mxu0 0.0
    %260 = vmatprep.subr.mxu0 0.0
    %261 = vmatpush1.msra.mxu0 0.0
    %262 = vmatprep.subr.mxu0 0.0
    %263 = vmatpush1.msra.mxu0 0.0
    %264 = vmatprep.subr.mxu0 0.0
    %265 = vmatpush1.msra.mxu0 0.0
    %266 = vmatprep.subr.mxu0 0.0
    %267 = vmatpush1.msra.mxu0 0.0
    %268 = vmatprep.subr.mxu0 0.0
    %269 = vmatpush1.msra.mxu0 %v238
    %270 = vmatprep.subr.mxu0 0.0
    %271 = vmatpush1.msra.mxu0 %v215
    %272 = vmatprep.subr.mxu0 0.0
    %273 = vmatpush2.msra.mxu0 0.0
    %274 = vmatprep.subr.mxu0 0.0
    %275 = vmatpush2.msra.mxu0 0.0
    %276 = vmatprep.subr.mxu0 0.0
    %277 = vmatpush2.msra.mxu0 0.0
    %278 = vmatprep.subr.mxu0 0.0
    %279 = vmatpush2.msra.mxu0 0.0
    %280 = vmatprep.subr.mxu0 0.0
    %281 = vmatpush2.msra.mxu0 0.0
    %282 = vmatprep.subr.mxu0 0.0
    %283 = vmatpush2.msra.mxu0 0.0
    %284 = vmatprep.subr.mxu0 0.0
    %285 = vmatpush2.msra.mxu0 0.0
    %286 = vmatprep.subr.mxu0 0.0
    %287 = vmatpush2.msra.mxu0 0.0
    %288 = vmatprep.subr.mxu0 0.0
    %289 = vmatpush2.msra.mxu0 0.0
    %290 = vmatprep.subr.mxu0 0.0
    %291 = vmatpush2.msra.mxu0 0.0
    %292 = vmatprep.subr.mxu0 0.0
    %293 = vmatpush2.msra.mxu0 0.0
    %294 = vmatprep.subr.mxu0 0.0
    %295 = vmatpush2.msra.mxu0 0.0
    %296 = vmatprep.subr.mxu0 0.0
    %297 = vmatpush2.msra.mxu0 0.0
    %298 = vmatprep.subr.mxu0 0.0
    %299 = vmatpush2.msra.mxu0 0.0
    %300 = vmatprep.subr.mxu0 0.0
    %301 = vmatpush2.msra.mxu0 0.0
    %302 = vmatprep.subr.mxu0 0.0
    %303 = vmatpush2.msra.mxu0 0.0
    %304 = vmatprep.mubr.f32.mxu0 0.0
    %305 = vmatmul.mubr.f32.gmra.mxu0 %v219
    %v306 = vpop.f32.mrf.mxu0
    %v307 = vadd.f32 0.0, %v306
    %v308 = vpop.f32.mrf.mxu0
    %309 = vmatprep.mubr.f32.mxu0 0.0
    %310 = vmatmul.mubr.f32.gmra.mxu0 %v222
    %v311 = vpop.f32.mrf.mxu0
    %v312 = vadd.f32 0.0, %v311
    %v313 = vpop.f32.mrf.mxu0
    %314 = vmatprep.mubr.f32.mxu0 0.0
    %315 = vmatmul.mubr.f32.gmra.mxu0 %v225
    %v316 = vpop.f32.mrf.mxu0
    %v317 = vadd.f32 0.0, %v316
    %v318 = vpop.f32.mrf.mxu0
    %319 = vmatprep.mubr.f32.mxu0 0.0
    %320 = vmatmul.mubr.f32.gmra.mxu0 %v228
    %v321 = vpop.f32.mrf.mxu0
    %v322 = vadd.f32 0.0, %v321
    %v323 = vpop.f32.mrf.mxu0
    %324 = vmatprep.mubr.f32.mxu0 0.0
    %325 = vmatmul.mubr.f32.gmra.mxu0 %v231
    %v326 = vpop.f32.mrf.mxu0
    %v327 = vadd.f32 0.0, %v326
    %v328 = vpop.f32.mrf.mxu0
    %329 = vmatprep.mubr.f32.mxu0 0.0
    %330 = vmatmul.mubr.f32.gmra.mxu0 %v234
    %v331 = vpop.f32.mrf.mxu0
    %v332 = vadd.f32 0.0, %v331
    %v333 = vpop.f32.mrf.mxu0
    %334 = vdwg.mxu0
    %v335 = vmax.f32 %v307, 0.0
    %v336 = vmax.f32 %v312, 0.0
    %v337 = vmax.f32 %v317, 0.0
    %v338 = vmax.f32 %v322, 0.0
    %v339 = vmax.f32 %v327, 0.0
    %v340 = vmax.f32 %v332, 0.0
    %347 = vrot.lane.b32.xlu0 %v335, 108
    %v348 = vpop.permute.xlu0 %347
    %349 = vrot.lane.b32.xlu0 %v336, 108
    %v350 = vpop.permute.xlu0 %349
    %351 = vrot.lane.b32.xlu0 %v337, 108
    %v352 = vpop.permute.xlu0 %351
    %353 = vrot.lane.b32.xlu0 %v338, 108
    %v354 = vpop.permute.xlu0 %353
    %355 = vrot.lane.b32.xlu0 %v339, 108
    %v356 = vpop.permute.xlu0 %355
    %357 = vrot.lane.b32.xlu0 %v340, 108
    %v358 = vpop.permute.xlu0 %357
    %v365 = vmul.f32 %v335, %v348
    %v366 = vmul.f32 %v336, %v350
    %v367 = vmul.f32 %v337, %v352
    %v368 = vmul.f32 %v338, %v354
    %v369 = vmul.f32 %v339, %v356
    %v370 = vmul.f32 %v340, %v358
    %v371 = vld [vmem:[%s17] sm:$0xff]
    %v372 = vld [vmem:[%s17 + $0x8] sm:$0xff]
    %v373 = vld [vmem:[%s17 + $0x10] sm:$0xf]
    %v374 = vld [vmem:[%s19] sm:$0xff]
    %v375 = vld [vmem:[%s19 + $0x8] sm:$0xff]
    %v376 = vld [vmem:[%s19 + $0x10] sm:$0xf]
    %383 = vrot.lane.b32.xlu0 %v365, 108
    %v384 = vpop.permute.xlu0 %383
    %385 = vrot.lane.b32.xlu0 %v366, 108
    %v386 = vpop.permute.xlu0 %385
    %387 = vrot.lane.b32.xlu0 %v367, 108
    %v388 = vpop.permute.xlu0 %387
    %389 = vrot.lane.b32.xlu0 %v368, 108
    %v390 = vpop.permute.xlu0 %389
    %391 = vrot.lane.b32.xlu0 %v369, 108
    %v392 = vpop.permute.xlu0 %391
    %393 = vrot.lane.b32.xlu0 %v370, 108
    %v394 = vpop.permute.xlu0 %393
    %vm395 = vcmask 162816
    %v396 = vsel %vm395, %v384, 0
    %v398 = vsel %vm395, %v386, 0
    %v400 = vsel %vm395, %v388, 0
    %v402 = vsel %vm395, %v390, 0
    %v404 = vsel %vm395, %v392, 0
    %v406 = vsel %vm395, %v394, 0
    %vm408 = vcmask 1043456
    %v410 = vsel %vm408, %v376, 0
    %412 = vmatprep.subr.mxu0 0.0
    %413 = vmatpush1.msra.mxu0 0.0
    %414 = vmatprep.subr.mxu0 0.0
    %415 = vmatpush1.msra.mxu0 0.0
    %416 = vmatprep.subr.mxu0 0.0
    %417 = vmatpush1.msra.mxu0 0.0
    %418 = vmatprep.subr.mxu0 0.0
    %419 = vmatpush1.msra.mxu0 0.0
    %420 = vmatprep.subr.mxu0 0.0
    %421 = vmatpush1.msra.mxu0 0.0
    %422 = vmatprep.subr.mxu0 0.0
    %423 = vmatpush1.msra.mxu0 0.0
    %424 = vmatprep.subr.mxu0 0.0
    %425 = vmatpush1.msra.mxu0 0.0
    %426 = vmatprep.subr.mxu0 0.0
    %427 = vmatpush1.msra.mxu0 0.0
    %428 = vmatprep.subr.mxu0 0.0
    %429 = vmatpush1.msra.mxu0 0.0
    %430 = vmatprep.subr.mxu0 0.0
    %431 = vmatpush1.msra.mxu0 0.0
    %432 = vmatprep.subr.mxu0 0.0
    %433 = vmatpush1.msra.mxu0 0.0
    %434 = vmatprep.subr.mxu0 0.0
    %435 = vmatpush1.msra.mxu0 0.0
    %436 = vmatprep.subr.mxu0 0.0
    %437 = vmatpush1.msra.mxu0 0.0
    %438 = vmatprep.subr.mxu0 0.0
    %439 = vmatpush1.msra.mxu0 %v410
    %440 = vmatprep.subr.mxu0 0.0
    %441 = vmatpush1.msra.mxu0 %v375
    %442 = vmatprep.subr.mxu0 0.0
    %443 = vmatpush1.msra.mxu0 %v374
    %444 = vmatprep.subr.mxu0 0.0
    %445 = vmatpush2.msra.mxu0 0.0
    %446 = vmatprep.subr.mxu0 0.0
    %447 = vmatpush2.msra.mxu0 0.0
    %448 = vmatprep.subr.mxu0 0.0
    %449 = vmatpush2.msra.mxu0 0.0
    %450 = vmatprep.subr.mxu0 0.0
    %451 = vmatpush2.msra.mxu0 0.0
    %452 = vmatprep.subr.mxu0 0.0
    %453 = vmatpush2.msra.mxu0 0.0
    %454 = vmatprep.subr.mxu0 0.0
    %455 = vmatpush2.msra.mxu0 0.0
    %456 = vmatprep.subr.mxu0 0.0
    %457 = vmatpush2.msra.mxu0 0.0
    %458 = vmatprep.subr.mxu0 0.0
    %459 = vmatpush2.msra.mxu0 0.0
    %460 = vmatprep.subr.mxu0 0.0
    %461 = vmatpush2.msra.mxu0 0.0
    %462 = vmatprep.subr.mxu0 0.0
    %463 = vmatpush2.msra.mxu0 0.0
    %464 = vmatprep.subr.mxu0 0.0
    %465 = vmatpush2.msra.mxu0 0.0
    %466 = vmatprep.subr.mxu0 0.0
    %467 = vmatpush2.msra.mxu0 0.0
    %468 = vmatprep.subr.mxu0 0.0
    %469 = vmatpush2.msra.mxu0 0.0
    %470 = vmatprep.subr.mxu0 0.0
    %471 = vmatpush2.msra.mxu0 0.0
    %472 = vmatprep.subr.mxu0 0.0
    %473 = vmatpush2.msra.mxu0 0.0
    %474 = vmatprep.subr.mxu0 0.0
    %475 = vmatpush2.msra.mxu0 0.0
    %476 = vmatprep.mubr.f32.mxu0 0.0
    %477 = vmatmul.mubr.f32.gmra.mxu0 %v396
    %v478 = vpop.f32.mrf.mxu0
    %v479 = vadd.f32 0.0, %v478
    %v480 = vpop.f32.mrf.mxu0
    %481 = vmatprep.mubr.f32.mxu0 0.0
    %482 = vmatmul.mubr.f32.gmra.mxu0 %v398
    %v483 = vpop.f32.mrf.mxu0
    %v484 = vadd.f32 0.0, %v483
    %v485 = vpop.f32.mrf.mxu0
    %486 = vmatprep.mubr.f32.mxu0 0.0
    %487 = vmatmul.mubr.f32.gmra.mxu0 %v400
    %v488 = vpop.f32.mrf.mxu0
    %v489 = vadd.f32 0.0, %v488
    %v490 = vpop.f32.mrf.mxu0
    %491 = vmatprep.mubr.f32.mxu0 0.0
    %492 = vmatmul.mubr.f32.gmra.mxu0 %v402
    %v493 = vpop.f32.mrf.mxu0
    %v494 = vadd.f32 0.0, %v493
    %v495 = vpop.f32.mrf.mxu0
    %496 = vmatprep.mubr.f32.mxu0 0.0
    %497 = vmatmul.mubr.f32.gmra.mxu0 %v404
    %v498 = vpop.f32.mrf.mxu0
    %v499 = vadd.f32 0.0, %v498
    %v500 = vpop.f32.mrf.mxu0
    %501 = vmatprep.mubr.f32.mxu0 0.0
    %502 = vmatmul.mubr.f32.gmra.mxu0 %v406
    %v503 = vpop.f32.mrf.mxu0
    %v504 = vadd.f32 0.0, %v503
    %v505 = vpop.f32.mrf.mxu0
    %506 = vdwg.mxu0
    %v507 = vsel %vm395, %v335, 0
    %v509 = vsel %vm395, %v336, 0
    %v511 = vsel %vm395, %v337, 0
    %v513 = vsel %vm395, %v338, 0
    %v515 = vsel %vm395, %v339, 0
    %v517 = vsel %vm395, %v340, 0
    %v520 = vsel %vm408, %v373, 0
    %522 = vmatprep.subr.mxu0 0.0
    %523 = vmatpush1.msra.mxu0 0.0
    %524 = vmatprep.subr.mxu0 0.0
    %525 = vmatpush1.msra.mxu0 0.0
    %526 = vmatprep.subr.mxu0 0.0
    %527 = vmatpush1.msra.mxu0 0.0
    %528 = vmatprep.subr.mxu0 0.0
    %529 = vmatpush1.msra.mxu0 0.0
    %530 = vmatprep.subr.mxu0 0.0
    %531 = vmatpush1.msra.mxu0 0.0
    %532 = vmatprep.subr.mxu0 0.0
    %533 = vmatpush1.msra.mxu0 0.0
    %534 = vmatprep.subr.mxu0 0.0
    %535 = vmatpush1.msra.mxu0 0.0
    %536 = vmatprep.subr.mxu0 0.0
    %537 = vmatpush1.msra.mxu0 0.0
    %538 = vmatprep.subr.mxu0 0.0
    %539 = vmatpush1.msra.mxu0 0.0
    %540 = vmatprep.subr.mxu0 0.0
    %541 = vmatpush1.msra.mxu0 0.0
    %542 = vmatprep.subr.mxu0 0.0
    %543 = vmatpush1.msra.mxu0 0.0
    %544 = vmatprep.subr.mxu0 0.0
    %545 = vmatpush1.msra.mxu0 0.0
    %546 = vmatprep.subr.mxu0 0.0
    %547 = vmatpush1.msra.mxu0 0.0
    %548 = vmatprep.subr.mxu0 0.0
    %549 = vmatpush1.msra.mxu0 %v520
    %550 = vmatprep.subr.mxu0 0.0
    %551 = vmatpush1.msra.mxu0 %v372
    %552 = vmatprep.subr.mxu0 0.0
    %553 = vmatpush1.msra.mxu0 %v371
    %554 = vmatprep.subr.mxu0 0.0
    %555 = vmatpush2.msra.mxu0 0.0
    %556 = vmatprep.subr.mxu0 0.0
    %557 = vmatpush2.msra.mxu0 0.0
    %558 = vmatprep.subr.mxu0 0.0
    %559 = vmatpush2.msra.mxu0 0.0
    %560 = vmatprep.subr.mxu0 0.0
    %561 = vmatpush2.msra.mxu0 0.0
    %562 = vmatprep.subr.mxu0 0.0
    %563 = vmatpush2.msra.mxu0 0.0
    %564 = vmatprep.subr.mxu0 0.0
    %565 = vmatpush2.msra.mxu0 0.0
    %566 = vmatprep.subr.mxu0 0.0
    %567 = vmatpush2.msra.mxu0 0.0
    %568 = vmatprep.subr.mxu0 0.0
    %569 = vmatpush2.msra.mxu0 0.0
    %570 = vmatprep.subr.mxu0 0.0
    %571 = vmatpush2.msra.mxu0 0.0
    %572 = vmatprep.subr.mxu0 0.0
    %573 = vmatpush2.msra.mxu0 0.0
    %574 = vmatprep.subr.mxu0 0.0
    %575 = vmatpush2.msra.mxu0 0.0
    %576 = vmatprep.subr.mxu0 0.0
    %577 = vmatpush2.msra.mxu0 0.0
    %578 = vmatprep.subr.mxu0 0.0
    %579 = vmatpush2.msra.mxu0 0.0
    %580 = vmatprep.subr.mxu0 0.0
    %581 = vmatpush2.msra.mxu0 0.0
    %582 = vmatprep.subr.mxu0 0.0
    %583 = vmatpush2.msra.mxu0 0.0
    %584 = vmatprep.subr.mxu0 0.0
    %585 = vmatpush2.msra.mxu0 0.0
    %586 = vmatprep.mubr.f32.mxu0 0.0
    %587 = vmatmul.mubr.f32.gmra.mxu0 %v507
    %v588 = vpop.f32.mrf.mxu0
    %v589 = vadd.f32 %v479, %v588
    %v590 = vpop.f32.mrf.mxu0
    %591 = vmatprep.mubr.f32.mxu0 0.0
    %592 = vmatmul.mubr.f32.gmra.mxu0 %v509
    %v593 = vpop.f32.mrf.mxu0
    %v594 = vadd.f32 %v484, %v593
    %v595 = vpop.f32.mrf.mxu0
    %596 = vmatprep.mubr.f32.mxu0 0.0
    %597 = vmatmul.mubr.f32.gmra.mxu0 %v511
    %v598 = vpop.f32.mrf.mxu0
    %v599 = vadd.f32 %v489, %v598
    %v600 = vpop.f32.mrf.mxu0
    %601 = vmatprep.mubr.f32.mxu0 0.0
    %602 = vmatmul.mubr.f32.gmra.mxu0 %v513
    %v603 = vpop.f32.mrf.mxu0
    %v604 = vadd.f32 %v494, %v603
    %v605 = vpop.f32.mrf.mxu0
    %606 = vmatprep.mubr.f32.mxu0 0.0
    %607 = vmatmul.mubr.f32.gmra.mxu0 %v515
    %v608 = vpop.f32.mrf.mxu0
    %v609 = vadd.f32 %v499, %v608
    %v610 = vpop.f32.mrf.mxu0
    %611 = vmatprep.mubr.f32.mxu0 0.0
    %612 = vmatmul.mubr.f32.gmra.mxu0 %v517
    %v613 = vpop.f32.mrf.mxu0
    %v614 = vadd.f32 %v504, %v613
    %v615 = vpop.f32.mrf.mxu0
    %616 = vdwg.mxu0
    %v617 = vmax.f32 %v589, 0.0
    %v618 = vmax.f32 %v594, 0.0
    %v619 = vmax.f32 %v599, 0.0
    %v620 = vmax.f32 %v604, 0.0
    %v621 = vmax.f32 %v609, 0.0
    %v622 = vmax.f32 %v614, 0.0
    %vm623 = vcmask 130048
    %v625 = vsel %vm623, %v205, 0
    %v628 = vsel %vm623, %v206, 0
    %v631 = vsel %vm623, %v207, 0
    %v634 = vsel %vm623, %v208, 0
    %v637 = vsel %vm623, %v209, 0
    %v640 = vsel %vm623, %v210, 0
    %642 = vmatprep.subr.mxu0 0.0
    %643 = vmatpush1.msra.mxu0 0.0
    %644 = vmatprep.subr.mxu0 0.0
    %645 = vmatpush1.msra.mxu0 0.0
    %646 = vmatprep.subr.mxu0 0.0
    %647 = vmatpush1.msra.mxu0 0.0
    %648 = vmatprep.subr.mxu0 0.0
    %649 = vmatpush1.msra.mxu0 0.0
    %650 = vmatprep.subr.mxu0 0.0
    %651 = vmatpush1.msra.mxu0 0.0
    %652 = vmatprep.subr.mxu0 0.0
    %653 = vmatpush1.msra.mxu0 0.0
    %654 = vmatprep.subr.mxu0 0.0
    %655 = vmatpush1.msra.mxu0 0.0
    %656 = vmatprep.subr.mxu0 0.0
    %657 = vmatpush1.msra.mxu0 0.0
    %658 = vmatprep.subr.mxu0 0.0
    %659 = vmatpush1.msra.mxu0 0.0
    %660 = vmatprep.subr.mxu0 0.0
    %661 = vmatpush1.msra.mxu0 0.0
    %662 = vmatprep.subr.mxu0 0.0
    %663 = vmatpush1.msra.mxu0 0.0
    %664 = vmatprep.subr.mxu0 0.0
    %665 = vmatpush1.msra.mxu0 0.0
    %666 = vmatprep.subr.mxu0 0.0
    %667 = vmatpush1.msra.mxu0 0.0
    %668 = vmatprep.subr.mxu0 0.0
    %669 = vmatpush1.msra.mxu0 0.0
    %670 = vmatprep.subr.mxu0 0.0
    %671 = vmatpush1.msra.mxu0 %v214
    %672 = vmatprep.subr.mxu0 0.0
    %673 = vmatpush1.msra.mxu0 %v213
    %674 = vmatprep.subr.mxu0 0.0
    %675 = vmatpush2.msra.mxu0 0.0
    %676 = vmatprep.subr.mxu0 0.0
    %677 = vmatpush2.msra.mxu0 0.0
    %678 = vmatprep.subr.mxu0 0.0
    %679 = vmatpush2.msra.mxu0 0.0
    %680 = vmatprep.subr.mxu0 0.0
    %681 = vmatpush2.msra.mxu0 0.0
    %682 = vmatprep.subr.mxu0 0.0
    %683 = vmatpush2.msra.mxu0 0.0
    %684 = vmatprep.subr.mxu0 0.0
    %685 = vmatpush2.msra.mxu0 0.0
    %686 = vmatprep.subr.mxu0 0.0
    %687 = vmatpush2.msra.mxu0 0.0
    %688 = vmatprep.subr.mxu0 0.0
    %689 = vmatpush2.msra.mxu0 0.0
    %690 = vmatprep.subr.mxu0 0.0
    %691 = vmatpush2.msra.mxu0 0.0
    %692 = vmatprep.subr.mxu0 0.0
    %693 = vmatpush2.msra.mxu0 0.0
    %694 = vmatprep.subr.mxu0 0.0
    %695 = vmatpush2.msra.mxu0 0.0
    %696 = vmatprep.subr.mxu0 0.0
    %697 = vmatpush2.msra.mxu0 0.0
    %698 = vmatprep.subr.mxu0 0.0
    %699 = vmatpush2.msra.mxu0 0.0
    %700 = vmatprep.subr.mxu0 0.0
    %701 = vmatpush2.msra.mxu0 0.0
    %702 = vmatprep.subr.mxu0 0.0
    %703 = vmatpush2.msra.mxu0 0.0
    %704 = vmatprep.subr.mxu0 0.0
    %705 = vmatpush2.msra.mxu0 0.0
    %706 = vmatprep.mubr.f32.mxu0 0.0
    %707 = vmatmul.mubr.f32.gmra.mxu0 %v625
    %v708 = vpop.f32.mrf.mxu0
    %v709 = vadd.f32 0.0, %v708
    %v710 = vpop.f32.mrf.mxu0
    %711 = vmatprep.mubr.f32.mxu0 0.0
    %712 = vmatmul.mubr.f32.gmra.mxu0 %v628
    %v713 = vpop.f32.mrf.mxu0
    %v714 = vadd.f32 0.0, %v713
    %v715 = vpop.f32.mrf.mxu0
    %716 = vmatprep.mubr.f32.mxu0 0.0
    %717 = vmatmul.mubr.f32.gmra.mxu0 %v631
    %v718 = vpop.f32.mrf.mxu0
    %v719 = vadd.f32 0.0, %v718
    %v720 = vpop.f32.mrf.mxu0
    %721 = vmatprep.mubr.f32.mxu0 0.0
    %722 = vmatmul.mubr.f32.gmra.mxu0 %v634
    %v723 = vpop.f32.mrf.mxu0
    %v724 = vadd.f32 0.0, %v723
    %v725 = vpop.f32.mrf.mxu0
    %726 = vmatprep.mubr.f32.mxu0 0.0
    %727 = vmatmul.mubr.f32.gmra.mxu0 %v637
    %v728 = vpop.f32.mrf.mxu0
    %v729 = vadd.f32 0.0, %v728
    %v730 = vpop.f32.mrf.mxu0
    %731 = vmatprep.mubr.f32.mxu0 0.0
    %732 = vmatmul.mubr.f32.gmra.mxu0 %v640
    %v733 = vpop.f32.mrf.mxu0
    %v734 = vadd.f32 0.0, %v733
    %v735 = vpop.f32.mrf.mxu0
    %736 = vdwg.mxu0
    %v737 = vld [vmem:[%s21] sm:$0xff]
    %vm738 = vcmask 64512
    %v740 = vsel %vm738, %v709, 0
    %v743 = vsel %vm738, %v714, 0
    %v746 = vsel %vm738, %v719, 0
    %v749 = vsel %vm738, %v724, 0
    %v752 = vsel %vm738, %v729, 0
    %v755 = vsel %vm738, %v734, 0
    %757 = vmatprep.subr.mxu0 0.0
    %758 = vmatpush1.msra.mxu0 0.0
    %759 = vmatprep.subr.mxu0 0.0
    %760 = vmatpush1.msra.mxu0 0.0
    %761 = vmatprep.subr.mxu0 0.0
    %762 = vmatpush1.msra.mxu0 0.0
    %763 = vmatprep.subr.mxu0 0.0
    %764 = vmatpush1.msra.mxu0 0.0
    %765 = vmatprep.subr.mxu0 0.0
    %766 = vmatpush1.msra.mxu0 0.0
    %767 = vmatprep.subr.mxu0 0.0
    %768 = vmatpush1.msra.mxu0 0.0
    %769 = vmatprep.subr.mxu0 0.0
    %770 = vmatpush1.msra.mxu0 0.0
    %771 = vmatprep.subr.mxu0 0.0
    %772 = vmatpush1.msra.mxu0 0.0
    %773 = vmatprep.subr.mxu0 0.0
    %774 = vmatpush1.msra.mxu0 0.0
    %775 = vmatprep.subr.mxu0 0.0
    %776 = vmatpush1.msra.mxu0 0.0
    %777 = vmatprep.subr.mxu0 0.0
    %778 = vmatpush1.msra.mxu0 0.0
    %779 = vmatprep.subr.mxu0 0.0
    %780 = vmatpush1.msra.mxu0 0.0
    %781 = vmatprep.subr.mxu0 0.0
    %782 = vmatpush1.msra.mxu0 0.0
    %783 = vmatprep.subr.mxu0 0.0
    %784 = vmatpush1.msra.mxu0 0.0
    %785 = vmatprep.subr.mxu0 0.0
    %786 = vmatpush1.msra.mxu0 0.0
    %787 = vmatprep.subr.mxu0 0.0
    %788 = vmatpush1.msra.mxu0 %v737
    %789 = vmatprep.subr.mxu0 0.0
    %790 = vmatpush2.msra.mxu0 0.0
    %791 = vmatprep.subr.mxu0 0.0
    %792 = vmatpush2.msra.mxu0 0.0
    %793 = vmatprep.subr.mxu0 0.0
    %794 = vmatpush2.msra.mxu0 0.0
    %795 = vmatprep.subr.mxu0 0.0
    %796 = vmatpush2.msra.mxu0 0.0
    %797 = vmatprep.subr.mxu0 0.0
    %798 = vmatpush2.msra.mxu0 0.0
    %799 = vmatprep.subr.mxu0 0.0
    %800 = vmatpush2.msra.mxu0 0.0
    %801 = vmatprep.subr.mxu0 0.0
    %802 = vmatpush2.msra.mxu0 0.0
    %803 = vmatprep.subr.mxu0 0.0
    %804 = vmatpush2.msra.mxu0 0.0
    %805 = vmatprep.subr.mxu0 0.0
    %806 = vmatpush2.msra.mxu0 0.0
    %807 = vmatprep.subr.mxu0 0.0
    %808 = vmatpush2.msra.mxu0 0.0
    %809 = vmatprep.subr.mxu0 0.0
    %810 = vmatpush2.msra.mxu0 0.0
    %811 = vmatprep.subr.mxu0 0.0
    %812 = vmatpush2.msra.mxu0 0.0
    %813 = vmatprep.subr.mxu0 0.0
    %814 = vmatpush2.msra.mxu0 0.0
    %815 = vmatprep.subr.mxu0 0.0
    %816 = vmatpush2.msra.mxu0 0.0
    %817 = vmatprep.subr.mxu0 0.0
    %818 = vmatpush2.msra.mxu0 0.0
    %819 = vmatprep.subr.mxu0 0.0
    %820 = vmatpush2.msra.mxu0 0.0
    %821 = vmatprep.mubr.f32.mxu0 0.0
    %822 = vmatmul.mubr.f32.gmra.mxu0 %v740
    %v823 = vpop.f32.mrf.mxu0
    %v824 = vadd.f32 0.0, %v823
    %v825 = vpop.f32.mrf.mxu0
    %826 = vmatprep.mubr.f32.mxu0 0.0
    %827 = vmatmul.mubr.f32.gmra.mxu0 %v743
    %v828 = vpop.f32.mrf.mxu0
    %v829 = vadd.f32 0.0, %v828
    %v830 = vpop.f32.mrf.mxu0
    %831 = vmatprep.mubr.f32.mxu0 0.0
    %832 = vmatmul.mubr.f32.gmra.mxu0 %v746
    %v833 = vpop.f32.mrf.mxu0
    %v834 = vadd.f32 0.0, %v833
    %v835 = vpop.f32.mrf.mxu0
    %836 = vmatprep.mubr.f32.mxu0 0.0
    %837 = vmatmul.mubr.f32.gmra.mxu0 %v749
    %v838 = vpop.f32.mrf.mxu0
    %v839 = vadd.f32 0.0, %v838
    %v840 = vpop.f32.mrf.mxu0
    %841 = vmatprep.mubr.f32.mxu0 0.0
    %842 = vmatmul.mubr.f32.gmra.mxu0 %v752
    %v843 = vpop.f32.mrf.mxu0
    %v844 = vadd.f32 0.0, %v843
    %v845 = vpop.f32.mrf.mxu0
    %846 = vmatprep.mubr.f32.mxu0 0.0
    %847 = vmatmul.mubr.f32.gmra.mxu0 %v755
    %v848 = vpop.f32.mrf.mxu0
    %v849 = vadd.f32 0.0, %v848
    %v850 = vpop.f32.mrf.mxu0
    %851 = vdwg.mxu0
    %v852 = vld [vmem:[%s23] sm:$0xff]
    %v853 = vld [vmem:[%s23 + $0x8] sm:$0x3]
    %v855 = vsel %vm217, %v617, 0
    %v858 = vsel %vm217, %v618, 0
    %v861 = vsel %vm217, %v619, 0
    %v864 = vsel %vm217, %v620, 0
    %v867 = vsel %vm217, %v621, 0
    %v870 = vsel %vm217, %v622, 0
    %v873 = vsel %vm236, %v853, 0
    %875 = vmatprep.subr.mxu0 0.0
    %876 = vmatpush1.msra.mxu0 0.0
    %877 = vmatprep.subr.mxu0 0.0
    %878 = vmatpush1.msra.mxu0 0.0
    %879 = vmatprep.subr.mxu0 0.0
    %880 = vmatpush1.msra.mxu0 0.0
    %881 = vmatprep.subr.mxu0 0.0
    %882 = vmatpush1.msra.mxu0 0.0
    %883 = vmatprep.subr.mxu0 0.0
    %884 = vmatpush1.msra.mxu0 0.0
    %885 = vmatprep.subr.mxu0 0.0
    %886 = vmatpush1.msra.mxu0 0.0
    %887 = vmatprep.subr.mxu0 0.0
    %888 = vmatpush1.msra.mxu0 0.0
    %889 = vmatprep.subr.mxu0 0.0
    %890 = vmatpush1.msra.mxu0 0.0
    %891 = vmatprep.subr.mxu0 0.0
    %892 = vmatpush1.msra.mxu0 0.0
    %893 = vmatprep.subr.mxu0 0.0
    %894 = vmatpush1.msra.mxu0 0.0
    %895 = vmatprep.subr.mxu0 0.0
    %896 = vmatpush1.msra.mxu0 0.0
    %897 = vmatprep.subr.mxu0 0.0
    %898 = vmatpush1.msra.mxu0 0.0
    %899 = vmatprep.subr.mxu0 0.0
    %900 = vmatpush1.msra.mxu0 0.0
    %901 = vmatprep.subr.mxu0 0.0
    %902 = vmatpush1.msra.mxu0 0.0
    %903 = vmatprep.subr.mxu0 0.0
    %904 = vmatpush1.msra.mxu0 %v873
    %905 = vmatprep.subr.mxu0 0.0
    %906 = vmatpush1.msra.mxu0 %v852
    %907 = vmatprep.subr.mxu0 0.0
    %908 = vmatpush2.msra.mxu0 0.0
    %909 = vmatprep.subr.mxu0 0.0
    %910 = vmatpush2.msra.mxu0 0.0
    %911 = vmatprep.subr.mxu0 0.0
    %912 = vmatpush2.msra.mxu0 0.0
    %913 = vmatprep.subr.mxu0 0.0
    %914 = vmatpush2.msra.mxu0 0.0
    %915 = vmatprep.subr.mxu0 0.0
    %916 = vmatpush2.msra.mxu0 0.0
    %917 = vmatprep.subr.mxu0 0.0
    %918 = vmatpush2.msra.mxu0 0.0
    %919 = vmatprep.subr.mxu0 0.0
    %920 = vmatpush2.msra.mxu0 0.0
    %921 = vmatprep.subr.mxu0 0.0
    %922 = vmatpush2.msra.mxu0 0.0
    %923 = vmatprep.subr.mxu0 0.0
    %924 = vmatpush2.msra.mxu0 0.0
    %925 = vmatprep.subr.mxu0 0.0
    %926 = vmatpush2.msra.mxu0 0.0
    %927 = vmatprep.subr.mxu0 0.0
    %928 = vmatpush2.msra.mxu0 0.0
    %929 = vmatprep.subr.mxu0 0.0
    %930 = vmatpush2.msra.mxu0 0.0
    %931 = vmatprep.subr.mxu0 0.0
    %932 = vmatpush2.msra.mxu0 0.0
    %933 = vmatprep.subr.mxu0 0.0
    %934 = vmatpush2.msra.mxu0 0.0
    %935 = vmatprep.subr.mxu0 0.0
    %936 = vmatpush2.msra.mxu0 0.0
    %937 = vmatprep.subr.mxu0 0.0
    %938 = vmatpush2.msra.mxu0 0.0
    %939 = vmatprep.mubr.f32.mxu0 0.0
    %940 = vmatmul.mubr.f32.gmra.mxu0 %v855
    %v941 = vpop.f32.mrf.mxu0
    %v942 = vadd.f32 0.0, %v941
    %v943 = vpop.f32.mrf.mxu0
    %944 = vmatprep.mubr.f32.mxu0 0.0
    %945 = vmatmul.mubr.f32.gmra.mxu0 %v858
    %v946 = vpop.f32.mrf.mxu0
    %v947 = vadd.f32 0.0, %v946
    %v948 = vpop.f32.mrf.mxu0
    %949 = vmatprep.mubr.f32.mxu0 0.0
    %950 = vmatmul.mubr.f32.gmra.mxu0 %v861
    %v951 = vpop.f32.mrf.mxu0
    %v952 = vadd.f32 0.0, %v951
    %v953 = vpop.f32.mrf.mxu0
    %954 = vmatprep.mubr.f32.mxu0 0.0
    %955 = vmatmul.mubr.f32.gmra.mxu0 %v864
    %v956 = vpop.f32.mrf.mxu0
    %v957 = vadd.f32 0.0, %v956
    %v958 = vpop.f32.mrf.mxu0
    %959 = vmatprep.mubr.f32.mxu0 0.0
    %960 = vmatmul.mubr.f32.gmra.mxu0 %v867
    %v961 = vpop.f32.mrf.mxu0
    %v962 = vadd.f32 0.0, %v961
    %v963 = vpop.f32.mrf.mxu0
    %964 = vmatprep.mubr.f32.mxu0 0.0
    %965 = vmatmul.mubr.f32.gmra.mxu0 %v870
    %v966 = vpop.f32.mrf.mxu0
    %v967 = vadd.f32 0.0, %v966
    %v968 = vpop.f32.mrf.mxu0
    %969 = vdwg.mxu0
    %v970 = vmul.f32 %v824, %v942
    %v971 = vmul.f32 %v829, %v947
    %v972 = vmul.f32 %v834, %v952
    %v973 = vmul.f32 %v839, %v957
    %v974 = vmul.f32 %v844, %v962
    %v975 = vmul.f32 %v849, %v967
    %v976 = vld [vmem:[%s25] sm:$0xff]
    %v977 = vld [vmem:[%s25 + $0x8] sm:$0xff]
    %v978 = vld [vmem:[%s25 + $0x10] sm:$0xff]
    %v979 = vld [vmem:[%s25 + $0x18] sm:$0xff]
    %v980 = vld [vmem:[%s25 + $0x20] sm:$0xff]
    %v981 = vld [vmem:[%s25 + $0x28] sm:$0xff]
    %v982 = vld [vmem:[%s25 + $0x30] sm:$0xff]
    %v983 = vld [vmem:[%s25 + $0x38] sm:$0xff]
    %v984 = vld [vmem:[%s25 + $0x40] sm:$0xff]
    %v985 = vld [vmem:[%s25 + $0x48] sm:$0xff]
    %vm986 = vcmask 654336
    %v988 = vsel %vm986, %v970, 0
    %v991 = vsel %vm986, %v971, 0
    %v994 = vsel %vm986, %v972, 0
    %v997 = vsel %vm986, %v973, 0
    %v1000 = vsel %vm986, %v974, 0
    %v1003 = vsel %vm986, %v975, 0
    %1005 = vmatprep.subr.mxu0 0.0
    %1006 = vmatpush1.msra.mxu0 0.0
    %1007 = vmatprep.subr.mxu0 0.0
    %1008 = vmatpush1.msra.mxu0 0.0
    %1009 = vmatprep.subr.mxu0 0.0
    %1010 = vmatpush1.msra.mxu0 0.0
    %1011 = vmatprep.subr.mxu0 0.0
    %1012 = vmatpush1.msra.mxu0 0.0
    %1013 = vmatprep.subr.mxu0 0.0
    %1014 = vmatpush1.msra.mxu0 0.0
    %1015 = vmatprep.subr.mxu0 0.0
    %1016 = vmatpush1.msra.mxu0 0.0
    %1017 = vmatprep.subr.mxu0 0.0
    %1018 = vmatpush1.msra.mxu0 %v985
    %1019 = vmatprep.subr.mxu0 0.0
    %1020 = vmatpush1.msra.mxu0 %v984
    %1021 = vmatprep.subr.mxu0 0.0
    %1022 = vmatpush1.msra.mxu0 %v983
    %1023 = vmatprep.subr.mxu0 0.0
    %1024 = vmatpush1.msra.mxu0 %v982
    %1025 = vmatprep.subr.mxu0 0.0
    %1026 = vmatpush1.msra.mxu0 %v981
    %1027 = vmatprep.subr.mxu0 0.0
    %1028 = vmatpush1.msra.mxu0 %v980
    %1029 = vmatprep.subr.mxu0 0.0
    %1030 = vmatpush1.msra.mxu0 %v979
    %1031 = vmatprep.subr.mxu0 0.0
    %1032 = vmatpush1.msra.mxu0 %v978
    %1033 = vmatprep.subr.mxu0 0.0
    %1034 = vmatpush1.msra.mxu0 %v977
    %1035 = vmatprep.subr.mxu0 0.0
    %1036 = vmatpush1.msra.mxu0 %v976
    %1037 = vmatprep.subr.mxu0 0.0
    %1038 = vmatpush2.msra.mxu0 0.0
    %1039 = vmatprep.subr.mxu0 0.0
    %1040 = vmatpush2.msra.mxu0 0.0
    %1041 = vmatprep.subr.mxu0 0.0
    %1042 = vmatpush2.msra.mxu0 0.0
    %1043 = vmatprep.subr.mxu0 0.0
    %1044 = vmatpush2.msra.mxu0 0.0
    %1045 = vmatprep.subr.mxu0 0.0
    %1046 = vmatpush2.msra.mxu0 0.0
    %1047 = vmatprep.subr.mxu0 0.0
    %1048 = vmatpush2.msra.mxu0 0.0
    %1049 = vmatprep.subr.mxu0 0.0
    %1050 = vmatpush2.msra.mxu0 0.0
    %1051 = vmatprep.subr.mxu0 0.0
    %1052 = vmatpush2.msra.mxu0 0.0
    %1053 = vmatprep.subr.mxu0 0.0
    %1054 = vmatpush2.msra.mxu0 0.0
    %1055 = vmatprep.subr.mxu0 0.0
    %1056 = vmatpush2.msra.mxu0 0.0
    %1057 = vmatprep.subr.mxu0 0.0
    %1058 = vmatpush2.msra.mxu0 0.0
    %1059 = vmatprep.subr.mxu0 0.0
    %1060 = vmatpush2.msra.mxu0 0.0
    %1061 = vmatprep.subr.mxu0 0.0
    %1062 = vmatpush2.msra.mxu0 0.0
    %1063 = vmatprep.subr.mxu0 0.0
    %1064 = vmatpush2.msra.mxu0 0.0
    %1065 = vmatprep.subr.mxu0 0.0
    %1066 = vmatpush2.msra.mxu0 0.0
    %1067 = vmatprep.subr.mxu0 0.0
    %1068 = vmatpush2.msra.mxu0 0.0
    %1069 = vmatprep.mubr.f32.mxu0 0.0
    %1070 = vmatmul.mubr.f32.gmra.mxu0 %v988
    %v1071 = vpop.f32.mrf.mxu0
    %v1072 = vadd.f32 0.0, %v1071
    %v1073 = vpop.f32.mrf.mxu0
    %1074 = vmatprep.mubr.f32.mxu0 0.0
    %1075 = vmatmul.mubr.f32.gmra.mxu0 %v991
    %v1076 = vpop.f32.mrf.mxu0
    %v1077 = vadd.f32 0.0, %v1076
    %v1078 = vpop.f32.mrf.mxu0
    %1079 = vmatprep.mubr.f32.mxu0 0.0
    %1080 = vmatmul.mubr.f32.gmra.mxu0 %v994
    %v1081 = vpop.f32.mrf.mxu0
    %v1082 = vadd.f32 0.0, %v1081
    %v1083 = vpop.f32.mrf.mxu0
    %1084 = vmatprep.mubr.f32.mxu0 0.0
    %1085 = vmatmul.mubr.f32.gmra.mxu0 %v997
    %v1086 = vpop.f32.mrf.mxu0
    %v1087 = vadd.f32 0.0, %v1086
    %v1088 = vpop.f32.mrf.mxu0
    %1089 = vmatprep.mubr.f32.mxu0 0.0
    %1090 = vmatmul.mubr.f32.gmra.mxu0 %v1000
    %v1091 = vpop.f32.mrf.mxu0
    %v1092 = vadd.f32 0.0, %v1091
    %v1093 = vpop.f32.mrf.mxu0
    %1094 = vmatprep.mubr.f32.mxu0 0.0
    %1095 = vmatmul.mubr.f32.gmra.mxu0 %v1003
    %v1096 = vpop.f32.mrf.mxu0
    %v1097 = vadd.f32 0.0, %v1096
    %v1098 = vpop.f32.mrf.mxu0
    %1099 = vdwg.mxu0
    %v1100 = vld [vmem:[%s27] sm:$0x1]
    %v1102 = vlaneseq
    %v1103 = vshrl.u32 %v1102, 7
    %v1104 = vsub.s32 0, %v1103
    %v1105 = vrot.slane %v1100, %v1104
    %vm1107 = vcmask 392192
    %v1109 = vsel %vm1107, %v211, 0
    %v1112 = vsel %vm1107, %v212, 0
    %1114 = vmatprep.subr.mxu0 0.0
    %1115 = vmatpush1.msra.mxu0 0.0
    %1116 = vmatprep.subr.mxu0 0.0
    %1117 = vmatpush1.msra.mxu0 0.0
    %1118 = vmatprep.subr.mxu0 0.0
    %1119 = vmatpush1.msra.mxu0 0.0
    %1120 = vmatprep.subr.mxu0 0.0
    %1121 = vmatpush1.msra.mxu0 0.0
    %1122 = vmatprep.subr.mxu0 0.0
    %1123 = vmatpush1.msra.mxu0 0.0
    %1124 = vmatprep.subr.mxu0 0.0
    %1125 = vmatpush1.msra.mxu0 0.0
    %1126 = vmatprep.subr.mxu0 0.0
    %1127 = vmatpush1.msra.mxu0 0.0
    %1128 = vmatprep.subr.mxu0 0.0
    %1129 = vmatpush1.msra.mxu0 0.0
    %1130 = vmatprep.subr.mxu0 0.0
    %1131 = vmatpush1.msra.mxu0 0.0
    %1132 = vmatprep.subr.mxu0 0.0
    %1133 = vmatpush1.msra.mxu0 0.0
    %1134 = vmatprep.subr.mxu0 0.0
    %1135 = vmatpush1.msra.mxu0 %v1097
    %1136 = vmatprep.subr.mxu0 0.0
    %1137 = vmatpush1.msra.mxu0 %v1092
    %1138 = vmatprep.subr.mxu0 0.0
    %1139 = vmatpush1.msra.mxu0 %v1087
    %1140 = vmatprep.subr.mxu0 0.0
    %1141 = vmatpush1.msra.mxu0 %v1082
    %1142 = vmatprep.subr.mxu0 0.0
    %1143 = vmatpush1.msra.mxu0 %v1077
    %1144 = vmatprep.subr.mxu0 0.0
    %1145 = vmatpush1.msra.mxu0 %v1072
    %1146 = vmatprep.subr.mxu0 0.0
    %1147 = vmatpush2.msra.mxu0 0.0
    %1148 = vmatprep.subr.mxu0 0.0
    %1149 = vmatpush2.msra.mxu0 0.0
    %1150 = vmatprep.subr.mxu0 0.0
    %1151 = vmatpush2.msra.mxu0 0.0
    %1152 = vmatprep.subr.mxu0 0.0
    %1153 = vmatpush2.msra.mxu0 0.0
    %1154 = vmatprep.subr.mxu0 0.0
    %1155 = vmatpush2.msra.mxu0 0.0
    %1156 = vmatprep.subr.mxu0 0.0
    %1157 = vmatpush2.msra.mxu0 0.0
    %1158 = vmatprep.subr.mxu0 0.0
    %1159 = vmatpush2.msra.mxu0 0.0
    %1160 = vmatprep.subr.mxu0 0.0
    %1161 = vmatpush2.msra.mxu0 0.0
    %1162 = vmatprep.subr.mxu0 0.0
    %1163 = vmatpush2.msra.mxu0 0.0
    %1164 = vmatprep.subr.mxu0 0.0
    %1165 = vmatpush2.msra.mxu0 0.0
    %1166 = vmatprep.subr.mxu0 0.0
    %1167 = vmatpush2.msra.mxu0 0.0
    %1168 = vmatprep.subr.mxu0 0.0
    %1169 = vmatpush2.msra.mxu0 0.0
    %1170 = vmatprep.subr.mxu0 0.0
    %1171 = vmatpush2.msra.mxu0 0.0
    %1172 = vmatprep.subr.mxu0 0.0
    %1173 = vmatpush2.msra.mxu0 0.0
    %1174 = vmatprep.subr.mxu0 0.0
    %1175 = vmatpush2.msra.mxu0 0.0
    %1176 = vmatprep.subr.mxu0 0.0
    %1177 = vmatpush2.msra.mxu0 0.0
    %1178 = vmatprep.mubr.f32.mxu0 0.0
    %1179 = vmatmul.mubr.f32.gmra.mxu0 %v1109
    %v1180 = vpop.f32.mrf.mxu0
    %v1181 = vadd.f32 %v1105, %v1180
    %v1182 = vpop.f32.mrf.mxu0
    %1183 = vmatprep.mubr.f32.mxu0 0.0
    %1184 = vmatmul.mubr.f32.gmra.mxu0 %v1112
    %v1185 = vpop.f32.mrf.mxu0
    %v1186 = vadd.f32 %v1105, %v1185
    %v1187 = vpop.f32.mrf.mxu0
    %1188 = vdwg.mxu0
    %v1189 = vmax.f32 %v1181, 0.0
    %v1190 = vmax.f32 %v1186, 0.0
    %v1191 = vld [vmem:[%s29] sm:$0xff]
    %v1192 = vld [vmem:[%s31] sm:$0x1]
    %v1194 = vlaneseq
    %v1195 = vshrl.u32 %v1194, 7
    %v1196 = vsub.s32 0, %v1195
    %v1197 = vrot.slane %v1192, %v1196
    %v1200 = vsel %vm738, %v213, 0
    %v1203 = vsel %vm738, %v214, 0
    %1205 = vmatprep.subr.mxu0 0.0
    %1206 = vmatpush1.msra.mxu0 0.0
    %1207 = vmatprep.subr.mxu0 0.0
    %1208 = vmatpush1.msra.mxu0 0.0
    %1209 = vmatprep.subr.mxu0 0.0
    %1210 = vmatpush1.msra.mxu0 0.0
    %1211 = vmatprep.subr.mxu0 0.0
    %1212 = vmatpush1.msra.mxu0 0.0
    %1213 = vmatprep.subr.mxu0 0.0
    %1214 = vmatpush1.msra.mxu0 0.0
    %1215 = vmatprep.subr.mxu0 0.0
    %1216 = vmatpush1.msra.mxu0 0.0
    %1217 = vmatprep.subr.mxu0 0.0
    %1218 = vmatpush1.msra.mxu0 0.0
    %1219 = vmatprep.subr.mxu0 0.0
    %1220 = vmatpush1.msra.mxu0 0.0
    %1221 = vmatprep.subr.mxu0 0.0
    %1222 = vmatpush1.msra.mxu0 0.0
    %1223 = vmatprep.subr.mxu0 0.0
    %1224 = vmatpush1.msra.mxu0 0.0
    %1225 = vmatprep.subr.mxu0 0.0
    %1226 = vmatpush1.msra.mxu0 0.0
    %1227 = vmatprep.subr.mxu0 0.0
    %1228 = vmatpush1.msra.mxu0 0.0
    %1229 = vmatprep.subr.mxu0 0.0
    %1230 = vmatpush1.msra.mxu0 0.0
    %1231 = vmatprep.subr.mxu0 0.0
    %1232 = vmatpush1.msra.mxu0 0.0
    %1233 = vmatprep.subr.mxu0 0.0
    %1234 = vmatpush1.msra.mxu0 0.0
    %1235 = vmatprep.subr.mxu0 0.0
    %1236 = vmatpush1.msra.mxu0 %v1191
    %1237 = vmatprep.subr.mxu0 0.0
    %1238 = vmatpush2.msra.mxu0 0.0
    %1239 = vmatprep.subr.mxu0 0.0
    %1240 = vmatpush2.msra.mxu0 0.0
    %1241 = vmatprep.subr.mxu0 0.0
    %1242 = vmatpush2.msra.mxu0 0.0
    %1243 = vmatprep.subr.mxu0 0.0
    %1244 = vmatpush2.msra.mxu0 0.0
    %1245 = vmatprep.subr.mxu0 0.0
    %1246 = vmatpush2.msra.mxu0 0.0
    %1247 = vmatprep.subr.mxu0 0.0
    %1248 = vmatpush2.msra.mxu0 0.0
    %1249 = vmatprep.subr.mxu0 0.0
    %1250 = vmatpush2.msra.mxu0 0.0
    %1251 = vmatprep.subr.mxu0 0.0
    %1252 = vmatpush2.msra.mxu0 0.0
    %1253 = vmatprep.subr.mxu0 0.0
    %1254 = vmatpush2.msra.mxu0 0.0
    %1255 = vmatprep.subr.mxu0 0.0
    %1256 = vmatpush2.msra.mxu0 0.0
    %1257 = vmatprep.subr.mxu0 0.0
    %1258 = vmatpush2.msra.mxu0 0.0
    %1259 = vmatprep.subr.mxu0 0.0
    %1260 = vmatpush2.msra.mxu0 0.0
    %1261 = vmatprep.subr.mxu0 0.0
    %1262 = vmatpush2.msra.mxu0 0.0
    %1263 = vmatprep.subr.mxu0 0.0
    %1264 = vmatpush2.msra.mxu0 0.0
    %1265 = vmatprep.subr.mxu0 0.0
    %1266 = vmatpush2.msra.mxu0 0.0
    %1267 = vmatprep.subr.mxu0 0.0
    %1268 = vmatpush2.msra.mxu0 0.0
    %1269 = vmatprep.mubr.f32.mxu0 0.0
    %1270 = vmatmul.mubr.f32.gmra.mxu0 %v1200
    %v1271 = vpop.f32.mrf.mxu0
    %v1272 = vadd.f32 %v1197, %v1271
    %v1273 = vpop.f32.mrf.mxu0
    %1274 = vmatprep.mubr.f32.mxu0 0.0
    %1275 = vmatmul.mubr.f32.gmra.mxu0 %v1203
    %v1276 = vpop.f32.mrf.mxu0
    %v1277 = vadd.f32 %v1197, %v1276
    %v1278 = vpop.f32.mrf.mxu0
    %1279 = vdwg.mxu0
    %v1280 = vtanh.pop %v1272
    %v1281 = vtanh.pop %v1277
    %1284 = vrot.lane.b32.xlu0 %v1280, 112
    %v1285 = vpop.permute.xlu0 %1284
    %1286 = vrot.lane.b32.xlu0 %v1281, 112
    %v1287 = vpop.permute.xlu0 %1286
    %v1290 = vmul.f32 %v1280, %v1285
    %v1291 = vmul.f32 %v1281, %v1287
    %vm1292 = vcmask 523264
    %1293 = vst.msk [vmem:[#allocation2] sm:$0xff] %vm1292, %v1189
    %1294 = vst.msk [vmem:[#allocation2 + $0x8] sm:$0xff] %vm1292, %v1190
    %1297 = vrot.lane.b32.xlu0 %v1290, 64
    %v1298 = vpop.permute.xlu0 %1297
    %1299 = vrot.lane.b32.xlu0 %v1291, 64
    %v1300 = vpop.permute.xlu0 %1299
    %vm1303 = vcmask 654848
    %1304 = vst.msk [vmem:[#allocation2] sm:$0xff] %vm1303, %v1298
    %1305 = vst.msk [vmem:[#allocation2 + $0x8] sm:$0xff] %vm1303, %v1300
    %v1306 = vld [vmem:[#allocation2] sm:$0xff]
    %v1307 = vld [vmem:[#allocation2 + $0x8] sm:$0xff]
    %v1308 = vld [vmem:[%s33] sm:$0xff]
    %v1309 = vld [vmem:[%s33 + $0x8] sm:$0x3]
    %v1311 = vsel %vm236, %v1309, 0
    %1313 = vmatprep.subr.mxu0 0.0
    %1314 = vmatpush1.msra.mxu0 0.0
    %1315 = vmatprep.subr.mxu0 0.0
    %1316 = vmatpush1.msra.mxu0 0.0
    %1317 = vmatprep.subr.mxu0 0.0
    %1318 = vmatpush1.msra.mxu0 0.0
    %1319 = vmatprep.subr.mxu0 0.0
    %1320 = vmatpush1.msra.mxu0 0.0
    %1321 = vmatprep.subr.mxu0 0.0
    %1322 = vmatpush1.msra.mxu0 0.0
    %1323 = vmatprep.subr.mxu0 0.0
    %1324 = vmatpush1.msra.mxu0 0.0
    %1325 = vmatprep.subr.mxu0 0.0
    %1326 = vmatpush1.msra.mxu0 0.0
    %1327 = vmatprep.subr.mxu0 0.0
    %1328 = vmatpush1.msra.mxu0 0.0
    %1329 = vmatprep.subr.mxu0 0.0
    %1330 = vmatpush1.msra.mxu0 0.0
    %1331 = vmatprep.subr.mxu0 0.0
    %1332 = vmatpush1.msra.mxu0 0.0
    %1333 = vmatprep.subr.mxu0 0.0
    %1334 = vmatpush1.msra.mxu0 0.0
    %1335 = vmatprep.subr.mxu0 0.0
    %1336 = vmatpush1.msra.mxu0 0.0
    %1337 = vmatprep.subr.mxu0 0.0
    %1338 = vmatpush1.msra.mxu0 0.0
    %1339 = vmatprep.subr.mxu0 0.0
    %1340 = vmatpush1.msra.mxu0 0.0
    %1341 = vmatprep.subr.mxu0 0.0
    %1342 = vmatpush1.msra.mxu0 %v1311
    %1343 = vmatprep.subr.mxu0 0.0
    %1344 = vmatpush1.msra.mxu0 %v1308
    %1345 = vmatprep.subr.mxu0 0.0
    %1346 = vmatpush2.msra.mxu0 0.0
    %1347 = vmatprep.subr.mxu0 0.0
    %1348 = vmatpush2.msra.mxu0 0.0
    %1349 = vmatprep.subr.mxu0 0.0
    %1350 = vmatpush2.msra.mxu0 0.0
    %1351 = vmatprep.subr.mxu0 0.0
    %1352 = vmatpush2.msra.mxu0 0.0
    %1353 = vmatprep.subr.mxu0 0.0
    %1354 = vmatpush2.msra.mxu0 0.0
    %1355 = vmatprep.subr.mxu0 0.0
    %1356 = vmatpush2.msra.mxu0 0.0
    %1357 = vmatprep.subr.mxu0 0.0
    %1358 = vmatpush2.msra.mxu0 0.0
    %1359 = vmatprep.subr.mxu0 0.0
    %1360 = vmatpush2.msra.mxu0 0.0
    %1361 = vmatprep.subr.mxu0 0.0
    %1362 = vmatpush2.msra.mxu0 0.0
    %1363 = vmatprep.subr.mxu0 0.0
    %1364 = vmatpush2.msra.mxu0 0.0
    %1365 = vmatprep.subr.mxu0 0.0
    %1366 = vmatpush2.msra.mxu0 0.0
    %1367 = vmatprep.subr.mxu0 0.0
    %1368 = vmatpush2.msra.mxu0 0.0
    %1369 = vmatprep.subr.mxu0 0.0
    %1370 = vmatpush2.msra.mxu0 0.0
    %1371 = vmatprep.subr.mxu0 0.0
    %1372 = vmatpush2.msra.mxu0 0.0
    %1373 = vmatprep.subr.mxu0 0.0
    %1374 = vmatpush2.msra.mxu0 0.0
    %1375 = vmatprep.subr.mxu0 0.0
    %1376 = vmatpush2.msra.mxu0 0.0
    %1377 = vmatprep.mubr.f32.mxu0 0.0
    %1378 = vmatmul.mubr.f32.gmra.mxu0 %v219
    %v1379 = vpop.f32.mrf.mxu0
    %v1380 = vadd.f32 0.0, %v1379
    %v1381 = vpop.f32.mrf.mxu0
    %1382 = vmatprep.mubr.f32.mxu0 0.0
    %1383 = vmatmul.mubr.f32.gmra.mxu0 %v222
    %v1384 = vpop.f32.mrf.mxu0
    %v1385 = vadd.f32 0.0, %v1384
    %v1386 = vpop.f32.mrf.mxu0
    %1387 = vmatprep.mubr.f32.mxu0 0.0
    %1388 = vmatmul.mubr.f32.gmra.mxu0 %v225
    %v1389 = vpop.f32.mrf.mxu0
    %v1390 = vadd.f32 0.0, %v1389
    %v1391 = vpop.f32.mrf.mxu0
    %1392 = vmatprep.mubr.f32.mxu0 0.0
    %1393 = vmatmul.mubr.f32.gmra.mxu0 %v228
    %v1394 = vpop.f32.mrf.mxu0
    %v1395 = vadd.f32 0.0, %v1394
    %v1396 = vpop.f32.mrf.mxu0
    %1397 = vmatprep.mubr.f32.mxu0 0.0
    %1398 = vmatmul.mubr.f32.gmra.mxu0 %v231
    %v1399 = vpop.f32.mrf.mxu0
    %v1400 = vadd.f32 0.0, %v1399
    %v1401 = vpop.f32.mrf.mxu0
    %1402 = vmatprep.mubr.f32.mxu0 0.0
    %1403 = vmatmul.mubr.f32.gmra.mxu0 %v234
    %v1404 = vpop.f32.mrf.mxu0
    %v1405 = vadd.f32 0.0, %v1404
    %v1406 = vpop.f32.mrf.mxu0
    %1407 = vdwg.mxu0
    %v1408 = vmax.f32 %v1380, 0.0
    %v1409 = vmax.f32 %v1385, 0.0
    %v1410 = vmax.f32 %v1390, 0.0
    %v1411 = vmax.f32 %v1395, 0.0
    %v1412 = vmax.f32 %v1400, 0.0
    %v1413 = vmax.f32 %v1405, 0.0
    %1420 = vrot.lane.b32.xlu0 %v1408, 108
    %v1421 = vpop.permute.xlu0 %1420
    %1422 = vrot.lane.b32.xlu0 %v1409, 108
    %v1423 = vpop.permute.xlu0 %1422
    %1424 = vrot.lane.b32.xlu0 %v1410, 108
    %v1425 = vpop.permute.xlu0 %1424
    %1426 = vrot.lane.b32.xlu0 %v1411, 108
    %v1427 = vpop.permute.xlu0 %1426
    %1428 = vrot.lane.b32.xlu0 %v1412, 108
    %v1429 = vpop.permute.xlu0 %1428
    %1430 = vrot.lane.b32.xlu0 %v1413, 108
    %v1431 = vpop.permute.xlu0 %1430
    %v1438 = vmul.f32 %v1408, %v1421
    %v1439 = vmul.f32 %v1409, %v1423
    %v1440 = vmul.f32 %v1410, %v1425
    %v1441 = vmul.f32 %v1411, %v1427
    %v1442 = vmul.f32 %v1412, %v1429
    %v1443 = vmul.f32 %v1413, %v1431
    %v1444 = vld [vmem:[%s35] sm:$0xff]
    %v1445 = vld [vmem:[%s35 + $0x8] sm:$0xff]
    %v1446 = vld [vmem:[%s35 + $0x10] sm:$0xf]
    %v1447 = vld [vmem:[%s37] sm:$0xff]
    %v1448 = vld [vmem:[%s37 + $0x8] sm:$0xff]
    %v1449 = vld [vmem:[%s37 + $0x10] sm:$0xf]
    %1456 = vrot.lane.b32.xlu0 %v1438, 108
    %v1457 = vpop.permute.xlu0 %1456
    %1458 = vrot.lane.b32.xlu0 %v1439, 108
    %v1459 = vpop.permute.xlu0 %1458
    %1460 = vrot.lane.b32.xlu0 %v1440, 108
    %v1461 = vpop.permute.xlu0 %1460
    %1462 = vrot.lane.b32.xlu0 %v1441, 108
    %v1463 = vpop.permute.xlu0 %1462
    %1464 = vrot.lane.b32.xlu0 %v1442, 108
    %v1465 = vpop.permute.xlu0 %1464
    %1466 = vrot.lane.b32.xlu0 %v1443, 108
    %v1467 = vpop.permute.xlu0 %1466
    %v1468 = vsel %vm395, %v1457, 0
    %v1470 = vsel %vm395, %v1459, 0
    %v1472 = vsel %vm395, %v1461, 0
    %v1474 = vsel %vm395, %v1463, 0
    %v1476 = vsel %vm395, %v1465, 0
    %v1478 = vsel %vm395, %v1467, 0
    %v1481 = vsel %vm408, %v1449, 0
    %1483 = vmatprep.subr.mxu0 0.0
    %1484 = vmatpush1.msra.mxu0 0.0
    %1485 = vmatprep.subr.mxu0 0.0
    %1486 = vmatpush1.msra.mxu0 0.0
    %1487 = vmatprep.subr.mxu0 0.0
    %1488 = vmatpush1.msra.mxu0 0.0
    %1489 = vmatprep.subr.mxu0 0.0
    %1490 = vmatpush1.msra.mxu0 0.0
    %1491 = vmatprep.subr.mxu0 0.0
    %1492 = vmatpush1.msra.mxu0 0.0
    %1493 = vmatprep.subr.mxu0 0.0
    %1494 = vmatpush1.msra.mxu0 0.0
    %1495 = vmatprep.subr.mxu0 0.0
    %1496 = vmatpush1.msra.mxu0 0.0
    %1497 = vmatprep.subr.mxu0 0.0
    %1498 = vmatpush1.msra.mxu0 0.0
    %1499 = vmatprep.subr.mxu0 0.0
    %1500 = vmatpush1.msra.mxu0 0.0
    %1501 = vmatprep.subr.mxu0 0.0
    %1502 = vmatpush1.msra.mxu0 0.0
    %1503 = vmatprep.subr.mxu0 0.0
    %1504 = vmatpush1.msra.mxu0 0.0
    %1505 = vmatprep.subr.mxu0 0.0
    %1506 = vmatpush1.msra.mxu0 0.0
    %1507 = vmatprep.subr.mxu0 0.0
    %1508 = vmatpush1.msra.mxu0 0.0
    %1509 = vmatprep.subr.mxu0 0.0
    %1510 = vmatpush1.msra.mxu0 %v1481
    %1511 = vmatprep.subr.mxu0 0.0
    %1512 = vmatpush1.msra.mxu0 %v1448
    %1513 = vmatprep.subr.mxu0 0.0
    %1514 = vmatpush1.msra.mxu0 %v1447
    %1515 = vmatprep.subr.mxu0 0.0
    %1516 = vmatpush2.msra.mxu0 0.0
    %1517 = vmatprep.subr.mxu0 0.0
    %1518 = vmatpush2.msra.mxu0 0.0
    %1519 = vmatprep.subr.mxu0 0.0
    %1520 = vmatpush2.msra.mxu0 0.0
    %1521 = vmatprep.subr.mxu0 0.0
    %1522 = vmatpush2.msra.mxu0 0.0
    %1523 = vmatprep.subr.mxu0 0.0
    %1524 = vmatpush2.msra.mxu0 0.0
    %1525 = vmatprep.subr.mxu0 0.0
    %1526 = vmatpush2.msra.mxu0 0.0
    %1527 = vmatprep.subr.mxu0 0.0
    %1528 = vmatpush2.msra.mxu0 0.0
    %1529 = vmatprep.subr.mxu0 0.0
    %1530 = vmatpush2.msra.mxu0 0.0
    %1531 = vmatprep.subr.mxu0 0.0
    %1532 = vmatpush2.msra.mxu0 0.0
    %1533 = vmatprep.subr.mxu0 0.0
    %1534 = vmatpush2.msra.mxu0 0.0
    %1535 = vmatprep.subr.mxu0 0.0
    %1536 = vmatpush2.msra.mxu0 0.0
    %1537 = vmatprep.subr.mxu0 0.0
    %1538 = vmatpush2.msra.mxu0 0.0
    %1539 = vmatprep.subr.mxu0 0.0
    %1540 = vmatpush2.msra.mxu0 0.0
    %1541 = vmatprep.subr.mxu0 0.0
    %1542 = vmatpush2.msra.mxu0 0.0
    %1543 = vmatprep.subr.mxu0 0.0
    %1544 = vmatpush2.msra.mxu0 0.0
    %1545 = vmatprep.subr.mxu0 0.0
    %1546 = vmatpush2.msra.mxu0 0.0
    %1547 = vmatprep.mubr.f32.mxu0 0.0
    %1548 = vmatmul.mubr.f32.gmra.mxu0 %v1468
    %v1549 = vpop.f32.mrf.mxu0
    %v1550 = vadd.f32 0.0, %v1549
    %v1551 = vpop.f32.mrf.mxu0
    %1552 = vmatprep.mubr.f32.mxu0 0.0
    %1553 = vmatmul.mubr.f32.gmra.mxu0 %v1470
    %v1554 = vpop.f32.mrf.mxu0
    %v1555 = vadd.f32 0.0, %v1554
    %v1556 = vpop.f32.mrf.mxu0
    %1557 = vmatprep.mubr.f32.mxu0 0.0
    %1558 = vmatmul.mubr.f32.gmra.mxu0 %v1472
    %v1559 = vpop.f32.mrf.mxu0
    %v1560 = vadd.f32 0.0, %v1559
    %v1561 = vpop.f32.mrf.mxu0
    %1562 = vmatprep.mubr.f32.mxu0 0.0
    %1563 = vmatmul.mubr.f32.gmra.mxu0 %v1474
    %v1564 = vpop.f32.mrf.mxu0
    %v1565 = vadd.f32 0.0, %v1564
    %v1566 = vpop.f32.mrf.mxu0
    %1567 = vmatprep.mubr.f32.mxu0 0.0
    %1568 = vmatmul.mubr.f32.gmra.mxu0 %v1476
    %v1569 = vpop.f32.mrf.mxu0
    %v1570 = vadd.f32 0.0, %v1569
    %v1571 = vpop.f32.mrf.mxu0
    %1572 = vmatprep.mubr.f32.mxu0 0.0
    %1573 = vmatmul.mubr.f32.gmra.mxu0 %v1478
    %v1574 = vpop.f32.mrf.mxu0
    %v1575 = vadd.f32 0.0, %v1574
    %v1576 = vpop.f32.mrf.mxu0
    %1577 = vdwg.mxu0
    %v1578 = vsel %vm395, %v1408, 0
    %v1580 = vsel %vm395, %v1409, 0
    %v1582 = vsel %vm395, %v1410, 0
    %v1584 = vsel %vm395, %v1411, 0
    %v1586 = vsel %vm395, %v1412, 0
    %v1588 = vsel %vm395, %v1413, 0
    %v1591 = vsel %vm408, %v1446, 0
    %1593 = vmatprep.subr.mxu0 0.0
    %1594 = vmatpush1.msra.mxu0 0.0
    %1595 = vmatprep.subr.mxu0 0.0
    %1596 = vmatpush1.msra.mxu0 0.0
    %1597 = vmatprep.subr.mxu0 0.0
    %1598 = vmatpush1.msra.mxu0 0.0
    %1599 = vmatprep.subr.mxu0 0.0
    %1600 = vmatpush1.msra.mxu0 0.0
    %1601 = vmatprep.subr.mxu0 0.0
    %1602 = vmatpush1.msra.mxu0 0.0
    %1603 = vmatprep.subr.mxu0 0.0
    %1604 = vmatpush1.msra.mxu0 0.0
    %1605 = vmatprep.subr.mxu0 0.0
    %1606 = vmatpush1.msra.mxu0 0.0
    %1607 = vmatprep.subr.mxu0 0.0
    %1608 = vmatpush1.msra.mxu0 0.0
    %1609 = vmatprep.subr.mxu0 0.0
    %1610 = vmatpush1.msra.mxu0 0.0
    %1611 = vmatprep.subr.mxu0 0.0
    %1612 = vmatpush1.msra.mxu0 0.0
    %1613 = vmatprep.subr.mxu0 0.0
    %1614 = vmatpush1.msra.mxu0 0.0
    %1615 = vmatprep.subr.mxu0 0.0
    %1616 = vmatpush1.msra.mxu0 0.0
    %1617 = vmatprep.subr.mxu0 0.0
    %1618 = vmatpush1.msra.mxu0 0.0
    %1619 = vmatprep.subr.mxu0 0.0
    %1620 = vmatpush1.msra.mxu0 %v1591
    %1621 = vmatprep.subr.mxu0 0.0
    %1622 = vmatpush1.msra.mxu0 %v1445
    %1623 = vmatprep.subr.mxu0 0.0
    %1624 = vmatpush1.msra.mxu0 %v1444
    %1625 = vmatprep.subr.mxu0 0.0
    %1626 = vmatpush2.msra.mxu0 0.0
    %1627 = vmatprep.subr.mxu0 0.0
    %1628 = vmatpush2.msra.mxu0 0.0
    %1629 = vmatprep.subr.mxu0 0.0
    %1630 = vmatpush2.msra.mxu0 0.0
    %1631 = vmatprep.subr.mxu0 0.0
    %1632 = vmatpush2.msra.mxu0 0.0
    %1633 = vmatprep.subr.mxu0 0.0
    %1634 = vmatpush2.msra.mxu0 0.0
    %1635 = vmatprep.subr.mxu0 0.0
    %1636 = vmatpush2.msra.mxu0 0.0
    %1637 = vmatprep.subr.mxu0 0.0
    %1638 = vmatpush2.msra.mxu0 0.0
    %1639 = vmatprep.subr.mxu0 0.0
    %1640 = vmatpush2.msra.mxu0 0.0
    %1641 = vmatprep.subr.mxu0 0.0
    %1642 = vmatpush2.msra.mxu0 0.0
    %1643 = vmatprep.subr.mxu0 0.0
    %1644 = vmatpush2.msra.mxu0 0.0
    %1645 = vmatprep.subr.mxu0 0.0
    %1646 = vmatpush2.msra.mxu0 0.0
    %1647 = vmatprep.subr.mxu0 0.0
    %1648 = vmatpush2.msra.mxu0 0.0
    %1649 = vmatprep.subr.mxu0 0.0
    %1650 = vmatpush2.msra.mxu0 0.0
    %1651 = vmatprep.subr.mxu0 0.0
    %1652 = vmatpush2.msra.mxu0 0.0
    %1653 = vmatprep.subr.mxu0 0.0
    %1654 = vmatpush2.msra.mxu0 0.0
    %1655 = vmatprep.subr.mxu0 0.0
    %1656 = vmatpush2.msra.mxu0 0.0
    %1657 = vmatprep.mubr.f32.mxu0 0.0
    %1658 = vmatmul.mubr.f32.gmra.mxu0 %v1578
    %v1659 = vpop.f32.mrf.mxu0
    %v1660 = vadd.f32 %v1550, %v1659
    %v1661 = vpop.f32.mrf.mxu0
    %1662 = vmatprep.mubr.f32.mxu0 0.0
    %1663 = vmatmul.mubr.f32.gmra.mxu0 %v1580
    %v1664 = vpop.f32.mrf.mxu0
    %v1665 = vadd.f32 %v1555, %v1664
    %v1666 = vpop.f32.mrf.mxu0
    %1667 = vmatprep.mubr.f32.mxu0 0.0
    %1668 = vmatmul.mubr.f32.gmra.mxu0 %v1582
    %v1669 = vpop.f32.mrf.mxu0
    %v1670 = vadd.f32 %v1560, %v1669
    %v1671 = vpop.f32.mrf.mxu0
    %1672 = vmatprep.mubr.f32.mxu0 0.0
    %1673 = vmatmul.mubr.f32.gmra.mxu0 %v1584
    %v1674 = vpop.f32.mrf.mxu0
    %v1675 = vadd.f32 %v1565, %v1674
    %v1676 = vpop.f32.mrf.mxu0
    %1677 = vmatprep.mubr.f32.mxu0 0.0
    %1678 = vmatmul.mubr.f32.gmra.mxu0 %v1586
    %v1679 = vpop.f32.mrf.mxu0
    %v1680 = vadd.f32 %v1570, %v1679
    %v1681 = vpop.f32.mrf.mxu0
    %1682 = vmatprep.mubr.f32.mxu0 0.0
    %1683 = vmatmul.mubr.f32.gmra.mxu0 %v1588
    %v1684 = vpop.f32.mrf.mxu0
    %v1685 = vadd.f32 %v1575, %v1684
    %v1686 = vpop.f32.mrf.mxu0
    %1687 = vdwg.mxu0
    %v1688 = vmax.f32 %v1660, 0.0
    %v1689 = vmax.f32 %v1665, 0.0
    %v1690 = vmax.f32 %v1670, 0.0
    %v1691 = vmax.f32 %v1675, 0.0
    %v1692 = vmax.f32 %v1680, 0.0
    %v1693 = vmax.f32 %v1685, 0.0
    %1694 = vmatprep.subr.mxu0 0.0
    %1695 = vmatpush1.msra.mxu0 0.0
    %1696 = vmatprep.subr.mxu0 0.0
    %1697 = vmatpush1.msra.mxu0 0.0
    %1698 = vmatprep.subr.mxu0 0.0
    %1699 = vmatpush1.msra.mxu0 0.0
    %1700 = vmatprep.subr.mxu0 0.0
    %1701 = vmatpush1.msra.mxu0 0.0
    %1702 = vmatprep.subr.mxu0 0.0
    %1703 = vmatpush1.msra.mxu0 0.0
    %1704 = vmatprep.subr.mxu0 0.0
    %1705 = vmatpush1.msra.mxu0 0.0
    %1706 = vmatprep.subr.mxu0 0.0
    %1707 = vmatpush1.msra.mxu0 0.0
    %1708 = vmatprep.subr.mxu0 0.0
    %1709 = vmatpush1.msra.mxu0 0.0
    %1710 = vmatprep.subr.mxu0 0.0
    %1711 = vmatpush1.msra.mxu0 0.0
    %1712 = vmatprep.subr.mxu0 0.0
    %1713 = vmatpush1.msra.mxu0 0.0
    %1714 = vmatprep.subr.mxu0 0.0
    %1715 = vmatpush1.msra.mxu0 0.0
    %1716 = vmatprep.subr.mxu0 0.0
    %1717 = vmatpush1.msra.mxu0 0.0
    %1718 = vmatprep.subr.mxu0 0.0
    %1719 = vmatpush1.msra.mxu0 0.0
    %1720 = vmatprep.subr.mxu0 0.0
    %1721 = vmatpush1.msra.mxu0 0.0
    %1722 = vmatprep.subr.mxu0 0.0
    %1723 = vmatpush1.msra.mxu0 %v1307
    %1724 = vmatprep.subr.mxu0 0.0
    %1725 = vmatpush1.msra.mxu0 %v1306
    %1726 = vmatprep.subr.mxu0 0.0
    %1727 = vmatpush2.msra.mxu0 0.0
    %1728 = vmatprep.subr.mxu0 0.0
    %1729 = vmatpush2.msra.mxu0 0.0
    %1730 = vmatprep.subr.mxu0 0.0
    %1731 = vmatpush2.msra.mxu0 0.0
    %1732 = vmatprep.subr.mxu0 0.0
    %1733 = vmatpush2.msra.mxu0 0.0
    %1734 = vmatprep.subr.mxu0 0.0
    %1735 = vmatpush2.msra.mxu0 0.0
    %1736 = vmatprep.subr.mxu0 0.0
    %1737 = vmatpush2.msra.mxu0 0.0
    %1738 = vmatprep.subr.mxu0 0.0
    %1739 = vmatpush2.msra.mxu0 0.0
    %1740 = vmatprep.subr.mxu0 0.0
    %1741 = vmatpush2.msra.mxu0 0.0
    %1742 = vmatprep.subr.mxu0 0.0
    %1743 = vmatpush2.msra.mxu0 0.0
    %1744 = vmatprep.subr.mxu0 0.0
    %1745 = vmatpush2.msra.mxu0 0.0
    %1746 = vmatprep.subr.mxu0 0.0
    %1747 = vmatpush2.msra.mxu0 0.0
    %1748 = vmatprep.subr.mxu0 0.0
    %1749 = vmatpush2.msra.mxu0 0.0
    %1750 = vmatprep.subr.mxu0 0.0
    %1751 = vmatpush2.msra.mxu0 0.0
    %1752 = vmatprep.subr.mxu0 0.0
    %1753 = vmatpush2.msra.mxu0 0.0
    %1754 = vmatprep.subr.mxu0 0.0
    %1755 = vmatpush2.msra.mxu0 0.0
    %1756 = vmatprep.subr.mxu0 0.0
    %1757 = vmatpush2.msra.mxu0 0.0
    %1758 = vmatprep.mubr.f32.mxu0 0.0
    %1759 = vmatmul.mubr.f32.gmra.mxu0 %v625
    %v1760 = vpop.f32.mrf.mxu0
    %v1761 = vadd.f32 0.0, %v1760
    %v1762 = vpop.f32.mrf.mxu0
    %1763 = vmatprep.mubr.f32.mxu0 0.0
    %1764 = vmatmul.mubr.f32.gmra.mxu0 %v628
    %v1765 = vpop.f32.mrf.mxu0
    %v1766 = vadd.f32 0.0, %v1765
    %v1767 = vpop.f32.mrf.mxu0
    %1768 = vmatprep.mubr.f32.mxu0 0.0
    %1769 = vmatmul.mubr.f32.gmra.mxu0 %v631
    %v1770 = vpop.f32.mrf.mxu0
    %v1771 = vadd.f32 0.0, %v1770
    %v1772 = vpop.f32.mrf.mxu0
    %1773 = vmatprep.mubr.f32.mxu0 0.0
    %1774 = vmatmul.mubr.f32.gmra.mxu0 %v634
    %v1775 = vpop.f32.mrf.mxu0
    %v1776 = vadd.f32 0.0, %v1775
    %v1777 = vpop.f32.mrf.mxu0
    %1778 = vmatprep.mubr.f32.mxu0 0.0
    %1779 = vmatmul.mubr.f32.gmra.mxu0 %v637
    %v1780 = vpop.f32.mrf.mxu0
    %v1781 = vadd.f32 0.0, %v1780
    %v1782 = vpop.f32.mrf.mxu0
    %1783 = vmatprep.mubr.f32.mxu0 0.0
    %1784 = vmatmul.mubr.f32.gmra.mxu0 %v640
    %v1785 = vpop.f32.mrf.mxu0
    %v1786 = vadd.f32 0.0, %v1785
    %v1787 = vpop.f32.mrf.mxu0
    %1788 = vdwg.mxu0
    %v1789 = vld [vmem:[%s39] sm:$0xff]
    %v1790 = vld [vmem:[%s39 + $0x8] sm:$0xff]
    %v1791 = vld [vmem:[%s39 + $0x10] sm:$0xff]
    %v1792 = vld [vmem:[%s39 + $0x18] sm:$0xff]
    %v1793 = vld [vmem:[%s39 + $0x20] sm:$0xff]
    %v1794 = vld [vmem:[%s39 + $0x28] sm:$0xff]
    %v1795 = vld [vmem:[%s39 + $0x30] sm:$0xff]
    %v1796 = vld [vmem:[%s39 + $0x38] sm:$0xff]
    %v1797 = vld [vmem:[%s39 + $0x40] sm:$0xff]
    %v1798 = vld [vmem:[%s39 + $0x48] sm:$0xff]
    %v1799 = vld [vmem:[%s39 + $0x50] sm:$0xff]
    %v1800 = vld [vmem:[%s39 + $0x58] sm:$0xff]
    %v1801 = vld [vmem:[%s39 + $0x60] sm:$0xff]
    %v1802 = vld [vmem:[%s39 + $0x68] sm:$0xff]
    %v1803 = vld [vmem:[%s39 + $0x70] sm:$0xff]
    %v1804 = vld [vmem:[%s39 + $0x78] sm:$0xff]
    %v1805 = vld [vmem:[%s39 + $0x80] sm:$0xff]
    %v1806 = vld [vmem:[%s39 + $0x88] sm:$0xff]
    %v1807 = vld [vmem:[%s39 + $0x90] sm:$0xff]
    %v1808 = vld [vmem:[%s39 + $0x98] sm:$0xff]
    %v1809 = vld [vmem:[%s39 + $0xa0] sm:$0xff]
    %v1810 = vld [vmem:[%s39 + $0xa8] sm:$0xff]
    %v1811 = vld [vmem:[%s39 + $0xb0] sm:$0xff]
    %v1812 = vld [vmem:[%s39 + $0xb8] sm:$0xff]
    %v1813 = vld [vmem:[%s39 + $0xc0] sm:$0xff]
    %v1814 = vld [vmem:[%s39 + $0xc8] sm:$0xff]
    %v1815 = vld [vmem:[%s39 + $0xd0] sm:$0xff]
    %v1816 = vld [vmem:[%s39 + $0xd8] sm:$0xff]
    %v1817 = vld [vmem:[%s39 + $0xe0] sm:$0xff]
    %v1818 = vld [vmem:[%s39 + $0xe8] sm:$0xff]
    %v1819 = vld [vmem:[%s39 + $0xf0] sm:$0xff]
    %v1820 = vld [vmem:[%s39 + $0xf8] sm:$0xff]
    %v1821 = vld [vmem:[%s39 + $0x100] sm:$0xff]
    %v1822 = vld [vmem:[%s39 + $0x108] sm:$0xff]
    %v1823 = vld [vmem:[%s39 + $0x110] sm:$0xff]
    %v1824 = vld [vmem:[%s39 + $0x118] sm:$0xff]
    %v1825 = vld [vmem:[%s39 + $0x120] sm:$0xff]
    %v1826 = vld [vmem:[%s39 + $0x128] sm:$0xff]
    %v1827 = vld [vmem:[%s39 + $0x130] sm:$0xff]
    %v1828 = vld [vmem:[%s39 + $0x138] sm:$0xff]
    %v1829 = vld [vmem:[%s39 + $0x140] sm:$0xff]
    %v1830 = vld [vmem:[%s39 + $0x148] sm:$0xff]
    %v1831 = vld [vmem:[%s39 + $0x150] sm:$0xff]
    %v1832 = vld [vmem:[%s39 + $0x158] sm:$0xff]
    %v1833 = vld [vmem:[%s39 + $0x160] sm:$0xff]
    %v1834 = vld [vmem:[%s39 + $0x168] sm:$0xff]
    %v1835 = vld [vmem:[%s39 + $0x170] sm:$0xff]
    %v1836 = vld [vmem:[%s39 + $0x178] sm:$0xff]
    %v1837 = vld [vmem:[%s39 + $0x180] sm:$0xff]
    %v1838 = vld [vmem:[%s39 + $0x188] sm:$0xff]
    %v1839 = vld [vmem:[%s39 + $0x190] sm:$0xff]
    %v1840 = vld [vmem:[%s39 + $0x198] sm:$0xff]
    %v1841 = vld [vmem:[%s39 + $0x1a0] sm:$0xff]
    %v1842 = vld [vmem:[%s39 + $0x1a8] sm:$0xff]
    %v1843 = vld [vmem:[%s39 + $0x1b0] sm:$0xff]
    %v1844 = vld [vmem:[%s39 + $0x1b8] sm:$0xff]
    %v1845 = vld [vmem:[%s39 + $0x1c0] sm:$0xff]
    %v1846 = vld [vmem:[%s39 + $0x1c8] sm:$0xff]
    %v1847 = vld [vmem:[%s39 + $0x1d0] sm:$0xff]
    %v1848 = vld [vmem:[%s39 + $0x1d8] sm:$0xff]
    %v1849 = vld [vmem:[%s39 + $0x1e0] sm:$0xff]
    %v1850 = vld [vmem:[%s39 + $0x1e8] sm:$0xff]
    %v1851 = vld [vmem:[%s39 + $0x1f0] sm:$0xff]
    %v1852 = vld [vmem:[%s39 + $0x1f8] sm:$0xff]
    %v1853 = vld [vmem:[%s39 + $0x200] sm:$0xff]
    %v1854 = vld [vmem:[%s39 + $0x208] sm:$0xff]
    %v1855 = vld [vmem:[%s39 + $0x210] sm:$0xff]
    %v1856 = vld [vmem:[%s39 + $0x218] sm:$0xff]
    %v1857 = vld [vmem:[%s39 + $0x220] sm:$0xff]
    %v1858 = vld [vmem:[%s39 + $0x228] sm:$0xff]
    %v1860 = vsel %vm986, %v1761, 0
    %v1863 = vsel %vm986, %v1766, 0
    %v1866 = vsel %vm986, %v1771, 0
    %v1869 = vsel %vm986, %v1776, 0
    %v1872 = vsel %vm986, %v1781, 0
    %v1875 = vsel %vm986, %v1786, 0
    %1877 = vmatprep.subr.mxu0 0.0
    %1878 = vmatpush1.msra.mxu0 0.0
    %1879 = vmatprep.subr.mxu0 0.0
    %1880 = vmatpush1.msra.mxu0 0.0
    %1881 = vmatprep.subr.mxu0 0.0
    %1882 = vmatpush1.msra.mxu0 0.0
    %1883 = vmatprep.subr.mxu0 0.0
    %1884 = vmatpush1.msra.mxu0 0.0
    %1885 = vmatprep.subr.mxu0 0.0
    %1886 = vmatpush1.msra.mxu0 0.0
    %1887 = vmatprep.subr.mxu0 0.0
    %1888 = vmatpush1.msra.mxu0 0.0
    %1889 = vmatprep.subr.mxu0 %v1853
    %1890 = vmatpush1.msra.mxu0 %v1852
    %1891 = vmatprep.subr.mxu0 %v1846
    %1892 = vmatpush1.msra.mxu0 %v1845
    %1893 = vmatprep.subr.mxu0 %v1839
    %1894 = vmatpush1.msra.mxu0 %v1838
    %1895 = vmatprep.subr.mxu0 %v1832
    %1896 = vmatpush1.msra.mxu0 %v1831
    %1897 = vmatprep.subr.mxu0 %v1825
    %1898 = vmatpush1.msra.mxu0 %v1824
    %1899 = vmatprep.subr.mxu0 %v1818
    %1900 = vmatpush1.msra.mxu0 %v1817
    %1901 = vmatprep.subr.mxu0 %v1811
    %1902 = vmatpush1.msra.mxu0 %v1810
    %1903 = vmatprep.subr.mxu0 %v1804
    %1904 = vmatpush1.msra.mxu0 %v1803
    %1905 = vmatprep.subr.mxu0 %v1797
    %1906 = vmatpush1.msra.mxu0 %v1796
    %1907 = vmatprep.subr.mxu0 %v1790
    %1908 = vmatpush1.msra.mxu0 %v1789
    %1909 = vmatprep.subr.mxu0 0.0
    %1910 = vmatpush2.msra.mxu0 0.0
    %1911 = vmatprep.subr.mxu0 0.0
    %1912 = vmatpush2.msra.mxu0 0.0
    %1913 = vmatprep.subr.mxu0 0.0
    %1914 = vmatpush2.msra.mxu0 0.0
    %1915 = vmatprep.subr.mxu0 0.0
    %1916 = vmatpush2.msra.mxu0 0.0
    %1917 = vmatprep.subr.mxu0 0.0
    %1918 = vmatpush2.msra.mxu0 0.0
    %1919 = vmatprep.subr.mxu0 0.0
    %1920 = vmatpush2.msra.mxu0 0.0
    %1921 = vmatprep.subr.mxu0 0.0
    %1922 = vmatpush2.msra.mxu0 0.0
    %1923 = vmatprep.subr.mxu0 0.0
    %1924 = vmatpush2.msra.mxu0 0.0
    %1925 = vmatprep.subr.mxu0 0.0
    %1926 = vmatpush2.msra.mxu0 0.0
    %1927 = vmatprep.subr.mxu0 0.0
    %1928 = vmatpush2.msra.mxu0 0.0
    %1929 = vmatprep.subr.mxu0 0.0
    %1930 = vmatpush2.msra.mxu0 0.0
    %1931 = vmatprep.subr.mxu0 0.0
    %1932 = vmatpush2.msra.mxu0 0.0
    %1933 = vmatprep.subr.mxu0 0.0
    %1934 = vmatpush2.msra.mxu0 0.0
    %1935 = vmatprep.subr.mxu0 0.0
    %1936 = vmatpush2.msra.mxu0 0.0
    %1937 = vmatprep.subr.mxu0 0.0
    %1938 = vmatpush2.msra.mxu0 0.0
    %1939 = vmatprep.subr.mxu0 0.0
    %1940 = vmatpush2.msra.mxu0 0.0
    %1941 = vmatprep.mubr.f32.mxu0 0.0
    %1942 = vmatmul.mubr.f32.gmra.mxu0 %v1860
    %v1943 = vpop.f32.mrf.mxu0
    %v1944 = vadd.f32 0.0, %v1943
    %v1945 = vpop.f32.mrf.mxu0
    %v1946 = vadd.f32 0.0, %v1945
    %1947 = vmatprep.mubr.f32.mxu0 0.0
    %1948 = vmatmul.mubr.f32.gmra.mxu0 %v1863
    %v1949 = vpop.f32.mrf.mxu0
    %v1950 = vadd.f32 0.0, %v1949
    %v1951 = vpop.f32.mrf.mxu0
    %v1952 = vadd.f32 0.0, %v1951
    %1953 = vmatprep.mubr.f32.mxu0 0.0
    %1954 = vmatmul.mubr.f32.gmra.mxu0 %v1866
    %v1955 = vpop.f32.mrf.mxu0
    %v1956 = vadd.f32 0.0, %v1955
    %v1957 = vpop.f32.mrf.mxu0
    %v1958 = vadd.f32 0.0, %v1957
    %1959 = vmatprep.mubr.f32.mxu0 0.0
    %1960 = vmatmul.mubr.f32.gmra.mxu0 %v1869
    %v1961 = vpop.f32.mrf.mxu0
    %v1962 = vadd.f32 0.0, %v1961
    %v1963 = vpop.f32.mrf.mxu0
    %v1964 = vadd.f32 0.0, %v1963
    %1965 = vmatprep.mubr.f32.mxu0 0.0
    %1966 = vmatmul.mubr.f32.gmra.mxu0 %v1872
    %v1967 = vpop.f32.mrf.mxu0
    %v1968 = vadd.f32 0.0, %v1967
    %v1969 = vpop.f32.mrf.mxu0
    %v1970 = vadd.f32 0.0, %v1969
    %1971 = vmatprep.mubr.f32.mxu0 0.0
    %1972 = vmatmul.mubr.f32.gmra.mxu0 %v1875
    %v1973 = vpop.f32.mrf.mxu0
    %v1974 = vadd.f32 0.0, %v1973
    %v1975 = vpop.f32.mrf.mxu0
    %v1976 = vadd.f32 0.0, %v1975
    %1977 = vdwg.mxu0
    %1978 = vmatprep.subr.mxu0 0.0
    %1979 = vmatpush1.msra.mxu0 0.0
    %1980 = vmatprep.subr.mxu0 0.0
    %1981 = vmatpush1.msra.mxu0 0.0
    %1982 = vmatprep.subr.mxu0 0.0
    %1983 = vmatpush1.msra.mxu0 0.0
    %1984 = vmatprep.subr.mxu0 0.0
    %1985 = vmatpush1.msra.mxu0 0.0
    %1986 = vmatprep.subr.mxu0 0.0
    %1987 = vmatpush1.msra.mxu0 0.0
    %1988 = vmatprep.subr.mxu0 0.0
    %1989 = vmatpush1.msra.mxu0 0.0
    %1990 = vmatprep.subr.mxu0 %v1855
    %1991 = vmatpush1.msra.mxu0 %v1854
    %1992 = vmatprep.subr.mxu0 %v1848
    %1993 = vmatpush1.msra.mxu0 %v1847
    %1994 = vmatprep.subr.mxu0 %v1841
    %1995 = vmatpush1.msra.mxu0 %v1840
    %1996 = vmatprep.subr.mxu0 %v1834
    %1997 = vmatpush1.msra.mxu0 %v1833
    %1998 = vmatprep.subr.mxu0 %v1827
    %1999 = vmatpush1.msra.mxu0 %v1826
    %2000 = vmatprep.subr.mxu0 %v1820
    %2001 = vmatpush1.msra.mxu0 %v1819
    %2002 = vmatprep.subr.mxu0 %v1813
    %2003 = vmatpush1.msra.mxu0 %v1812
    %2004 = vmatprep.subr.mxu0 %v1806
    %2005 = vmatpush1.msra.mxu0 %v1805
    %2006 = vmatprep.subr.mxu0 %v1799
    %2007 = vmatpush1.msra.mxu0 %v1798
    %2008 = vmatprep.subr.mxu0 %v1792
    %2009 = vmatpush1.msra.mxu0 %v1791
    %2010 = vmatprep.subr.mxu0 0.0
    %2011 = vmatpush2.msra.mxu0 0.0
    %2012 = vmatprep.subr.mxu0 0.0
    %2013 = vmatpush2.msra.mxu0 0.0
    %2014 = vmatprep.subr.mxu0 0.0
    %2015 = vmatpush2.msra.mxu0 0.0
    %2016 = vmatprep.subr.mxu0 0.0
    %2017 = vmatpush2.msra.mxu0 0.0
    %2018 = vmatprep.subr.mxu0 0.0
    %2019 = vmatpush2.msra.mxu0 0.0
    %2020 = vmatprep.subr.mxu0 0.0
    %2021 = vmatpush2.msra.mxu0 0.0
    %2022 = vmatprep.subr.mxu0 0.0
    %2023 = vmatpush2.msra.mxu0 0.0
    %2024 = vmatprep.subr.mxu0 0.0
    %2025 = vmatpush2.msra.mxu0 0.0
    %2026 = vmatprep.subr.mxu0 0.0
    %2027 = vmatpush2.msra.mxu0 0.0
    %2028 = vmatprep.subr.mxu0 0.0
    %2029 = vmatpush2.msra.mxu0 0.0
    %2030 = vmatprep.subr.mxu0 0.0
    %2031 = vmatpush2.msra.mxu0 0.0
    %2032 = vmatprep.subr.mxu0 0.0
    %2033 = vmatpush2.msra.mxu0 0.0
    %2034 = vmatprep.subr.mxu0 0.0
    %2035 = vmatpush2.msra.mxu0 0.0
    %2036 = vmatprep.subr.mxu0 0.0
    %2037 = vmatpush2.msra.mxu0 0.0
    %2038 = vmatprep.subr.mxu0 0.0
    %2039 = vmatpush2.msra.mxu0 0.0
    %2040 = vmatprep.subr.mxu0 0.0
    %2041 = vmatpush2.msra.mxu0 0.0
    %2042 = vmatprep.mubr.f32.mxu0 0.0
    %2043 = vmatmul.mubr.f32.gmra.mxu0 %v1860
    %v2044 = vpop.f32.mrf.mxu0
    %v2045 = vadd.f32 0.0, %v2044
    %v2046 = vpop.f32.mrf.mxu0
    %v2047 = vadd.f32 0.0, %v2046
    %2048 = vmatprep.mubr.f32.mxu0 0.0
    %2049 = vmatmul.mubr.f32.gmra.mxu0 %v1863
    %v2050 = vpop.f32.mrf.mxu0
    %v2051 = vadd.f32 0.0, %v2050
    %v2052 = vpop.f32.mrf.mxu0
    %v2053 = vadd.f32 0.0, %v2052
    %2054 = vmatprep.mubr.f32.mxu0 0.0
    %2055 = vmatmul.mubr.f32.gmra.mxu0 %v1866
    %v2056 = vpop.f32.mrf.mxu0
    %v2057 = vadd.f32 0.0, %v2056
    %v2058 = vpop.f32.mrf.mxu0
    %v2059 = vadd.f32 0.0, %v2058
    %2060 = vmatprep.mubr.f32.mxu0 0.0
    %2061 = vmatmul.mubr.f32.gmra.mxu0 %v1869
    %v2062 = vpop.f32.mrf.mxu0
    %v2063 = vadd.f32 0.0, %v2062
    %v2064 = vpop.f32.mrf.mxu0
    %v2065 = vadd.f32 0.0, %v2064
    %2066 = vmatprep.mubr.f32.mxu0 0.0
    %2067 = vmatmul.mubr.f32.gmra.mxu0 %v1872
    %v2068 = vpop.f32.mrf.mxu0
    %v2069 = vadd.f32 0.0, %v2068
    %v2070 = vpop.f32.mrf.mxu0
    %v2071 = vadd.f32 0.0, %v2070
    %2072 = vmatprep.mubr.f32.mxu0 0.0
    %2073 = vmatmul.mubr.f32.gmra.mxu0 %v1875
    %v2074 = vpop.f32.mrf.mxu0
    %v2075 = vadd.f32 0.0, %v2074
    %v2076 = vpop.f32.mrf.mxu0
    %v2077 = vadd.f32 0.0, %v2076
    %2078 = vdwg.mxu0
    %2079 = vmatprep.subr.mxu0 0.0
    %2080 = vmatpush1.msra.mxu0 0.0
    %2081 = vmatprep.subr.mxu0 0.0
    %2082 = vmatpush1.msra.mxu0 0.0
    %2083 = vmatprep.subr.mxu0 0.0
    %2084 = vmatpush1.msra.mxu0 0.0
    %2085 = vmatprep.subr.mxu0 0.0
    %2086 = vmatpush1.msra.mxu0 0.0
    %2087 = vmatprep.subr.mxu0 0.0
    %2088 = vmatpush1.msra.mxu0 0.0
    %2089 = vmatprep.subr.mxu0 0.0
    %2090 = vmatpush1.msra.mxu0 0.0
    %2091 = vmatprep.subr.mxu0 %v1857
    %2092 = vmatpush1.msra.mxu0 %v1856
    %2093 = vmatprep.subr.mxu0 %v1850
    %2094 = vmatpush1.msra.mxu0 %v1849
    %2095 = vmatprep.subr.mxu0 %v1843
    %2096 = vmatpush1.msra.mxu0 %v1842
    %2097 = vmatprep.subr.mxu0 %v1836
    %2098 = vmatpush1.msra.mxu0 %v1835
    %2099 = vmatprep.subr.mxu0 %v1829
    %2100 = vmatpush1.msra.mxu0 %v1828
    %2101 = vmatprep.subr.mxu0 %v1822
    %2102 = vmatpush1.msra.mxu0 %v1821
    %2103 = vmatprep.subr.mxu0 %v1815
    %2104 = vmatpush1.msra.mxu0 %v1814
    %2105 = vmatprep.subr.mxu0 %v1808
    %2106 = vmatpush1.msra.mxu0 %v1807
    %2107 = vmatprep.subr.mxu0 %v1801
    %2108 = vmatpush1.msra.mxu0 %v1800
    %2109 = vmatprep.subr.mxu0 %v1794
    %2110 = vmatpush1.msra.mxu0 %v1793
    %2111 = vmatprep.subr.mxu0 0.0
    %2112 = vmatpush2.msra.mxu0 0.0
    %2113 = vmatprep.subr.mxu0 0.0
    %2114 = vmatpush2.msra.mxu0 0.0
    %2115 = vmatprep.subr.mxu0 0.0
    %2116 = vmatpush2.msra.mxu0 0.0
    %2117 = vmatprep.subr.mxu0 0.0
    %2118 = vmatpush2.msra.mxu0 0.0
    %2119 = vmatprep.subr.mxu0 0.0
    %2120 = vmatpush2.msra.mxu0 0.0
    %2121 = vmatprep.subr.mxu0 0.0
    %2122 = vmatpush2.msra.mxu0 0.0
    %2123 = vmatprep.subr.mxu0 0.0
    %2124 = vmatpush2.msra.mxu0 0.0
    %2125 = vmatprep.subr.mxu0 0.0
    %2126 = vmatpush2.msra.mxu0 0.0
    %2127 = vmatprep.subr.mxu0 0.0
    %2128 = vmatpush2.msra.mxu0 0.0
    %2129 = vmatprep.subr.mxu0 0.0
    %2130 = vmatpush2.msra.mxu0 0.0
    %2131 = vmatprep.subr.mxu0 0.0
    %2132 = vmatpush2.msra.mxu0 0.0
    %2133 = vmatprep.subr.mxu0 0.0
    %2134 = vmatpush2.msra.mxu0 0.0
    %2135 = vmatprep.subr.mxu0 0.0
    %2136 = vmatpush2.msra.mxu0 0.0
    %2137 = vmatprep.subr.mxu0 0.0
    %2138 = vmatpush2.msra.mxu0 0.0
    %2139 = vmatprep.subr.mxu0 0.0
    %2140 = vmatpush2.msra.mxu0 0.0
    %2141 = vmatprep.subr.mxu0 0.0
    %2142 = vmatpush2.msra.mxu0 0.0
    %2143 = vmatprep.mubr.f32.mxu0 0.0
    %2144 = vmatmul.mubr.f32.gmra.mxu0 %v1860
    %v2145 = vpop.f32.mrf.mxu0
    %v2146 = vadd.f32 0.0, %v2145
    %v2147 = vpop.f32.mrf.mxu0
    %v2148 = vadd.f32 0.0, %v2147
    %2149 = vmatprep.mubr.f32.mxu0 0.0
    %2150 = vmatmul.mubr.f32.gmra.mxu0 %v1863
    %v2151 = vpop.f32.mrf.mxu0
    %v2152 = vadd.f32 0.0, %v2151
    %v2153 = vpop.f32.mrf.mxu0
    %v2154 = vadd.f32 0.0, %v2153
    %2155 = vmatprep.mubr.f32.mxu0 0.0
    %2156 = vmatmul.mubr.f32.gmra.mxu0 %v1866
    %v2157 = vpop.f32.mrf.mxu0
    %v2158 = vadd.f32 0.0, %v2157
    %v2159 = vpop.f32.mrf.mxu0
    %v2160 = vadd.f32 0.0, %v2159
    %2161 = vmatprep.mubr.f32.mxu0 0.0
    %2162 = vmatmul.mubr.f32.gmra.mxu0 %v1869
    %v2163 = vpop.f32.mrf.mxu0
    %v2164 = vadd.f32 0.0, %v2163
    %v2165 = vpop.f32.mrf.mxu0
    %v2166 = vadd.f32 0.0, %v2165
    %2167 = vmatprep.mubr.f32.mxu0 0.0
    %2168 = vmatmul.mubr.f32.gmra.mxu0 %v1872
    %v2169 = vpop.f32.mrf.mxu0
    %v2170 = vadd.f32 0.0, %v2169
    %v2171 = vpop.f32.mrf.mxu0
    %v2172 = vadd.f32 0.0, %v2171
    %2173 = vmatprep.mubr.f32.mxu0 0.0
    %2174 = vmatmul.mubr.f32.gmra.mxu0 %v1875
    %v2175 = vpop.f32.mrf.mxu0
    %v2176 = vadd.f32 0.0, %v2175
    %v2177 = vpop.f32.mrf.mxu0
    %v2178 = vadd.f32 0.0, %v2177
    %2179 = vdwg.mxu0
    %2180 = vmatprep.subr.mxu0 0.0
    %2181 = vmatpush1.msra.mxu0 0.0
    %2182 = vmatprep.subr.mxu0 0.0
    %2183 = vmatpush1.msra.mxu0 0.0
    %2184 = vmatprep.subr.mxu0 0.0
    %2185 = vmatpush1.msra.mxu0 0.0
    %2186 = vmatprep.subr.mxu0 0.0
    %2187 = vmatpush1.msra.mxu0 0.0
    %2188 = vmatprep.subr.mxu0 0.0
    %2189 = vmatpush1.msra.mxu0 0.0
    %2190 = vmatprep.subr.mxu0 0.0
    %2191 = vmatpush1.msra.mxu0 0.0
    %2192 = vmatprep.subr.mxu0 0.0
    %2193 = vmatpush1.msra.mxu0 %v1858
    %2194 = vmatprep.subr.mxu0 0.0
    %2195 = vmatpush1.msra.mxu0 %v1851
    %2196 = vmatprep.subr.mxu0 0.0
    %2197 = vmatpush1.msra.mxu0 %v1844
    %2198 = vmatprep.subr.mxu0 0.0
    %2199 = vmatpush1.msra.mxu0 %v1837
    %2200 = vmatprep.subr.mxu0 0.0
    %2201 = vmatpush1.msra.mxu0 %v1830
    %2202 = vmatprep.subr.mxu0 0.0
    %2203 = vmatpush1.msra.mxu0 %v1823
    %2204 = vmatprep.subr.mxu0 0.0
    %2205 = vmatpush1.msra.mxu0 %v1816
    %2206 = vmatprep.subr.mxu0 0.0
    %2207 = vmatpush1.msra.mxu0 %v1809
    %2208 = vmatprep.subr.mxu0 0.0
    %2209 = vmatpush1.msra.mxu0 %v1802
    %2210 = vmatprep.subr.mxu0 0.0
    %2211 = vmatpush1.msra.mxu0 %v1795
    %2212 = vmatprep.subr.mxu0 0.0
    %2213 = vmatpush2.msra.mxu0 0.0
    %2214 = vmatprep.subr.mxu0 0.0
    %2215 = vmatpush2.msra.mxu0 0.0
    %2216 = vmatprep.subr.mxu0 0.0
    %2217 = vmatpush2.msra.mxu0 0.0
    %2218 = vmatprep.subr.mxu0 0.0
    %2219 = vmatpush2.msra.mxu0 0.0
    %2220 = vmatprep.subr.mxu0 0.0
    %2221 = vmatpush2.msra.mxu0 0.0
    %2222 = vmatprep.subr.mxu0 0.0
    %2223 = vmatpush2.msra.mxu0 0.0
    %2224 = vmatprep.subr.mxu0 0.0
    %2225 = vmatpush2.msra.mxu0 0.0
    %2226 = vmatprep.subr.mxu0 0.0
    %2227 = vmatpush2.msra.mxu0 0.0
    %2228 = vmatprep.subr.mxu0 0.0
    %2229 = vmatpush2.msra.mxu0 0.0
    %2230 = vmatprep.subr.mxu0 0.0
    %2231 = vmatpush2.msra.mxu0 0.0
    %2232 = vmatprep.subr.mxu0 0.0
    %2233 = vmatpush2.msra.mxu0 0.0
    %2234 = vmatprep.subr.mxu0 0.0
    %2235 = vmatpush2.msra.mxu0 0.0
    %2236 = vmatprep.subr.mxu0 0.0
    %2237 = vmatpush2.msra.mxu0 0.0
    %2238 = vmatprep.subr.mxu0 0.0
    %2239 = vmatpush2.msra.mxu0 0.0
    %2240 = vmatprep.subr.mxu0 0.0
    %2241 = vmatpush2.msra.mxu0 0.0
    %2242 = vmatprep.subr.mxu0 0.0
    %2243 = vmatpush2.msra.mxu0 0.0
    %2244 = vmatprep.mubr.f32.mxu0 0.0
    %2245 = vmatmul.mubr.f32.gmra.mxu0 %v1860
    %v2246 = vpop.f32.mrf.mxu0
    %v2247 = vadd.f32 0.0, %v2246
    %v2248 = vpop.f32.mrf.mxu0
    %2249 = vmatprep.mubr.f32.mxu0 0.0
    %2250 = vmatmul.mubr.f32.gmra.mxu0 %v1863
    %v2251 = vpop.f32.mrf.mxu0
    %v2252 = vadd.f32 0.0, %v2251
    %v2253 = vpop.f32.mrf.mxu0
    %2254 = vmatprep.mubr.f32.mxu0 0.0
    %2255 = vmatmul.mubr.f32.gmra.mxu0 %v1866
    %v2256 = vpop.f32.mrf.mxu0
    %v2257 = vadd.f32 0.0, %v2256
    %v2258 = vpop.f32.mrf.mxu0
    %2259 = vmatprep.mubr.f32.mxu0 0.0
    %2260 = vmatmul.mubr.f32.gmra.mxu0 %v1869
    %v2261 = vpop.f32.mrf.mxu0
    %v2262 = vadd.f32 0.0, %v2261
    %v2263 = vpop.f32.mrf.mxu0
    %2264 = vmatprep.mubr.f32.mxu0 0.0
    %2265 = vmatmul.mubr.f32.gmra.mxu0 %v1872
    %v2266 = vpop.f32.mrf.mxu0
    %v2267 = vadd.f32 0.0, %v2266
    %v2268 = vpop.f32.mrf.mxu0
    %2269 = vmatprep.mubr.f32.mxu0 0.0
    %2270 = vmatmul.mubr.f32.gmra.mxu0 %v1875
    %v2271 = vpop.f32.mrf.mxu0
    %v2272 = vadd.f32 0.0, %v2271
    %v2273 = vpop.f32.mrf.mxu0
    %2274 = vdwg.mxu0
    %v2275 = vld [vmem:[%s41] sm:$0xff]
    %v2276 = vld [vmem:[%s41 + $0x8] sm:$0xff]
    %v2277 = vld [vmem:[%s41 + $0x10] sm:$0xff]
    %v2278 = vld [vmem:[%s41 + $0x18] sm:$0xff]
    %v2279 = vld [vmem:[%s41 + $0x20] sm:$0xff]
    %v2280 = vld [vmem:[%s41 + $0x28] sm:$0xff]
    %v2281 = vld [vmem:[%s41 + $0x30] sm:$0xff]
    %v2282 = vld [vmem:[%s41 + $0x38] sm:$0x3]
    %v2283 = vld [vmem:[%s41 + $0x40] sm:$0x3]
    %v2284 = vld [vmem:[%s41 + $0x48] sm:$0x3]
    %v2285 = vld [vmem:[%s41 + $0x50] sm:$0x3]
    %v2286 = vld [vmem:[%s41 + $0x58] sm:$0x3]
    %v2287 = vld [vmem:[%s41 + $0x60] sm:$0x3]
    %v2288 = vld [vmem:[%s41 + $0x68] sm:$0x3]
    %v2290 = vsel %vm217, %v1688, 0
    %v2293 = vsel %vm217, %v1689, 0
    %v2296 = vsel %vm217, %v1690, 0
    %v2299 = vsel %vm217, %v1691, 0
    %v2302 = vsel %vm217, %v1692, 0
    %v2305 = vsel %vm217, %v1693, 0
    %v2308 = vsel %vm236, %v2282, 0
    %v2311 = vsel %vm236, %v2283, 0
    %v2314 = vsel %vm236, %v2284, 0
    %v2317 = vsel %vm236, %v2285, 0
    %v2320 = vsel %vm236, %v2286, 0
    %v2323 = vsel %vm236, %v2287, 0
    %v2326 = vsel %vm236, %v2288, 0
    %2328 = vmatprep.subr.mxu0 0.0
    %2329 = vmatpush1.msra.mxu0 0.0
    %2330 = vmatprep.subr.mxu0 0.0
    %2331 = vmatpush1.msra.mxu0 0.0
    %2332 = vmatprep.subr.mxu0 0.0
    %2333 = vmatpush1.msra.mxu0 0.0
    %2334 = vmatprep.subr.mxu0 0.0
    %2335 = vmatpush1.msra.mxu0 0.0
    %2336 = vmatprep.subr.mxu0 0.0
    %2337 = vmatpush1.msra.mxu0 0.0
    %2338 = vmatprep.subr.mxu0 0.0
    %2339 = vmatpush1.msra.mxu0 0.0
    %2340 = vmatprep.subr.mxu0 0.0
    %2341 = vmatpush1.msra.mxu0 0.0
    %2342 = vmatprep.subr.mxu0 0.0
    %2343 = vmatpush1.msra.mxu0 0.0
    %2344 = vmatprep.subr.mxu0 0.0
    %2345 = vmatpush1.msra.mxu0 0.0
    %2346 = vmatprep.subr.mxu0 0.0
    %2347 = vmatpush1.msra.mxu0 0.0
    %2348 = vmatprep.subr.mxu0 0.0
    %2349 = vmatpush1.msra.mxu0 0.0
    %2350 = vmatprep.subr.mxu0 0.0
    %2351 = vmatpush1.msra.mxu0 0.0
    %2352 = vmatprep.subr.mxu0 0.0
    %2353 = vmatpush1.msra.mxu0 0.0
    %2354 = vmatprep.subr.mxu0 0.0
    %2355 = vmatpush1.msra.mxu0 0.0
    %2356 = vmatprep.subr.mxu0 %v2311
    %2357 = vmatpush1.msra.mxu0 %v2308
    %2358 = vmatprep.subr.mxu0 %v2276
    %2359 = vmatpush1.msra.mxu0 %v2275
    %2360 = vmatprep.subr.mxu0 0.0
    %2361 = vmatpush2.msra.mxu0 0.0
    %2362 = vmatprep.subr.mxu0 0.0
    %2363 = vmatpush2.msra.mxu0 0.0
    %2364 = vmatprep.subr.mxu0 0.0
    %2365 = vmatpush2.msra.mxu0 0.0
    %2366 = vmatprep.subr.mxu0 0.0
    %2367 = vmatpush2.msra.mxu0 0.0
    %2368 = vmatprep.subr.mxu0 0.0
    %2369 = vmatpush2.msra.mxu0 0.0
    %2370 = vmatprep.subr.mxu0 0.0
    %2371 = vmatpush2.msra.mxu0 0.0
    %2372 = vmatprep.subr.mxu0 0.0
    %2373 = vmatpush2.msra.mxu0 0.0
    %2374 = vmatprep.subr.mxu0 0.0
    %2375 = vmatpush2.msra.mxu0 0.0
    %2376 = vmatprep.subr.mxu0 0.0
    %2377 = vmatpush2.msra.mxu0 0.0
    %2378 = vmatprep.subr.mxu0 0.0
    %2379 = vmatpush2.msra.mxu0 0.0
    %2380 = vmatprep.subr.mxu0 0.0
    %2381 = vmatpush2.msra.mxu0 0.0
    %2382 = vmatprep.subr.mxu0 0.0
    %2383 = vmatpush2.msra.mxu0 0.0
    %2384 = vmatprep.subr.mxu0 0.0
    %2385 = vmatpush2.msra.mxu0 0.0
    %2386 = vmatprep.subr.mxu0 0.0
    %2387 = vmatpush2.msra.mxu0 0.0
    %2388 = vmatprep.subr.mxu0 0.0
    %2389 = vmatpush2.msra.mxu0 0.0
    %2390 = vmatprep.subr.mxu0 0.0
    %2391 = vmatpush2.msra.mxu0 0.0
    %2392 = vmatprep.mubr.f32.mxu0 0.0
    %2393 = vmatmul.mubr.f32.gmra.mxu0 %v2290
    %v2394 = vpop.f32.mrf.mxu0
    %v2395 = vadd.f32 0.0, %v2394
    %v2396 = vpop.f32.mrf.mxu0
    %v2397 = vadd.f32 0.0, %v2396
    %2398 = vmatprep.mubr.f32.mxu0 0.0
    %2399 = vmatmul.mubr.f32.gmra.mxu0 %v2293
    %v2400 = vpop.f32.mrf.mxu0
    %v2401 = vadd.f32 0.0, %v2400
    %v2402 = vpop.f32.mrf.mxu0
    %v2403 = vadd.f32 0.0, %v2402
    %2404 = vmatprep.mubr.f32.mxu0 0.0
    %2405 = vmatmul.mubr.f32.gmra.mxu0 %v2296
    %v2406 = vpop.f32.mrf.mxu0
    %v2407 = vadd.f32 0.0, %v2406
    %v2408 = vpop.f32.mrf.mxu0
    %v2409 = vadd.f32 0.0, %v2408
    %2410 = vmatprep.mubr.f32.mxu0 0.0
    %2411 = vmatmul.mubr.f32.gmra.mxu0 %v2299
    %v2412 = vpop.f32.mrf.mxu0
    %v2413 = vadd.f32 0.0, %v2412
    %v2414 = vpop.f32.mrf.mxu0
    %v2415 = vadd.f32 0.0, %v2414
    %2416 = vmatprep.mubr.f32.mxu0 0.0
    %2417 = vmatmul.mubr.f32.gmra.mxu0 %v2302
    %v2418 = vpop.f32.mrf.mxu0
    %v2419 = vadd.f32 0.0, %v2418
    %v2420 = vpop.f32.mrf.mxu0
    %v2421 = vadd.f32 0.0, %v2420
    %2422 = vmatprep.mubr.f32.mxu0 0.0
    %2423 = vmatmul.mubr.f32.gmra.mxu0 %v2305
    %v2424 = vpop.f32.mrf.mxu0
    %v2425 = vadd.f32 0.0, %v2424
    %v2426 = vpop.f32.mrf.mxu0
    %v2427 = vadd.f32 0.0, %v2426
    %2428 = vdwg.mxu0
    %2429 = vmatprep.subr.mxu0 0.0
    %2430 = vmatpush1.msra.mxu0 0.0
    %2431 = vmatprep.subr.mxu0 0.0
    %2432 = vmatpush1.msra.mxu0 0.0
    %2433 = vmatprep.subr.mxu0 0.0
    %2434 = vmatpush1.msra.mxu0 0.0
    %2435 = vmatprep.subr.mxu0 0.0
    %2436 = vmatpush1.msra.mxu0 0.0
    %2437 = vmatprep.subr.mxu0 0.0
    %2438 = vmatpush1.msra.mxu0 0.0
    %2439 = vmatprep.subr.mxu0 0.0
    %2440 = vmatpush1.msra.mxu0 0.0
    %2441 = vmatprep.subr.mxu0 0.0
    %2442 = vmatpush1.msra.mxu0 0.0
    %2443 = vmatprep.subr.mxu0 0.0
    %2444 = vmatpush1.msra.mxu0 0.0
    %2445 = vmatprep.subr.mxu0 0.0
    %2446 = vmatpush1.msra.mxu0 0.0
    %2447 = vmatprep.subr.mxu0 0.0
    %2448 = vmatpush1.msra.mxu0 0.0
    %2449 = vmatprep.subr.mxu0 0.0
    %2450 = vmatpush1.msra.mxu0 0.0
    %2451 = vmatprep.subr.mxu0 0.0
    %2452 = vmatpush1.msra.mxu0 0.0
    %2453 = vmatprep.subr.mxu0 0.0
    %2454 = vmatpush1.msra.mxu0 0.0
    %2455 = vmatprep.subr.mxu0 0.0
    %2456 = vmatpush1.msra.mxu0 0.0
    %2457 = vmatprep.subr.mxu0 %v2317
    %2458 = vmatpush1.msra.mxu0 %v2314
    %2459 = vmatprep.subr.mxu0 %v2278
    %2460 = vmatpush1.msra.mxu0 %v2277
    %2461 = vmatprep.subr.mxu0 0.0
    %2462 = vmatpush2.msra.mxu0 0.0
    %2463 = vmatprep.subr.mxu0 0.0
    %2464 = vmatpush2.msra.mxu0 0.0
    %2465 = vmatprep.subr.mxu0 0.0
    %2466 = vmatpush2.msra.mxu0 0.0
    %2467 = vmatprep.subr.mxu0 0.0
    %2468 = vmatpush2.msra.mxu0 0.0
    %2469 = vmatprep.subr.mxu0 0.0
    %2470 = vmatpush2.msra.mxu0 0.0
    %2471 = vmatprep.subr.mxu0 0.0
    %2472 = vmatpush2.msra.mxu0 0.0
    %2473 = vmatprep.subr.mxu0 0.0
    %2474 = vmatpush2.msra.mxu0 0.0
    %2475 = vmatprep.subr.mxu0 0.0
    %2476 = vmatpush2.msra.mxu0 0.0
    %2477 = vmatprep.subr.mxu0 0.0
    %2478 = vmatpush2.msra.mxu0 0.0
    %2479 = vmatprep.subr.mxu0 0.0
    %2480 = vmatpush2.msra.mxu0 0.0
    %2481 = vmatprep.subr.mxu0 0.0
    %2482 = vmatpush2.msra.mxu0 0.0
    %2483 = vmatprep.subr.mxu0 0.0
    %2484 = vmatpush2.msra.mxu0 0.0
    %2485 = vmatprep.subr.mxu0 0.0
    %2486 = vmatpush2.msra.mxu0 0.0
    %2487 = vmatprep.subr.mxu0 0.0
    %2488 = vmatpush2.msra.mxu0 0.0
    %2489 = vmatprep.subr.mxu0 0.0
    %2490 = vmatpush2.msra.mxu0 0.0
    %2491 = vmatprep.subr.mxu0 0.0
    %2492 = vmatpush2.msra.mxu0 0.0
    %2493 = vmatprep.mubr.f32.mxu0 0.0
    %2494 = vmatmul.mubr.f32.gmra.mxu0 %v2290
    %v2495 = vpop.f32.mrf.mxu0
    %v2496 = vadd.f32 0.0, %v2495
    %v2497 = vpop.f32.mrf.mxu0
    %v2498 = vadd.f32 0.0, %v2497
    %2499 = vmatprep.mubr.f32.mxu0 0.0
    %2500 = vmatmul.mubr.f32.gmra.mxu0 %v2293
    %v2501 = vpop.f32.mrf.mxu0
    %v2502 = vadd.f32 0.0, %v2501
    %v2503 = vpop.f32.mrf.mxu0
    %v2504 = vadd.f32 0.0, %v2503
    %2505 = vmatprep.mubr.f32.mxu0 0.0
    %2506 = vmatmul.mubr.f32.gmra.mxu0 %v2296
    %v2507 = vpop.f32.mrf.mxu0
    %v2508 = vadd.f32 0.0, %v2507
    %v2509 = vpop.f32.mrf.mxu0
    %v2510 = vadd.f32 0.0, %v2509
    %2511 = vmatprep.mubr.f32.mxu0 0.0
    %2512 = vmatmul.mubr.f32.gmra.mxu0 %v2299
    %v2513 = vpop.f32.mrf.mxu0
    %v2514 = vadd.f32 0.0, %v2513
    %v2515 = vpop.f32.mrf.mxu0
    %v2516 = vadd.f32 0.0, %v2515
    %2517 = vmatprep.mubr.f32.mxu0 0.0
    %2518 = vmatmul.mubr.f32.gmra.mxu0 %v2302
    %v2519 = vpop.f32.mrf.mxu0
    %v2520 = vadd.f32 0.0, %v2519
    %v2521 = vpop.f32.mrf.mxu0
    %v2522 = vadd.f32 0.0, %v2521
    %2523 = vmatprep.mubr.f32.mxu0 0.0
    %2524 = vmatmul.mubr.f32.gmra.mxu0 %v2305
    %v2525 = vpop.f32.mrf.mxu0
    %v2526 = vadd.f32 0.0, %v2525
    %v2527 = vpop.f32.mrf.mxu0
    %v2528 = vadd.f32 0.0, %v2527
    %2529 = vdwg.mxu0
    %2530 = vmatprep.subr.mxu0 0.0
    %2531 = vmatpush1.msra.mxu0 0.0
    %2532 = vmatprep.subr.mxu0 0.0
    %2533 = vmatpush1.msra.mxu0 0.0
    %2534 = vmatprep.subr.mxu0 0.0
    %2535 = vmatpush1.msra.mxu0 0.0
    %2536 = vmatprep.subr.mxu0 0.0
    %2537 = vmatpush1.msra.mxu0 0.0
    %2538 = vmatprep.subr.mxu0 0.0
    %2539 = vmatpush1.msra.mxu0 0.0
    %2540 = vmatprep.subr.mxu0 0.0
    %2541 = vmatpush1.msra.mxu0 0.0
    %2542 = vmatprep.subr.mxu0 0.0
    %2543 = vmatpush1.msra.mxu0 0.0
    %2544 = vmatprep.subr.mxu0 0.0
    %2545 = vmatpush1.msra.mxu0 0.0
    %2546 = vmatprep.subr.mxu0 0.0
    %2547 = vmatpush1.msra.mxu0 0.0
    %2548 = vmatprep.subr.mxu0 0.0
    %2549 = vmatpush1.msra.mxu0 0.0
    %2550 = vmatprep.subr.mxu0 0.0
    %2551 = vmatpush1.msra.mxu0 0.0
    %2552 = vmatprep.subr.mxu0 0.0
    %2553 = vmatpush1.msra.mxu0 0.0
    %2554 = vmatprep.subr.mxu0 0.0
    %2555 = vmatpush1.msra.mxu0 0.0
    %2556 = vmatprep.subr.mxu0 0.0
    %2557 = vmatpush1.msra.mxu0 0.0
    %2558 = vmatprep.subr.mxu0 %v2323
    %2559 = vmatpush1.msra.mxu0 %v2320
    %2560 = vmatprep.subr.mxu0 %v2280
    %2561 = vmatpush1.msra.mxu0 %v2279
    %2562 = vmatprep.subr.mxu0 0.0
    %2563 = vmatpush2.msra.mxu0 0.0
    %2564 = vmatprep.subr.mxu0 0.0
    %2565 = vmatpush2.msra.mxu0 0.0
    %2566 = vmatprep.subr.mxu0 0.0
    %2567 = vmatpush2.msra.mxu0 0.0
    %2568 = vmatprep.subr.mxu0 0.0
    %2569 = vmatpush2.msra.mxu0 0.0
    %2570 = vmatprep.subr.mxu0 0.0
    %2571 = vmatpush2.msra.mxu0 0.0
    %2572 = vmatprep.subr.mxu0 0.0
    %2573 = vmatpush2.msra.mxu0 0.0
    %2574 = vmatprep.subr.mxu0 0.0
    %2575 = vmatpush2.msra.mxu0 0.0
    %2576 = vmatprep.subr.mxu0 0.0
    %2577 = vmatpush2.msra.mxu0 0.0
    %2578 = vmatprep.subr.mxu0 0.0
    %2579 = vmatpush2.msra.mxu0 0.0
    %2580 = vmatprep.subr.mxu0 0.0
    %2581 = vmatpush2.msra.mxu0 0.0
    %2582 = vmatprep.subr.mxu0 0.0
    %2583 = vmatpush2.msra.mxu0 0.0
    %2584 = vmatprep.subr.mxu0 0.0
    %2585 = vmatpush2.msra.mxu0 0.0
    %2586 = vmatprep.subr.mxu0 0.0
    %2587 = vmatpush2.msra.mxu0 0.0
    %2588 = vmatprep.subr.mxu0 0.0
    %2589 = vmatpush2.msra.mxu0 0.0
    %2590 = vmatprep.subr.mxu0 0.0
    %2591 = vmatpush2.msra.mxu0 0.0
    %2592 = vmatprep.subr.mxu0 0.0
    %2593 = vmatpush2.msra.mxu0 0.0
    %2594 = vmatprep.mubr.f32.mxu0 0.0
    %2595 = vmatmul.mubr.f32.gmra.mxu0 %v2290
    %v2596 = vpop.f32.mrf.mxu0
    %v2597 = vadd.f32 0.0, %v2596
    %v2598 = vpop.f32.mrf.mxu0
    %v2599 = vadd.f32 0.0, %v2598
    %2600 = vmatprep.mubr.f32.mxu0 0.0
    %2601 = vmatmul.mubr.f32.gmra.mxu0 %v2293
    %v2602 = vpop.f32.mrf.mxu0
    %v2603 = vadd.f32 0.0, %v2602
    %v2604 = vpop.f32.mrf.mxu0
    %v2605 = vadd.f32 0.0, %v2604
    %2606 = vmatprep.mubr.f32.mxu0 0.0
    %2607 = vmatmul.mubr.f32.gmra.mxu0 %v2296
    %v2608 = vpop.f32.mrf.mxu0
    %v2609 = vadd.f32 0.0, %v2608
    %v2610 = vpop.f32.mrf.mxu0
    %v2611 = vadd.f32 0.0, %v2610
    %2612 = vmatprep.mubr.f32.mxu0 0.0
    %2613 = vmatmul.mubr.f32.gmra.mxu0 %v2299
    %v2614 = vpop.f32.mrf.mxu0
    %v2615 = vadd.f32 0.0, %v2614
    %v2616 = vpop.f32.mrf.mxu0
    %v2617 = vadd.f32 0.0, %v2616
    %2618 = vmatprep.mubr.f32.mxu0 0.0
    %2619 = vmatmul.mubr.f32.gmra.mxu0 %v2302
    %v2620 = vpop.f32.mrf.mxu0
    %v2621 = vadd.f32 0.0, %v2620
    %v2622 = vpop.f32.mrf.mxu0
    %v2623 = vadd.f32 0.0, %v2622
    %2624 = vmatprep.mubr.f32.mxu0 0.0
    %2625 = vmatmul.mubr.f32.gmra.mxu0 %v2305
    %v2626 = vpop.f32.mrf.mxu0
    %v2627 = vadd.f32 0.0, %v2626
    %v2628 = vpop.f32.mrf.mxu0
    %v2629 = vadd.f32 0.0, %v2628
    %2630 = vdwg.mxu0
    %2631 = vmatprep.subr.mxu0 0.0
    %2632 = vmatpush1.msra.mxu0 0.0
    %2633 = vmatprep.subr.mxu0 0.0
    %2634 = vmatpush1.msra.mxu0 0.0
    %2635 = vmatprep.subr.mxu0 0.0
    %2636 = vmatpush1.msra.mxu0 0.0
    %2637 = vmatprep.subr.mxu0 0.0
    %2638 = vmatpush1.msra.mxu0 0.0
    %2639 = vmatprep.subr.mxu0 0.0
    %2640 = vmatpush1.msra.mxu0 0.0
    %2641 = vmatprep.subr.mxu0 0.0
    %2642 = vmatpush1.msra.mxu0 0.0
    %2643 = vmatprep.subr.mxu0 0.0
    %2644 = vmatpush1.msra.mxu0 0.0
    %2645 = vmatprep.subr.mxu0 0.0
    %2646 = vmatpush1.msra.mxu0 0.0
    %2647 = vmatprep.subr.mxu0 0.0
    %2648 = vmatpush1.msra.mxu0 0.0
    %2649 = vmatprep.subr.mxu0 0.0
    %2650 = vmatpush1.msra.mxu0 0.0
    %2651 = vmatprep.subr.mxu0 0.0
    %2652 = vmatpush1.msra.mxu0 0.0
    %2653 = vmatprep.subr.mxu0 0.0
    %2654 = vmatpush1.msra.mxu0 0.0
    %2655 = vmatprep.subr.mxu0 0.0
    %2656 = vmatpush1.msra.mxu0 0.0
    %2657 = vmatprep.subr.mxu0 0.0
    %2658 = vmatpush1.msra.mxu0 0.0
    %2659 = vmatprep.subr.mxu0 0.0
    %2660 = vmatpush1.msra.mxu0 %v2326
    %2661 = vmatprep.subr.mxu0 0.0
    %2662 = vmatpush1.msra.mxu0 %v2281
    %2663 = vmatprep.subr.mxu0 0.0
    %2664 = vmatpush2.msra.mxu0 0.0
    %2665 = vmatprep.subr.mxu0 0.0
    %2666 = vmatpush2.msra.mxu0 0.0
    %2667 = vmatprep.subr.mxu0 0.0
    %2668 = vmatpush2.msra.mxu0 0.0
    %2669 = vmatprep.subr.mxu0 0.0
    %2670 = vmatpush2.msra.mxu0 0.0
    %2671 = vmatprep.subr.mxu0 0.0
    %2672 = vmatpush2.msra.mxu0 0.0
    %2673 = vmatprep.subr.mxu0 0.0
    %2674 = vmatpush2.msra.mxu0 0.0
    %2675 = vmatprep.subr.mxu0 0.0
    %2676 = vmatpush2.msra.mxu0 0.0
    %2677 = vmatprep.subr.mxu0 0.0
    %2678 = vmatpush2.msra.mxu0 0.0
    %2679 = vmatprep.subr.mxu0 0.0
    %2680 = vmatpush2.msra.mxu0 0.0
    %2681 = vmatprep.subr.mxu0 0.0
    %2682 = vmatpush2.msra.mxu0 0.0
    %2683 = vmatprep.subr.mxu0 0.0
    %2684 = vmatpush2.msra.mxu0 0.0
    %2685 = vmatprep.subr.mxu0 0.0
    %2686 = vmatpush2.msra.mxu0 0.0
    %2687 = vmatprep.subr.mxu0 0.0
    %2688 = vmatpush2.msra.mxu0 0.0
    %2689 = vmatprep.subr.mxu0 0.0
    %2690 = vmatpush2.msra.mxu0 0.0
    %2691 = vmatprep.subr.mxu0 0.0
    %2692 = vmatpush2.msra.mxu0 0.0
    %2693 = vmatprep.subr.mxu0 0.0
    %2694 = vmatpush2.msra.mxu0 0.0
    %2695 = vmatprep.mubr.f32.mxu0 0.0
    %2696 = vmatmul.mubr.f32.gmra.mxu0 %v2290
    %v2697 = vpop.f32.mrf.mxu0
    %v2698 = vadd.f32 0.0, %v2697
    %v2699 = vpop.f32.mrf.mxu0
    %2700 = vmatprep.mubr.f32.mxu0 0.0
    %2701 = vmatmul.mubr.f32.gmra.mxu0 %v2293
    %v2702 = vpop.f32.mrf.mxu0
    %v2703 = vadd.f32 0.0, %v2702
    %v2704 = vpop.f32.mrf.mxu0
    %2705 = vmatprep.mubr.f32.mxu0 0.0
    %2706 = vmatmul.mubr.f32.gmra.mxu0 %v2296
    %v2707 = vpop.f32.mrf.mxu0
    %v2708 = vadd.f32 0.0, %v2707
    %v2709 = vpop.f32.mrf.mxu0
    %2710 = vmatprep.mubr.f32.mxu0 0.0
    %2711 = vmatmul.mubr.f32.gmra.mxu0 %v2299
    %v2712 = vpop.f32.mrf.mxu0
    %v2713 = vadd.f32 0.0, %v2712
    %v2714 = vpop.f32.mrf.mxu0
    %2715 = vmatprep.mubr.f32.mxu0 0.0
    %2716 = vmatmul.mubr.f32.gmra.mxu0 %v2302
    %v2717 = vpop.f32.mrf.mxu0
    %v2718 = vadd.f32 0.0, %v2717
    %v2719 = vpop.f32.mrf.mxu0
    %2720 = vmatprep.mubr.f32.mxu0 0.0
    %2721 = vmatmul.mubr.f32.gmra.mxu0 %v2305
    %v2722 = vpop.f32.mrf.mxu0
    %v2723 = vadd.f32 0.0, %v2722
    %v2724 = vpop.f32.mrf.mxu0
    %2725 = vdwg.mxu0
    %v2726 = vmul.f32 %v1944, %v2395
    %v2727 = vmul.f32 %v1946, %v2397
    %v2728 = vmul.f32 %v2045, %v2496
    %v2729 = vmul.f32 %v2047, %v2498
    %v2730 = vmul.f32 %v2146, %v2597
    %v2731 = vmul.f32 %v2148, %v2599
    %v2732 = vmul.f32 %v2247, %v2698
    %v2733 = vmul.f32 %v1950, %v2401
    %v2734 = vmul.f32 %v1952, %v2403
    %v2735 = vmul.f32 %v2051, %v2502
    %v2736 = vmul.f32 %v2053, %v2504
    %v2737 = vmul.f32 %v2152, %v2603
    %v2738 = vmul.f32 %v2154, %v2605
    %v2739 = vmul.f32 %v2252, %v2703
    %v2740 = vmul.f32 %v1956, %v2407
    %v2741 = vmul.f32 %v1958, %v2409
    %v2742 = vmul.f32 %v2057, %v2508
    %v2743 = vmul.f32 %v2059, %v2510
    %v2744 = vmul.f32 %v2158, %v2609
    %v2745 = vmul.f32 %v2160, %v2611
    %v2746 = vmul.f32 %v2257, %v2708
    %v2747 = vmul.f32 %v1962, %v2413
    %v2748 = vmul.f32 %v1964, %v2415
    %v2749 = vmul.f32 %v2063, %v2514
    %v2750 = vmul.f32 %v2065, %v2516
    %v2751 = vmul.f32 %v2164, %v2615
    %v2752 = vmul.f32 %v2166, %v2617
    %v2753 = vmul.f32 %v2262, %v2713
    %v2754 = vmul.f32 %v1968, %v2419
    %v2755 = vmul.f32 %v1970, %v2421
    %v2756 = vmul.f32 %v2069, %v2520
    %v2757 = vmul.f32 %v2071, %v2522
    %v2758 = vmul.f32 %v2170, %v2621
    %v2759 = vmul.f32 %v2172, %v2623
    %v2760 = vmul.f32 %v2267, %v2718
    %v2761 = vmul.f32 %v1974, %v2425
    %v2762 = vmul.f32 %v1976, %v2427
    %v2763 = vmul.f32 %v2075, %v2526
    %v2764 = vmul.f32 %v2077, %v2528
    %v2765 = vmul.f32 %v2176, %v2627
    %v2766 = vmul.f32 %v2178, %v2629
    %v2767 = vmul.f32 %v2272, %v2723
    %v2768 = vld [vmem:[%s43] sm:$0xff]
    %v2769 = vld [vmem:[%s43 + $0x8] sm:$0xff]
    %v2770 = vld [vmem:[%s43 + $0x10] sm:$0xff]
    %v2771 = vld [vmem:[%s43 + $0x18] sm:$0xff]
    %v2772 = vld [vmem:[%s43 + $0x20] sm:$0xff]
    %v2773 = vld [vmem:[%s43 + $0x28] sm:$0xff]
    %v2774 = vld [vmem:[%s43 + $0x30] sm:$0xff]
    %v2775 = vld [vmem:[%s43 + $0x38] sm:$0xff]
    %v2776 = vld [vmem:[%s43 + $0x40] sm:$0xff]
    %v2777 = vld [vmem:[%s43 + $0x48] sm:$0xff]
    %v2778 = vld [vmem:[%s43 + $0x50] sm:$0xff]
    %v2779 = vld [vmem:[%s43 + $0x58] sm:$0xff]
    %v2780 = vld [vmem:[%s43 + $0x60] sm:$0xff]
    %v2781 = vld [vmem:[%s43 + $0x68] sm:$0xff]
    %v2782 = vld [vmem:[%s43 + $0x70] sm:$0xff]
    %v2783 = vld [vmem:[%s43 + $0x78] sm:$0xff]
    %v2784 = vld [vmem:[%s43 + $0x80] sm:$0xff]
    %v2785 = vld [vmem:[%s43 + $0x88] sm:$0xff]
    %v2786 = vld [vmem:[%s43 + $0x90] sm:$0xff]
    %v2787 = vld [vmem:[%s43 + $0x98] sm:$0xff]
    %v2788 = vld [vmem:[%s43 + $0xa0] sm:$0xff]
    %v2789 = vld [vmem:[%s43 + $0xa8] sm:$0xff]
    %v2790 = vld [vmem:[%s43 + $0xb0] sm:$0xff]
    %v2791 = vld [vmem:[%s43 + $0xb8] sm:$0xff]
    %v2792 = vld [vmem:[%s43 + $0xc0] sm:$0xff]
    %v2793 = vld [vmem:[%s43 + $0xc8] sm:$0xff]
    %v2794 = vld [vmem:[%s43 + $0xd0] sm:$0xff]
    %v2795 = vld [vmem:[%s43 + $0xd8] sm:$0xff]
    %v2796 = vld [vmem:[%s43 + $0xe0] sm:$0xff]
    %v2797 = vld [vmem:[%s43 + $0xe8] sm:$0xff]
    %v2798 = vld [vmem:[%s43 + $0xf0] sm:$0xff]
    %v2799 = vld [vmem:[%s43 + $0xf8] sm:$0xff]
    %v2800 = vld [vmem:[%s43 + $0x100] sm:$0xff]
    %v2801 = vld [vmem:[%s43 + $0x108] sm:$0xff]
    %v2802 = vld [vmem:[%s43 + $0x110] sm:$0xff]
    %v2803 = vld [vmem:[%s43 + $0x118] sm:$0xff]
    %v2804 = vld [vmem:[%s43 + $0x120] sm:$0xff]
    %v2805 = vld [vmem:[%s43 + $0x128] sm:$0xff]
    %v2806 = vld [vmem:[%s43 + $0x130] sm:$0xff]
    %v2807 = vld [vmem:[%s43 + $0x138] sm:$0xff]
    %v2808 = vld [vmem:[%s43 + $0x140] sm:$0xff]
    %v2809 = vld [vmem:[%s43 + $0x148] sm:$0xff]
    %v2810 = vld [vmem:[%s43 + $0x150] sm:$0xff]
    %v2811 = vld [vmem:[%s43 + $0x158] sm:$0xff]
    %v2812 = vld [vmem:[%s43 + $0x160] sm:$0xff]
    %v2813 = vld [vmem:[%s43 + $0x168] sm:$0xff]
    %v2814 = vld [vmem:[%s43 + $0x170] sm:$0xff]
    %v2815 = vld [vmem:[%s43 + $0x178] sm:$0xff]
    %v2816 = vld [vmem:[%s43 + $0x180] sm:$0xff]
    %v2817 = vld [vmem:[%s43 + $0x188] sm:$0xff]
    %v2818 = vld [vmem:[%s43 + $0x190] sm:$0xff]
    %v2819 = vld [vmem:[%s43 + $0x198] sm:$0xff]
    %v2820 = vld [vmem:[%s43 + $0x1a0] sm:$0xff]
    %v2821 = vld [vmem:[%s43 + $0x1a8] sm:$0xff]
    %v2822 = vld [vmem:[%s43 + $0x1b0] sm:$0xff]
    %v2823 = vld [vmem:[%s43 + $0x1b8] sm:$0xff]
    %v2824 = vld [vmem:[%s43 + $0x1c0] sm:$0xff]
    %v2825 = vld [vmem:[%s43 + $0x1c8] sm:$0xff]
    %v2826 = vld [vmem:[%s43 + $0x1d0] sm:$0xff]
    %v2827 = vld [vmem:[%s43 + $0x1d8] sm:$0xff]
    %v2828 = vld [vmem:[%s43 + $0x1e0] sm:$0xff]
    %v2829 = vld [vmem:[%s43 + $0x1e8] sm:$0xff]
    %v2830 = vld [vmem:[%s43 + $0x1f0] sm:$0xff]
    %v2831 = vld [vmem:[%s43 + $0x1f8] sm:$0xff]
    %v2832 = vld [vmem:[%s43 + $0x200] sm:$0xff]
    %v2833 = vld [vmem:[%s43 + $0x208] sm:$0xff]
    %v2834 = vld [vmem:[%s43 + $0x210] sm:$0xff]
    %v2835 = vld [vmem:[%s43 + $0x218] sm:$0xff]
    %v2836 = vld [vmem:[%s43 + $0x220] sm:$0xff]
    %v2837 = vld [vmem:[%s43 + $0x228] sm:$0xff]
    %v2838 = vld [vmem:[%s43 + $0x230] sm:$0xff]
    %v2839 = vld [vmem:[%s43 + $0x238] sm:$0xff]
    %v2840 = vld [vmem:[%s43 + $0x240] sm:$0xff]
    %v2841 = vld [vmem:[%s43 + $0x248] sm:$0xff]
    %v2842 = vld [vmem:[%s43 + $0x250] sm:$0xff]
    %v2843 = vld [vmem:[%s43 + $0x258] sm:$0xff]
    %v2844 = vld [vmem:[%s43 + $0x260] sm:$0xff]
    %v2845 = vld [vmem:[%s43 + $0x268] sm:$0xff]
    %v2846 = vld [vmem:[%s43 + $0x270] sm:$0xff]
    %v2847 = vld [vmem:[%s43 + $0x278] sm:$0xff]
    %v2848 = vld [vmem:[%s43 + $0x280] sm:$0xff]
    %v2849 = vld [vmem:[%s43 + $0x288] sm:$0xff]
    %v2850 = vld [vmem:[%s43 + $0x290] sm:$0xff]
    %v2851 = vld [vmem:[%s43 + $0x298] sm:$0xff]
    %v2852 = vld [vmem:[%s43 + $0x2a0] sm:$0xff]
    %v2853 = vld [vmem:[%s43 + $0x2a8] sm:$0xff]
    %v2854 = vld [vmem:[%s43 + $0x2b0] sm:$0xff]
    %v2855 = vld [vmem:[%s43 + $0x2b8] sm:$0xff]
    %v2856 = vld [vmem:[%s43 + $0x2c0] sm:$0xff]
    %v2857 = vld [vmem:[%s43 + $0x2c8] sm:$0xff]
    %v2858 = vld [vmem:[%s43 + $0x2d0] sm:$0xff]
    %v2859 = vld [vmem:[%s43 + $0x2d8] sm:$0xff]
    %v2860 = vld [vmem:[%s43 + $0x2e0] sm:$0xff]
    %v2861 = vld [vmem:[%s43 + $0x2e8] sm:$0xff]
    %v2862 = vld [vmem:[%s43 + $0x2f0] sm:$0xff]
    %v2863 = vld [vmem:[%s43 + $0x2f8] sm:$0xff]
    %v2864 = vld [vmem:[%s43 + $0x300] sm:$0xff]
    %v2865 = vld [vmem:[%s43 + $0x308] sm:$0xff]
    %v2866 = vld [vmem:[%s43 + $0x310] sm:$0xff]
    %v2867 = vld [vmem:[%s43 + $0x318] sm:$0xff]
    %vm2868 = vcmask 261120
    %v2870 = vsel %vm2868, %v2732, 0
    %v2873 = vsel %vm2868, %v2739, 0
    %v2876 = vsel %vm2868, %v2746, 0
    %v2879 = vsel %vm2868, %v2753, 0
    %v2882 = vsel %vm2868, %v2760, 0
    %v2885 = vsel %vm2868, %v2767, 0
    %2887 = vmatprep.subr.mxu0 0.0
    %2888 = vmatpush1.msra.mxu0 %v2783
    %2889 = vmatprep.subr.mxu0 0.0
    %2890 = vmatpush1.msra.mxu0 %v2782
    %2891 = vmatprep.subr.mxu0 0.0
    %2892 = vmatpush1.msra.mxu0 %v2781
    %2893 = vmatprep.subr.mxu0 0.0
    %2894 = vmatpush1.msra.mxu0 %v2780
    %2895 = vmatprep.subr.mxu0 0.0
    %2896 = vmatpush1.msra.mxu0 %v2779
    %2897 = vmatprep.subr.mxu0 0.0
    %2898 = vmatpush1.msra.mxu0 %v2778
    %2899 = vmatprep.subr.mxu0 0.0
    %2900 = vmatpush1.msra.mxu0 %v2777
    %2901 = vmatprep.subr.mxu0 0.0
    %2902 = vmatpush1.msra.mxu0 %v2776
    %2903 = vmatprep.subr.mxu0 0.0
    %2904 = vmatpush1.msra.mxu0 %v2775
    %2905 = vmatprep.subr.mxu0 0.0
    %2906 = vmatpush1.msra.mxu0 %v2774
    %2907 = vmatprep.subr.mxu0 0.0
    %2908 = vmatpush1.msra.mxu0 %v2773
    %2909 = vmatprep.subr.mxu0 0.0
    %2910 = vmatpush1.msra.mxu0 %v2772
    %2911 = vmatprep.subr.mxu0 0.0
    %2912 = vmatpush1.msra.mxu0 %v2771
    %2913 = vmatprep.subr.mxu0 0.0
    %2914 = vmatpush1.msra.mxu0 %v2770
    %2915 = vmatprep.subr.mxu0 0.0
    %2916 = vmatpush1.msra.mxu0 %v2769
    %2917 = vmatprep.subr.mxu0 0.0
    %2918 = vmatpush1.msra.mxu0 %v2768
    %2919 = vmatprep.subr.mxu0 0.0
    %2920 = vmatpush2.msra.mxu0 %v2799
    %2921 = vmatprep.subr.mxu0 0.0
    %2922 = vmatpush2.msra.mxu0 %v2798
    %2923 = vmatprep.subr.mxu0 0.0
    %2924 = vmatpush2.msra.mxu0 %v2797
    %2925 = vmatprep.subr.mxu0 0.0
    %2926 = vmatpush2.msra.mxu0 %v2796
    %2927 = vmatprep.subr.mxu0 0.0
    %2928 = vmatpush2.msra.mxu0 %v2795
    %2929 = vmatprep.subr.mxu0 0.0
    %2930 = vmatpush2.msra.mxu0 %v2794
    %2931 = vmatprep.subr.mxu0 0.0
    %2932 = vmatpush2.msra.mxu0 %v2793
    %2933 = vmatprep.subr.mxu0 0.0
    %2934 = vmatpush2.msra.mxu0 %v2792
    %2935 = vmatprep.subr.mxu0 0.0
    %2936 = vmatpush2.msra.mxu0 %v2791
    %2937 = vmatprep.subr.mxu0 0.0
    %2938 = vmatpush2.msra.mxu0 %v2790
    %2939 = vmatprep.subr.mxu0 0.0
    %2940 = vmatpush2.msra.mxu0 %v2789
    %2941 = vmatprep.subr.mxu0 0.0
    %2942 = vmatpush2.msra.mxu0 %v2788
    %2943 = vmatprep.subr.mxu0 0.0
    %2944 = vmatpush2.msra.mxu0 %v2787
    %2945 = vmatprep.subr.mxu0 0.0
    %2946 = vmatpush2.msra.mxu0 %v2786
    %2947 = vmatprep.subr.mxu0 0.0
    %2948 = vmatpush2.msra.mxu0 %v2785
    %2949 = vmatprep.subr.mxu0 0.0
    %2950 = vmatpush2.msra.mxu0 %v2784
    %2951 = vmatprep.mubr.f32.mxu0 %v2727
    %2952 = vmatmul.mubr.f32.gmra.mxu0 %v2726
    %v2953 = vpop.f32.mrf.mxu0
    %v2954 = vadd.f32 0.0, %v2953
    %v2955 = vpop.f32.mrf.mxu0
    %2956 = vmatprep.mubr.f32.mxu0 %v2734
    %2957 = vmatmul.mubr.f32.gmra.mxu0 %v2733
    %v2958 = vpop.f32.mrf.mxu0
    %v2959 = vadd.f32 0.0, %v2958
    %v2960 = vpop.f32.mrf.mxu0
    %2961 = vmatprep.mubr.f32.mxu0 %v2741
    %2962 = vmatmul.mubr.f32.gmra.mxu0 %v2740
    %v2963 = vpop.f32.mrf.mxu0
    %v2964 = vadd.f32 0.0, %v2963
    %v2965 = vpop.f32.mrf.mxu0
    %2966 = vmatprep.mubr.f32.mxu0 %v2748
    %2967 = vmatmul.mubr.f32.gmra.mxu0 %v2747
    %v2968 = vpop.f32.mrf.mxu0
    %v2969 = vadd.f32 0.0, %v2968
    %v2970 = vpop.f32.mrf.mxu0
    %2971 = vmatprep.mubr.f32.mxu0 %v2755
    %2972 = vmatmul.mubr.f32.gmra.mxu0 %v2754
    %v2973 = vpop.f32.mrf.mxu0
    %v2974 = vadd.f32 0.0, %v2973
    %v2975 = vpop.f32.mrf.mxu0
    %2976 = vmatprep.mubr.f32.mxu0 %v2762
    %2977 = vmatmul.mubr.f32.gmra.mxu0 %v2761
    %v2978 = vpop.f32.mrf.mxu0
    %v2979 = vadd.f32 0.0, %v2978
    %v2980 = vpop.f32.mrf.mxu0
    %2981 = vdwg.mxu0
    %2982 = vmatprep.subr.mxu0 0.0
    %2983 = vmatpush1.msra.mxu0 %v2815
    %2984 = vmatprep.subr.mxu0 0.0
    %2985 = vmatpush1.msra.mxu0 %v2814
    %2986 = vmatprep.subr.mxu0 0.0
    %2987 = vmatpush1.msra.mxu0 %v2813
    %2988 = vmatprep.subr.mxu0 0.0
    %2989 = vmatpush1.msra.mxu0 %v2812
    %2990 = vmatprep.subr.mxu0 0.0
    %2991 = vmatpush1.msra.mxu0 %v2811
    %2992 = vmatprep.subr.mxu0 0.0
    %2993 = vmatpush1.msra.mxu0 %v2810
    %2994 = vmatprep.subr.mxu0 0.0
    %2995 = vmatpush1.msra.mxu0 %v2809
    %2996 = vmatprep.subr.mxu0 0.0
    %2997 = vmatpush1.msra.mxu0 %v2808
    %2998 = vmatprep.subr.mxu0 0.0
    %2999 = vmatpush1.msra.mxu0 %v2807
    %3000 = vmatprep.subr.mxu0 0.0
    %3001 = vmatpush1.msra.mxu0 %v2806
    %3002 = vmatprep.subr.mxu0 0.0
    %3003 = vmatpush1.msra.mxu0 %v2805
    %3004 = vmatprep.subr.mxu0 0.0
    %3005 = vmatpush1.msra.mxu0 %v2804
    %3006 = vmatprep.subr.mxu0 0.0
    %3007 = vmatpush1.msra.mxu0 %v2803
    %3008 = vmatprep.subr.mxu0 0.0
    %3009 = vmatpush1.msra.mxu0 %v2802
    %3010 = vmatprep.subr.mxu0 0.0
    %3011 = vmatpush1.msra.mxu0 %v2801
    %3012 = vmatprep.subr.mxu0 0.0
    %3013 = vmatpush1.msra.mxu0 %v2800
    %3014 = vmatprep.subr.mxu0 0.0
    %3015 = vmatpush2.msra.mxu0 %v2831
    %3016 = vmatprep.subr.mxu0 0.0
    %3017 = vmatpush2.msra.mxu0 %v2830
    %3018 = vmatprep.subr.mxu0 0.0
    %3019 = vmatpush2.msra.mxu0 %v2829
    %3020 = vmatprep.subr.mxu0 0.0
    %3021 = vmatpush2.msra.mxu0 %v2828
    %3022 = vmatprep.subr.mxu0 0.0
    %3023 = vmatpush2.msra.mxu0 %v2827
    %3024 = vmatprep.subr.mxu0 0.0
    %3025 = vmatpush2.msra.mxu0 %v2826
    %3026 = vmatprep.subr.mxu0 0.0
    %3027 = vmatpush2.msra.mxu0 %v2825
    %3028 = vmatprep.subr.mxu0 0.0
    %3029 = vmatpush2.msra.mxu0 %v2824
    %3030 = vmatprep.subr.mxu0 0.0
    %3031 = vmatpush2.msra.mxu0 %v2823
    %3032 = vmatprep.subr.mxu0 0.0
    %3033 = vmatpush2.msra.mxu0 %v2822
    %3034 = vmatprep.subr.mxu0 0.0
    %3035 = vmatpush2.msra.mxu0 %v2821
    %3036 = vmatprep.subr.mxu0 0.0
    %3037 = vmatpush2.msra.mxu0 %v2820
    %3038 = vmatprep.subr.mxu0 0.0
    %3039 = vmatpush2.msra.mxu0 %v2819
    %3040 = vmatprep.subr.mxu0 0.0
    %3041 = vmatpush2.msra.mxu0 %v2818
    %3042 = vmatprep.subr.mxu0 0.0
    %3043 = vmatpush2.msra.mxu0 %v2817
    %3044 = vmatprep.subr.mxu0 0.0
    %3045 = vmatpush2.msra.mxu0 %v2816
    %3046 = vmatprep.mubr.f32.mxu0 %v2729
    %3047 = vmatmul.mubr.f32.gmra.mxu0 %v2728
    %v3048 = vpop.f32.mrf.mxu0
    %v3049 = vadd.f32 %v2954, %v3048
    %v3050 = vpop.f32.mrf.mxu0
    %3051 = vmatprep.mubr.f32.mxu0 %v2736
    %3052 = vmatmul.mubr.f32.gmra.mxu0 %v2735
    %v3053 = vpop.f32.mrf.mxu0
    %v3054 = vadd.f32 %v2959, %v3053
    %v3055 = vpop.f32.mrf.mxu0
    %3056 = vmatprep.mubr.f32.mxu0 %v2743
    %3057 = vmatmul.mubr.f32.gmra.mxu0 %v2742
    %v3058 = vpop.f32.mrf.mxu0
    %v3059 = vadd.f32 %v2964, %v3058
    %v3060 = vpop.f32.mrf.mxu0
    %3061 = vmatprep.mubr.f32.mxu0 %v2750
    %3062 = vmatmul.mubr.f32.gmra.mxu0 %v2749
    %v3063 = vpop.f32.mrf.mxu0
    %v3064 = vadd.f32 %v2969, %v3063
    %v3065 = vpop.f32.mrf.mxu0
    %3066 = vmatprep.mubr.f32.mxu0 %v2757
    %3067 = vmatmul.mubr.f32.gmra.mxu0 %v2756
    %v3068 = vpop.f32.mrf.mxu0
    %v3069 = vadd.f32 %v2974, %v3068
    %v3070 = vpop.f32.mrf.mxu0
    %3071 = vmatprep.mubr.f32.mxu0 %v2764
    %3072 = vmatmul.mubr.f32.gmra.mxu0 %v2763
    %v3073 = vpop.f32.mrf.mxu0
    %v3074 = vadd.f32 %v2979, %v3073
    %v3075 = vpop.f32.mrf.mxu0
    %3076 = vdwg.mxu0
    %3077 = vmatprep.subr.mxu0 0.0
    %3078 = vmatpush1.msra.mxu0 %v2847
    %3079 = vmatprep.subr.mxu0 0.0
    %3080 = vmatpush1.msra.mxu0 %v2846
    %3081 = vmatprep.subr.mxu0 0.0
    %3082 = vmatpush1.msra.mxu0 %v2845
    %3083 = vmatprep.subr.mxu0 0.0
    %3084 = vmatpush1.msra.mxu0 %v2844
    %3085 = vmatprep.subr.mxu0 0.0
    %3086 = vmatpush1.msra.mxu0 %v2843
    %3087 = vmatprep.subr.mxu0 0.0
    %3088 = vmatpush1.msra.mxu0 %v2842
    %3089 = vmatprep.subr.mxu0 0.0
    %3090 = vmatpush1.msra.mxu0 %v2841
    %3091 = vmatprep.subr.mxu0 0.0
    %3092 = vmatpush1.msra.mxu0 %v2840
    %3093 = vmatprep.subr.mxu0 0.0
    %3094 = vmatpush1.msra.mxu0 %v2839
    %3095 = vmatprep.subr.mxu0 0.0
    %3096 = vmatpush1.msra.mxu0 %v2838
    %3097 = vmatprep.subr.mxu0 0.0
    %3098 = vmatpush1.msra.mxu0 %v2837
    %3099 = vmatprep.subr.mxu0 0.0
    %3100 = vmatpush1.msra.mxu0 %v2836
    %3101 = vmatprep.subr.mxu0 0.0
    %3102 = vmatpush1.msra.mxu0 %v2835
    %3103 = vmatprep.subr.mxu0 0.0
    %3104 = vmatpush1.msra.mxu0 %v2834
    %3105 = vmatprep.subr.mxu0 0.0
    %3106 = vmatpush1.msra.mxu0 %v2833
    %3107 = vmatprep.subr.mxu0 0.0
    %3108 = vmatpush1.msra.mxu0 %v2832
    %3109 = vmatprep.subr.mxu0 0.0
    %3110 = vmatpush2.msra.mxu0 %v2863
    %3111 = vmatprep.subr.mxu0 0.0
    %3112 = vmatpush2.msra.mxu0 %v2862
    %3113 = vmatprep.subr.mxu0 0.0
    %3114 = vmatpush2.msra.mxu0 %v2861
    %3115 = vmatprep.subr.mxu0 0.0
    %3116 = vmatpush2.msra.mxu0 %v2860
    %3117 = vmatprep.subr.mxu0 0.0
    %3118 = vmatpush2.msra.mxu0 %v2859
    %3119 = vmatprep.subr.mxu0 0.0
    %3120 = vmatpush2.msra.mxu0 %v2858
    %3121 = vmatprep.subr.mxu0 0.0
    %3122 = vmatpush2.msra.mxu0 %v2857
    %3123 = vmatprep.subr.mxu0 0.0
    %3124 = vmatpush2.msra.mxu0 %v2856
    %3125 = vmatprep.subr.mxu0 0.0
    %3126 = vmatpush2.msra.mxu0 %v2855
    %3127 = vmatprep.subr.mxu0 0.0
    %3128 = vmatpush2.msra.mxu0 %v2854
    %3129 = vmatprep.subr.mxu0 0.0
    %3130 = vmatpush2.msra.mxu0 %v2853
    %3131 = vmatprep.subr.mxu0 0.0
    %3132 = vmatpush2.msra.mxu0 %v2852
    %3133 = vmatprep.subr.mxu0 0.0
    %3134 = vmatpush2.msra.mxu0 %v2851
    %3135 = vmatprep.subr.mxu0 0.0
    %3136 = vmatpush2.msra.mxu0 %v2850
    %3137 = vmatprep.subr.mxu0 0.0
    %3138 = vmatpush2.msra.mxu0 %v2849
    %3139 = vmatprep.subr.mxu0 0.0
    %3140 = vmatpush2.msra.mxu0 %v2848
    %3141 = vmatprep.mubr.f32.mxu0 %v2731
    %3142 = vmatmul.mubr.f32.gmra.mxu0 %v2730
    %v3143 = vpop.f32.mrf.mxu0
    %v3144 = vadd.f32 %v3049, %v3143
    %v3145 = vpop.f32.mrf.mxu0
    %3146 = vmatprep.mubr.f32.mxu0 %v2738
    %3147 = vmatmul.mubr.f32.gmra.mxu0 %v2737
    %v3148 = vpop.f32.mrf.mxu0
    %v3149 = vadd.f32 %v3054, %v3148
    %v3150 = vpop.f32.mrf.mxu0
    %3151 = vmatprep.mubr.f32.mxu0 %v2745
    %3152 = vmatmul.mubr.f32.gmra.mxu0 %v2744
    %v3153 = vpop.f32.mrf.mxu0
    %v3154 = vadd.f32 %v3059, %v3153
    %v3155 = vpop.f32.mrf.mxu0
    %3156 = vmatprep.mubr.f32.mxu0 %v2752
    %3157 = vmatmul.mubr.f32.gmra.mxu0 %v2751
    %v3158 = vpop.f32.mrf.mxu0
    %v3159 = vadd.f32 %v3064, %v3158
    %v3160 = vpop.f32.mrf.mxu0
    %3161 = vmatprep.mubr.f32.mxu0 %v2759
    %3162 = vmatmul.mubr.f32.gmra.mxu0 %v2758
    %v3163 = vpop.f32.mrf.mxu0
    %v3164 = vadd.f32 %v3069, %v3163
    %v3165 = vpop.f32.mrf.mxu0
    %3166 = vmatprep.mubr.f32.mxu0 %v2766
    %3167 = vmatmul.mubr.f32.gmra.mxu0 %v2765
    %v3168 = vpop.f32.mrf.mxu0
    %v3169 = vadd.f32 %v3074, %v3168
    %v3170 = vpop.f32.mrf.mxu0
    %3171 = vdwg.mxu0
    %3172 = vmatprep.subr.mxu0 0.0
    %3173 = vmatpush1.msra.mxu0 0.0
    %3174 = vmatprep.subr.mxu0 0.0
    %3175 = vmatpush1.msra.mxu0 0.0
    %3176 = vmatprep.subr.mxu0 0.0
    %3177 = vmatpush1.msra.mxu0 0.0
    %3178 = vmatprep.subr.mxu0 0.0
    %3179 = vmatpush1.msra.mxu0 0.0
    %3180 = vmatprep.subr.mxu0 0.0
    %3181 = vmatpush1.msra.mxu0 0.0
    %3182 = vmatprep.subr.mxu0 0.0
    %3183 = vmatpush1.msra.mxu0 0.0
    %3184 = vmatprep.subr.mxu0 0.0
    %3185 = vmatpush1.msra.mxu0 0.0
    %3186 = vmatprep.subr.mxu0 0.0
    %3187 = vmatpush1.msra.mxu0 0.0
    %3188 = vmatprep.subr.mxu0 0.0
    %3189 = vmatpush1.msra.mxu0 0.0
    %3190 = vmatprep.subr.mxu0 0.0
    %3191 = vmatpush1.msra.mxu0 0.0
    %3192 = vmatprep.subr.mxu0 0.0
    %3193 = vmatpush1.msra.mxu0 0.0
    %3194 = vmatprep.subr.mxu0 0.0
    %3195 = vmatpush1.msra.mxu0 0.0
    %3196 = vmatprep.subr.mxu0 0.0
    %3197 = vmatpush1.msra.mxu0 %v2867
    %3198 = vmatprep.subr.mxu0 0.0
    %3199 = vmatpush1.msra.mxu0 %v2866
    %3200 = vmatprep.subr.mxu0 0.0
    %3201 = vmatpush1.msra.mxu0 %v2865
    %3202 = vmatprep.subr.mxu0 0.0
    %3203 = vmatpush1.msra.mxu0 %v2864
    %3204 = vmatprep.subr.mxu0 0.0
    %3205 = vmatpush2.msra.mxu0 0.0
    %3206 = vmatprep.subr.mxu0 0.0
    %3207 = vmatpush2.msra.mxu0 0.0
    %3208 = vmatprep.subr.mxu0 0.0
    %3209 = vmatpush2.msra.mxu0 0.0
    %3210 = vmatprep.subr.mxu0 0.0
    %3211 = vmatpush2.msra.mxu0 0.0
    %3212 = vmatprep.subr.mxu0 0.0
    %3213 = vmatpush2.msra.mxu0 0.0
    %3214 = vmatprep.subr.mxu0 0.0
    %3215 = vmatpush2.msra.mxu0 0.0
    %3216 = vmatprep.subr.mxu0 0.0
    %3217 = vmatpush2.msra.mxu0 0.0
    %3218 = vmatprep.subr.mxu0 0.0
    %3219 = vmatpush2.msra.mxu0 0.0
    %3220 = vmatprep.subr.mxu0 0.0
    %3221 = vmatpush2.msra.mxu0 0.0
    %3222 = vmatprep.subr.mxu0 0.0
    %3223 = vmatpush2.msra.mxu0 0.0
    %3224 = vmatprep.subr.mxu0 0.0
    %3225 = vmatpush2.msra.mxu0 0.0
    %3226 = vmatprep.subr.mxu0 0.0
    %3227 = vmatpush2.msra.mxu0 0.0
    %3228 = vmatprep.subr.mxu0 0.0
    %3229 = vmatpush2.msra.mxu0 0.0
    %3230 = vmatprep.subr.mxu0 0.0
    %3231 = vmatpush2.msra.mxu0 0.0
    %3232 = vmatprep.subr.mxu0 0.0
    %3233 = vmatpush2.msra.mxu0 0.0
    %3234 = vmatprep.subr.mxu0 0.0
    %3235 = vmatpush2.msra.mxu0 0.0
    %3236 = vmatprep.mubr.f32.mxu0 0.0
    %3237 = vmatmul.mubr.f32.gmra.mxu0 %v2870
    %v3238 = vpop.f32.mrf.mxu0
    %v3239 = vadd.f32 %v3144, %v3238
    %v3240 = vpop.f32.mrf.mxu0
    %3241 = vmatprep.mubr.f32.mxu0 0.0
    %3242 = vmatmul.mubr.f32.gmra.mxu0 %v2873
    %v3243 = vpop.f32.mrf.mxu0
    %v3244 = vadd.f32 %v3149, %v3243
    %v3245 = vpop.f32.mrf.mxu0
    %3246 = vmatprep.mubr.f32.mxu0 0.0
    %3247 = vmatmul.mubr.f32.gmra.mxu0 %v2876
    %v3248 = vpop.f32.mrf.mxu0
    %v3249 = vadd.f32 %v3154, %v3248
    %v3250 = vpop.f32.mrf.mxu0
    %3251 = vmatprep.mubr.f32.mxu0 0.0
    %3252 = vmatmul.mubr.f32.gmra.mxu0 %v2879
    %v3253 = vpop.f32.mrf.mxu0
    %v3254 = vadd.f32 %v3159, %v3253
    %v3255 = vpop.f32.mrf.mxu0
    %3256 = vmatprep.mubr.f32.mxu0 0.0
    %3257 = vmatmul.mubr.f32.gmra.mxu0 %v2882
    %v3258 = vpop.f32.mrf.mxu0
    %v3259 = vadd.f32 %v3164, %v3258
    %v3260 = vpop.f32.mrf.mxu0
    %3261 = vmatprep.mubr.f32.mxu0 0.0
    %3262 = vmatmul.mubr.f32.gmra.mxu0 %v2885
    %v3263 = vpop.f32.mrf.mxu0
    %v3264 = vadd.f32 %v3169, %v3263
    %v3265 = vpop.f32.mrf.mxu0
    %3266 = vdwg.mxu0
    %v3267 = vld [vmem:[%s45] sm:$0x1]
    %v3269 = vlaneseq
    %v3270 = vshrl.u32 %v3269, 7
    %v3271 = vsub.s32 0, %v3270
    %v3272 = vrot.slane %v3267, %v3271
    %3274 = vmatprep.subr.mxu0 0.0
    %3275 = vmatpush1.msra.mxu0 0.0
    %3276 = vmatprep.subr.mxu0 0.0
    %3277 = vmatpush1.msra.mxu0 0.0
    %3278 = vmatprep.subr.mxu0 0.0
    %3279 = vmatpush1.msra.mxu0 0.0
    %3280 = vmatprep.subr.mxu0 0.0
    %3281 = vmatpush1.msra.mxu0 0.0
    %3282 = vmatprep.subr.mxu0 0.0
    %3283 = vmatpush1.msra.mxu0 0.0
    %3284 = vmatprep.subr.mxu0 0.0
    %3285 = vmatpush1.msra.mxu0 0.0
    %3286 = vmatprep.subr.mxu0 0.0
    %3287 = vmatpush1.msra.mxu0 0.0
    %3288 = vmatprep.subr.mxu0 0.0
    %3289 = vmatpush1.msra.mxu0 0.0
    %3290 = vmatprep.subr.mxu0 0.0
    %3291 = vmatpush1.msra.mxu0 0.0
    %3292 = vmatprep.subr.mxu0 0.0
    %3293 = vmatpush1.msra.mxu0 0.0
    %3294 = vmatprep.subr.mxu0 0.0
    %3295 = vmatpush1.msra.mxu0 %v3264
    %3296 = vmatprep.subr.mxu0 0.0
    %3297 = vmatpush1.msra.mxu0 %v3259
    %3298 = vmatprep.subr.mxu0 0.0
    %3299 = vmatpush1.msra.mxu0 %v3254
    %3300 = vmatprep.subr.mxu0 0.0
    %3301 = vmatpush1.msra.mxu0 %v3249
    %3302 = vmatprep.subr.mxu0 0.0
    %3303 = vmatpush1.msra.mxu0 %v3244
    %3304 = vmatprep.subr.mxu0 0.0
    %3305 = vmatpush1.msra.mxu0 %v3239
    %3306 = vmatprep.subr.mxu0 0.0
    %3307 = vmatpush2.msra.mxu0 0.0
    %3308 = vmatprep.subr.mxu0 0.0
    %3309 = vmatpush2.msra.mxu0 0.0
    %3310 = vmatprep.subr.mxu0 0.0
    %3311 = vmatpush2.msra.mxu0 0.0
    %3312 = vmatprep.subr.mxu0 0.0
    %3313 = vmatpush2.msra.mxu0 0.0
    %3314 = vmatprep.subr.mxu0 0.0
    %3315 = vmatpush2.msra.mxu0 0.0
    %3316 = vmatprep.subr.mxu0 0.0
    %3317 = vmatpush2.msra.mxu0 0.0
    %3318 = vmatprep.subr.mxu0 0.0
    %3319 = vmatpush2.msra.mxu0 0.0
    %3320 = vmatprep.subr.mxu0 0.0
    %3321 = vmatpush2.msra.mxu0 0.0
    %3322 = vmatprep.subr.mxu0 0.0
    %3323 = vmatpush2.msra.mxu0 0.0
    %3324 = vmatprep.subr.mxu0 0.0
    %3325 = vmatpush2.msra.mxu0 0.0
    %3326 = vmatprep.subr.mxu0 0.0
    %3327 = vmatpush2.msra.mxu0 0.0
    %3328 = vmatprep.subr.mxu0 0.0
    %3329 = vmatpush2.msra.mxu0 0.0
    %3330 = vmatprep.subr.mxu0 0.0
    %3331 = vmatpush2.msra.mxu0 0.0
    %3332 = vmatprep.subr.mxu0 0.0
    %3333 = vmatpush2.msra.mxu0 0.0
    %3334 = vmatprep.subr.mxu0 0.0
    %3335 = vmatpush2.msra.mxu0 0.0
    %3336 = vmatprep.subr.mxu0 0.0
    %3337 = vmatpush2.msra.mxu0 0.0
    %3338 = vmatprep.mubr.f32.mxu0 0.0
    %3339 = vmatmul.mubr.f32.gmra.mxu0 %v1109
    %v3340 = vpop.f32.mrf.mxu0
    %v3341 = vadd.f32 %v3272, %v3340
    %v3342 = vpop.f32.mrf.mxu0
    %3343 = vmatprep.mubr.f32.mxu0 0.0
    %3344 = vmatmul.mubr.f32.gmra.mxu0 %v1112
    %v3345 = vpop.f32.mrf.mxu0
    %v3346 = vadd.f32 %v3272, %v3345
    %v3347 = vpop.f32.mrf.mxu0
    %3348 = vdwg.mxu0
    %v3349 = vmax.f32 %v3341, 0.0
    %v3350 = vmax.f32 %v3346, 0.0
    %v3351 = vld [vmem:[%s47] sm:$0xff]
    %v3352 = vld [vmem:[%s47 + $0x8] sm:$0xff]
    %v3353 = vld [vmem:[%s47 + $0x10] sm:$0xff]
    %v3354 = vld [vmem:[%s47 + $0x18] sm:$0xff]
    %v3355 = vld [vmem:[%s47 + $0x20] sm:$0xff]
    %v3356 = vld [vmem:[%s47 + $0x28] sm:$0xff]
    %v3357 = vld [vmem:[%s47 + $0x30] sm:$0xff]
    %v3358 = vld [vmem:[%s47 + $0x38] sm:$0xff]
    %v3359 = vld [vmem:[%s47 + $0x40] sm:$0xff]
    %v3360 = vld [vmem:[%s47 + $0x48] sm:$0xff]
    %v3361 = vld [vmem:[%s49] sm:$0x1]
    %v3363 = vlaneseq
    %v3364 = vshrl.u32 %v3363, 7
    %v3365 = vsub.s32 0, %v3364
    %v3366 = vrot.slane %v3361, %v3365
    %v3369 = vsel %vm986, %v1306, 0
    %v3372 = vsel %vm986, %v1307, 0
    %3374 = vmatprep.subr.mxu0 0.0
    %3375 = vmatpush1.msra.mxu0 0.0
    %3376 = vmatprep.subr.mxu0 0.0
    %3377 = vmatpush1.msra.mxu0 0.0
    %3378 = vmatprep.subr.mxu0 0.0
    %3379 = vmatpush1.msra.mxu0 0.0
    %3380 = vmatprep.subr.mxu0 0.0
    %3381 = vmatpush1.msra.mxu0 0.0
    %3382 = vmatprep.subr.mxu0 0.0
    %3383 = vmatpush1.msra.mxu0 0.0
    %3384 = vmatprep.subr.mxu0 0.0
    %3385 = vmatpush1.msra.mxu0 0.0
    %3386 = vmatprep.subr.mxu0 0.0
    %3387 = vmatpush1.msra.mxu0 %v3360
    %3388 = vmatprep.subr.mxu0 0.0
    %3389 = vmatpush1.msra.mxu0 %v3359
    %3390 = vmatprep.subr.mxu0 0.0
    %3391 = vmatpush1.msra.mxu0 %v3358
    %3392 = vmatprep.subr.mxu0 0.0
    %3393 = vmatpush1.msra.mxu0 %v3357
    %3394 = vmatprep.subr.mxu0 0.0
    %3395 = vmatpush1.msra.mxu0 %v3356
    %3396 = vmatprep.subr.mxu0 0.0
    %3397 = vmatpush1.msra.mxu0 %v3355
    %3398 = vmatprep.subr.mxu0 0.0
    %3399 = vmatpush1.msra.mxu0 %v3354
    %3400 = vmatprep.subr.mxu0 0.0
    %3401 = vmatpush1.msra.mxu0 %v3353
    %3402 = vmatprep.subr.mxu0 0.0
    %3403 = vmatpush1.msra.mxu0 %v3352
    %3404 = vmatprep.subr.mxu0 0.0
    %3405 = vmatpush1.msra.mxu0 %v3351
    %3406 = vmatprep.subr.mxu0 0.0
    %3407 = vmatpush2.msra.mxu0 0.0
    %3408 = vmatprep.subr.mxu0 0.0
    %3409 = vmatpush2.msra.mxu0 0.0
    %3410 = vmatprep.subr.mxu0 0.0
    %3411 = vmatpush2.msra.mxu0 0.0
    %3412 = vmatprep.subr.mxu0 0.0
    %3413 = vmatpush2.msra.mxu0 0.0
    %3414 = vmatprep.subr.mxu0 0.0
    %3415 = vmatpush2.msra.mxu0 0.0
    %3416 = vmatprep.subr.mxu0 0.0
    %3417 = vmatpush2.msra.mxu0 0.0
    %3418 = vmatprep.subr.mxu0 0.0
    %3419 = vmatpush2.msra.mxu0 0.0
    %3420 = vmatprep.subr.mxu0 0.0
    %3421 = vmatpush2.msra.mxu0 0.0
    %3422 = vmatprep.subr.mxu0 0.0
    %3423 = vmatpush2.msra.mxu0 0.0
    %3424 = vmatprep.subr.mxu0 0.0
    %3425 = vmatpush2.msra.mxu0 0.0
    %3426 = vmatprep.subr.mxu0 0.0
    %3427 = vmatpush2.msra.mxu0 0.0
    %3428 = vmatprep.subr.mxu0 0.0
    %3429 = vmatpush2.msra.mxu0 0.0
    %3430 = vmatprep.subr.mxu0 0.0
    %3431 = vmatpush2.msra.mxu0 0.0
    %3432 = vmatprep.subr.mxu0 0.0
    %3433 = vmatpush2.msra.mxu0 0.0
    %3434 = vmatprep.subr.mxu0 0.0
    %3435 = vmatpush2.msra.mxu0 0.0
    %3436 = vmatprep.subr.mxu0 0.0
    %3437 = vmatpush2.msra.mxu0 0.0
    %3438 = vmatprep.mubr.f32.mxu0 0.0
    %3439 = vmatmul.mubr.f32.gmra.mxu0 %v3369
    %v3440 = vpop.f32.mrf.mxu0
    %v3441 = vadd.f32 %v3366, %v3440
    %v3442 = vpop.f32.mrf.mxu0
    %3443 = vmatprep.mubr.f32.mxu0 0.0
    %3444 = vmatmul.mubr.f32.gmra.mxu0 %v3372
    %v3445 = vpop.f32.mrf.mxu0
    %v3446 = vadd.f32 %v3366, %v3445
    %v3447 = vpop.f32.mrf.mxu0
    %3448 = vdwg.mxu0
    %v3449 = vtanh.pop %v3441
    %v3450 = vtanh.pop %v3446
    %3453 = vrot.lane.b32.xlu0 %v3449, 112
    %v3454 = vpop.permute.xlu0 %3453
    %3455 = vrot.lane.b32.xlu0 %v3450, 112
    %v3456 = vpop.permute.xlu0 %3455
    %v3459 = vmul.f32 %v3449, %v3454
    %v3460 = vmul.f32 %v3450, %v3456
    %3461 = vst.msk [vmem:[#allocation2] sm:$0xff] %vm1292, %v3349
    %3462 = vst.msk [vmem:[#allocation2 + $0x8] sm:$0xff] %vm1292, %v3350
    %3465 = vrot.lane.b32.xlu0 %v3459, 64
    %v3466 = vpop.permute.xlu0 %3465
    %3467 = vrot.lane.b32.xlu0 %v3460, 64
    %v3468 = vpop.permute.xlu0 %3467
    %3471 = vst.msk [vmem:[#allocation2] sm:$0xff] %vm1303, %v3466
    %3472 = vst.msk [vmem:[#allocation2 + $0x8] sm:$0xff] %vm1303, %v3468
    %v3473 = vld [vmem:[#allocation2] sm:$0xff]
    %v3474 = vld [vmem:[#allocation2 + $0x8] sm:$0xff]
    %v3475 = vld [vmem:[%s51] sm:$0xff]
    %v3476 = vld [vmem:[%s51 + $0x8] sm:$0x3]
    %v3478 = vsel %vm236, %v3476, 0
    %3480 = vmatprep.subr.mxu0 0.0
    %3481 = vmatpush1.msra.mxu0 0.0
    %3482 = vmatprep.subr.mxu0 0.0
    %3483 = vmatpush1.msra.mxu0 0.0
    %3484 = vmatprep.subr.mxu0 0.0
    %3485 = vmatpush1.msra.mxu0 0.0
    %3486 = vmatprep.subr.mxu0 0.0
    %3487 = vmatpush1.msra.mxu0 0.0
    %3488 = vmatprep.subr.mxu0 0.0
    %3489 = vmatpush1.msra.mxu0 0.0
    %3490 = vmatprep.subr.mxu0 0.0
    %3491 = vmatpush1.msra.mxu0 0.0
    %3492 = vmatprep.subr.mxu0 0.0
    %3493 = vmatpush1.msra.mxu0 0.0
    %3494 = vmatprep.subr.mxu0 0.0
    %3495 = vmatpush1.msra.mxu0 0.0
    %3496 = vmatprep.subr.mxu0 0.0
    %3497 = vmatpush1.msra.mxu0 0.0
    %3498 = vmatprep.subr.mxu0 0.0
    %3499 = vmatpush1.msra.mxu0 0.0
    %3500 = vmatprep.subr.mxu0 0.0
    %3501 = vmatpush1.msra.mxu0 0.0
    %3502 = vmatprep.subr.mxu0 0.0
    %3503 = vmatpush1.msra.mxu0 0.0
    %3504 = vmatprep.subr.mxu0 0.0
    %3505 = vmatpush1.msra.mxu0 0.0
    %3506 = vmatprep.subr.mxu0 0.0
    %3507 = vmatpush1.msra.mxu0 0.0
    %3508 = vmatprep.subr.mxu0 0.0
    %3509 = vmatpush1.msra.mxu0 %v3478
    %3510 = vmatprep.subr.mxu0 0.0
    %3511 = vmatpush1.msra.mxu0 %v3475
    %3512 = vmatprep.subr.mxu0 0.0
    %3513 = vmatpush2.msra.mxu0 0.0
    %3514 = vmatprep.subr.mxu0 0.0
    %3515 = vmatpush2.msra.mxu0 0.0
    %3516 = vmatprep.subr.mxu0 0.0
    %3517 = vmatpush2.msra.mxu0 0.0
    %3518 = vmatprep.subr.mxu0 0.0
    %3519 = vmatpush2.msra.mxu0 0.0
    %3520 = vmatprep.subr.mxu0 0.0
    %3521 = vmatpush2.msra.mxu0 0.0
    %3522 = vmatprep.subr.mxu0 0.0
    %3523 = vmatpush2.msra.mxu0 0.0
    %3524 = vmatprep.subr.mxu0 0.0
    %3525 = vmatpush2.msra.mxu0 0.0
    %3526 = vmatprep.subr.mxu0 0.0
    %3527 = vmatpush2.msra.mxu0 0.0
    %3528 = vmatprep.subr.mxu0 0.0
    %3529 = vmatpush2.msra.mxu0 0.0
    %3530 = vmatprep.subr.mxu0 0.0
    %3531 = vmatpush2.msra.mxu0 0.0
    %3532 = vmatprep.subr.mxu0 0.0
    %3533 = vmatpush2.msra.mxu0 0.0
    %3534 = vmatprep.subr.mxu0 0.0
    %3535 = vmatpush2.msra.mxu0 0.0
    %3536 = vmatprep.subr.mxu0 0.0
    %3537 = vmatpush2.msra.mxu0 0.0
    %3538 = vmatprep.subr.mxu0 0.0
    %3539 = vmatpush2.msra.mxu0 0.0
    %3540 = vmatprep.subr.mxu0 0.0
    %3541 = vmatpush2.msra.mxu0 0.0
    %3542 = vmatprep.subr.mxu0 0.0
    %3543 = vmatpush2.msra.mxu0 0.0
    %3544 = vmatprep.mubr.f32.mxu0 0.0
    %3545 = vmatmul.mubr.f32.gmra.mxu0 %v219
    %v3546 = vpop.f32.mrf.mxu0
    %v3547 = vadd.f32 0.0, %v3546
    %v3548 = vpop.f32.mrf.mxu0
    %3549 = vmatprep.mubr.f32.mxu0 0.0
    %3550 = vmatmul.mubr.f32.gmra.mxu0 %v222
    %v3551 = vpop.f32.mrf.mxu0
    %v3552 = vadd.f32 0.0, %v3551
    %v3553 = vpop.f32.mrf.mxu0
    %3554 = vmatprep.mubr.f32.mxu0 0.0
    %3555 = vmatmul.mubr.f32.gmra.mxu0 %v225
    %v3556 = vpop.f32.mrf.mxu0
    %v3557 = vadd.f32 0.0, %v3556
    %v3558 = vpop.f32.mrf.mxu0
    %3559 = vmatprep.mubr.f32.mxu0 0.0
    %3560 = vmatmul.mubr.f32.gmra.mxu0 %v228
    %v3561 = vpop.f32.mrf.mxu0
    %v3562 = vadd.f32 0.0, %v3561
    %v3563 = vpop.f32.mrf.mxu0
    %3564 = vmatprep.mubr.f32.mxu0 0.0
    %3565 = vmatmul.mubr.f32.gmra.mxu0 %v231
    %v3566 = vpop.f32.mrf.mxu0
    %v3567 = vadd.f32 0.0, %v3566
    %v3568 = vpop.f32.mrf.mxu0
    %3569 = vmatprep.mubr.f32.mxu0 0.0
    %3570 = vmatmul.mubr.f32.gmra.mxu0 %v234
    %v3571 = vpop.f32.mrf.mxu0
    %v3572 = vadd.f32 0.0, %v3571
    %v3573 = vpop.f32.mrf.mxu0
    %3574 = vdwg.mxu0
    %v3575 = vmax.f32 %v3547, 0.0
    %v3576 = vmax.f32 %v3552, 0.0
    %v3577 = vmax.f32 %v3557, 0.0
    %v3578 = vmax.f32 %v3562, 0.0
    %v3579 = vmax.f32 %v3567, 0.0
    %v3580 = vmax.f32 %v3572, 0.0
    %3587 = vrot.lane.b32.xlu0 %v3575, 108
    %v3588 = vpop.permute.xlu0 %3587
    %3589 = vrot.lane.b32.xlu0 %v3576, 108
    %v3590 = vpop.permute.xlu0 %3589
    %3591 = vrot.lane.b32.xlu0 %v3577, 108
    %v3592 = vpop.permute.xlu0 %3591
    %3593 = vrot.lane.b32.xlu0 %v3578, 108
    %v3594 = vpop.permute.xlu0 %3593
    %3595 = vrot.lane.b32.xlu0 %v3579, 108
    %v3596 = vpop.permute.xlu0 %3595
    %3597 = vrot.lane.b32.xlu0 %v3580, 108
    %v3598 = vpop.permute.xlu0 %3597
    %v3605 = vmul.f32 %v3575, %v3588
    %v3606 = vmul.f32 %v3576, %v3590
    %v3607 = vmul.f32 %v3577, %v3592
    %v3608 = vmul.f32 %v3578, %v3594
    %v3609 = vmul.f32 %v3579, %v3596
    %v3610 = vmul.f32 %v3580, %v3598
    %v3611 = vld [vmem:[%s53] sm:$0xff]
    %v3612 = vld [vmem:[%s53 + $0x8] sm:$0xff]
    %v3613 = vld [vmem:[%s53 + $0x10] sm:$0xf]
    %v3614 = vld [vmem:[%s55] sm:$0xff]
    %v3615 = vld [vmem:[%s55 + $0x8] sm:$0xff]
    %v3616 = vld [vmem:[%s55 + $0x10] sm:$0xf]
    %3623 = vrot.lane.b32.xlu0 %v3605, 108
    %v3624 = vpop.permute.xlu0 %3623
    %3625 = vrot.lane.b32.xlu0 %v3606, 108
    %v3626 = vpop.permute.xlu0 %3625
    %3627 = vrot.lane.b32.xlu0 %v3607, 108
    %v3628 = vpop.permute.xlu0 %3627
    %3629 = vrot.lane.b32.xlu0 %v3608, 108
    %v3630 = vpop.permute.xlu0 %3629
    %3631 = vrot.lane.b32.xlu0 %v3609, 108
    %v3632 = vpop.permute.xlu0 %3631
    %3633 = vrot.lane.b32.xlu0 %v3610, 108
    %v3634 = vpop.permute.xlu0 %3633
    %v3635 = vsel %vm395, %v3624, 0
    %v3637 = vsel %vm395, %v3626, 0
    %v3639 = vsel %vm395, %v3628, 0
    %v3641 = vsel %vm395, %v3630, 0
    %v3643 = vsel %vm395, %v3632, 0
    %v3645 = vsel %vm395, %v3634, 0
    %v3648 = vsel %vm408, %v3616, 0
    %3650 = vmatprep.subr.mxu0 0.0
    %3651 = vmatpush1.msra.mxu0 0.0
    %3652 = vmatprep.subr.mxu0 0.0
    %3653 = vmatpush1.msra.mxu0 0.0
    %3654 = vmatprep.subr.mxu0 0.0
    %3655 = vmatpush1.msra.mxu0 0.0
    %3656 = vmatprep.subr.mxu0 0.0
    %3657 = vmatpush1.msra.mxu0 0.0
    %3658 = vmatprep.subr.mxu0 0.0
    %3659 = vmatpush1.msra.mxu0 0.0
    %3660 = vmatprep.subr.mxu0 0.0
    %3661 = vmatpush1.msra.mxu0 0.0
    %3662 = vmatprep.subr.mxu0 0.0
    %3663 = vmatpush1.msra.mxu0 0.0
    %3664 = vmatprep.subr.mxu0 0.0
    %3665 = vmatpush1.msra.mxu0 0.0
    %3666 = vmatprep.subr.mxu0 0.0
    %3667 = vmatpush1.msra.mxu0 0.0
    %3668 = vmatprep.subr.mxu0 0.0
    %3669 = vmatpush1.msra.mxu0 0.0
    %3670 = vmatprep.subr.mxu0 0.0
    %3671 = vmatpush1.msra.mxu0 0.0
    %3672 = vmatprep.subr.mxu0 0.0
    %3673 = vmatpush1.msra.mxu0 0.0
    %3674 = vmatprep.subr.mxu0 0.0
    %3675 = vmatpush1.msra.mxu0 0.0
    %3676 = vmatprep.subr.mxu0 0.0
    %3677 = vmatpush1.msra.mxu0 %v3648
    %3678 = vmatprep.subr.mxu0 0.0
    %3679 = vmatpush1.msra.mxu0 %v3615
    %3680 = vmatprep.subr.mxu0 0.0
    %3681 = vmatpush1.msra.mxu0 %v3614
    %3682 = vmatprep.subr.mxu0 0.0
    %3683 = vmatpush2.msra.mxu0 0.0
    %3684 = vmatprep.subr.mxu0 0.0
    %3685 = vmatpush2.msra.mxu0 0.0
    %3686 = vmatprep.subr.mxu0 0.0
    %3687 = vmatpush2.msra.mxu0 0.0
    %3688 = vmatprep.subr.mxu0 0.0
    %3689 = vmatpush2.msra.mxu0 0.0
    %3690 = vmatprep.subr.mxu0 0.0
    %3691 = vmatpush2.msra.mxu0 0.0
    %3692 = vmatprep.subr.mxu0 0.0
    %3693 = vmatpush2.msra.mxu0 0.0
    %3694 = vmatprep.subr.mxu0 0.0
    %3695 = vmatpush2.msra.mxu0 0.0
    %3696 = vmatprep.subr.mxu0 0.0
    %3697 = vmatpush2.msra.mxu0 0.0
    %3698 = vmatprep.subr.mxu0 0.0
    %3699 = vmatpush2.msra.mxu0 0.0
    %3700 = vmatprep.subr.mxu0 0.0
    %3701 = vmatpush2.msra.mxu0 0.0
    %3702 = vmatprep.subr.mxu0 0.0
    %3703 = vmatpush2.msra.mxu0 0.0
    %3704 = vmatprep.subr.mxu0 0.0
    %3705 = vmatpush2.msra.mxu0 0.0
    %3706 = vmatprep.subr.mxu0 0.0
    %3707 = vmatpush2.msra.mxu0 0.0
    %3708 = vmatprep.subr.mxu0 0.0
    %3709 = vmatpush2.msra.mxu0 0.0
    %3710 = vmatprep.subr.mxu0 0.0
    %3711 = vmatpush2.msra.mxu0 0.0
    %3712 = vmatprep.subr.mxu0 0.0
    %3713 = vmatpush2.msra.mxu0 0.0
    %3714 = vmatprep.mubr.f32.mxu0 0.0
    %3715 = vmatmul.mubr.f32.gmra.mxu0 %v3635
    %v3716 = vpop.f32.mrf.mxu0
    %v3717 = vadd.f32 0.0, %v3716
    %v3718 = vpop.f32.mrf.mxu0
    %3719 = vmatprep.mubr.f32.mxu0 0.0
    %3720 = vmatmul.mubr.f32.gmra.mxu0 %v3637
    %v3721 = vpop.f32.mrf.mxu0
    %v3722 = vadd.f32 0.0, %v3721
    %v3723 = vpop.f32.mrf.mxu0
    %3724 = vmatprep.mubr.f32.mxu0 0.0
    %3725 = vmatmul.mubr.f32.gmra.mxu0 %v3639
    %v3726 = vpop.f32.mrf.mxu0
    %v3727 = vadd.f32 0.0, %v3726
    %v3728 = vpop.f32.mrf.mxu0
    %3729 = vmatprep.mubr.f32.mxu0 0.0
    %3730 = vmatmul.mubr.f32.gmra.mxu0 %v3641
    %v3731 = vpop.f32.mrf.mxu0
    %v3732 = vadd.f32 0.0, %v3731
    %v3733 = vpop.f32.mrf.mxu0
    %3734 = vmatprep.mubr.f32.mxu0 0.0
    %3735 = vmatmul.mubr.f32.gmra.mxu0 %v3643
    %v3736 = vpop.f32.mrf.mxu0
    %v3737 = vadd.f32 0.0, %v3736
    %v3738 = vpop.f32.mrf.mxu0
    %3739 = vmatprep.mubr.f32.mxu0 0.0
    %3740 = vmatmul.mubr.f32.gmra.mxu0 %v3645
    %v3741 = vpop.f32.mrf.mxu0
    %v3742 = vadd.f32 0.0, %v3741
    %v3743 = vpop.f32.mrf.mxu0
    %3744 = vdwg.mxu0
    %v3745 = vsel %vm395, %v3575, 0
    %v3747 = vsel %vm395, %v3576, 0
    %v3749 = vsel %vm395, %v3577, 0
    %v3751 = vsel %vm395, %v3578, 0
    %v3753 = vsel %vm395, %v3579, 0
    %v3755 = vsel %vm395, %v3580, 0
    %v3758 = vsel %vm408, %v3613, 0
    %3760 = vmatprep.subr.mxu0 0.0
    %3761 = vmatpush1.msra.mxu0 0.0
    %3762 = vmatprep.subr.mxu0 0.0
    %3763 = vmatpush1.msra.mxu0 0.0
    %3764 = vmatprep.subr.mxu0 0.0
    %3765 = vmatpush1.msra.mxu0 0.0
    %3766 = vmatprep.subr.mxu0 0.0
    %3767 = vmatpush1.msra.mxu0 0.0
    %3768 = vmatprep.subr.mxu0 0.0
    %3769 = vmatpush1.msra.mxu0 0.0
    %3770 = vmatprep.subr.mxu0 0.0
    %3771 = vmatpush1.msra.mxu0 0.0
    %3772 = vmatprep.subr.mxu0 0.0
    %3773 = vmatpush1.msra.mxu0 0.0
    %3774 = vmatprep.subr.mxu0 0.0
    %3775 = vmatpush1.msra.mxu0 0.0
    %3776 = vmatprep.subr.mxu0 0.0
    %3777 = vmatpush1.msra.mxu0 0.0
    %3778 = vmatprep.subr.mxu0 0.0
    %3779 = vmatpush1.msra.mxu0 0.0
    %3780 = vmatprep.subr.mxu0 0.0
    %3781 = vmatpush1.msra.mxu0 0.0
    %3782 = vmatprep.subr.mxu0 0.0
    %3783 = vmatpush1.msra.mxu0 0.0
    %3784 = vmatprep.subr.mxu0 0.0
    %3785 = vmatpush1.msra.mxu0 0.0
    %3786 = vmatprep.subr.mxu0 0.0
    %3787 = vmatpush1.msra.mxu0 %v3758
    %3788 = vmatprep.subr.mxu0 0.0
    %3789 = vmatpush1.msra.mxu0 %v3612
    %3790 = vmatprep.subr.mxu0 0.0
    %3791 = vmatpush1.msra.mxu0 %v3611
    %3792 = vmatprep.subr.mxu0 0.0
    %3793 = vmatpush2.msra.mxu0 0.0
    %3794 = vmatprep.subr.mxu0 0.0
    %3795 = vmatpush2.msra.mxu0 0.0
    %3796 = vmatprep.subr.mxu0 0.0
    %3797 = vmatpush2.msra.mxu0 0.0
    %3798 = vmatprep.subr.mxu0 0.0
    %3799 = vmatpush2.msra.mxu0 0.0
    %3800 = vmatprep.subr.mxu0 0.0
    %3801 = vmatpush2.msra.mxu0 0.0
    %3802 = vmatprep.subr.mxu0 0.0
    %3803 = vmatpush2.msra.mxu0 0.0
    %3804 = vmatprep.subr.mxu0 0.0
    %3805 = vmatpush2.msra.mxu0 0.0
    %3806 = vmatprep.subr.mxu0 0.0
    %3807 = vmatpush2.msra.mxu0 0.0
    %3808 = vmatprep.subr.mxu0 0.0
    %3809 = vmatpush2.msra.mxu0 0.0
    %3810 = vmatprep.subr.mxu0 0.0
    %3811 = vmatpush2.msra.mxu0 0.0
    %3812 = vmatprep.subr.mxu0 0.0
    %3813 = vmatpush2.msra.mxu0 0.0
    %3814 = vmatprep.subr.mxu0 0.0
    %3815 = vmatpush2.msra.mxu0 0.0
    %3816 = vmatprep.subr.mxu0 0.0
    %3817 = vmatpush2.msra.mxu0 0.0
    %3818 = vmatprep.subr.mxu0 0.0
    %3819 = vmatpush2.msra.mxu0 0.0
    %3820 = vmatprep.subr.mxu0 0.0
    %3821 = vmatpush2.msra.mxu0 0.0
    %3822 = vmatprep.subr.mxu0 0.0
    %3823 = vmatpush2.msra.mxu0 0.0
    %3824 = vmatprep.mubr.f32.mxu0 0.0
    %3825 = vmatmul.mubr.f32.gmra.mxu0 %v3745
    %v3826 = vpop.f32.mrf.mxu0
    %v3827 = vadd.f32 %v3717, %v3826
    %v3828 = vpop.f32.mrf.mxu0
    %3829 = vmatprep.mubr.f32.mxu0 0.0
    %3830 = vmatmul.mubr.f32.gmra.mxu0 %v3747
    %v3831 = vpop.f32.mrf.mxu0
    %v3832 = vadd.f32 %v3722, %v3831
    %v3833 = vpop.f32.mrf.mxu0
    %3834 = vmatprep.mubr.f32.mxu0 0.0
    %3835 = vmatmul.mubr.f32.gmra.mxu0 %v3749
    %v3836 = vpop.f32.mrf.mxu0
    %v3837 = vadd.f32 %v3727, %v3836
    %v3838 = vpop.f32.mrf.mxu0
    %3839 = vmatprep.mubr.f32.mxu0 0.0
    %3840 = vmatmul.mubr.f32.gmra.mxu0 %v3751
    %v3841 = vpop.f32.mrf.mxu0
    %v3842 = vadd.f32 %v3732, %v3841
    %v3843 = vpop.f32.mrf.mxu0
    %3844 = vmatprep.mubr.f32.mxu0 0.0
    %3845 = vmatmul.mubr.f32.gmra.mxu0 %v3753
    %v3846 = vpop.f32.mrf.mxu0
    %v3847 = vadd.f32 %v3737, %v3846
    %v3848 = vpop.f32.mrf.mxu0
    %3849 = vmatprep.mubr.f32.mxu0 0.0
    %3850 = vmatmul.mubr.f32.gmra.mxu0 %v3755
    %v3851 = vpop.f32.mrf.mxu0
    %v3852 = vadd.f32 %v3742, %v3851
    %v3853 = vpop.f32.mrf.mxu0
    %3854 = vdwg.mxu0
    %v3855 = vmax.f32 %v3827, 0.0
    %v3856 = vmax.f32 %v3832, 0.0
    %v3857 = vmax.f32 %v3837, 0.0
    %v3858 = vmax.f32 %v3842, 0.0
    %v3859 = vmax.f32 %v3847, 0.0
    %v3860 = vmax.f32 %v3852, 0.0
    %3861 = vmatprep.subr.mxu0 0.0
    %3862 = vmatpush1.msra.mxu0 0.0
    %3863 = vmatprep.subr.mxu0 0.0
    %3864 = vmatpush1.msra.mxu0 0.0
    %3865 = vmatprep.subr.mxu0 0.0
    %3866 = vmatpush1.msra.mxu0 0.0
    %3867 = vmatprep.subr.mxu0 0.0
    %3868 = vmatpush1.msra.mxu0 0.0
    %3869 = vmatprep.subr.mxu0 0.0
    %3870 = vmatpush1.msra.mxu0 0.0
    %3871 = vmatprep.subr.mxu0 0.0
    %3872 = vmatpush1.msra.mxu0 0.0
    %3873 = vmatprep.subr.mxu0 0.0
    %3874 = vmatpush1.msra.mxu0 0.0
    %3875 = vmatprep.subr.mxu0 0.0
    %3876 = vmatpush1.msra.mxu0 0.0
    %3877 = vmatprep.subr.mxu0 0.0
    %3878 = vmatpush1.msra.mxu0 0.0
    %3879 = vmatprep.subr.mxu0 0.0
    %3880 = vmatpush1.msra.mxu0 0.0
    %3881 = vmatprep.subr.mxu0 0.0
    %3882 = vmatpush1.msra.mxu0 0.0
    %3883 = vmatprep.subr.mxu0 0.0
    %3884 = vmatpush1.msra.mxu0 0.0
    %3885 = vmatprep.subr.mxu0 0.0
    %3886 = vmatpush1.msra.mxu0 0.0
    %3887 = vmatprep.subr.mxu0 0.0
    %3888 = vmatpush1.msra.mxu0 0.0
    %3889 = vmatprep.subr.mxu0 0.0
    %3890 = vmatpush1.msra.mxu0 %v3474
    %3891 = vmatprep.subr.mxu0 0.0
    %3892 = vmatpush1.msra.mxu0 %v3473
    %3893 = vmatprep.subr.mxu0 0.0
    %3894 = vmatpush2.msra.mxu0 0.0
    %3895 = vmatprep.subr.mxu0 0.0
    %3896 = vmatpush2.msra.mxu0 0.0
    %3897 = vmatprep.subr.mxu0 0.0
    %3898 = vmatpush2.msra.mxu0 0.0
    %3899 = vmatprep.subr.mxu0 0.0
    %3900 = vmatpush2.msra.mxu0 0.0
    %3901 = vmatprep.subr.mxu0 0.0
    %3902 = vmatpush2.msra.mxu0 0.0
    %3903 = vmatprep.subr.mxu0 0.0
    %3904 = vmatpush2.msra.mxu0 0.0
    %3905 = vmatprep.subr.mxu0 0.0
    %3906 = vmatpush2.msra.mxu0 0.0
    %3907 = vmatprep.subr.mxu0 0.0
    %3908 = vmatpush2.msra.mxu0 0.0
    %3909 = vmatprep.subr.mxu0 0.0
    %3910 = vmatpush2.msra.mxu0 0.0
    %3911 = vmatprep.subr.mxu0 0.0
    %3912 = vmatpush2.msra.mxu0 0.0
    %3913 = vmatprep.subr.mxu0 0.0
    %3914 = vmatpush2.msra.mxu0 0.0
    %3915 = vmatprep.subr.mxu0 0.0
    %3916 = vmatpush2.msra.mxu0 0.0
    %3917 = vmatprep.subr.mxu0 0.0
    %3918 = vmatpush2.msra.mxu0 0.0
    %3919 = vmatprep.subr.mxu0 0.0
    %3920 = vmatpush2.msra.mxu0 0.0
    %3921 = vmatprep.subr.mxu0 0.0
    %3922 = vmatpush2.msra.mxu0 0.0
    %3923 = vmatprep.subr.mxu0 0.0
    %3924 = vmatpush2.msra.mxu0 0.0
    %3925 = vmatprep.mubr.f32.mxu0 0.0
    %3926 = vmatmul.mubr.f32.gmra.mxu0 %v625
    %v3927 = vpop.f32.mrf.mxu0
    %v3928 = vadd.f32 0.0, %v3927
    %v3929 = vpop.f32.mrf.mxu0
    %3930 = vmatprep.mubr.f32.mxu0 0.0
    %3931 = vmatmul.mubr.f32.gmra.mxu0 %v628
    %v3932 = vpop.f32.mrf.mxu0
    %v3933 = vadd.f32 0.0, %v3932
    %v3934 = vpop.f32.mrf.mxu0
    %3935 = vmatprep.mubr.f32.mxu0 0.0
    %3936 = vmatmul.mubr.f32.gmra.mxu0 %v631
    %v3937 = vpop.f32.mrf.mxu0
    %v3938 = vadd.f32 0.0, %v3937
    %v3939 = vpop.f32.mrf.mxu0
    %3940 = vmatprep.mubr.f32.mxu0 0.0
    %3941 = vmatmul.mubr.f32.gmra.mxu0 %v634
    %v3942 = vpop.f32.mrf.mxu0
    %v3943 = vadd.f32 0.0, %v3942
    %v3944 = vpop.f32.mrf.mxu0
    %3945 = vmatprep.mubr.f32.mxu0 0.0
    %3946 = vmatmul.mubr.f32.gmra.mxu0 %v637
    %v3947 = vpop.f32.mrf.mxu0
    %v3948 = vadd.f32 0.0, %v3947
    %v3949 = vpop.f32.mrf.mxu0
    %3950 = vmatprep.mubr.f32.mxu0 0.0
    %3951 = vmatmul.mubr.f32.gmra.mxu0 %v640
    %v3952 = vpop.f32.mrf.mxu0
    %v3953 = vadd.f32 0.0, %v3952
    %v3954 = vpop.f32.mrf.mxu0
    %3955 = vdwg.mxu0
    %v3956 = vld [vmem:[%s57] sm:$0xff]
    %v3957 = vld [vmem:[%s57 + $0x8] sm:$0xff]
    %v3958 = vld [vmem:[%s57 + $0x10] sm:$0xff]
    %v3959 = vld [vmem:[%s57 + $0x18] sm:$0xff]
    %v3960 = vld [vmem:[%s57 + $0x20] sm:$0xff]
    %v3961 = vld [vmem:[%s57 + $0x28] sm:$0xff]
    %v3962 = vld [vmem:[%s57 + $0x30] sm:$0xff]
    %v3963 = vld [vmem:[%s57 + $0x38] sm:$0xff]
    %v3964 = vld [vmem:[%s57 + $0x40] sm:$0xff]
    %v3965 = vld [vmem:[%s57 + $0x48] sm:$0xff]
    %v3966 = vld [vmem:[%s57 + $0x50] sm:$0xff]
    %v3967 = vld [vmem:[%s57 + $0x58] sm:$0xff]
    %v3968 = vld [vmem:[%s57 + $0x60] sm:$0xff]
    %v3969 = vld [vmem:[%s57 + $0x68] sm:$0xff]
    %v3970 = vld [vmem:[%s57 + $0x70] sm:$0xff]
    %v3971 = vld [vmem:[%s57 + $0x78] sm:$0xff]
    %v3972 = vld [vmem:[%s57 + $0x80] sm:$0xff]
    %v3973 = vld [vmem:[%s57 + $0x88] sm:$0xff]
    %v3974 = vld [vmem:[%s57 + $0x90] sm:$0xff]
    %v3975 = vld [vmem:[%s57 + $0x98] sm:$0xff]
    %v3976 = vld [vmem:[%s57 + $0xa0] sm:$0xff]
    %v3977 = vld [vmem:[%s57 + $0xa8] sm:$0xff]
    %v3978 = vld [vmem:[%s57 + $0xb0] sm:$0xff]
    %v3979 = vld [vmem:[%s57 + $0xb8] sm:$0xff]
    %v3980 = vld [vmem:[%s57 + $0xc0] sm:$0xff]
    %v3981 = vld [vmem:[%s57 + $0xc8] sm:$0xff]
    %v3982 = vld [vmem:[%s57 + $0xd0] sm:$0xff]
    %v3983 = vld [vmem:[%s57 + $0xd8] sm:$0xff]
    %v3984 = vld [vmem:[%s57 + $0xe0] sm:$0xff]
    %v3985 = vld [vmem:[%s57 + $0xe8] sm:$0xff]
    %v3986 = vld [vmem:[%s57 + $0xf0] sm:$0xff]
    %v3987 = vld [vmem:[%s57 + $0xf8] sm:$0xff]
    %v3988 = vld [vmem:[%s57 + $0x100] sm:$0xff]
    %v3989 = vld [vmem:[%s57 + $0x108] sm:$0xff]
    %v3990 = vld [vmem:[%s57 + $0x110] sm:$0xff]
    %v3991 = vld [vmem:[%s57 + $0x118] sm:$0xff]
    %v3992 = vld [vmem:[%s57 + $0x120] sm:$0xff]
    %v3993 = vld [vmem:[%s57 + $0x128] sm:$0xff]
    %v3994 = vld [vmem:[%s57 + $0x130] sm:$0xff]
    %v3995 = vld [vmem:[%s57 + $0x138] sm:$0xff]
    %v3996 = vld [vmem:[%s57 + $0x140] sm:$0xff]
    %v3997 = vld [vmem:[%s57 + $0x148] sm:$0xff]
    %v3998 = vld [vmem:[%s57 + $0x150] sm:$0xff]
    %v3999 = vld [vmem:[%s57 + $0x158] sm:$0xff]
    %v4000 = vld [vmem:[%s57 + $0x160] sm:$0xff]
    %v4001 = vld [vmem:[%s57 + $0x168] sm:$0xff]
    %v4002 = vld [vmem:[%s57 + $0x170] sm:$0xff]
    %v4003 = vld [vmem:[%s57 + $0x178] sm:$0xff]
    %v4004 = vld [vmem:[%s57 + $0x180] sm:$0xff]
    %v4005 = vld [vmem:[%s57 + $0x188] sm:$0xff]
    %v4006 = vld [vmem:[%s57 + $0x190] sm:$0xff]
    %v4007 = vld [vmem:[%s57 + $0x198] sm:$0xff]
    %v4008 = vld [vmem:[%s57 + $0x1a0] sm:$0xff]
    %v4009 = vld [vmem:[%s57 + $0x1a8] sm:$0xff]
    %v4010 = vld [vmem:[%s57 + $0x1b0] sm:$0xff]
    %v4011 = vld [vmem:[%s57 + $0x1b8] sm:$0xff]
    %v4012 = vld [vmem:[%s57 + $0x1c0] sm:$0xff]
    %v4013 = vld [vmem:[%s57 + $0x1c8] sm:$0xff]
    %v4014 = vld [vmem:[%s57 + $0x1d0] sm:$0xff]
    %v4015 = vld [vmem:[%s57 + $0x1d8] sm:$0xff]
    %v4016 = vld [vmem:[%s57 + $0x1e0] sm:$0xff]
    %v4017 = vld [vmem:[%s57 + $0x1e8] sm:$0xff]
    %v4018 = vld [vmem:[%s57 + $0x1f0] sm:$0xff]
    %v4019 = vld [vmem:[%s57 + $0x1f8] sm:$0xff]
    %v4020 = vld [vmem:[%s57 + $0x200] sm:$0xff]
    %v4021 = vld [vmem:[%s57 + $0x208] sm:$0xff]
    %v4022 = vld [vmem:[%s57 + $0x210] sm:$0xff]
    %v4023 = vld [vmem:[%s57 + $0x218] sm:$0xff]
    %v4024 = vld [vmem:[%s57 + $0x220] sm:$0xff]
    %v4025 = vld [vmem:[%s57 + $0x228] sm:$0xff]
    %v4027 = vsel %vm986, %v3928, 0
    %v4030 = vsel %vm986, %v3933, 0
    %v4033 = vsel %vm986, %v3938, 0
    %v4036 = vsel %vm986, %v3943, 0
    %v4039 = vsel %vm986, %v3948, 0
    %v4042 = vsel %vm986, %v3953, 0
    %4044 = vmatprep.subr.mxu0 0.0
    %4045 = vmatpush1.msra.mxu0 0.0
    %4046 = vmatprep.subr.mxu0 0.0
    %4047 = vmatpush1.msra.mxu0 0.0
    %4048 = vmatprep.subr.mxu0 0.0
    %4049 = vmatpush1.msra.mxu0 0.0
    %4050 = vmatprep.subr.mxu0 0.0
    %4051 = vmatpush1.msra.mxu0 0.0
    %4052 = vmatprep.subr.mxu0 0.0
    %4053 = vmatpush1.msra.mxu0 0.0
    %4054 = vmatprep.subr.mxu0 0.0
    %4055 = vmatpush1.msra.mxu0 0.0
    %4056 = vmatprep.subr.mxu0 %v4020
    %4057 = vmatpush1.msra.mxu0 %v4019
    %4058 = vmatprep.subr.mxu0 %v4013
    %4059 = vmatpush1.msra.mxu0 %v4012
    %4060 = vmatprep.subr.mxu0 %v4006
    %4061 = vmatpush1.msra.mxu0 %v4005
    %4062 = vmatprep.subr.mxu0 %v3999
    %4063 = vmatpush1.msra.mxu0 %v3998
    %4064 = vmatprep.subr.mxu0 %v3992
    %4065 = vmatpush1.msra.mxu0 %v3991
    %4066 = vmatprep.subr.mxu0 %v3985
    %4067 = vmatpush1.msra.mxu0 %v3984
    %4068 = vmatprep.subr.mxu0 %v3978
    %4069 = vmatpush1.msra.mxu0 %v3977
    %4070 = vmatprep.subr.mxu0 %v3971
    %4071 = vmatpush1.msra.mxu0 %v3970
    %4072 = vmatprep.subr.mxu0 %v3964
    %4073 = vmatpush1.msra.mxu0 %v3963
    %4074 = vmatprep.subr.mxu0 %v3957
    %4075 = vmatpush1.msra.mxu0 %v3956
    %4076 = vmatprep.subr.mxu0 0.0
    %4077 = vmatpush2.msra.mxu0 0.0
    %4078 = vmatprep.subr.mxu0 0.0
    %4079 = vmatpush2.msra.mxu0 0.0
    %4080 = vmatprep.subr.mxu0 0.0
    %4081 = vmatpush2.msra.mxu0 0.0
    %4082 = vmatprep.subr.mxu0 0.0
    %4083 = vmatpush2.msra.mxu0 0.0
    %4084 = vmatprep.subr.mxu0 0.0
    %4085 = vmatpush2.msra.mxu0 0.0
    %4086 = vmatprep.subr.mxu0 0.0
    %4087 = vmatpush2.msra.mxu0 0.0
    %4088 = vmatprep.subr.mxu0 0.0
    %4089 = vmatpush2.msra.mxu0 0.0
    %4090 = vmatprep.subr.mxu0 0.0
    %4091 = vmatpush2.msra.mxu0 0.0
    %4092 = vmatprep.subr.mxu0 0.0
    %4093 = vmatpush2.msra.mxu0 0.0
    %4094 = vmatprep.subr.mxu0 0.0
    %4095 = vmatpush2.msra.mxu0 0.0
    %4096 = vmatprep.subr.mxu0 0.0
    %4097 = vmatpush2.msra.mxu0 0.0
    %4098 = vmatprep.subr.mxu0 0.0
    %4099 = vmatpush2.msra.mxu0 0.0
    %4100 = vmatprep.subr.mxu0 0.0
    %4101 = vmatpush2.msra.mxu0 0.0
    %4102 = vmatprep.subr.mxu0 0.0
    %4103 = vmatpush2.msra.mxu0 0.0
    %4104 = vmatprep.subr.mxu0 0.0
    %4105 = vmatpush2.msra.mxu0 0.0
    %4106 = vmatprep.subr.mxu0 0.0
    %4107 = vmatpush2.msra.mxu0 0.0
    %4108 = vmatprep.mubr.f32.mxu0 0.0
    %4109 = vmatmul.mubr.f32.gmra.mxu0 %v4027
    %v4110 = vpop.f32.mrf.mxu0
    %v4111 = vadd.f32 0.0, %v4110
    %v4112 = vpop.f32.mrf.mxu0
    %v4113 = vadd.f32 0.0, %v4112
    %4114 = vmatprep.mubr.f32.mxu0 0.0
    %4115 = vmatmul.mubr.f32.gmra.mxu0 %v4030
    %v4116 = vpop.f32.mrf.mxu0
    %v4117 = vadd.f32 0.0, %v4116
    %v4118 = vpop.f32.mrf.mxu0
    %v4119 = vadd.f32 0.0, %v4118
    %4120 = vmatprep.mubr.f32.mxu0 0.0
    %4121 = vmatmul.mubr.f32.gmra.mxu0 %v4033
    %v4122 = vpop.f32.mrf.mxu0
    %v4123 = vadd.f32 0.0, %v4122
    %v4124 = vpop.f32.mrf.mxu0
    %v4125 = vadd.f32 0.0, %v4124
    %4126 = vmatprep.mubr.f32.mxu0 0.0
    %4127 = vmatmul.mubr.f32.gmra.mxu0 %v4036
    %v4128 = vpop.f32.mrf.mxu0
    %v4129 = vadd.f32 0.0, %v4128
    %v4130 = vpop.f32.mrf.mxu0
    %v4131 = vadd.f32 0.0, %v4130
    %4132 = vmatprep.mubr.f32.mxu0 0.0
    %4133 = vmatmul.mubr.f32.gmra.mxu0 %v4039
    %v4134 = vpop.f32.mrf.mxu0
    %v4135 = vadd.f32 0.0, %v4134
    %v4136 = vpop.f32.mrf.mxu0
    %v4137 = vadd.f32 0.0, %v4136
    %4138 = vmatprep.mubr.f32.mxu0 0.0
    %4139 = vmatmul.mubr.f32.gmra.mxu0 %v4042
    %v4140 = vpop.f32.mrf.mxu0
    %v4141 = vadd.f32 0.0, %v4140
    %v4142 = vpop.f32.mrf.mxu0
    %v4143 = vadd.f32 0.0, %v4142
    %4144 = vdwg.mxu0
    %4145 = vmatprep.subr.mxu0 0.0
    %4146 = vmatpush1.msra.mxu0 0.0
    %4147 = vmatprep.subr.mxu0 0.0
    %4148 = vmatpush1.msra.mxu0 0.0
    %4149 = vmatprep.subr.mxu0 0.0
    %4150 = vmatpush1.msra.mxu0 0.0
    %4151 = vmatprep.subr.mxu0 0.0
    %4152 = vmatpush1.msra.mxu0 0.0
    %4153 = vmatprep.subr.mxu0 0.0
    %4154 = vmatpush1.msra.mxu0 0.0
    %4155 = vmatprep.subr.mxu0 0.0
    %4156 = vmatpush1.msra.mxu0 0.0
    %4157 = vmatprep.subr.mxu0 %v4022
    %4158 = vmatpush1.msra.mxu0 %v4021
    %4159 = vmatprep.subr.mxu0 %v4015
    %4160 = vmatpush1.msra.mxu0 %v4014
    %4161 = vmatprep.subr.mxu0 %v4008
    %4162 = vmatpush1.msra.mxu0 %v4007
    %4163 = vmatprep.subr.mxu0 %v4001
    %4164 = vmatpush1.msra.mxu0 %v4000
    %4165 = vmatprep.subr.mxu0 %v3994
    %4166 = vmatpush1.msra.mxu0 %v3993
    %4167 = vmatprep.subr.mxu0 %v3987
    %4168 = vmatpush1.msra.mxu0 %v3986
    %4169 = vmatprep.subr.mxu0 %v3980
    %4170 = vmatpush1.msra.mxu0 %v3979
    %4171 = vmatprep.subr.mxu0 %v3973
    %4172 = vmatpush1.msra.mxu0 %v3972
    %4173 = vmatprep.subr.mxu0 %v3966
    %4174 = vmatpush1.msra.mxu0 %v3965
    %4175 = vmatprep.subr.mxu0 %v3959
    %4176 = vmatpush1.msra.mxu0 %v3958
    %4177 = vmatprep.subr.mxu0 0.0
    %4178 = vmatpush2.msra.mxu0 0.0
    %4179 = vmatprep.subr.mxu0 0.0
    %4180 = vmatpush2.msra.mxu0 0.0
    %4181 = vmatprep.subr.mxu0 0.0
    %4182 = vmatpush2.msra.mxu0 0.0
    %4183 = vmatprep.subr.mxu0 0.0
    %4184 = vmatpush2.msra.mxu0 0.0
    %4185 = vmatprep.subr.mxu0 0.0
    %4186 = vmatpush2.msra.mxu0 0.0
    %4187 = vmatprep.subr.mxu0 0.0
    %4188 = vmatpush2.msra.mxu0 0.0
    %4189 = vmatprep.subr.mxu0 0.0
    %4190 = vmatpush2.msra.mxu0 0.0
    %4191 = vmatprep.subr.mxu0 0.0
    %4192 = vmatpush2.msra.mxu0 0.0
    %4193 = vmatprep.subr.mxu0 0.0
    %4194 = vmatpush2.msra.mxu0 0.0
    %4195 = vmatprep.subr.mxu0 0.0
    %4196 = vmatpush2.msra.mxu0 0.0
    %4197 = vmatprep.subr.mxu0 0.0
    %4198 = vmatpush2.msra.mxu0 0.0
    %4199 = vmatprep.subr.mxu0 0.0
    %4200 = vmatpush2.msra.mxu0 0.0
    %4201 = vmatprep.subr.mxu0 0.0
    %4202 = vmatpush2.msra.mxu0 0.0
    %4203 = vmatprep.subr.mxu0 0.0
    %4204 = vmatpush2.msra.mxu0 0.0
    %4205 = vmatprep.subr.mxu0 0.0
    %4206 = vmatpush2.msra.mxu0 0.0
    %4207 = vmatprep.subr.mxu0 0.0
    %4208 = vmatpush2.msra.mxu0 0.0
    %4209 = vmatprep.mubr.f32.mxu0 0.0
    %4210 = vmatmul.mubr.f32.gmra.mxu0 %v4027
    %v4211 = vpop.f32.mrf.mxu0
    %v4212 = vadd.f32 0.0, %v4211
    %v4213 = vpop.f32.mrf.mxu0
    %v4214 = vadd.f32 0.0, %v4213
    %4215 = vmatprep.mubr.f32.mxu0 0.0
    %4216 = vmatmul.mubr.f32.gmra.mxu0 %v4030
    %v4217 = vpop.f32.mrf.mxu0
    %v4218 = vadd.f32 0.0, %v4217
    %v4219 = vpop.f32.mrf.mxu0
    %v4220 = vadd.f32 0.0, %v4219
    %4221 = vmatprep.mubr.f32.mxu0 0.0
    %4222 = vmatmul.mubr.f32.gmra.mxu0 %v4033
    %v4223 = vpop.f32.mrf.mxu0
    %v4224 = vadd.f32 0.0, %v4223
    %v4225 = vpop.f32.mrf.mxu0
    %v4226 = vadd.f32 0.0, %v4225
    %4227 = vmatprep.mubr.f32.mxu0 0.0
    %4228 = vmatmul.mubr.f32.gmra.mxu0 %v4036
    %v4229 = vpop.f32.mrf.mxu0
    %v4230 = vadd.f32 0.0, %v4229
    %v4231 = vpop.f32.mrf.mxu0
    %v4232 = vadd.f32 0.0, %v4231
    %4233 = vmatprep.mubr.f32.mxu0 0.0
    %4234 = vmatmul.mubr.f32.gmra.mxu0 %v4039
    %v4235 = vpop.f32.mrf.mxu0
    %v4236 = vadd.f32 0.0, %v4235
    %v4237 = vpop.f32.mrf.mxu0
    %v4238 = vadd.f32 0.0, %v4237
    %4239 = vmatprep.mubr.f32.mxu0 0.0
    %4240 = vmatmul.mubr.f32.gmra.mxu0 %v4042
    %v4241 = vpop.f32.mrf.mxu0
    %v4242 = vadd.f32 0.0, %v4241
    %v4243 = vpop.f32.mrf.mxu0
    %v4244 = vadd.f32 0.0, %v4243
    %4245 = vdwg.mxu0
    %4246 = vmatprep.subr.mxu0 0.0
    %4247 = vmatpush1.msra.mxu0 0.0
    %4248 = vmatprep.subr.mxu0 0.0
    %4249 = vmatpush1.msra.mxu0 0.0
    %4250 = vmatprep.subr.mxu0 0.0
    %4251 = vmatpush1.msra.mxu0 0.0
    %4252 = vmatprep.subr.mxu0 0.0
    %4253 = vmatpush1.msra.mxu0 0.0
    %4254 = vmatprep.subr.mxu0 0.0
    %4255 = vmatpush1.msra.mxu0 0.0
    %4256 = vmatprep.subr.mxu0 0.0
    %4257 = vmatpush1.msra.mxu0 0.0
    %4258 = vmatprep.subr.mxu0 %v4024
    %4259 = vmatpush1.msra.mxu0 %v4023
    %4260 = vmatprep.subr.mxu0 %v4017
    %4261 = vmatpush1.msra.mxu0 %v4016
    %4262 = vmatprep.subr.mxu0 %v4010
    %4263 = vmatpush1.msra.mxu0 %v4009
    %4264 = vmatprep.subr.mxu0 %v4003
    %4265 = vmatpush1.msra.mxu0 %v4002
    %4266 = vmatprep.subr.mxu0 %v3996
    %4267 = vmatpush1.msra.mxu0 %v3995
    %4268 = vmatprep.subr.mxu0 %v3989
    %4269 = vmatpush1.msra.mxu0 %v3988
    %4270 = vmatprep.subr.mxu0 %v3982
    %4271 = vmatpush1.msra.mxu0 %v3981
    %4272 = vmatprep.subr.mxu0 %v3975
    %4273 = vmatpush1.msra.mxu0 %v3974
    %4274 = vmatprep.subr.mxu0 %v3968
    %4275 = vmatpush1.msra.mxu0 %v3967
    %4276 = vmatprep.subr.mxu0 %v3961
    %4277 = vmatpush1.msra.mxu0 %v3960
    %4278 = vmatprep.subr.mxu0 0.0
    %4279 = vmatpush2.msra.mxu0 0.0
    %4280 = vmatprep.subr.mxu0 0.0
    %4281 = vmatpush2.msra.mxu0 0.0
    %4282 = vmatprep.subr.mxu0 0.0
    %4283 = vmatpush2.msra.mxu0 0.0
    %4284 = vmatprep.subr.mxu0 0.0
    %4285 = vmatpush2.msra.mxu0 0.0
    %4286 = vmatprep.subr.mxu0 0.0
    %4287 = vmatpush2.msra.mxu0 0.0
    %4288 = vmatprep.subr.mxu0 0.0
    %4289 = vmatpush2.msra.mxu0 0.0
    %4290 = vmatprep.subr.mxu0 0.0
    %4291 = vmatpush2.msra.mxu0 0.0
    %4292 = vmatprep.subr.mxu0 0.0
    %4293 = vmatpush2.msra.mxu0 0.0
    %4294 = vmatprep.subr.mxu0 0.0
    %4295 = vmatpush2.msra.mxu0 0.0
    %4296 = vmatprep.subr.mxu0 0.0
    %4297 = vmatpush2.msra.mxu0 0.0
    %4298 = vmatprep.subr.mxu0 0.0
    %4299 = vmatpush2.msra.mxu0 0.0
    %4300 = vmatprep.subr.mxu0 0.0
    %4301 = vmatpush2.msra.mxu0 0.0
    %4302 = vmatprep.subr.mxu0 0.0
    %4303 = vmatpush2.msra.mxu0 0.0
    %4304 = vmatprep.subr.mxu0 0.0
    %4305 = vmatpush2.msra.mxu0 0.0
    %4306 = vmatprep.subr.mxu0 0.0
    %4307 = vmatpush2.msra.mxu0 0.0
    %4308 = vmatprep.subr.mxu0 0.0
    %4309 = vmatpush2.msra.mxu0 0.0
    %4310 = vmatprep.mubr.f32.mxu0 0.0
    %4311 = vmatmul.mubr.f32.gmra.mxu0 %v4027
    %v4312 = vpop.f32.mrf.mxu0
    %v4313 = vadd.f32 0.0, %v4312
    %v4314 = vpop.f32.mrf.mxu0
    %v4315 = vadd.f32 0.0, %v4314
    %4316 = vmatprep.mubr.f32.mxu0 0.0
    %4317 = vmatmul.mubr.f32.gmra.mxu0 %v4030
    %v4318 = vpop.f32.mrf.mxu0
    %v4319 = vadd.f32 0.0, %v4318
    %v4320 = vpop.f32.mrf.mxu0
    %v4321 = vadd.f32 0.0, %v4320
    %4322 = vmatprep.mubr.f32.mxu0 0.0
    %4323 = vmatmul.mubr.f32.gmra.mxu0 %v4033
    %v4324 = vpop.f32.mrf.mxu0
    %v4325 = vadd.f32 0.0, %v4324
    %v4326 = vpop.f32.mrf.mxu0
    %v4327 = vadd.f32 0.0, %v4326
    %4328 = vmatprep.mubr.f32.mxu0 0.0
    %4329 = vmatmul.mubr.f32.gmra.mxu0 %v4036
    %v4330 = vpop.f32.mrf.mxu0
    %v4331 = vadd.f32 0.0, %v4330
    %v4332 = vpop.f32.mrf.mxu0
    %v4333 = vadd.f32 0.0, %v4332
    %4334 = vmatprep.mubr.f32.mxu0 0.0
    %4335 = vmatmul.mubr.f32.gmra.mxu0 %v4039
    %v4336 = vpop.f32.mrf.mxu0
    %v4337 = vadd.f32 0.0, %v4336
    %v4338 = vpop.f32.mrf.mxu0
    %v4339 = vadd.f32 0.0, %v4338
    %4340 = vmatprep.mubr.f32.mxu0 0.0
    %4341 = vmatmul.mubr.f32.gmra.mxu0 %v4042
    %v4342 = vpop.f32.mrf.mxu0
    %v4343 = vadd.f32 0.0, %v4342
    %v4344 = vpop.f32.mrf.mxu0
    %v4345 = vadd.f32 0.0, %v4344
    %4346 = vdwg.mxu0
    %4347 = vmatprep.subr.mxu0 0.0
    %4348 = vmatpush1.msra.mxu0 0.0
    %4349 = vmatprep.subr.mxu0 0.0
    %4350 = vmatpush1.msra.mxu0 0.0
    %4351 = vmatprep.subr.mxu0 0.0
    %4352 = vmatpush1.msra.mxu0 0.0
    %4353 = vmatprep.subr.mxu0 0.0
    %4354 = vmatpush1.msra.mxu0 0.0
    %4355 = vmatprep.subr.mxu0 0.0
    %4356 = vmatpush1.msra.mxu0 0.0
    %4357 = vmatprep.subr.mxu0 0.0
    %4358 = vmatpush1.msra.mxu0 0.0
    %4359 = vmatprep.subr.mxu0 0.0
    %4360 = vmatpush1.msra.mxu0 %v4025
    %4361 = vmatprep.subr.mxu0 0.0
    %4362 = vmatpush1.msra.mxu0 %v4018
    %4363 = vmatprep.subr.mxu0 0.0
    %4364 = vmatpush1.msra.mxu0 %v4011
    %4365 = vmatprep.subr.mxu0 0.0
    %4366 = vmatpush1.msra.mxu0 %v4004
    %4367 = vmatprep.subr.mxu0 0.0
    %4368 = vmatpush1.msra.mxu0 %v3997
    %4369 = vmatprep.subr.mxu0 0.0
    %4370 = vmatpush1.msra.mxu0 %v3990
    %4371 = vmatprep.subr.mxu0 0.0
    %4372 = vmatpush1.msra.mxu0 %v3983
    %4373 = vmatprep.subr.mxu0 0.0
    %4374 = vmatpush1.msra.mxu0 %v3976
    %4375 = vmatprep.subr.mxu0 0.0
    %4376 = vmatpush1.msra.mxu0 %v3969
    %4377 = vmatprep.subr.mxu0 0.0
    %4378 = vmatpush1.msra.mxu0 %v3962
    %4379 = vmatprep.subr.mxu0 0.0
    %4380 = vmatpush2.msra.mxu0 0.0
    %4381 = vmatprep.subr.mxu0 0.0
    %4382 = vmatpush2.msra.mxu0 0.0
    %4383 = vmatprep.subr.mxu0 0.0
    %4384 = vmatpush2.msra.mxu0 0.0
    %4385 = vmatprep.subr.mxu0 0.0
    %4386 = vmatpush2.msra.mxu0 0.0
    %4387 = vmatprep.subr.mxu0 0.0
    %4388 = vmatpush2.msra.mxu0 0.0
    %4389 = vmatprep.subr.mxu0 0.0
    %4390 = vmatpush2.msra.mxu0 0.0
    %4391 = vmatprep.subr.mxu0 0.0
    %4392 = vmatpush2.msra.mxu0 0.0
    %4393 = vmatprep.subr.mxu0 0.0
    %4394 = vmatpush2.msra.mxu0 0.0
    %4395 = vmatprep.subr.mxu0 0.0
    %4396 = vmatpush2.msra.mxu0 0.0
    %4397 = vmatprep.subr.mxu0 0.0
    %4398 = vmatpush2.msra.mxu0 0.0
    %4399 = vmatprep.subr.mxu0 0.0
    %4400 = vmatpush2.msra.mxu0 0.0
    %4401 = vmatprep.subr.mxu0 0.0
    %4402 = vmatpush2.msra.mxu0 0.0
    %4403 = vmatprep.subr.mxu0 0.0
    %4404 = vmatpush2.msra.mxu0 0.0
    %4405 = vmatprep.subr.mxu0 0.0
    %4406 = vmatpush2.msra.mxu0 0.0
    %4407 = vmatprep.subr.mxu0 0.0
    %4408 = vmatpush2.msra.mxu0 0.0
    %4409 = vmatprep.subr.mxu0 0.0
    %4410 = vmatpush2.msra.mxu0 0.0
    %4411 = vmatprep.mubr.f32.mxu0 0.0
    %4412 = vmatmul.mubr.f32.gmra.mxu0 %v4027
    %v4413 = vpop.f32.mrf.mxu0
    %v4414 = vadd.f32 0.0, %v4413
    %v4415 = vpop.f32.mrf.mxu0
    %4416 = vmatprep.mubr.f32.mxu0 0.0
    %4417 = vmatmul.mubr.f32.gmra.mxu0 %v4030
    %v4418 = vpop.f32.mrf.mxu0
    %v4419 = vadd.f32 0.0, %v4418
    %v4420 = vpop.f32.mrf.mxu0
    %4421 = vmatprep.mubr.f32.mxu0 0.0
    %4422 = vmatmul.mubr.f32.gmra.mxu0 %v4033
    %v4423 = vpop.f32.mrf.mxu0
    %v4424 = vadd.f32 0.0, %v4423
    %v4425 = vpop.f32.mrf.mxu0
    %4426 = vmatprep.mubr.f32.mxu0 0.0
    %4427 = vmatmul.mubr.f32.gmra.mxu0 %v4036
    %v4428 = vpop.f32.mrf.mxu0
    %v4429 = vadd.f32 0.0, %v4428
    %v4430 = vpop.f32.mrf.mxu0
    %4431 = vmatprep.mubr.f32.mxu0 0.0
    %4432 = vmatmul.mubr.f32.gmra.mxu0 %v4039
    %v4433 = vpop.f32.mrf.mxu0
    %v4434 = vadd.f32 0.0, %v4433
    %v4435 = vpop.f32.mrf.mxu0
    %4436 = vmatprep.mubr.f32.mxu0 0.0
    %4437 = vmatmul.mubr.f32.gmra.mxu0 %v4042
    %v4438 = vpop.f32.mrf.mxu0
    %v4439 = vadd.f32 0.0, %v4438
    %v4440 = vpop.f32.mrf.mxu0
    %4441 = vdwg.mxu0
    %v4442 = vld [vmem:[%s59] sm:$0xff]
    %v4443 = vld [vmem:[%s59 + $0x8] sm:$0xff]
    %v4444 = vld [vmem:[%s59 + $0x10] sm:$0xff]
    %v4445 = vld [vmem:[%s59 + $0x18] sm:$0xff]
    %v4446 = vld [vmem:[%s59 + $0x20] sm:$0xff]
    %v4447 = vld [vmem:[%s59 + $0x28] sm:$0xff]
    %v4448 = vld [vmem:[%s59 + $0x30] sm:$0xff]
    %v4449 = vld [vmem:[%s59 + $0x38] sm:$0x3]
    %v4450 = vld [vmem:[%s59 + $0x40] sm:$0x3]
    %v4451 = vld [vmem:[%s59 + $0x48] sm:$0x3]
    %v4452 = vld [vmem:[%s59 + $0x50] sm:$0x3]
    %v4453 = vld [vmem:[%s59 + $0x58] sm:$0x3]
    %v4454 = vld [vmem:[%s59 + $0x60] sm:$0x3]
    %v4455 = vld [vmem:[%s59 + $0x68] sm:$0x3]
    %v4457 = vsel %vm217, %v3855, 0
    %v4460 = vsel %vm217, %v3856, 0
    %v4463 = vsel %vm217, %v3857, 0
    %v4466 = vsel %vm217, %v3858, 0
    %v4469 = vsel %vm217, %v3859, 0
    %v4472 = vsel %vm217, %v3860, 0
    %v4475 = vsel %vm236, %v4449, 0
    %v4478 = vsel %vm236, %v4450, 0
    %v4481 = vsel %vm236, %v4451, 0
    %v4484 = vsel %vm236, %v4452, 0
    %v4487 = vsel %vm236, %v4453, 0
    %v4490 = vsel %vm236, %v4454, 0
    %v4493 = vsel %vm236, %v4455, 0
    %4495 = vmatprep.subr.mxu0 0.0
    %4496 = vmatpush1.msra.mxu0 0.0
    %4497 = vmatprep.subr.mxu0 0.0
    %4498 = vmatpush1.msra.mxu0 0.0
    %4499 = vmatprep.subr.mxu0 0.0
    %4500 = vmatpush1.msra.mxu0 0.0
    %4501 = vmatprep.subr.mxu0 0.0
    %4502 = vmatpush1.msra.mxu0 0.0
    %4503 = vmatprep.subr.mxu0 0.0
    %4504 = vmatpush1.msra.mxu0 0.0
    %4505 = vmatprep.subr.mxu0 0.0
    %4506 = vmatpush1.msra.mxu0 0.0
    %4507 = vmatprep.subr.mxu0 0.0
    %4508 = vmatpush1.msra.mxu0 0.0
    %4509 = vmatprep.subr.mxu0 0.0
    %4510 = vmatpush1.msra.mxu0 0.0
    %4511 = vmatprep.subr.mxu0 0.0
    %4512 = vmatpush1.msra.mxu0 0.0
    %4513 = vmatprep.subr.mxu0 0.0
    %4514 = vmatpush1.msra.mxu0 0.0
    %4515 = vmatprep.subr.mxu0 0.0
    %4516 = vmatpush1.msra.mxu0 0.0
    %4517 = vmatprep.subr.mxu0 0.0
    %4518 = vmatpush1.msra.mxu0 0.0
    %4519 = vmatprep.subr.mxu0 0.0
    %4520 = vmatpush1.msra.mxu0 0.0
    %4521 = vmatprep.subr.mxu0 0.0
    %4522 = vmatpush1.msra.mxu0 0.0
    %4523 = vmatprep.subr.mxu0 %v4478
    %4524 = vmatpush1.msra.mxu0 %v4475
    %4525 = vmatprep.subr.mxu0 %v4443
    %4526 = vmatpush1.msra.mxu0 %v4442
    %4527 = vmatprep.subr.mxu0 0.0
    %4528 = vmatpush2.msra.mxu0 0.0
    %4529 = vmatprep.subr.mxu0 0.0
    %4530 = vmatpush2.msra.mxu0 0.0
    %4531 = vmatprep.subr.mxu0 0.0
    %4532 = vmatpush2.msra.mxu0 0.0
    %4533 = vmatprep.subr.mxu0 0.0
    %4534 = vmatpush2.msra.mxu0 0.0
    %4535 = vmatprep.subr.mxu0 0.0
    %4536 = vmatpush2.msra.mxu0 0.0
    %4537 = vmatprep.subr.mxu0 0.0
    %4538 = vmatpush2.msra.mxu0 0.0
    %4539 = vmatprep.subr.mxu0 0.0
    %4540 = vmatpush2.msra.mxu0 0.0
    %4541 = vmatprep.subr.mxu0 0.0
    %4542 = vmatpush2.msra.mxu0 0.0
    %4543 = vmatprep.subr.mxu0 0.0
    %4544 = vmatpush2.msra.mxu0 0.0
    %4545 = vmatprep.subr.mxu0 0.0
    %4546 = vmatpush2.msra.mxu0 0.0
    %4547 = vmatprep.subr.mxu0 0.0
    %4548 = vmatpush2.msra.mxu0 0.0
    %4549 = vmatprep.subr.mxu0 0.0
    %4550 = vmatpush2.msra.mxu0 0.0
    %4551 = vmatprep.subr.mxu0 0.0
    %4552 = vmatpush2.msra.mxu0 0.0
    %4553 = vmatprep.subr.mxu0 0.0
    %4554 = vmatpush2.msra.mxu0 0.0
    %4555 = vmatprep.subr.mxu0 0.0
    %4556 = vmatpush2.msra.mxu0 0.0
    %4557 = vmatprep.subr.mxu0 0.0
    %4558 = vmatpush2.msra.mxu0 0.0
    %4559 = vmatprep.mubr.f32.mxu0 0.0
    %4560 = vmatmul.mubr.f32.gmra.mxu0 %v4457
    %v4561 = vpop.f32.mrf.mxu0
    %v4562 = vadd.f32 0.0, %v4561
    %v4563 = vpop.f32.mrf.mxu0
    %v4564 = vadd.f32 0.0, %v4563
    %4565 = vmatprep.mubr.f32.mxu0 0.0
    %4566 = vmatmul.mubr.f32.gmra.mxu0 %v4460
    %v4567 = vpop.f32.mrf.mxu0
    %v4568 = vadd.f32 0.0, %v4567
    %v4569 = vpop.f32.mrf.mxu0
    %v4570 = vadd.f32 0.0, %v4569
    %4571 = vmatprep.mubr.f32.mxu0 0.0
    %4572 = vmatmul.mubr.f32.gmra.mxu0 %v4463
    %v4573 = vpop.f32.mrf.mxu0
    %v4574 = vadd.f32 0.0, %v4573
    %v4575 = vpop.f32.mrf.mxu0
    %v4576 = vadd.f32 0.0, %v4575
    %4577 = vmatprep.mubr.f32.mxu0 0.0
    %4578 = vmatmul.mubr.f32.gmra.mxu0 %v4466
    %v4579 = vpop.f32.mrf.mxu0
    %v4580 = vadd.f32 0.0, %v4579
    %v4581 = vpop.f32.mrf.mxu0
    %v4582 = vadd.f32 0.0, %v4581
    %4583 = vmatprep.mubr.f32.mxu0 0.0
    %4584 = vmatmul.mubr.f32.gmra.mxu0 %v4469
    %v4585 = vpop.f32.mrf.mxu0
    %v4586 = vadd.f32 0.0, %v4585
    %v4587 = vpop.f32.mrf.mxu0
    %v4588 = vadd.f32 0.0, %v4587
    %4589 = vmatprep.mubr.f32.mxu0 0.0
    %4590 = vmatmul.mubr.f32.gmra.mxu0 %v4472
    %v4591 = vpop.f32.mrf.mxu0
    %v4592 = vadd.f32 0.0, %v4591
    %v4593 = vpop.f32.mrf.mxu0
    %v4594 = vadd.f32 0.0, %v4593
    %4595 = vdwg.mxu0
    %4596 = vmatprep.subr.mxu0 0.0
    %4597 = vmatpush1.msra.mxu0 0.0
    %4598 = vmatprep.subr.mxu0 0.0
    %4599 = vmatpush1.msra.mxu0 0.0
    %4600 = vmatprep.subr.mxu0 0.0
    %4601 = vmatpush1.msra.mxu0 0.0
    %4602 = vmatprep.subr.mxu0 0.0
    %4603 = vmatpush1.msra.mxu0 0.0
    %4604 = vmatprep.subr.mxu0 0.0
    %4605 = vmatpush1.msra.mxu0 0.0
    %4606 = vmatprep.subr.mxu0 0.0
    %4607 = vmatpush1.msra.mxu0 0.0
    %4608 = vmatprep.subr.mxu0 0.0
    %4609 = vmatpush1.msra.mxu0 0.0
    %4610 = vmatprep.subr.mxu0 0.0
    %4611 = vmatpush1.msra.mxu0 0.0
    %4612 = vmatprep.subr.mxu0 0.0
    %4613 = vmatpush1.msra.mxu0 0.0
    %4614 = vmatprep.subr.mxu0 0.0
    %4615 = vmatpush1.msra.mxu0 0.0
    %4616 = vmatprep.subr.mxu0 0.0
    %4617 = vmatpush1.msra.mxu0 0.0
    %4618 = vmatprep.subr.mxu0 0.0
    %4619 = vmatpush1.msra.mxu0 0.0
    %4620 = vmatprep.subr.mxu0 0.0
    %4621 = vmatpush1.msra.mxu0 0.0
    %4622 = vmatprep.subr.mxu0 0.0
    %4623 = vmatpush1.msra.mxu0 0.0
    %4624 = vmatprep.subr.mxu0 %v4484
    %4625 = vmatpush1.msra.mxu0 %v4481
    %4626 = vmatprep.subr.mxu0 %v4445
    %4627 = vmatpush1.msra.mxu0 %v4444
    %4628 = vmatprep.subr.mxu0 0.0
    %4629 = vmatpush2.msra.mxu0 0.0
    %4630 = vmatprep.subr.mxu0 0.0
    %4631 = vmatpush2.msra.mxu0 0.0
    %4632 = vmatprep.subr.mxu0 0.0
    %4633 = vmatpush2.msra.mxu0 0.0
    %4634 = vmatprep.subr.mxu0 0.0
    %4635 = vmatpush2.msra.mxu0 0.0
    %4636 = vmatprep.subr.mxu0 0.0
    %4637 = vmatpush2.msra.mxu0 0.0
    %4638 = vmatprep.subr.mxu0 0.0
    %4639 = vmatpush2.msra.mxu0 0.0
    %4640 = vmatprep.subr.mxu0 0.0
    %4641 = vmatpush2.msra.mxu0 0.0
    %4642 = vmatprep.subr.mxu0 0.0
    %4643 = vmatpush2.msra.mxu0 0.0
    %4644 = vmatprep.subr.mxu0 0.0
    %4645 = vmatpush2.msra.mxu0 0.0
    %4646 = vmatprep.subr.mxu0 0.0
    %4647 = vmatpush2.msra.mxu0 0.0
    %4648 = vmatprep.subr.mxu0 0.0
    %4649 = vmatpush2.msra.mxu0 0.0
    %4650 = vmatprep.subr.mxu0 0.0
    %4651 = vmatpush2.msra.mxu0 0.0
    %4652 = vmatprep.subr.mxu0 0.0
    %4653 = vmatpush2.msra.mxu0 0.0
    %4654 = vmatprep.subr.mxu0 0.0
    %4655 = vmatpush2.msra.mxu0 0.0
    %4656 = vmatprep.subr.mxu0 0.0
    %4657 = vmatpush2.msra.mxu0 0.0
    %4658 = vmatprep.subr.mxu0 0.0
    %4659 = vmatpush2.msra.mxu0 0.0
    %4660 = vmatprep.mubr.f32.mxu0 0.0
    %4661 = vmatmul.mubr.f32.gmra.mxu0 %v4457
    %v4662 = vpop.f32.mrf.mxu0
    %v4663 = vadd.f32 0.0, %v4662
    %v4664 = vpop.f32.mrf.mxu0
    %v4665 = vadd.f32 0.0, %v4664
    %4666 = vmatprep.mubr.f32.mxu0 0.0
    %4667 = vmatmul.mubr.f32.gmra.mxu0 %v4460
    %v4668 = vpop.f32.mrf.mxu0
    %v4669 = vadd.f32 0.0, %v4668
    %v4670 = vpop.f32.mrf.mxu0
    %v4671 = vadd.f32 0.0, %v4670
    %4672 = vmatprep.mubr.f32.mxu0 0.0
    %4673 = vmatmul.mubr.f32.gmra.mxu0 %v4463
    %v4674 = vpop.f32.mrf.mxu0
    %v4675 = vadd.f32 0.0, %v4674
    %v4676 = vpop.f32.mrf.mxu0
    %v4677 = vadd.f32 0.0, %v4676
    %4678 = vmatprep.mubr.f32.mxu0 0.0
    %4679 = vmatmul.mubr.f32.gmra.mxu0 %v4466
    %v4680 = vpop.f32.mrf.mxu0
    %v4681 = vadd.f32 0.0, %v4680
    %v4682 = vpop.f32.mrf.mxu0
    %v4683 = vadd.f32 0.0, %v4682
    %4684 = vmatprep.mubr.f32.mxu0 0.0
    %4685 = vmatmul.mubr.f32.gmra.mxu0 %v4469
    %v4686 = vpop.f32.mrf.mxu0
    %v4687 = vadd.f32 0.0, %v4686
    %v4688 = vpop.f32.mrf.mxu0
    %v4689 = vadd.f32 0.0, %v4688
    %4690 = vmatprep.mubr.f32.mxu0 0.0
    %4691 = vmatmul.mubr.f32.gmra.mxu0 %v4472
    %v4692 = vpop.f32.mrf.mxu0
    %v4693 = vadd.f32 0.0, %v4692
    %v4694 = vpop.f32.mrf.mxu0
    %v4695 = vadd.f32 0.0, %v4694
    %4696 = vdwg.mxu0
    %4697 = vmatprep.subr.mxu0 0.0
    %4698 = vmatpush1.msra.mxu0 0.0
    %4699 = vmatprep.subr.mxu0 0.0
    %4700 = vmatpush1.msra.mxu0 0.0
    %4701 = vmatprep.subr.mxu0 0.0
    %4702 = vmatpush1.msra.mxu0 0.0
    %4703 = vmatprep.subr.mxu0 0.0
    %4704 = vmatpush1.msra.mxu0 0.0
    %4705 = vmatprep.subr.mxu0 0.0
    %4706 = vmatpush1.msra.mxu0 0.0
    %4707 = vmatprep.subr.mxu0 0.0
    %4708 = vmatpush1.msra.mxu0 0.0
    %4709 = vmatprep.subr.mxu0 0.0
    %4710 = vmatpush1.msra.mxu0 0.0
    %4711 = vmatprep.subr.mxu0 0.0
    %4712 = vmatpush1.msra.mxu0 0.0
    %4713 = vmatprep.subr.mxu0 0.0
    %4714 = vmatpush1.msra.mxu0 0.0
    %4715 = vmatprep.subr.mxu0 0.0
    %4716 = vmatpush1.msra.mxu0 0.0
    %4717 = vmatprep.subr.mxu0 0.0
    %4718 = vmatpush1.msra.mxu0 0.0
    %4719 = vmatprep.subr.mxu0 0.0
    %4720 = vmatpush1.msra.mxu0 0.0
    %4721 = vmatprep.subr.mxu0 0.0
    %4722 = vmatpush1.msra.mxu0 0.0
    %4723 = vmatprep.subr.mxu0 0.0
    %4724 = vmatpush1.msra.mxu0 0.0
    %4725 = vmatprep.subr.mxu0 %v4490
    %4726 = vmatpush1.msra.mxu0 %v4487
    %4727 = vmatprep.subr.mxu0 %v4447
    %4728 = vmatpush1.msra.mxu0 %v4446
    %4729 = vmatprep.subr.mxu0 0.0
    %4730 = vmatpush2.msra.mxu0 0.0
    %4731 = vmatprep.subr.mxu0 0.0
    %4732 = vmatpush2.msra.mxu0 0.0
    %4733 = vmatprep.subr.mxu0 0.0
    %4734 = vmatpush2.msra.mxu0 0.0
    %4735 = vmatprep.subr.mxu0 0.0
    %4736 = vmatpush2.msra.mxu0 0.0
    %4737 = vmatprep.subr.mxu0 0.0
    %4738 = vmatpush2.msra.mxu0 0.0
    %4739 = vmatprep.subr.mxu0 0.0
    %4740 = vmatpush2.msra.mxu0 0.0
    %4741 = vmatprep.subr.mxu0 0.0
    %4742 = vmatpush2.msra.mxu0 0.0
    %4743 = vmatprep.subr.mxu0 0.0
    %4744 = vmatpush2.msra.mxu0 0.0
    %4745 = vmatprep.subr.mxu0 0.0
    %4746 = vmatpush2.msra.mxu0 0.0
    %4747 = vmatprep.subr.mxu0 0.0
    %4748 = vmatpush2.msra.mxu0 0.0
    %4749 = vmatprep.subr.mxu0 0.0
    %4750 = vmatpush2.msra.mxu0 0.0
    %4751 = vmatprep.subr.mxu0 0.0
    %4752 = vmatpush2.msra.mxu0 0.0
    %4753 = vmatprep.subr.mxu0 0.0
    %4754 = vmatpush2.msra.mxu0 0.0
    %4755 = vmatprep.subr.mxu0 0.0
    %4756 = vmatpush2.msra.mxu0 0.0
    %4757 = vmatprep.subr.mxu0 0.0
    %4758 = vmatpush2.msra.mxu0 0.0
    %4759 = vmatprep.subr.mxu0 0.0
    %4760 = vmatpush2.msra.mxu0 0.0
    %4761 = vmatprep.mubr.f32.mxu0 0.0
    %4762 = vmatmul.mubr.f32.gmra.mxu0 %v4457
    %v4763 = vpop.f32.mrf.mxu0
    %v4764 = vadd.f32 0.0, %v4763
    %v4765 = vpop.f32.mrf.mxu0
    %v4766 = vadd.f32 0.0, %v4765
    %4767 = vmatprep.mubr.f32.mxu0 0.0
    %4768 = vmatmul.mubr.f32.gmra.mxu0 %v4460
    %v4769 = vpop.f32.mrf.mxu0
    %v4770 = vadd.f32 0.0, %v4769
    %v4771 = vpop.f32.mrf.mxu0
    %v4772 = vadd.f32 0.0, %v4771
    %4773 = vmatprep.mubr.f32.mxu0 0.0
    %4774 = vmatmul.mubr.f32.gmra.mxu0 %v4463
    %v4775 = vpop.f32.mrf.mxu0
    %v4776 = vadd.f32 0.0, %v4775
    %v4777 = vpop.f32.mrf.mxu0
    %v4778 = vadd.f32 0.0, %v4777
    %4779 = vmatprep.mubr.f32.mxu0 0.0
    %4780 = vmatmul.mubr.f32.gmra.mxu0 %v4466
    %v4781 = vpop.f32.mrf.mxu0
    %v4782 = vadd.f32 0.0, %v4781
    %v4783 = vpop.f32.mrf.mxu0
    %v4784 = vadd.f32 0.0, %v4783
    %4785 = vmatprep.mubr.f32.mxu0 0.0
    %4786 = vmatmul.mubr.f32.gmra.mxu0 %v4469
    %v4787 = vpop.f32.mrf.mxu0
    %v4788 = vadd.f32 0.0, %v4787
    %v4789 = vpop.f32.mrf.mxu0
    %v4790 = vadd.f32 0.0, %v4789
    %4791 = vmatprep.mubr.f32.mxu0 0.0
    %4792 = vmatmul.mubr.f32.gmra.mxu0 %v4472
    %v4793 = vpop.f32.mrf.mxu0
    %v4794 = vadd.f32 0.0, %v4793
    %v4795 = vpop.f32.mrf.mxu0
    %v4796 = vadd.f32 0.0, %v4795
    %4797 = vdwg.mxu0
    %4798 = vmatprep.subr.mxu0 0.0
    %4799 = vmatpush1.msra.mxu0 0.0
    %4800 = vmatprep.subr.mxu0 0.0
    %4801 = vmatpush1.msra.mxu0 0.0
    %4802 = vmatprep.subr.mxu0 0.0
    %4803 = vmatpush1.msra.mxu0 0.0
    %4804 = vmatprep.subr.mxu0 0.0
    %4805 = vmatpush1.msra.mxu0 0.0
    %4806 = vmatprep.subr.mxu0 0.0
    %4807 = vmatpush1.msra.mxu0 0.0
    %4808 = vmatprep.subr.mxu0 0.0
    %4809 = vmatpush1.msra.mxu0 0.0
    %4810 = vmatprep.subr.mxu0 0.0
    %4811 = vmatpush1.msra.mxu0 0.0
    %4812 = vmatprep.subr.mxu0 0.0
    %4813 = vmatpush1.msra.mxu0 0.0
    %4814 = vmatprep.subr.mxu0 0.0
    %4815 = vmatpush1.msra.mxu0 0.0
    %4816 = vmatprep.subr.mxu0 0.0
    %4817 = vmatpush1.msra.mxu0 0.0
    %4818 = vmatprep.subr.mxu0 0.0
    %4819 = vmatpush1.msra.mxu0 0.0
    %4820 = vmatprep.subr.mxu0 0.0
    %4821 = vmatpush1.msra.mxu0 0.0
    %4822 = vmatprep.subr.mxu0 0.0
    %4823 = vmatpush1.msra.mxu0 0.0
    %4824 = vmatprep.subr.mxu0 0.0
    %4825 = vmatpush1.msra.mxu0 0.0
    %4826 = vmatprep.subr.mxu0 0.0
    %4827 = vmatpush1.msra.mxu0 %v4493
    %4828 = vmatprep.subr.mxu0 0.0
    %4829 = vmatpush1.msra.mxu0 %v4448
    %4830 = vmatprep.subr.mxu0 0.0
    %4831 = vmatpush2.msra.mxu0 0.0
    %4832 = vmatprep.subr.mxu0 0.0
    %4833 = vmatpush2.msra.mxu0 0.0
    %4834 = vmatprep.subr.mxu0 0.0
    %4835 = vmatpush2.msra.mxu0 0.0
    %4836 = vmatprep.subr.mxu0 0.0
    %4837 = vmatpush2.msra.mxu0 0.0
    %4838 = vmatprep.subr.mxu0 0.0
    %4839 = vmatpush2.msra.mxu0 0.0
    %4840 = vmatprep.subr.mxu0 0.0
    %4841 = vmatpush2.msra.mxu0 0.0
    %4842 = vmatprep.subr.mxu0 0.0
    %4843 = vmatpush2.msra.mxu0 0.0
    %4844 = vmatprep.subr.mxu0 0.0
    %4845 = vmatpush2.msra.mxu0 0.0
    %4846 = vmatprep.subr.mxu0 0.0
    %4847 = vmatpush2.msra.mxu0 0.0
    %4848 = vmatprep.subr.mxu0 0.0
    %4849 = vmatpush2.msra.mxu0 0.0
    %4850 = vmatprep.subr.mxu0 0.0
    %4851 = vmatpush2.msra.mxu0 0.0
    %4852 = vmatprep.subr.mxu0 0.0
    %4853 = vmatpush2.msra.mxu0 0.0
    %4854 = vmatprep.subr.mxu0 0.0
    %4855 = vmatpush2.msra.mxu0 0.0
    %4856 = vmatprep.subr.mxu0 0.0
    %4857 = vmatpush2.msra.mxu0 0.0
    %4858 = vmatprep.subr.mxu0 0.0
    %4859 = vmatpush2.msra.mxu0 0.0
    %4860 = vmatprep.subr.mxu0 0.0
    %4861 = vmatpush2.msra.mxu0 0.0
    %4862 = vmatprep.mubr.f32.mxu0 0.0
    %4863 = vmatmul.mubr.f32.gmra.mxu0 %v4457
    %v4864 = vpop.f32.mrf.mxu0
    %v4865 = vadd.f32 0.0, %v4864
    %v4866 = vpop.f32.mrf.mxu0
    %4867 = vmatprep.mubr.f32.mxu0 0.0
    %4868 = vmatmul.mubr.f32.gmra.mxu0 %v4460
    %v4869 = vpop.f32.mrf.mxu0
    %v4870 = vadd.f32 0.0, %v4869
    %v4871 = vpop.f32.mrf.mxu0
    %4872 = vmatprep.mubr.f32.mxu0 0.0
    %4873 = vmatmul.mubr.f32.gmra.mxu0 %v4463
    %v4874 = vpop.f32.mrf.mxu0
    %v4875 = vadd.f32 0.0, %v4874
    %v4876 = vpop.f32.mrf.mxu0
    %4877 = vmatprep.mubr.f32.mxu0 0.0
    %4878 = vmatmul.mubr.f32.gmra.mxu0 %v4466
    %v4879 = vpop.f32.mrf.mxu0
    %v4880 = vadd.f32 0.0, %v4879
    %v4881 = vpop.f32.mrf.mxu0
    %4882 = vmatprep.mubr.f32.mxu0 0.0
    %4883 = vmatmul.mubr.f32.gmra.mxu0 %v4469
    %v4884 = vpop.f32.mrf.mxu0
    %v4885 = vadd.f32 0.0, %v4884
    %v4886 = vpop.f32.mrf.mxu0
    %4887 = vmatprep.mubr.f32.mxu0 0.0
    %4888 = vmatmul.mubr.f32.gmra.mxu0 %v4472
    %v4889 = vpop.f32.mrf.mxu0
    %v4890 = vadd.f32 0.0, %v4889
    %v4891 = vpop.f32.mrf.mxu0
    %4892 = vdwg.mxu0
    %v4893 = vmul.f32 %v4111, %v4562
    %v4894 = vmul.f32 %v4113, %v4564
    %v4895 = vmul.f32 %v4212, %v4663
    %v4896 = vmul.f32 %v4214, %v4665
    %v4897 = vmul.f32 %v4313, %v4764
    %v4898 = vmul.f32 %v4315, %v4766
    %v4899 = vmul.f32 %v4414, %v4865
    %v4900 = vmul.f32 %v4117, %v4568
    %v4901 = vmul.f32 %v4119, %v4570
    %v4902 = vmul.f32 %v4218, %v4669
    %v4903 = vmul.f32 %v4220, %v4671
    %v4904 = vmul.f32 %v4319, %v4770
    %v4905 = vmul.f32 %v4321, %v4772
    %v4906 = vmul.f32 %v4419, %v4870
    %v4907 = vmul.f32 %v4123, %v4574
    %v4908 = vmul.f32 %v4125, %v4576
    %v4909 = vmul.f32 %v4224, %v4675
    %v4910 = vmul.f32 %v4226, %v4677
    %v4911 = vmul.f32 %v4325, %v4776
    %v4912 = vmul.f32 %v4327, %v4778
    %v4913 = vmul.f32 %v4424, %v4875
    %v4914 = vmul.f32 %v4129, %v4580
    %v4915 = vmul.f32 %v4131, %v4582
    %v4916 = vmul.f32 %v4230, %v4681
    %v4917 = vmul.f32 %v4232, %v4683
    %v4918 = vmul.f32 %v4331, %v4782
    %v4919 = vmul.f32 %v4333, %v4784
    %v4920 = vmul.f32 %v4429, %v4880
    %v4921 = vmul.f32 %v4135, %v4586
    %v4922 = vmul.f32 %v4137, %v4588
    %v4923 = vmul.f32 %v4236, %v4687
    %v4924 = vmul.f32 %v4238, %v4689
    %v4925 = vmul.f32 %v4337, %v4788
    %v4926 = vmul.f32 %v4339, %v4790
    %v4927 = vmul.f32 %v4434, %v4885
    %v4928 = vmul.f32 %v4141, %v4592
    %v4929 = vmul.f32 %v4143, %v4594
    %v4930 = vmul.f32 %v4242, %v4693
    %v4931 = vmul.f32 %v4244, %v4695
    %v4932 = vmul.f32 %v4343, %v4794
    %v4933 = vmul.f32 %v4345, %v4796
    %v4934 = vmul.f32 %v4439, %v4890
    %v4935 = vld [vmem:[%s61] sm:$0xff]
    %v4936 = vld [vmem:[%s61 + $0x8] sm:$0xff]
    %v4937 = vld [vmem:[%s61 + $0x10] sm:$0xff]
    %v4938 = vld [vmem:[%s61 + $0x18] sm:$0xff]
    %v4939 = vld [vmem:[%s61 + $0x20] sm:$0xff]
    %v4940 = vld [vmem:[%s61 + $0x28] sm:$0xff]
    %v4941 = vld [vmem:[%s61 + $0x30] sm:$0xff]
    %v4942 = vld [vmem:[%s61 + $0x38] sm:$0xff]
    %v4943 = vld [vmem:[%s61 + $0x40] sm:$0xff]
    %v4944 = vld [vmem:[%s61 + $0x48] sm:$0xff]
    %v4945 = vld [vmem:[%s61 + $0x50] sm:$0xff]
    %v4946 = vld [vmem:[%s61 + $0x58] sm:$0xff]
    %v4947 = vld [vmem:[%s61 + $0x60] sm:$0xff]
    %v4948 = vld [vmem:[%s61 + $0x68] sm:$0xff]
    %v4949 = vld [vmem:[%s61 + $0x70] sm:$0xff]
    %v4950 = vld [vmem:[%s61 + $0x78] sm:$0xff]
    %v4951 = vld [vmem:[%s61 + $0x80] sm:$0xff]
    %v4952 = vld [vmem:[%s61 + $0x88] sm:$0xff]
    %v4953 = vld [vmem:[%s61 + $0x90] sm:$0xff]
    %v4954 = vld [vmem:[%s61 + $0x98] sm:$0xff]
    %v4955 = vld [vmem:[%s61 + $0xa0] sm:$0xff]
    %v4956 = vld [vmem:[%s61 + $0xa8] sm:$0xff]
    %v4957 = vld [vmem:[%s61 + $0xb0] sm:$0xff]
    %v4958 = vld [vmem:[%s61 + $0xb8] sm:$0xff]
    %v4959 = vld [vmem:[%s61 + $0xc0] sm:$0xff]
    %v4960 = vld [vmem:[%s61 + $0xc8] sm:$0xff]
    %v4961 = vld [vmem:[%s61 + $0xd0] sm:$0xff]
    %v4962 = vld [vmem:[%s61 + $0xd8] sm:$0xff]
    %v4963 = vld [vmem:[%s61 + $0xe0] sm:$0xff]
    %v4964 = vld [vmem:[%s61 + $0xe8] sm:$0xff]
    %v4965 = vld [vmem:[%s61 + $0xf0] sm:$0xff]
    %v4966 = vld [vmem:[%s61 + $0xf8] sm:$0xff]
    %v4967 = vld [vmem:[%s61 + $0x100] sm:$0xff]
    %v4968 = vld [vmem:[%s61 + $0x108] sm:$0xff]
    %v4969 = vld [vmem:[%s61 + $0x110] sm:$0xff]
    %v4970 = vld [vmem:[%s61 + $0x118] sm:$0xff]
    %v4971 = vld [vmem:[%s61 + $0x120] sm:$0xff]
    %v4972 = vld [vmem:[%s61 + $0x128] sm:$0xff]
    %v4973 = vld [vmem:[%s61 + $0x130] sm:$0xff]
    %v4974 = vld [vmem:[%s61 + $0x138] sm:$0xff]
    %v4975 = vld [vmem:[%s61 + $0x140] sm:$0xff]
    %v4976 = vld [vmem:[%s61 + $0x148] sm:$0xff]
    %v4977 = vld [vmem:[%s61 + $0x150] sm:$0xff]
    %v4978 = vld [vmem:[%s61 + $0x158] sm:$0xff]
    %v4979 = vld [vmem:[%s61 + $0x160] sm:$0xff]
    %v4980 = vld [vmem:[%s61 + $0x168] sm:$0xff]
    %v4981 = vld [vmem:[%s61 + $0x170] sm:$0xff]
    %v4982 = vld [vmem:[%s61 + $0x178] sm:$0xff]
    %v4983 = vld [vmem:[%s61 + $0x180] sm:$0xff]
    %v4984 = vld [vmem:[%s61 + $0x188] sm:$0xff]
    %v4985 = vld [vmem:[%s61 + $0x190] sm:$0xff]
    %v4986 = vld [vmem:[%s61 + $0x198] sm:$0xff]
    %v4987 = vld [vmem:[%s61 + $0x1a0] sm:$0xff]
    %v4988 = vld [vmem:[%s61 + $0x1a8] sm:$0xff]
    %v4989 = vld [vmem:[%s61 + $0x1b0] sm:$0xff]
    %v4990 = vld [vmem:[%s61 + $0x1b8] sm:$0xff]
    %v4991 = vld [vmem:[%s61 + $0x1c0] sm:$0xff]
    %v4992 = vld [vmem:[%s61 + $0x1c8] sm:$0xff]
    %v4993 = vld [vmem:[%s61 + $0x1d0] sm:$0xff]
    %v4994 = vld [vmem:[%s61 + $0x1d8] sm:$0xff]
    %v4995 = vld [vmem:[%s61 + $0x1e0] sm:$0xff]
    %v4996 = vld [vmem:[%s61 + $0x1e8] sm:$0xff]
    %v4997 = vld [vmem:[%s61 + $0x1f0] sm:$0xff]
    %v4998 = vld [vmem:[%s61 + $0x1f8] sm:$0xff]
    %v4999 = vld [vmem:[%s61 + $0x200] sm:$0xff]
    %v5000 = vld [vmem:[%s61 + $0x208] sm:$0xff]
    %v5001 = vld [vmem:[%s61 + $0x210] sm:$0xff]
    %v5002 = vld [vmem:[%s61 + $0x218] sm:$0xff]
    %v5003 = vld [vmem:[%s61 + $0x220] sm:$0xff]
    %v5004 = vld [vmem:[%s61 + $0x228] sm:$0xff]
    %v5005 = vld [vmem:[%s61 + $0x230] sm:$0xff]
    %v5006 = vld [vmem:[%s61 + $0x238] sm:$0xff]
    %v5007 = vld [vmem:[%s61 + $0x240] sm:$0xff]
    %v5008 = vld [vmem:[%s61 + $0x248] sm:$0xff]
    %v5009 = vld [vmem:[%s61 + $0x250] sm:$0xff]
    %v5010 = vld [vmem:[%s61 + $0x258] sm:$0xff]
    %v5011 = vld [vmem:[%s61 + $0x260] sm:$0xff]
    %v5012 = vld [vmem:[%s61 + $0x268] sm:$0xff]
    %v5013 = vld [vmem:[%s61 + $0x270] sm:$0xff]
    %v5014 = vld [vmem:[%s61 + $0x278] sm:$0xff]
    %v5015 = vld [vmem:[%s61 + $0x280] sm:$0xff]
    %v5016 = vld [vmem:[%s61 + $0x288] sm:$0xff]
    %v5017 = vld [vmem:[%s61 + $0x290] sm:$0xff]
    %v5018 = vld [vmem:[%s61 + $0x298] sm:$0xff]
    %v5019 = vld [vmem:[%s61 + $0x2a0] sm:$0xff]
    %v5020 = vld [vmem:[%s61 + $0x2a8] sm:$0xff]
    %v5021 = vld [vmem:[%s61 + $0x2b0] sm:$0xff]
    %v5022 = vld [vmem:[%s61 + $0x2b8] sm:$0xff]
    %v5023 = vld [vmem:[%s61 + $0x2c0] sm:$0xff]
    %v5024 = vld [vmem:[%s61 + $0x2c8] sm:$0xff]
    %v5025 = vld [vmem:[%s61 + $0x2d0] sm:$0xff]
    %v5026 = vld [vmem:[%s61 + $0x2d8] sm:$0xff]
    %v5027 = vld [vmem:[%s61 + $0x2e0] sm:$0xff]
    %v5028 = vld [vmem:[%s61 + $0x2e8] sm:$0xff]
    %v5029 = vld [vmem:[%s61 + $0x2f0] sm:$0xff]
    %v5030 = vld [vmem:[%s61 + $0x2f8] sm:$0xff]
    %v5031 = vld [vmem:[%s61 + $0x300] sm:$0xff]
    %v5032 = vld [vmem:[%s61 + $0x308] sm:$0xff]
    %v5033 = vld [vmem:[%s61 + $0x310] sm:$0xff]
    %v5034 = vld [vmem:[%s61 + $0x318] sm:$0xff]
    %v5036 = vsel %vm2868, %v4899, 0
    %v5039 = vsel %vm2868, %v4906, 0
    %v5042 = vsel %vm2868, %v4913, 0
    %v5045 = vsel %vm2868, %v4920, 0
    %v5048 = vsel %vm2868, %v4927, 0
    %v5051 = vsel %vm2868, %v4934, 0
    %5053 = vmatprep.subr.mxu0 0.0
    %5054 = vmatpush1.msra.mxu0 %v4950
    %5055 = vmatprep.subr.mxu0 0.0
    %5056 = vmatpush1.msra.mxu0 %v4949
    %5057 = vmatprep.subr.mxu0 0.0
    %5058 = vmatpush1.msra.mxu0 %v4948
    %5059 = vmatprep.subr.mxu0 0.0
    %5060 = vmatpush1.msra.mxu0 %v4947
    %5061 = vmatprep.subr.mxu0 0.0
    %5062 = vmatpush1.msra.mxu0 %v4946
    %5063 = vmatprep.subr.mxu0 0.0
    %5064 = vmatpush1.msra.mxu0 %v4945
    %5065 = vmatprep.subr.mxu0 0.0
    %5066 = vmatpush1.msra.mxu0 %v4944
    %5067 = vmatprep.subr.mxu0 0.0
    %5068 = vmatpush1.msra.mxu0 %v4943
    %5069 = vmatprep.subr.mxu0 0.0
    %5070 = vmatpush1.msra.mxu0 %v4942
    %5071 = vmatprep.subr.mxu0 0.0
    %5072 = vmatpush1.msra.mxu0 %v4941
    %5073 = vmatprep.subr.mxu0 0.0
    %5074 = vmatpush1.msra.mxu0 %v4940
    %5075 = vmatprep.subr.mxu0 0.0
    %5076 = vmatpush1.msra.mxu0 %v4939
    %5077 = vmatprep.subr.mxu0 0.0
    %5078 = vmatpush1.msra.mxu0 %v4938
    %5079 = vmatprep.subr.mxu0 0.0
    %5080 = vmatpush1.msra.mxu0 %v4937
    %5081 = vmatprep.subr.mxu0 0.0
    %5082 = vmatpush1.msra.mxu0 %v4936
    %5083 = vmatprep.subr.mxu0 0.0
    %5084 = vmatpush1.msra.mxu0 %v4935
    %5085 = vmatprep.subr.mxu0 0.0
    %5086 = vmatpush2.msra.mxu0 %v4966
    %5087 = vmatprep.subr.mxu0 0.0
    %5088 = vmatpush2.msra.mxu0 %v4965
    %5089 = vmatprep.subr.mxu0 0.0
    %5090 = vmatpush2.msra.mxu0 %v4964
    %5091 = vmatprep.subr.mxu0 0.0
    %5092 = vmatpush2.msra.mxu0 %v4963
    %5093 = vmatprep.subr.mxu0 0.0
    %5094 = vmatpush2.msra.mxu0 %v4962
    %5095 = vmatprep.subr.mxu0 0.0
    %5096 = vmatpush2.msra.mxu0 %v4961
    %5097 = vmatprep.subr.mxu0 0.0
    %5098 = vmatpush2.msra.mxu0 %v4960
    %5099 = vmatprep.subr.mxu0 0.0
    %5100 = vmatpush2.msra.mxu0 %v4959
    %5101 = vmatprep.subr.mxu0 0.0
    %5102 = vmatpush2.msra.mxu0 %v4958
    %5103 = vmatprep.subr.mxu0 0.0
    %5104 = vmatpush2.msra.mxu0 %v4957
    %5105 = vmatprep.subr.mxu0 0.0
    %5106 = vmatpush2.msra.mxu0 %v4956
    %5107 = vmatprep.subr.mxu0 0.0
    %5108 = vmatpush2.msra.mxu0 %v4955
    %5109 = vmatprep.subr.mxu0 0.0
    %5110 = vmatpush2.msra.mxu0 %v4954
    %5111 = vmatprep.subr.mxu0 0.0
    %5112 = vmatpush2.msra.mxu0 %v4953
    %5113 = vmatprep.subr.mxu0 0.0
    %5114 = vmatpush2.msra.mxu0 %v4952
    %5115 = vmatprep.subr.mxu0 0.0
    %5116 = vmatpush2.msra.mxu0 %v4951
    %5117 = vmatprep.mubr.f32.mxu0 %v4894
    %5118 = vmatmul.mubr.f32.gmra.mxu0 %v4893
    %v5119 = vpop.f32.mrf.mxu0
    %v5120 = vadd.f32 0.0, %v5119
    %v5121 = vpop.f32.mrf.mxu0
    %5122 = vmatprep.mubr.f32.mxu0 %v4901
    %5123 = vmatmul.mubr.f32.gmra.mxu0 %v4900
    %v5124 = vpop.f32.mrf.mxu0
    %v5125 = vadd.f32 0.0, %v5124
    %v5126 = vpop.f32.mrf.mxu0
    %5127 = vmatprep.mubr.f32.mxu0 %v4908
    %5128 = vmatmul.mubr.f32.gmra.mxu0 %v4907
    %v5129 = vpop.f32.mrf.mxu0
    %v5130 = vadd.f32 0.0, %v5129
    %v5131 = vpop.f32.mrf.mxu0
    %5132 = vmatprep.mubr.f32.mxu0 %v4915
    %5133 = vmatmul.mubr.f32.gmra.mxu0 %v4914
    %v5134 = vpop.f32.mrf.mxu0
    %v5135 = vadd.f32 0.0, %v5134
    %v5136 = vpop.f32.mrf.mxu0
    %5137 = vmatprep.mubr.f32.mxu0 %v4922
    %5138 = vmatmul.mubr.f32.gmra.mxu0 %v4921
    %v5139 = vpop.f32.mrf.mxu0
    %v5140 = vadd.f32 0.0, %v5139
    %v5141 = vpop.f32.mrf.mxu0
    %5142 = vmatprep.mubr.f32.mxu0 %v4929
    %5143 = vmatmul.mubr.f32.gmra.mxu0 %v4928
    %v5144 = vpop.f32.mrf.mxu0
    %v5145 = vadd.f32 0.0, %v5144
    %v5146 = vpop.f32.mrf.mxu0
    %5147 = vdwg.mxu0
    %5148 = vmatprep.subr.mxu0 0.0
    %5149 = vmatpush1.msra.mxu0 %v4982
    %5150 = vmatprep.subr.mxu0 0.0
    %5151 = vmatpush1.msra.mxu0 %v4981
    %5152 = vmatprep.subr.mxu0 0.0
    %5153 = vmatpush1.msra.mxu0 %v4980
    %5154 = vmatprep.subr.mxu0 0.0
    %5155 = vmatpush1.msra.mxu0 %v4979
    %5156 = vmatprep.subr.mxu0 0.0
    %5157 = vmatpush1.msra.mxu0 %v4978
    %5158 = vmatprep.subr.mxu0 0.0
    %5159 = vmatpush1.msra.mxu0 %v4977
    %5160 = vmatprep.subr.mxu0 0.0
    %5161 = vmatpush1.msra.mxu0 %v4976
    %5162 = vmatprep.subr.mxu0 0.0
    %5163 = vmatpush1.msra.mxu0 %v4975
    %5164 = vmatprep.subr.mxu0 0.0
    %5165 = vmatpush1.msra.mxu0 %v4974
    %5166 = vmatprep.subr.mxu0 0.0
    %5167 = vmatpush1.msra.mxu0 %v4973
    %5168 = vmatprep.subr.mxu0 0.0
    %5169 = vmatpush1.msra.mxu0 %v4972
    %5170 = vmatprep.subr.mxu0 0.0
    %5171 = vmatpush1.msra.mxu0 %v4971
    %5172 = vmatprep.subr.mxu0 0.0
    %5173 = vmatpush1.msra.mxu0 %v4970
    %5174 = vmatprep.subr.mxu0 0.0
    %5175 = vmatpush1.msra.mxu0 %v4969
    %5176 = vmatprep.subr.mxu0 0.0
    %5177 = vmatpush1.msra.mxu0 %v4968
    %5178 = vmatprep.subr.mxu0 0.0
    %5179 = vmatpush1.msra.mxu0 %v4967
    %5180 = vmatprep.subr.mxu0 0.0
    %5181 = vmatpush2.msra.mxu0 %v4998
    %5182 = vmatprep.subr.mxu0 0.0
    %5183 = vmatpush2.msra.mxu0 %v4997
    %5184 = vmatprep.subr.mxu0 0.0
    %5185 = vmatpush2.msra.mxu0 %v4996
    %5186 = vmatprep.subr.mxu0 0.0
    %5187 = vmatpush2.msra.mxu0 %v4995
    %5188 = vmatprep.subr.mxu0 0.0
    %5189 = vmatpush2.msra.mxu0 %v4994
    %5190 = vmatprep.subr.mxu0 0.0
    %5191 = vmatpush2.msra.mxu0 %v4993
    %5192 = vmatprep.subr.mxu0 0.0
    %5193 = vmatpush2.msra.mxu0 %v4992
    %5194 = vmatprep.subr.mxu0 0.0
    %5195 = vmatpush2.msra.mxu0 %v4991
    %5196 = vmatprep.subr.mxu0 0.0
    %5197 = vmatpush2.msra.mxu0 %v4990
    %5198 = vmatprep.subr.mxu0 0.0
    %5199 = vmatpush2.msra.mxu0 %v4989
    %5200 = vmatprep.subr.mxu0 0.0
    %5201 = vmatpush2.msra.mxu0 %v4988
    %5202 = vmatprep.subr.mxu0 0.0
    %5203 = vmatpush2.msra.mxu0 %v4987
    %5204 = vmatprep.subr.mxu0 0.0
    %5205 = vmatpush2.msra.mxu0 %v4986
    %5206 = vmatprep.subr.mxu0 0.0
    %5207 = vmatpush2.msra.mxu0 %v4985
    %5208 = vmatprep.subr.mxu0 0.0
    %5209 = vmatpush2.msra.mxu0 %v4984
    %5210 = vmatprep.subr.mxu0 0.0
    %5211 = vmatpush2.msra.mxu0 %v4983
    %5212 = vmatprep.mubr.f32.mxu0 %v4896
    %5213 = vmatmul.mubr.f32.gmra.mxu0 %v4895
    %v5214 = vpop.f32.mrf.mxu0
    %v5215 = vadd.f32 %v5120, %v5214
    %v5216 = vpop.f32.mrf.mxu0
    %5217 = vmatprep.mubr.f32.mxu0 %v4903
    %5218 = vmatmul.mubr.f32.gmra.mxu0 %v4902
    %v5219 = vpop.f32.mrf.mxu0
    %v5220 = vadd.f32 %v5125, %v5219
    %v5221 = vpop.f32.mrf.mxu0
    %5222 = vmatprep.mubr.f32.mxu0 %v4910
    %5223 = vmatmul.mubr.f32.gmra.mxu0 %v4909
    %v5224 = vpop.f32.mrf.mxu0
    %v5225 = vadd.f32 %v5130, %v5224
    %v5226 = vpop.f32.mrf.mxu0
    %5227 = vmatprep.mubr.f32.mxu0 %v4917
    %5228 = vmatmul.mubr.f32.gmra.mxu0 %v4916
    %v5229 = vpop.f32.mrf.mxu0
    %v5230 = vadd.f32 %v5135, %v5229
    %v5231 = vpop.f32.mrf.mxu0
    %5232 = vmatprep.mubr.f32.mxu0 %v4924
    %5233 = vmatmul.mubr.f32.gmra.mxu0 %v4923
    %v5234 = vpop.f32.mrf.mxu0
    %v5235 = vadd.f32 %v5140, %v5234
    %v5236 = vpop.f32.mrf.mxu0
    %5237 = vmatprep.mubr.f32.mxu0 %v4931
    %5238 = vmatmul.mubr.f32.gmra.mxu0 %v4930
    %v5239 = vpop.f32.mrf.mxu0
    %v5240 = vadd.f32 %v5145, %v5239
    %v5241 = vpop.f32.mrf.mxu0
    %5242 = vdwg.mxu0
    %5243 = vmatprep.subr.mxu0 0.0
    %5244 = vmatpush1.msra.mxu0 %v5014
    %5245 = vmatprep.subr.mxu0 0.0
    %5246 = vmatpush1.msra.mxu0 %v5013
    %5247 = vmatprep.subr.mxu0 0.0
    %5248 = vmatpush1.msra.mxu0 %v5012
    %5249 = vmatprep.subr.mxu0 0.0
    %5250 = vmatpush1.msra.mxu0 %v5011
    %5251 = vmatprep.subr.mxu0 0.0
    %5252 = vmatpush1.msra.mxu0 %v5010
    %5253 = vmatprep.subr.mxu0 0.0
    %5254 = vmatpush1.msra.mxu0 %v5009
    %5255 = vmatprep.subr.mxu0 0.0
    %5256 = vmatpush1.msra.mxu0 %v5008
    %5257 = vmatprep.subr.mxu0 0.0
    %5258 = vmatpush1.msra.mxu0 %v5007
    %5259 = vmatprep.subr.mxu0 0.0
    %5260 = vmatpush1.msra.mxu0 %v5006
    %5261 = vmatprep.subr.mxu0 0.0
    %5262 = vmatpush1.msra.mxu0 %v5005
    %5263 = vmatprep.subr.mxu0 0.0
    %5264 = vmatpush1.msra.mxu0 %v5004
    %5265 = vmatprep.subr.mxu0 0.0
    %5266 = vmatpush1.msra.mxu0 %v5003
    %5267 = vmatprep.subr.mxu0 0.0
    %5268 = vmatpush1.msra.mxu0 %v5002
    %5269 = vmatprep.subr.mxu0 0.0
    %5270 = vmatpush1.msra.mxu0 %v5001
    %5271 = vmatprep.subr.mxu0 0.0
    %5272 = vmatpush1.msra.mxu0 %v5000
    %5273 = vmatprep.subr.mxu0 0.0
    %5274 = vmatpush1.msra.mxu0 %v4999
    %5275 = vmatprep.subr.mxu0 0.0
    %5276 = vmatpush2.msra.mxu0 %v5030
    %5277 = vmatprep.subr.mxu0 0.0
    %5278 = vmatpush2.msra.mxu0 %v5029
    %5279 = vmatprep.subr.mxu0 0.0
    %5280 = vmatpush2.msra.mxu0 %v5028
    %5281 = vmatprep.subr.mxu0 0.0
    %5282 = vmatpush2.msra.mxu0 %v5027
    %5283 = vmatprep.subr.mxu0 0.0
    %5284 = vmatpush2.msra.mxu0 %v5026
    %5285 = vmatprep.subr.mxu0 0.0
    %5286 = vmatpush2.msra.mxu0 %v5025
    %5287 = vmatprep.subr.mxu0 0.0
    %5288 = vmatpush2.msra.mxu0 %v5024
    %5289 = vmatprep.subr.mxu0 0.0
    %5290 = vmatpush2.msra.mxu0 %v5023
    %5291 = vmatprep.subr.mxu0 0.0
    %5292 = vmatpush2.msra.mxu0 %v5022
    %5293 = vmatprep.subr.mxu0 0.0
    %5294 = vmatpush2.msra.mxu0 %v5021
    %5295 = vmatprep.subr.mxu0 0.0
    %5296 = vmatpush2.msra.mxu0 %v5020
    %5297 = vmatprep.subr.mxu0 0.0
    %5298 = vmatpush2.msra.mxu0 %v5019
    %5299 = vmatprep.subr.mxu0 0.0
    %5300 = vmatpush2.msra.mxu0 %v5018
    %5301 = vmatprep.subr.mxu0 0.0
    %5302 = vmatpush2.msra.mxu0 %v5017
    %5303 = vmatprep.subr.mxu0 0.0
    %5304 = vmatpush2.msra.mxu0 %v5016
    %5305 = vmatprep.subr.mxu0 0.0
    %5306 = vmatpush2.msra.mxu0 %v5015
    %5307 = vmatprep.mubr.f32.mxu0 %v4898
    %5308 = vmatmul.mubr.f32.gmra.mxu0 %v4897
    %v5309 = vpop.f32.mrf.mxu0
    %v5310 = vadd.f32 %v5215, %v5309
    %v5311 = vpop.f32.mrf.mxu0
    %5312 = vmatprep.mubr.f32.mxu0 %v4905
    %5313 = vmatmul.mubr.f32.gmra.mxu0 %v4904
    %v5314 = vpop.f32.mrf.mxu0
    %v5315 = vadd.f32 %v5220, %v5314
    %v5316 = vpop.f32.mrf.mxu0
    %5317 = vmatprep.mubr.f32.mxu0 %v4912
    %5318 = vmatmul.mubr.f32.gmra.mxu0 %v4911
    %v5319 = vpop.f32.mrf.mxu0
    %v5320 = vadd.f32 %v5225, %v5319
    %v5321 = vpop.f32.mrf.mxu0
    %5322 = vmatprep.mubr.f32.mxu0 %v4919
    %5323 = vmatmul.mubr.f32.gmra.mxu0 %v4918
    %v5324 = vpop.f32.mrf.mxu0
    %v5325 = vadd.f32 %v5230, %v5324
    %v5326 = vpop.f32.mrf.mxu0
    %5327 = vmatprep.mubr.f32.mxu0 %v4926
    %5328 = vmatmul.mubr.f32.gmra.mxu0 %v4925
    %v5329 = vpop.f32.mrf.mxu0
    %v5330 = vadd.f32 %v5235, %v5329
    %v5331 = vpop.f32.mrf.mxu0
    %5332 = vmatprep.mubr.f32.mxu0 %v4933
    %5333 = vmatmul.mubr.f32.gmra.mxu0 %v4932
    %v5334 = vpop.f32.mrf.mxu0
    %v5335 = vadd.f32 %v5240, %v5334
    %v5336 = vpop.f32.mrf.mxu0
    %5337 = vdwg.mxu0
    %5338 = vmatprep.subr.mxu0 0.0
    %5339 = vmatpush1.msra.mxu0 0.0
    %5340 = vmatprep.subr.mxu0 0.0
    %5341 = vmatpush1.msra.mxu0 0.0
    %5342 = vmatprep.subr.mxu0 0.0
    %5343 = vmatpush1.msra.mxu0 0.0
    %5344 = vmatprep.subr.mxu0 0.0
    %5345 = vmatpush1.msra.mxu0 0.0
    %5346 = vmatprep.subr.mxu0 0.0
    %5347 = vmatpush1.msra.mxu0 0.0
    %5348 = vmatprep.subr.mxu0 0.0
    %5349 = vmatpush1.msra.mxu0 0.0
    %5350 = vmatprep.subr.mxu0 0.0
    %5351 = vmatpush1.msra.mxu0 0.0
    %5352 = vmatprep.subr.mxu0 0.0
    %5353 = vmatpush1.msra.mxu0 0.0
    %5354 = vmatprep.subr.mxu0 0.0
    %5355 = vmatpush1.msra.mxu0 0.0
    %5356 = vmatprep.subr.mxu0 0.0
    %5357 = vmatpush1.msra.mxu0 0.0
    %5358 = vmatprep.subr.mxu0 0.0
    %5359 = vmatpush1.msra.mxu0 0.0
    %5360 = vmatprep.subr.mxu0 0.0
    %5361 = vmatpush1.msra.mxu0 0.0
    %5362 = vmatprep.subr.mxu0 0.0
    %5363 = vmatpush1.msra.mxu0 %v5034
    %5364 = vmatprep.subr.mxu0 0.0
    %5365 = vmatpush1.msra.mxu0 %v5033
    %5366 = vmatprep.subr.mxu0 0.0
    %5367 = vmatpush1.msra.mxu0 %v5032
    %5368 = vmatprep.subr.mxu0 0.0
    %5369 = vmatpush1.msra.mxu0 %v5031
    %5370 = vmatprep.subr.mxu0 0.0
    %5371 = vmatpush2.msra.mxu0 0.0
    %5372 = vmatprep.subr.mxu0 0.0
    %5373 = vmatpush2.msra.mxu0 0.0
    %5374 = vmatprep.subr.mxu0 0.0
    %5375 = vmatpush2.msra.mxu0 0.0
    %5376 = vmatprep.subr.mxu0 0.0
    %5377 = vmatpush2.msra.mxu0 0.0
    %5378 = vmatprep.subr.mxu0 0.0
    %5379 = vmatpush2.msra.mxu0 0.0
    %5380 = vmatprep.subr.mxu0 0.0
    %5381 = vmatpush2.msra.mxu0 0.0
    %5382 = vmatprep.subr.mxu0 0.0
    %5383 = vmatpush2.msra.mxu0 0.0
    %5384 = vmatprep.subr.mxu0 0.0
    %5385 = vmatpush2.msra.mxu0 0.0
    %5386 = vmatprep.subr.mxu0 0.0
    %5387 = vmatpush2.msra.mxu0 0.0
    %5388 = vmatprep.subr.mxu0 0.0
    %5389 = vmatpush2.msra.mxu0 0.0
    %5390 = vmatprep.subr.mxu0 0.0
    %5391 = vmatpush2.msra.mxu0 0.0
    %5392 = vmatprep.subr.mxu0 0.0
    %5393 = vmatpush2.msra.mxu0 0.0
    %5394 = vmatprep.subr.mxu0 0.0
    %5395 = vmatpush2.msra.mxu0 0.0
    %5396 = vmatprep.subr.mxu0 0.0
    %5397 = vmatpush2.msra.mxu0 0.0
    %5398 = vmatprep.subr.mxu0 0.0
    %5399 = vmatpush2.msra.mxu0 0.0
    %5400 = vmatprep.subr.mxu0 0.0
    %5401 = vmatpush2.msra.mxu0 0.0
    %5402 = vmatprep.mubr.f32.mxu0 0.0
    %5403 = vmatmul.mubr.f32.gmra.mxu0 %v5036
    %v5404 = vpop.f32.mrf.mxu0
    %v5405 = vadd.f32 %v5310, %v5404
    %v5406 = vpop.f32.mrf.mxu0
    %5407 = vmatprep.mubr.f32.mxu0 0.0
    %5408 = vmatmul.mubr.f32.gmra.mxu0 %v5039
    %v5409 = vpop.f32.mrf.mxu0
    %v5410 = vadd.f32 %v5315, %v5409
    %v5411 = vpop.f32.mrf.mxu0
    %5412 = vmatprep.mubr.f32.mxu0 0.0
    %5413 = vmatmul.mubr.f32.gmra.mxu0 %v5042
    %v5414 = vpop.f32.mrf.mxu0
    %v5415 = vadd.f32 %v5320, %v5414
    %v5416 = vpop.f32.mrf.mxu0
    %5417 = vmatprep.mubr.f32.mxu0 0.0
    %5418 = vmatmul.mubr.f32.gmra.mxu0 %v5045
    %v5419 = vpop.f32.mrf.mxu0
    %v5420 = vadd.f32 %v5325, %v5419
    %v5421 = vpop.f32.mrf.mxu0
    %5422 = vmatprep.mubr.f32.mxu0 0.0
    %5423 = vmatmul.mubr.f32.gmra.mxu0 %v5048
    %v5424 = vpop.f32.mrf.mxu0
    %v5425 = vadd.f32 %v5330, %v5424
    %v5426 = vpop.f32.mrf.mxu0
    %5427 = vmatprep.mubr.f32.mxu0 0.0
    %5428 = vmatmul.mubr.f32.gmra.mxu0 %v5051
    %v5429 = vpop.f32.mrf.mxu0
    %v5430 = vadd.f32 %v5335, %v5429
    %v5431 = vpop.f32.mrf.mxu0
    %5432 = vdwg.mxu0
    %v5433 = vld [vmem:[%s63] sm:$0x1]
    %v5435 = vlaneseq
    %v5436 = vshrl.u32 %v5435, 7
    %v5437 = vsub.s32 0, %v5436
    %v5438 = vrot.slane %v5433, %v5437
    %5440 = vmatprep.subr.mxu0 0.0
    %5441 = vmatpush1.msra.mxu0 0.0
    %5442 = vmatprep.subr.mxu0 0.0
    %5443 = vmatpush1.msra.mxu0 0.0
    %5444 = vmatprep.subr.mxu0 0.0
    %5445 = vmatpush1.msra.mxu0 0.0
    %5446 = vmatprep.subr.mxu0 0.0
    %5447 = vmatpush1.msra.mxu0 0.0
    %5448 = vmatprep.subr.mxu0 0.0
    %5449 = vmatpush1.msra.mxu0 0.0
    %5450 = vmatprep.subr.mxu0 0.0
    %5451 = vmatpush1.msra.mxu0 0.0
    %5452 = vmatprep.subr.mxu0 0.0
    %5453 = vmatpush1.msra.mxu0 0.0
    %5454 = vmatprep.subr.mxu0 0.0
    %5455 = vmatpush1.msra.mxu0 0.0
    %5456 = vmatprep.subr.mxu0 0.0
    %5457 = vmatpush1.msra.mxu0 0.0
    %5458 = vmatprep.subr.mxu0 0.0
    %5459 = vmatpush1.msra.mxu0 0.0
    %5460 = vmatprep.subr.mxu0 0.0
    %5461 = vmatpush1.msra.mxu0 %v5430
    %5462 = vmatprep.subr.mxu0 0.0
    %5463 = vmatpush1.msra.mxu0 %v5425
    %5464 = vmatprep.subr.mxu0 0.0
    %5465 = vmatpush1.msra.mxu0 %v5420
    %5466 = vmatprep.subr.mxu0 0.0
    %5467 = vmatpush1.msra.mxu0 %v5415
    %5468 = vmatprep.subr.mxu0 0.0
    %5469 = vmatpush1.msra.mxu0 %v5410
    %5470 = vmatprep.subr.mxu0 0.0
    %5471 = vmatpush1.msra.mxu0 %v5405
    %5472 = vmatprep.subr.mxu0 0.0
    %5473 = vmatpush2.msra.mxu0 0.0
    %5474 = vmatprep.subr.mxu0 0.0
    %5475 = vmatpush2.msra.mxu0 0.0
    %5476 = vmatprep.subr.mxu0 0.0
    %5477 = vmatpush2.msra.mxu0 0.0
    %5478 = vmatprep.subr.mxu0 0.0
    %5479 = vmatpush2.msra.mxu0 0.0
    %5480 = vmatprep.subr.mxu0 0.0
    %5481 = vmatpush2.msra.mxu0 0.0
    %5482 = vmatprep.subr.mxu0 0.0
    %5483 = vmatpush2.msra.mxu0 0.0
    %5484 = vmatprep.subr.mxu0 0.0
    %5485 = vmatpush2.msra.mxu0 0.0
    %5486 = vmatprep.subr.mxu0 0.0
    %5487 = vmatpush2.msra.mxu0 0.0
    %5488 = vmatprep.subr.mxu0 0.0
    %5489 = vmatpush2.msra.mxu0 0.0
    %5490 = vmatprep.subr.mxu0 0.0
    %5491 = vmatpush2.msra.mxu0 0.0
    %5492 = vmatprep.subr.mxu0 0.0
    %5493 = vmatpush2.msra.mxu0 0.0
    %5494 = vmatprep.subr.mxu0 0.0
    %5495 = vmatpush2.msra.mxu0 0.0
    %5496 = vmatprep.subr.mxu0 0.0
    %5497 = vmatpush2.msra.mxu0 0.0
    %5498 = vmatprep.subr.mxu0 0.0
    %5499 = vmatpush2.msra.mxu0 0.0
    %5500 = vmatprep.subr.mxu0 0.0
    %5501 = vmatpush2.msra.mxu0 0.0
    %5502 = vmatprep.subr.mxu0 0.0
    %5503 = vmatpush2.msra.mxu0 0.0
    %5504 = vmatprep.mubr.f32.mxu0 0.0
    %5505 = vmatmul.mubr.f32.gmra.mxu0 %v1109
    %v5506 = vpop.f32.mrf.mxu0
    %v5507 = vadd.f32 %v5438, %v5506
    %v5508 = vpop.f32.mrf.mxu0
    %5509 = vmatprep.mubr.f32.mxu0 0.0
    %5510 = vmatmul.mubr.f32.gmra.mxu0 %v1112
    %v5511 = vpop.f32.mrf.mxu0
    %v5512 = vadd.f32 %v5438, %v5511
    %v5513 = vpop.f32.mrf.mxu0
    %5514 = vdwg.mxu0
    %v5515 = vmax.f32 %v5507, 0.0
    %v5516 = vmax.f32 %v5512, 0.0
    %v5517 = vld [vmem:[%s65] sm:$0xff]
    %v5518 = vld [vmem:[%s65 + $0x8] sm:$0xff]
    %v5519 = vld [vmem:[%s65 + $0x10] sm:$0xff]
    %v5520 = vld [vmem:[%s65 + $0x18] sm:$0xff]
    %v5521 = vld [vmem:[%s65 + $0x20] sm:$0xff]
    %v5522 = vld [vmem:[%s65 + $0x28] sm:$0xff]
    %v5523 = vld [vmem:[%s65 + $0x30] sm:$0xff]
    %v5524 = vld [vmem:[%s65 + $0x38] sm:$0xff]
    %v5525 = vld [vmem:[%s65 + $0x40] sm:$0xff]
    %v5526 = vld [vmem:[%s65 + $0x48] sm:$0xff]
    %v5527 = vld [vmem:[%s67] sm:$0x1]
    %v5529 = vlaneseq
    %v5530 = vshrl.u32 %v5529, 7
    %v5531 = vsub.s32 0, %v5530
    %v5532 = vrot.slane %v5527, %v5531
    %v5535 = vsel %vm986, %v3473, 0
    %v5538 = vsel %vm986, %v3474, 0
    %5540 = vmatprep.subr.mxu0 0.0
    %5541 = vmatpush1.msra.mxu0 0.0
    %5542 = vmatprep.subr.mxu0 0.0
    %5543 = vmatpush1.msra.mxu0 0.0
    %5544 = vmatprep.subr.mxu0 0.0
    %5545 = vmatpush1.msra.mxu0 0.0
    %5546 = vmatprep.subr.mxu0 0.0
    %5547 = vmatpush1.msra.mxu0 0.0
    %5548 = vmatprep.subr.mxu0 0.0
    %5549 = vmatpush1.msra.mxu0 0.0
    %5550 = vmatprep.subr.mxu0 0.0
    %5551 = vmatpush1.msra.mxu0 0.0
    %5552 = vmatprep.subr.mxu0 0.0
    %5553 = vmatpush1.msra.mxu0 %v5526
    %5554 = vmatprep.subr.mxu0 0.0
    %5555 = vmatpush1.msra.mxu0 %v5525
    %5556 = vmatprep.subr.mxu0 0.0
    %5557 = vmatpush1.msra.mxu0 %v5524
    %5558 = vmatprep.subr.mxu0 0.0
    %5559 = vmatpush1.msra.mxu0 %v5523
    %5560 = vmatprep.subr.mxu0 0.0
    %5561 = vmatpush1.msra.mxu0 %v5522
    %5562 = vmatprep.subr.mxu0 0.0
    %5563 = vmatpush1.msra.mxu0 %v5521
    %5564 = vmatprep.subr.mxu0 0.0
    %5565 = vmatpush1.msra.mxu0 %v5520
    %5566 = vmatprep.subr.mxu0 0.0
    %5567 = vmatpush1.msra.mxu0 %v5519
    %5568 = vmatprep.subr.mxu0 0.0
    %5569 = vmatpush1.msra.mxu0 %v5518
    %5570 = vmatprep.subr.mxu0 0.0
    %5571 = vmatpush1.msra.mxu0 %v5517
    %5572 = vmatprep.subr.mxu0 0.0
    %5573 = vmatpush2.msra.mxu0 0.0
    %5574 = vmatprep.subr.mxu0 0.0
    %5575 = vmatpush2.msra.mxu0 0.0
    %5576 = vmatprep.subr.mxu0 0.0
    %5577 = vmatpush2.msra.mxu0 0.0
    %5578 = vmatprep.subr.mxu0 0.0
    %5579 = vmatpush2.msra.mxu0 0.0
    %5580 = vmatprep.subr.mxu0 0.0
    %5581 = vmatpush2.msra.mxu0 0.0
    %5582 = vmatprep.subr.mxu0 0.0
    %5583 = vmatpush2.msra.mxu0 0.0
    %5584 = vmatprep.subr.mxu0 0.0
    %5585 = vmatpush2.msra.mxu0 0.0
    %5586 = vmatprep.subr.mxu0 0.0
    %5587 = vmatpush2.msra.mxu0 0.0
    %5588 = vmatprep.subr.mxu0 0.0
    %5589 = vmatpush2.msra.mxu0 0.0
    %5590 = vmatprep.subr.mxu0 0.0
    %5591 = vmatpush2.msra.mxu0 0.0
    %5592 = vmatprep.subr.mxu0 0.0
    %5593 = vmatpush2.msra.mxu0 0.0
    %5594 = vmatprep.subr.mxu0 0.0
    %5595 = vmatpush2.msra.mxu0 0.0
    %5596 = vmatprep.subr.mxu0 0.0
    %5597 = vmatpush2.msra.mxu0 0.0
    %5598 = vmatprep.subr.mxu0 0.0
    %5599 = vmatpush2.msra.mxu0 0.0
    %5600 = vmatprep.subr.mxu0 0.0
    %5601 = vmatpush2.msra.mxu0 0.0
    %5602 = vmatprep.subr.mxu0 0.0
    %5603 = vmatpush2.msra.mxu0 0.0
    %5604 = vmatprep.mubr.f32.mxu0 0.0
    %5605 = vmatmul.mubr.f32.gmra.mxu0 %v5535
    %v5606 = vpop.f32.mrf.mxu0
    %v5607 = vadd.f32 %v5532, %v5606
    %v5608 = vpop.f32.mrf.mxu0
    %5609 = vmatprep.mubr.f32.mxu0 0.0
    %5610 = vmatmul.mubr.f32.gmra.mxu0 %v5538
    %v5611 = vpop.f32.mrf.mxu0
    %v5612 = vadd.f32 %v5532, %v5611
    %v5613 = vpop.f32.mrf.mxu0
    %5614 = vdwg.mxu0
    %v5615 = vtanh.pop %v5607
    %v5616 = vtanh.pop %v5612
    %5619 = vrot.lane.b32.xlu0 %v5615, 112
    %v5620 = vpop.permute.xlu0 %5619
    %5621 = vrot.lane.b32.xlu0 %v5616, 112
    %v5622 = vpop.permute.xlu0 %5621
    %v5625 = vmul.f32 %v5615, %v5620
    %v5626 = vmul.f32 %v5616, %v5622
    %5627 = vst.msk [vmem:[#allocation2] sm:$0xff] %vm1292, %v5515
    %5628 = vst.msk [vmem:[#allocation2 + $0x8] sm:$0xff] %vm1292, %v5516
    %5631 = vrot.lane.b32.xlu0 %v5625, 64
    %v5632 = vpop.permute.xlu0 %5631
    %5633 = vrot.lane.b32.xlu0 %v5626, 64
    %v5634 = vpop.permute.xlu0 %5633
    %5637 = vst.msk [vmem:[#allocation2] sm:$0xff] %vm1303, %v5632
    %5638 = vst.msk [vmem:[#allocation2 + $0x8] sm:$0xff] %vm1303, %v5634
    %v5639 = vld [vmem:[#allocation2] sm:$0xff]
    %v5640 = vld [vmem:[#allocation2 + $0x8] sm:$0xff]
    %v5641 = vld [vmem:[%s69] sm:$0xff]
    %v5642 = vld [vmem:[%s69 + $0x8] sm:$0x3]
    %v5644 = vsel %vm236, %v5642, 0
    %5646 = vmatprep.subr.mxu0 0.0
    %5647 = vmatpush1.msra.mxu0 0.0
    %5648 = vmatprep.subr.mxu0 0.0
    %5649 = vmatpush1.msra.mxu0 0.0
    %5650 = vmatprep.subr.mxu0 0.0
    %5651 = vmatpush1.msra.mxu0 0.0
    %5652 = vmatprep.subr.mxu0 0.0
    %5653 = vmatpush1.msra.mxu0 0.0
    %5654 = vmatprep.subr.mxu0 0.0
    %5655 = vmatpush1.msra.mxu0 0.0
    %5656 = vmatprep.subr.mxu0 0.0
    %5657 = vmatpush1.msra.mxu0 0.0
    %5658 = vmatprep.subr.mxu0 0.0
    %5659 = vmatpush1.msra.mxu0 0.0
    %5660 = vmatprep.subr.mxu0 0.0
    %5661 = vmatpush1.msra.mxu0 0.0
    %5662 = vmatprep.subr.mxu0 0.0
    %5663 = vmatpush1.msra.mxu0 0.0
    %5664 = vmatprep.subr.mxu0 0.0
    %5665 = vmatpush1.msra.mxu0 0.0
    %5666 = vmatprep.subr.mxu0 0.0
    %5667 = vmatpush1.msra.mxu0 0.0
    %5668 = vmatprep.subr.mxu0 0.0
    %5669 = vmatpush1.msra.mxu0 0.0
    %5670 = vmatprep.subr.mxu0 0.0
    %5671 = vmatpush1.msra.mxu0 0.0
    %5672 = vmatprep.subr.mxu0 0.0
    %5673 = vmatpush1.msra.mxu0 0.0
    %5674 = vmatprep.subr.mxu0 0.0
    %5675 = vmatpush1.msra.mxu0 %v5644
    %5676 = vmatprep.subr.mxu0 0.0
    %5677 = vmatpush1.msra.mxu0 %v5641
    %5678 = vmatprep.subr.mxu0 0.0
    %5679 = vmatpush2.msra.mxu0 0.0
    %5680 = vmatprep.subr.mxu0 0.0
    %5681 = vmatpush2.msra.mxu0 0.0
    %5682 = vmatprep.subr.mxu0 0.0
    %5683 = vmatpush2.msra.mxu0 0.0
    %5684 = vmatprep.subr.mxu0 0.0
    %5685 = vmatpush2.msra.mxu0 0.0
    %5686 = vmatprep.subr.mxu0 0.0
    %5687 = vmatpush2.msra.mxu0 0.0
    %5688 = vmatprep.subr.mxu0 0.0
    %5689 = vmatpush2.msra.mxu0 0.0
    %5690 = vmatprep.subr.mxu0 0.0
    %5691 = vmatpush2.msra.mxu0 0.0
    %5692 = vmatprep.subr.mxu0 0.0
    %5693 = vmatpush2.msra.mxu0 0.0
    %5694 = vmatprep.subr.mxu0 0.0
    %5695 = vmatpush2.msra.mxu0 0.0
    %5696 = vmatprep.subr.mxu0 0.0
    %5697 = vmatpush2.msra.mxu0 0.0
    %5698 = vmatprep.subr.mxu0 0.0
    %5699 = vmatpush2.msra.mxu0 0.0
    %5700 = vmatprep.subr.mxu0 0.0
    %5701 = vmatpush2.msra.mxu0 0.0
    %5702 = vmatprep.subr.mxu0 0.0
    %5703 = vmatpush2.msra.mxu0 0.0
    %5704 = vmatprep.subr.mxu0 0.0
    %5705 = vmatpush2.msra.mxu0 0.0
    %5706 = vmatprep.subr.mxu0 0.0
    %5707 = vmatpush2.msra.mxu0 0.0
    %5708 = vmatprep.subr.mxu0 0.0
    %5709 = vmatpush2.msra.mxu0 0.0
    %5710 = vmatprep.mubr.f32.mxu0 0.0
    %5711 = vmatmul.mubr.f32.gmra.mxu0 %v219
    %v5712 = vpop.f32.mrf.mxu0
    %v5713 = vadd.f32 0.0, %v5712
    %v5714 = vpop.f32.mrf.mxu0
    %5715 = vmatprep.mubr.f32.mxu0 0.0
    %5716 = vmatmul.mubr.f32.gmra.mxu0 %v222
    %v5717 = vpop.f32.mrf.mxu0
    %v5718 = vadd.f32 0.0, %v5717
    %v5719 = vpop.f32.mrf.mxu0
    %5720 = vmatprep.mubr.f32.mxu0 0.0
    %5721 = vmatmul.mubr.f32.gmra.mxu0 %v225
    %v5722 = vpop.f32.mrf.mxu0
    %v5723 = vadd.f32 0.0, %v5722
    %v5724 = vpop.f32.mrf.mxu0
    %5725 = vmatprep.mubr.f32.mxu0 0.0
    %5726 = vmatmul.mubr.f32.gmra.mxu0 %v228
    %v5727 = vpop.f32.mrf.mxu0
    %v5728 = vadd.f32 0.0, %v5727
    %v5729 = vpop.f32.mrf.mxu0
    %5730 = vmatprep.mubr.f32.mxu0 0.0
    %5731 = vmatmul.mubr.f32.gmra.mxu0 %v231
    %v5732 = vpop.f32.mrf.mxu0
    %v5733 = vadd.f32 0.0, %v5732
    %v5734 = vpop.f32.mrf.mxu0
    %5735 = vmatprep.mubr.f32.mxu0 0.0
    %5736 = vmatmul.mubr.f32.gmra.mxu0 %v234
    %v5737 = vpop.f32.mrf.mxu0
    %v5738 = vadd.f32 0.0, %v5737
    %v5739 = vpop.f32.mrf.mxu0
    %5740 = vdwg.mxu0
    %v5741 = vmax.f32 %v5713, 0.0
    %v5742 = vmax.f32 %v5718, 0.0
    %v5743 = vmax.f32 %v5723, 0.0
    %v5744 = vmax.f32 %v5728, 0.0
    %v5745 = vmax.f32 %v5733, 0.0
    %v5746 = vmax.f32 %v5738, 0.0
    %5753 = vrot.lane.b32.xlu0 %v5741, 108
    %v5754 = vpop.permute.xlu0 %5753
    %5755 = vrot.lane.b32.xlu0 %v5742, 108
    %v5756 = vpop.permute.xlu0 %5755
    %5757 = vrot.lane.b32.xlu0 %v5743, 108
    %v5758 = vpop.permute.xlu0 %5757
    %5759 = vrot.lane.b32.xlu0 %v5744, 108
    %v5760 = vpop.permute.xlu0 %5759
    %5761 = vrot.lane.b32.xlu0 %v5745, 108
    %v5762 = vpop.permute.xlu0 %5761
    %5763 = vrot.lane.b32.xlu0 %v5746, 108
    %v5764 = vpop.permute.xlu0 %5763
    %v5771 = vmul.f32 %v5741, %v5754
    %v5772 = vmul.f32 %v5742, %v5756
    %v5773 = vmul.f32 %v5743, %v5758
    %v5774 = vmul.f32 %v5744, %v5760
    %v5775 = vmul.f32 %v5745, %v5762
    %v5776 = vmul.f32 %v5746, %v5764
    %v5777 = vld [vmem:[%s71] sm:$0xff]
    %v5778 = vld [vmem:[%s71 + $0x8] sm:$0xff]
    %v5779 = vld [vmem:[%s71 + $0x10] sm:$0xf]
    %v5780 = vld [vmem:[%s73] sm:$0xff]
    %v5781 = vld [vmem:[%s73 + $0x8] sm:$0xff]
    %v5782 = vld [vmem:[%s73 + $0x10] sm:$0xf]
    %5789 = vrot.lane.b32.xlu0 %v5771, 108
    %v5790 = vpop.permute.xlu0 %5789
    %5791 = vrot.lane.b32.xlu0 %v5772, 108
    %v5792 = vpop.permute.xlu0 %5791
    %5793 = vrot.lane.b32.xlu0 %v5773, 108
    %v5794 = vpop.permute.xlu0 %5793
    %5795 = vrot.lane.b32.xlu0 %v5774, 108
    %v5796 = vpop.permute.xlu0 %5795
    %5797 = vrot.lane.b32.xlu0 %v5775, 108
    %v5798 = vpop.permute.xlu0 %5797
    %5799 = vrot.lane.b32.xlu0 %v5776, 108
    %v5800 = vpop.permute.xlu0 %5799
    %v5801 = vsel %vm395, %v5790, 0
    %v5803 = vsel %vm395, %v5792, 0
    %v5805 = vsel %vm395, %v5794, 0
    %v5807 = vsel %vm395, %v5796, 0
    %v5809 = vsel %vm395, %v5798, 0
    %v5811 = vsel %vm395, %v5800, 0
    %v5814 = vsel %vm408, %v5782, 0
    %5816 = vmatprep.subr.mxu0 0.0
    %5817 = vmatpush1.msra.mxu0 0.0
    %5818 = vmatprep.subr.mxu0 0.0
    %5819 = vmatpush1.msra.mxu0 0.0
    %5820 = vmatprep.subr.mxu0 0.0
    %5821 = vmatpush1.msra.mxu0 0.0
    %5822 = vmatprep.subr.mxu0 0.0
    %5823 = vmatpush1.msra.mxu0 0.0
    %5824 = vmatprep.subr.mxu0 0.0
    %5825 = vmatpush1.msra.mxu0 0.0
    %5826 = vmatprep.subr.mxu0 0.0
    %5827 = vmatpush1.msra.mxu0 0.0
    %5828 = vmatprep.subr.mxu0 0.0
    %5829 = vmatpush1.msra.mxu0 0.0
    %5830 = vmatprep.subr.mxu0 0.0
    %5831 = vmatpush1.msra.mxu0 0.0
    %5832 = vmatprep.subr.mxu0 0.0
    %5833 = vmatpush1.msra.mxu0 0.0
    %5834 = vmatprep.subr.mxu0 0.0
    %5835 = vmatpush1.msra.mxu0 0.0
    %5836 = vmatprep.subr.mxu0 0.0
    %5837 = vmatpush1.msra.mxu0 0.0
    %5838 = vmatprep.subr.mxu0 0.0
    %5839 = vmatpush1.msra.mxu0 0.0
    %5840 = vmatprep.subr.mxu0 0.0
    %5841 = vmatpush1.msra.mxu0 0.0
    %5842 = vmatprep.subr.mxu0 0.0
    %5843 = vmatpush1.msra.mxu0 %v5814
    %5844 = vmatprep.subr.mxu0 0.0
    %5845 = vmatpush1.msra.mxu0 %v5781
    %5846 = vmatprep.subr.mxu0 0.0
    %5847 = vmatpush1.msra.mxu0 %v5780
    %5848 = vmatprep.subr.mxu0 0.0
    %5849 = vmatpush2.msra.mxu0 0.0
    %5850 = vmatprep.subr.mxu0 0.0
    %5851 = vmatpush2.msra.mxu0 0.0
    %5852 = vmatprep.subr.mxu0 0.0
    %5853 = vmatpush2.msra.mxu0 0.0
    %5854 = vmatprep.subr.mxu0 0.0
    %5855 = vmatpush2.msra.mxu0 0.0
    %5856 = vmatprep.subr.mxu0 0.0
    %5857 = vmatpush2.msra.mxu0 0.0
    %5858 = vmatprep.subr.mxu0 0.0
    %5859 = vmatpush2.msra.mxu0 0.0
    %5860 = vmatprep.subr.mxu0 0.0
    %5861 = vmatpush2.msra.mxu0 0.0
    %5862 = vmatprep.subr.mxu0 0.0
    %5863 = vmatpush2.msra.mxu0 0.0
    %5864 = vmatprep.subr.mxu0 0.0
    %5865 = vmatpush2.msra.mxu0 0.0
    %5866 = vmatprep.subr.mxu0 0.0
    %5867 = vmatpush2.msra.mxu0 0.0
    %5868 = vmatprep.subr.mxu0 0.0
    %5869 = vmatpush2.msra.mxu0 0.0
    %5870 = vmatprep.subr.mxu0 0.0
    %5871 = vmatpush2.msra.mxu0 0.0
    %5872 = vmatprep.subr.mxu0 0.0
    %5873 = vmatpush2.msra.mxu0 0.0
    %5874 = vmatprep.subr.mxu0 0.0
    %5875 = vmatpush2.msra.mxu0 0.0
    %5876 = vmatprep.subr.mxu0 0.0
    %5877 = vmatpush2.msra.mxu0 0.0
    %5878 = vmatprep.subr.mxu0 0.0
    %5879 = vmatpush2.msra.mxu0 0.0
    %5880 = vmatprep.mubr.f32.mxu0 0.0
    %5881 = vmatmul.mubr.f32.gmra.mxu0 %v5801
    %v5882 = vpop.f32.mrf.mxu0
    %v5883 = vadd.f32 0.0, %v5882
    %v5884 = vpop.f32.mrf.mxu0
    %5885 = vmatprep.mubr.f32.mxu0 0.0
    %5886 = vmatmul.mubr.f32.gmra.mxu0 %v5803
    %v5887 = vpop.f32.mrf.mxu0
    %v5888 = vadd.f32 0.0, %v5887
    %v5889 = vpop.f32.mrf.mxu0
    %5890 = vmatprep.mubr.f32.mxu0 0.0
    %5891 = vmatmul.mubr.f32.gmra.mxu0 %v5805
    %v5892 = vpop.f32.mrf.mxu0
    %v5893 = vadd.f32 0.0, %v5892
    %v5894 = vpop.f32.mrf.mxu0
    %5895 = vmatprep.mubr.f32.mxu0 0.0
    %5896 = vmatmul.mubr.f32.gmra.mxu0 %v5807
    %v5897 = vpop.f32.mrf.mxu0
    %v5898 = vadd.f32 0.0, %v5897
    %v5899 = vpop.f32.mrf.mxu0
    %5900 = vmatprep.mubr.f32.mxu0 0.0
    %5901 = vmatmul.mubr.f32.gmra.mxu0 %v5809
    %v5902 = vpop.f32.mrf.mxu0
    %v5903 = vadd.f32 0.0, %v5902
    %v5904 = vpop.f32.mrf.mxu0
    %5905 = vmatprep.mubr.f32.mxu0 0.0
    %5906 = vmatmul.mubr.f32.gmra.mxu0 %v5811
    %v5907 = vpop.f32.mrf.mxu0
    %v5908 = vadd.f32 0.0, %v5907
    %v5909 = vpop.f32.mrf.mxu0
    %5910 = vdwg.mxu0
    %v5911 = vsel %vm395, %v5741, 0
    %v5913 = vsel %vm395, %v5742, 0
    %v5915 = vsel %vm395, %v5743, 0
    %v5917 = vsel %vm395, %v5744, 0
    %v5919 = vsel %vm395, %v5745, 0
    %v5921 = vsel %vm395, %v5746, 0
    %v5924 = vsel %vm408, %v5779, 0
    %5926 = vmatprep.subr.mxu0 0.0
    %5927 = vmatpush1.msra.mxu0 0.0
    %5928 = vmatprep.subr.mxu0 0.0
    %5929 = vmatpush1.msra.mxu0 0.0
    %5930 = vmatprep.subr.mxu0 0.0
    %5931 = vmatpush1.msra.mxu0 0.0
    %5932 = vmatprep.subr.mxu0 0.0
    %5933 = vmatpush1.msra.mxu0 0.0
    %5934 = vmatprep.subr.mxu0 0.0
    %5935 = vmatpush1.msra.mxu0 0.0
    %5936 = vmatprep.subr.mxu0 0.0
    %5937 = vmatpush1.msra.mxu0 0.0
    %5938 = vmatprep.subr.mxu0 0.0
    %5939 = vmatpush1.msra.mxu0 0.0
    %5940 = vmatprep.subr.mxu0 0.0
    %5941 = vmatpush1.msra.mxu0 0.0
    %5942 = vmatprep.subr.mxu0 0.0
    %5943 = vmatpush1.msra.mxu0 0.0
    %5944 = vmatprep.subr.mxu0 0.0
    %5945 = vmatpush1.msra.mxu0 0.0
    %5946 = vmatprep.subr.mxu0 0.0
    %5947 = vmatpush1.msra.mxu0 0.0
    %5948 = vmatprep.subr.mxu0 0.0
    %5949 = vmatpush1.msra.mxu0 0.0
    %5950 = vmatprep.subr.mxu0 0.0
    %5951 = vmatpush1.msra.mxu0 0.0
    %5952 = vmatprep.subr.mxu0 0.0
    %5953 = vmatpush1.msra.mxu0 %v5924
    %5954 = vmatprep.subr.mxu0 0.0
    %5955 = vmatpush1.msra.mxu0 %v5778
    %5956 = vmatprep.subr.mxu0 0.0
    %5957 = vmatpush1.msra.mxu0 %v5777
    %5958 = vmatprep.subr.mxu0 0.0
    %5959 = vmatpush2.msra.mxu0 0.0
    %5960 = vmatprep.subr.mxu0 0.0
    %5961 = vmatpush2.msra.mxu0 0.0
    %5962 = vmatprep.subr.mxu0 0.0
    %5963 = vmatpush2.msra.mxu0 0.0
    %5964 = vmatprep.subr.mxu0 0.0
    %5965 = vmatpush2.msra.mxu0 0.0
    %5966 = vmatprep.subr.mxu0 0.0
    %5967 = vmatpush2.msra.mxu0 0.0
    %5968 = vmatprep.subr.mxu0 0.0
    %5969 = vmatpush2.msra.mxu0 0.0
    %5970 = vmatprep.subr.mxu0 0.0
    %5971 = vmatpush2.msra.mxu0 0.0
    %5972 = vmatprep.subr.mxu0 0.0
    %5973 = vmatpush2.msra.mxu0 0.0
    %5974 = vmatprep.subr.mxu0 0.0
    %5975 = vmatpush2.msra.mxu0 0.0
    %5976 = vmatprep.subr.mxu0 0.0
    %5977 = vmatpush2.msra.mxu0 0.0
    %5978 = vmatprep.subr.mxu0 0.0
    %5979 = vmatpush2.msra.mxu0 0.0
    %5980 = vmatprep.subr.mxu0 0.0
    %5981 = vmatpush2.msra.mxu0 0.0
    %5982 = vmatprep.subr.mxu0 0.0
    %5983 = vmatpush2.msra.mxu0 0.0
    %5984 = vmatprep.subr.mxu0 0.0
    %5985 = vmatpush2.msra.mxu0 0.0
    %5986 = vmatprep.subr.mxu0 0.0
    %5987 = vmatpush2.msra.mxu0 0.0
    %5988 = vmatprep.subr.mxu0 0.0
    %5989 = vmatpush2.msra.mxu0 0.0
    %5990 = vmatprep.mubr.f32.mxu0 0.0
    %5991 = vmatmul.mubr.f32.gmra.mxu0 %v5911
    %v5992 = vpop.f32.mrf.mxu0
    %v5993 = vadd.f32 %v5883, %v5992
    %v5994 = vpop.f32.mrf.mxu0
    %5995 = vmatprep.mubr.f32.mxu0 0.0
    %5996 = vmatmul.mubr.f32.gmra.mxu0 %v5913
    %v5997 = vpop.f32.mrf.mxu0
    %v5998 = vadd.f32 %v5888, %v5997
    %v5999 = vpop.f32.mrf.mxu0
    %6000 = vmatprep.mubr.f32.mxu0 0.0
    %6001 = vmatmul.mubr.f32.gmra.mxu0 %v5915
    %v6002 = vpop.f32.mrf.mxu0
    %v6003 = vadd.f32 %v5893, %v6002
    %v6004 = vpop.f32.mrf.mxu0
    %6005 = vmatprep.mubr.f32.mxu0 0.0
    %6006 = vmatmul.mubr.f32.gmra.mxu0 %v5917
    %v6007 = vpop.f32.mrf.mxu0
    %v6008 = vadd.f32 %v5898, %v6007
    %v6009 = vpop.f32.mrf.mxu0
    %6010 = vmatprep.mubr.f32.mxu0 0.0
    %6011 = vmatmul.mubr.f32.gmra.mxu0 %v5919
    %v6012 = vpop.f32.mrf.mxu0
    %v6013 = vadd.f32 %v5903, %v6012
    %v6014 = vpop.f32.mrf.mxu0
    %6015 = vmatprep.mubr.f32.mxu0 0.0
    %6016 = vmatmul.mubr.f32.gmra.mxu0 %v5921
    %v6017 = vpop.f32.mrf.mxu0
    %v6018 = vadd.f32 %v5908, %v6017
    %v6019 = vpop.f32.mrf.mxu0
    %6020 = vdwg.mxu0
    %v6021 = vmax.f32 %v5993, 0.0
    %v6022 = vmax.f32 %v5998, 0.0
    %v6023 = vmax.f32 %v6003, 0.0
    %v6024 = vmax.f32 %v6008, 0.0
    %v6025 = vmax.f32 %v6013, 0.0
    %v6026 = vmax.f32 %v6018, 0.0
    %6027 = vmatprep.subr.mxu0 0.0
    %6028 = vmatpush1.msra.mxu0 0.0
    %6029 = vmatprep.subr.mxu0 0.0
    %6030 = vmatpush1.msra.mxu0 0.0
    %6031 = vmatprep.subr.mxu0 0.0
    %6032 = vmatpush1.msra.mxu0 0.0
    %6033 = vmatprep.subr.mxu0 0.0
    %6034 = vmatpush1.msra.mxu0 0.0
    %6035 = vmatprep.subr.mxu0 0.0
    %6036 = vmatpush1.msra.mxu0 0.0
    %6037 = vmatprep.subr.mxu0 0.0
    %6038 = vmatpush1.msra.mxu0 0.0
    %6039 = vmatprep.subr.mxu0 0.0
    %6040 = vmatpush1.msra.mxu0 0.0
    %6041 = vmatprep.subr.mxu0 0.0
    %6042 = vmatpush1.msra.mxu0 0.0
    %6043 = vmatprep.subr.mxu0 0.0
    %6044 = vmatpush1.msra.mxu0 0.0
    %6045 = vmatprep.subr.mxu0 0.0
    %6046 = vmatpush1.msra.mxu0 0.0
    %6047 = vmatprep.subr.mxu0 0.0
    %6048 = vmatpush1.msra.mxu0 0.0
    %6049 = vmatprep.subr.mxu0 0.0
    %6050 = vmatpush1.msra.mxu0 0.0
    %6051 = vmatprep.subr.mxu0 0.0
    %6052 = vmatpush1.msra.mxu0 0.0
    %6053 = vmatprep.subr.mxu0 0.0
    %6054 = vmatpush1.msra.mxu0 0.0
    %6055 = vmatprep.subr.mxu0 0.0
    %6056 = vmatpush1.msra.mxu0 %v5640
    %6057 = vmatprep.subr.mxu0 0.0
    %6058 = vmatpush1.msra.mxu0 %v5639
    %6059 = vmatprep.subr.mxu0 0.0
    %6060 = vmatpush2.msra.mxu0 0.0
    %6061 = vmatprep.subr.mxu0 0.0
    %6062 = vmatpush2.msra.mxu0 0.0
    %6063 = vmatprep.subr.mxu0 0.0
    %6064 = vmatpush2.msra.mxu0 0.0
    %6065 = vmatprep.subr.mxu0 0.0
    %6066 = vmatpush2.msra.mxu0 0.0
    %6067 = vmatprep.subr.mxu0 0.0
    %6068 = vmatpush2.msra.mxu0 0.0
    %6069 = vmatprep.subr.mxu0 0.0
    %6070 = vmatpush2.msra.mxu0 0.0
    %6071 = vmatprep.subr.mxu0 0.0
    %6072 = vmatpush2.msra.mxu0 0.0
    %6073 = vmatprep.subr.mxu0 0.0
    %6074 = vmatpush2.msra.mxu0 0.0
    %6075 = vmatprep.subr.mxu0 0.0
    %6076 = vmatpush2.msra.mxu0 0.0
    %6077 = vmatprep.subr.mxu0 0.0
    %6078 = vmatpush2.msra.mxu0 0.0
    %6079 = vmatprep.subr.mxu0 0.0
    %6080 = vmatpush2.msra.mxu0 0.0
    %6081 = vmatprep.subr.mxu0 0.0
    %6082 = vmatpush2.msra.mxu0 0.0
    %6083 = vmatprep.subr.mxu0 0.0
    %6084 = vmatpush2.msra.mxu0 0.0
    %6085 = vmatprep.subr.mxu0 0.0
    %6086 = vmatpush2.msra.mxu0 0.0
    %6087 = vmatprep.subr.mxu0 0.0
    %6088 = vmatpush2.msra.mxu0 0.0
    %6089 = vmatprep.subr.mxu0 0.0
    %6090 = vmatpush2.msra.mxu0 0.0
    %6091 = vmatprep.mubr.f32.mxu0 0.0
    %6092 = vmatmul.mubr.f32.gmra.mxu0 %v625
    %v6093 = vpop.f32.mrf.mxu0
    %v6094 = vadd.f32 0.0, %v6093
    %v6095 = vpop.f32.mrf.mxu0
    %6096 = vmatprep.mubr.f32.mxu0 0.0
    %6097 = vmatmul.mubr.f32.gmra.mxu0 %v628
    %v6098 = vpop.f32.mrf.mxu0
    %v6099 = vadd.f32 0.0, %v6098
    %v6100 = vpop.f32.mrf.mxu0
    %6101 = vmatprep.mubr.f32.mxu0 0.0
    %6102 = vmatmul.mubr.f32.gmra.mxu0 %v631
    %v6103 = vpop.f32.mrf.mxu0
    %v6104 = vadd.f32 0.0, %v6103
    %v6105 = vpop.f32.mrf.mxu0
    %6106 = vmatprep.mubr.f32.mxu0 0.0
    %6107 = vmatmul.mubr.f32.gmra.mxu0 %v634
    %v6108 = vpop.f32.mrf.mxu0
    %v6109 = vadd.f32 0.0, %v6108
    %v6110 = vpop.f32.mrf.mxu0
    %6111 = vmatprep.mubr.f32.mxu0 0.0
    %6112 = vmatmul.mubr.f32.gmra.mxu0 %v637
    %v6113 = vpop.f32.mrf.mxu0
    %v6114 = vadd.f32 0.0, %v6113
    %v6115 = vpop.f32.mrf.mxu0
    %6116 = vmatprep.mubr.f32.mxu0 0.0
    %6117 = vmatmul.mubr.f32.gmra.mxu0 %v640
    %v6118 = vpop.f32.mrf.mxu0
    %v6119 = vadd.f32 0.0, %v6118
    %v6120 = vpop.f32.mrf.mxu0
    %6121 = vdwg.mxu0
    %v6122 = vld [vmem:[%s75] sm:$0xff]
    %v6123 = vld [vmem:[%s75 + $0x8] sm:$0xff]
    %v6124 = vld [vmem:[%s75 + $0x10] sm:$0xff]
    %v6125 = vld [vmem:[%s75 + $0x18] sm:$0xff]
    %v6126 = vld [vmem:[%s75 + $0x20] sm:$0xff]
    %v6127 = vld [vmem:[%s75 + $0x28] sm:$0xff]
    %v6128 = vld [vmem:[%s75 + $0x30] sm:$0xff]
    %v6129 = vld [vmem:[%s75 + $0x38] sm:$0xff]
    %v6130 = vld [vmem:[%s75 + $0x40] sm:$0xff]
    %v6131 = vld [vmem:[%s75 + $0x48] sm:$0xff]
    %v6132 = vld [vmem:[%s75 + $0x50] sm:$0xff]
    %v6133 = vld [vmem:[%s75 + $0x58] sm:$0xff]
    %v6134 = vld [vmem:[%s75 + $0x60] sm:$0xff]
    %v6135 = vld [vmem:[%s75 + $0x68] sm:$0xff]
    %v6136 = vld [vmem:[%s75 + $0x70] sm:$0xff]
    %v6137 = vld [vmem:[%s75 + $0x78] sm:$0xff]
    %v6138 = vld [vmem:[%s75 + $0x80] sm:$0xff]
    %v6139 = vld [vmem:[%s75 + $0x88] sm:$0xff]
    %v6140 = vld [vmem:[%s75 + $0x90] sm:$0xff]
    %v6141 = vld [vmem:[%s75 + $0x98] sm:$0xff]
    %v6142 = vld [vmem:[%s75 + $0xa0] sm:$0xff]
    %v6143 = vld [vmem:[%s75 + $0xa8] sm:$0xff]
    %v6144 = vld [vmem:[%s75 + $0xb0] sm:$0xff]
    %v6145 = vld [vmem:[%s75 + $0xb8] sm:$0xff]
    %v6146 = vld [vmem:[%s75 + $0xc0] sm:$0xff]
    %v6147 = vld [vmem:[%s75 + $0xc8] sm:$0xff]
    %v6148 = vld [vmem:[%s75 + $0xd0] sm:$0xff]
    %v6149 = vld [vmem:[%s75 + $0xd8] sm:$0xff]
    %v6150 = vld [vmem:[%s75 + $0xe0] sm:$0xff]
    %v6151 = vld [vmem:[%s75 + $0xe8] sm:$0xff]
    %v6152 = vld [vmem:[%s75 + $0xf0] sm:$0xff]
    %v6153 = vld [vmem:[%s75 + $0xf8] sm:$0xff]
    %v6154 = vld [vmem:[%s75 + $0x100] sm:$0xff]
    %v6155 = vld [vmem:[%s75 + $0x108] sm:$0xff]
    %v6156 = vld [vmem:[%s75 + $0x110] sm:$0xff]
    %v6157 = vld [vmem:[%s75 + $0x118] sm:$0xff]
    %v6158 = vld [vmem:[%s75 + $0x120] sm:$0xff]
    %v6159 = vld [vmem:[%s75 + $0x128] sm:$0xff]
    %v6160 = vld [vmem:[%s75 + $0x130] sm:$0xff]
    %v6161 = vld [vmem:[%s75 + $0x138] sm:$0xff]
    %v6162 = vld [vmem:[%s75 + $0x140] sm:$0xff]
    %v6163 = vld [vmem:[%s75 + $0x148] sm:$0xff]
    %v6164 = vld [vmem:[%s75 + $0x150] sm:$0xff]
    %v6165 = vld [vmem:[%s75 + $0x158] sm:$0xff]
    %v6166 = vld [vmem:[%s75 + $0x160] sm:$0xff]
    %v6167 = vld [vmem:[%s75 + $0x168] sm:$0xff]
    %v6168 = vld [vmem:[%s75 + $0x170] sm:$0xff]
    %v6169 = vld [vmem:[%s75 + $0x178] sm:$0xff]
    %v6170 = vld [vmem:[%s75 + $0x180] sm:$0xff]
    %v6171 = vld [vmem:[%s75 + $0x188] sm:$0xff]
    %v6172 = vld [vmem:[%s75 + $0x190] sm:$0xff]
    %v6173 = vld [vmem:[%s75 + $0x198] sm:$0xff]
    %v6174 = vld [vmem:[%s75 + $0x1a0] sm:$0xff]
    %v6175 = vld [vmem:[%s75 + $0x1a8] sm:$0xff]
    %v6176 = vld [vmem:[%s75 + $0x1b0] sm:$0xff]
    %v6177 = vld [vmem:[%s75 + $0x1b8] sm:$0xff]
    %v6178 = vld [vmem:[%s75 + $0x1c0] sm:$0xff]
    %v6179 = vld [vmem:[%s75 + $0x1c8] sm:$0xff]
    %v6180 = vld [vmem:[%s75 + $0x1d0] sm:$0xff]
    %v6181 = vld [vmem:[%s75 + $0x1d8] sm:$0xff]
    %v6182 = vld [vmem:[%s75 + $0x1e0] sm:$0xff]
    %v6183 = vld [vmem:[%s75 + $0x1e8] sm:$0xff]
    %v6184 = vld [vmem:[%s75 + $0x1f0] sm:$0xff]
    %v6185 = vld [vmem:[%s75 + $0x1f8] sm:$0xff]
    %v6186 = vld [vmem:[%s75 + $0x200] sm:$0xff]
    %v6187 = vld [vmem:[%s75 + $0x208] sm:$0xff]
    %v6188 = vld [vmem:[%s75 + $0x210] sm:$0xff]
    %v6189 = vld [vmem:[%s75 + $0x218] sm:$0xff]
    %v6190 = vld [vmem:[%s75 + $0x220] sm:$0xff]
    %v6191 = vld [vmem:[%s75 + $0x228] sm:$0xff]
    %v6193 = vsel %vm986, %v6094, 0
    %v6196 = vsel %vm986, %v6099, 0
    %v6199 = vsel %vm986, %v6104, 0
    %v6202 = vsel %vm986, %v6109, 0
    %v6205 = vsel %vm986, %v6114, 0
    %v6208 = vsel %vm986, %v6119, 0
    %6210 = vmatprep.subr.mxu0 0.0
    %6211 = vmatpush1.msra.mxu0 0.0
    %6212 = vmatprep.subr.mxu0 0.0
    %6213 = vmatpush1.msra.mxu0 0.0
    %6214 = vmatprep.subr.mxu0 0.0
    %6215 = vmatpush1.msra.mxu0 0.0
    %6216 = vmatprep.subr.mxu0 0.0
    %6217 = vmatpush1.msra.mxu0 0.0
    %6218 = vmatprep.subr.mxu0 0.0
    %6219 = vmatpush1.msra.mxu0 0.0
    %6220 = vmatprep.subr.mxu0 0.0
    %6221 = vmatpush1.msra.mxu0 0.0
    %6222 = vmatprep.subr.mxu0 %v6186
    %6223 = vmatpush1.msra.mxu0 %v6185
    %6224 = vmatprep.subr.mxu0 %v6179
    %6225 = vmatpush1.msra.mxu0 %v6178
    %6226 = vmatprep.subr.mxu0 %v6172
    %6227 = vmatpush1.msra.mxu0 %v6171
    %6228 = vmatprep.subr.mxu0 %v6165
    %6229 = vmatpush1.msra.mxu0 %v6164
    %6230 = vmatprep.subr.mxu0 %v6158
    %6231 = vmatpush1.msra.mxu0 %v6157
    %6232 = vmatprep.subr.mxu0 %v6151
    %6233 = vmatpush1.msra.mxu0 %v6150
    %6234 = vmatprep.subr.mxu0 %v6144
    %6235 = vmatpush1.msra.mxu0 %v6143
    %6236 = vmatprep.subr.mxu0 %v6137
    %6237 = vmatpush1.msra.mxu0 %v6136
    %6238 = vmatprep.subr.mxu0 %v6130
    %6239 = vmatpush1.msra.mxu0 %v6129
    %6240 = vmatprep.subr.mxu0 %v6123
    %6241 = vmatpush1.msra.mxu0 %v6122
    %6242 = vmatprep.subr.mxu0 0.0
    %6243 = vmatpush2.msra.mxu0 0.0
    %6244 = vmatprep.subr.mxu0 0.0
    %6245 = vmatpush2.msra.mxu0 0.0
    %6246 = vmatprep.subr.mxu0 0.0
    %6247 = vmatpush2.msra.mxu0 0.0
    %6248 = vmatprep.subr.mxu0 0.0
    %6249 = vmatpush2.msra.mxu0 0.0
    %6250 = vmatprep.subr.mxu0 0.0
    %6251 = vmatpush2.msra.mxu0 0.0
    %6252 = vmatprep.subr.mxu0 0.0
    %6253 = vmatpush2.msra.mxu0 0.0
    %6254 = vmatprep.subr.mxu0 0.0
    %6255 = vmatpush2.msra.mxu0 0.0
    %6256 = vmatprep.subr.mxu0 0.0
    %6257 = vmatpush2.msra.mxu0 0.0
    %6258 = vmatprep.subr.mxu0 0.0
    %6259 = vmatpush2.msra.mxu0 0.0
    %6260 = vmatprep.subr.mxu0 0.0
    %6261 = vmatpush2.msra.mxu0 0.0
    %6262 = vmatprep.subr.mxu0 0.0
    %6263 = vmatpush2.msra.mxu0 0.0
    %6264 = vmatprep.subr.mxu0 0.0
    %6265 = vmatpush2.msra.mxu0 0.0
    %6266 = vmatprep.subr.mxu0 0.0
    %6267 = vmatpush2.msra.mxu0 0.0
    %6268 = vmatprep.subr.mxu0 0.0
    %6269 = vmatpush2.msra.mxu0 0.0
    %6270 = vmatprep.subr.mxu0 0.0
    %6271 = vmatpush2.msra.mxu0 0.0
    %6272 = vmatprep.subr.mxu0 0.0
    %6273 = vmatpush2.msra.mxu0 0.0
    %6274 = vmatprep.mubr.f32.mxu0 0.0
    %6275 = vmatmul.mubr.f32.gmra.mxu0 %v6193
    %v6276 = vpop.f32.mrf.mxu0
    %v6277 = vadd.f32 0.0, %v6276
    %v6278 = vpop.f32.mrf.mxu0
    %v6279 = vadd.f32 0.0, %v6278
    %6280 = vmatprep.mubr.f32.mxu0 0.0
    %6281 = vmatmul.mubr.f32.gmra.mxu0 %v6196
    %v6282 = vpop.f32.mrf.mxu0
    %v6283 = vadd.f32 0.0, %v6282
    %v6284 = vpop.f32.mrf.mxu0
    %v6285 = vadd.f32 0.0, %v6284
    %6286 = vmatprep.mubr.f32.mxu0 0.0
    %6287 = vmatmul.mubr.f32.gmra.mxu0 %v6199
    %v6288 = vpop.f32.mrf.mxu0
    %v6289 = vadd.f32 0.0, %v6288
    %v6290 = vpop.f32.mrf.mxu0
    %v6291 = vadd.f32 0.0, %v6290
    %6292 = vmatprep.mubr.f32.mxu0 0.0
    %6293 = vmatmul.mubr.f32.gmra.mxu0 %v6202
    %v6294 = vpop.f32.mrf.mxu0
    %v6295 = vadd.f32 0.0, %v6294
    %v6296 = vpop.f32.mrf.mxu0
    %v6297 = vadd.f32 0.0, %v6296
    %6298 = vmatprep.mubr.f32.mxu0 0.0
    %6299 = vmatmul.mubr.f32.gmra.mxu0 %v6205
    %v6300 = vpop.f32.mrf.mxu0
    %v6301 = vadd.f32 0.0, %v6300
    %v6302 = vpop.f32.mrf.mxu0
    %v6303 = vadd.f32 0.0, %v6302
    %6304 = vmatprep.mubr.f32.mxu0 0.0
    %6305 = vmatmul.mubr.f32.gmra.mxu0 %v6208
    %v6306 = vpop.f32.mrf.mxu0
    %v6307 = vadd.f32 0.0, %v6306
    %v6308 = vpop.f32.mrf.mxu0
    %v6309 = vadd.f32 0.0, %v6308
    %6310 = vdwg.mxu0
    %6311 = vmatprep.subr.mxu0 0.0
    %6312 = vmatpush1.msra.mxu0 0.0
    %6313 = vmatprep.subr.mxu0 0.0
    %6314 = vmatpush1.msra.mxu0 0.0
    %6315 = vmatprep.subr.mxu0 0.0
    %6316 = vmatpush1.msra.mxu0 0.0
    %6317 = vmatprep.subr.mxu0 0.0
    %6318 = vmatpush1.msra.mxu0 0.0
    %6319 = vmatprep.subr.mxu0 0.0
    %6320 = vmatpush1.msra.mxu0 0.0
    %6321 = vmatprep.subr.mxu0 0.0
    %6322 = vmatpush1.msra.mxu0 0.0
    %6323 = vmatprep.subr.mxu0 %v6188
    %6324 = vmatpush1.msra.mxu0 %v6187
    %6325 = vmatprep.subr.mxu0 %v6181
    %6326 = vmatpush1.msra.mxu0 %v6180
    %6327 = vmatprep.subr.mxu0 %v6174
    %6328 = vmatpush1.msra.mxu0 %v6173
    %6329 = vmatprep.subr.mxu0 %v6167
    %6330 = vmatpush1.msra.mxu0 %v6166
    %6331 = vmatprep.subr.mxu0 %v6160
    %6332 = vmatpush1.msra.mxu0 %v6159
    %6333 = vmatprep.subr.mxu0 %v6153
    %6334 = vmatpush1.msra.mxu0 %v6152
    %6335 = vmatprep.subr.mxu0 %v6146
    %6336 = vmatpush1.msra.mxu0 %v6145
    %6337 = vmatprep.subr.mxu0 %v6139
    %6338 = vmatpush1.msra.mxu0 %v6138
    %6339 = vmatprep.subr.mxu0 %v6132
    %6340 = vmatpush1.msra.mxu0 %v6131
    %6341 = vmatprep.subr.mxu0 %v6125
    %6342 = vmatpush1.msra.mxu0 %v6124
    %6343 = vmatprep.subr.mxu0 0.0
    %6344 = vmatpush2.msra.mxu0 0.0
    %6345 = vmatprep.subr.mxu0 0.0
    %6346 = vmatpush2.msra.mxu0 0.0
    %6347 = vmatprep.subr.mxu0 0.0
    %6348 = vmatpush2.msra.mxu0 0.0
    %6349 = vmatprep.subr.mxu0 0.0
    %6350 = vmatpush2.msra.mxu0 0.0
    %6351 = vmatprep.subr.mxu0 0.0
    %6352 = vmatpush2.msra.mxu0 0.0
    %6353 = vmatprep.subr.mxu0 0.0
    %6354 = vmatpush2.msra.mxu0 0.0
    %6355 = vmatprep.subr.mxu0 0.0
    %6356 = vmatpush2.msra.mxu0 0.0
    %6357 = vmatprep.subr.mxu0 0.0
    %6358 = vmatpush2.msra.mxu0 0.0
    %6359 = vmatprep.subr.mxu0 0.0
    %6360 = vmatpush2.msra.mxu0 0.0
    %6361 = vmatprep.subr.mxu0 0.0
    %6362 = vmatpush2.msra.mxu0 0.0
    %6363 = vmatprep.subr.mxu0 0.0
    %6364 = vmatpush2.msra.mxu0 0.0
    %6365 = vmatprep.subr.mxu0 0.0
    %6366 = vmatpush2.msra.mxu0 0.0
    %6367 = vmatprep.subr.mxu0 0.0
    %6368 = vmatpush2.msra.mxu0 0.0
    %6369 = vmatprep.subr.mxu0 0.0
    %6370 = vmatpush2.msra.mxu0 0.0
    %6371 = vmatprep.subr.mxu0 0.0
    %6372 = vmatpush2.msra.mxu0 0.0
    %6373 = vmatprep.subr.mxu0 0.0
    %6374 = vmatpush2.msra.mxu0 0.0
    %6375 = vmatprep.mubr.f32.mxu0 0.0
    %6376 = vmatmul.mubr.f32.gmra.mxu0 %v6193
    %v6377 = vpop.f32.mrf.mxu0
    %v6378 = vadd.f32 0.0, %v6377
    %v6379 = vpop.f32.mrf.mxu0
    %v6380 = vadd.f32 0.0, %v6379
    %6381 = vmatprep.mubr.f32.mxu0 0.0
    %6382 = vmatmul.mubr.f32.gmra.mxu0 %v6196
    %v6383 = vpop.f32.mrf.mxu0
    %v6384 = vadd.f32 0.0, %v6383
    %v6385 = vpop.f32.mrf.mxu0
    %v6386 = vadd.f32 0.0, %v6385
    %6387 = vmatprep.mubr.f32.mxu0 0.0
    %6388 = vmatmul.mubr.f32.gmra.mxu0 %v6199
    %v6389 = vpop.f32.mrf.mxu0
    %v6390 = vadd.f32 0.0, %v6389
    %v6391 = vpop.f32.mrf.mxu0
    %v6392 = vadd.f32 0.0, %v6391
    %6393 = vmatprep.mubr.f32.mxu0 0.0
    %6394 = vmatmul.mubr.f32.gmra.mxu0 %v6202
    %v6395 = vpop.f32.mrf.mxu0
    %v6396 = vadd.f32 0.0, %v6395
    %v6397 = vpop.f32.mrf.mxu0
    %v6398 = vadd.f32 0.0, %v6397
    %6399 = vmatprep.mubr.f32.mxu0 0.0
    %6400 = vmatmul.mubr.f32.gmra.mxu0 %v6205
    %v6401 = vpop.f32.mrf.mxu0
    %v6402 = vadd.f32 0.0, %v6401
    %v6403 = vpop.f32.mrf.mxu0
    %v6404 = vadd.f32 0.0, %v6403
    %6405 = vmatprep.mubr.f32.mxu0 0.0
    %6406 = vmatmul.mubr.f32.gmra.mxu0 %v6208
    %v6407 = vpop.f32.mrf.mxu0
    %v6408 = vadd.f32 0.0, %v6407
    %v6409 = vpop.f32.mrf.mxu0
    %v6410 = vadd.f32 0.0, %v6409
    %6411 = vdwg.mxu0
    %6412 = vmatprep.subr.mxu0 0.0
    %6413 = vmatpush1.msra.mxu0 0.0
    %6414 = vmatprep.subr.mxu0 0.0
    %6415 = vmatpush1.msra.mxu0 0.0
    %6416 = vmatprep.subr.mxu0 0.0
    %6417 = vmatpush1.msra.mxu0 0.0
    %6418 = vmatprep.subr.mxu0 0.0
    %6419 = vmatpush1.msra.mxu0 0.0
    %6420 = vmatprep.subr.mxu0 0.0
    %6421 = vmatpush1.msra.mxu0 0.0
    %6422 = vmatprep.subr.mxu0 0.0
    %6423 = vmatpush1.msra.mxu0 0.0
    %6424 = vmatprep.subr.mxu0 %v6190
    %6425 = vmatpush1.msra.mxu0 %v6189
    %6426 = vmatprep.subr.mxu0 %v6183
    %6427 = vmatpush1.msra.mxu0 %v6182
    %6428 = vmatprep.subr.mxu0 %v6176
    %6429 = vmatpush1.msra.mxu0 %v6175
    %6430 = vmatprep.subr.mxu0 %v6169
    %6431 = vmatpush1.msra.mxu0 %v6168
    %6432 = vmatprep.subr.mxu0 %v6162
    %6433 = vmatpush1.msra.mxu0 %v6161
    %6434 = vmatprep.subr.mxu0 %v6155
    %6435 = vmatpush1.msra.mxu0 %v6154
    %6436 = vmatprep.subr.mxu0 %v6148
    %6437 = vmatpush1.msra.mxu0 %v6147
    %6438 = vmatprep.subr.mxu0 %v6141
    %6439 = vmatpush1.msra.mxu0 %v6140
    %6440 = vmatprep.subr.mxu0 %v6134
    %6441 = vmatpush1.msra.mxu0 %v6133
    %6442 = vmatprep.subr.mxu0 %v6127
    %6443 = vmatpush1.msra.mxu0 %v6126
    %6444 = vmatprep.subr.mxu0 0.0
    %6445 = vmatpush2.msra.mxu0 0.0
    %6446 = vmatprep.subr.mxu0 0.0
    %6447 = vmatpush2.msra.mxu0 0.0
    %6448 = vmatprep.subr.mxu0 0.0
    %6449 = vmatpush2.msra.mxu0 0.0
    %6450 = vmatprep.subr.mxu0 0.0
    %6451 = vmatpush2.msra.mxu0 0.0
    %6452 = vmatprep.subr.mxu0 0.0
    %6453 = vmatpush2.msra.mxu0 0.0
    %6454 = vmatprep.subr.mxu0 0.0
    %6455 = vmatpush2.msra.mxu0 0.0
    %6456 = vmatprep.subr.mxu0 0.0
    %6457 = vmatpush2.msra.mxu0 0.0
    %6458 = vmatprep.subr.mxu0 0.0
    %6459 = vmatpush2.msra.mxu0 0.0
    %6460 = vmatprep.subr.mxu0 0.0
    %6461 = vmatpush2.msra.mxu0 0.0
    %6462 = vmatprep.subr.mxu0 0.0
    %6463 = vmatpush2.msra.mxu0 0.0
    %6464 = vmatprep.subr.mxu0 0.0
    %6465 = vmatpush2.msra.mxu0 0.0
    %6466 = vmatprep.subr.mxu0 0.0
    %6467 = vmatpush2.msra.mxu0 0.0
    %6468 = vmatprep.subr.mxu0 0.0
    %6469 = vmatpush2.msra.mxu0 0.0
    %6470 = vmatprep.subr.mxu0 0.0
    %6471 = vmatpush2.msra.mxu0 0.0
    %6472 = vmatprep.subr.mxu0 0.0
    %6473 = vmatpush2.msra.mxu0 0.0
    %6474 = vmatprep.subr.mxu0 0.0
    %6475 = vmatpush2.msra.mxu0 0.0
    %6476 = vmatprep.mubr.f32.mxu0 0.0
    %6477 = vmatmul.mubr.f32.gmra.mxu0 %v6193
    %v6478 = vpop.f32.mrf.mxu0
    %v6479 = vadd.f32 0.0, %v6478
    %v6480 = vpop.f32.mrf.mxu0
    %v6481 = vadd.f32 0.0, %v6480
    %6482 = vmatprep.mubr.f32.mxu0 0.0
    %6483 = vmatmul.mubr.f32.gmra.mxu0 %v6196
    %v6484 = vpop.f32.mrf.mxu0
    %v6485 = vadd.f32 0.0, %v6484
    %v6486 = vpop.f32.mrf.mxu0
    %v6487 = vadd.f32 0.0, %v6486
    %6488 = vmatprep.mubr.f32.mxu0 0.0
    %6489 = vmatmul.mubr.f32.gmra.mxu0 %v6199
    %v6490 = vpop.f32.mrf.mxu0
    %v6491 = vadd.f32 0.0, %v6490
    %v6492 = vpop.f32.mrf.mxu0
    %v6493 = vadd.f32 0.0, %v6492
    %6494 = vmatprep.mubr.f32.mxu0 0.0
    %6495 = vmatmul.mubr.f32.gmra.mxu0 %v6202
    %v6496 = vpop.f32.mrf.mxu0
    %v6497 = vadd.f32 0.0, %v6496
    %v6498 = vpop.f32.mrf.mxu0
    %v6499 = vadd.f32 0.0, %v6498
    %6500 = vmatprep.mubr.f32.mxu0 0.0
    %6501 = vmatmul.mubr.f32.gmra.mxu0 %v6205
    %v6502 = vpop.f32.mrf.mxu0
    %v6503 = vadd.f32 0.0, %v6502
    %v6504 = vpop.f32.mrf.mxu0
    %v6505 = vadd.f32 0.0, %v6504
    %6506 = vmatprep.mubr.f32.mxu0 0.0
    %6507 = vmatmul.mubr.f32.gmra.mxu0 %v6208
    %v6508 = vpop.f32.mrf.mxu0
    %v6509 = vadd.f32 0.0, %v6508
    %v6510 = vpop.f32.mrf.mxu0
    %v6511 = vadd.f32 0.0, %v6510
    %6512 = vdwg.mxu0
    %6513 = vmatprep.subr.mxu0 0.0
    %6514 = vmatpush1.msra.mxu0 0.0
    %6515 = vmatprep.subr.mxu0 0.0
    %6516 = vmatpush1.msra.mxu0 0.0
    %6517 = vmatprep.subr.mxu0 0.0
    %6518 = vmatpush1.msra.mxu0 0.0
    %6519 = vmatprep.subr.mxu0 0.0
    %6520 = vmatpush1.msra.mxu0 0.0
    %6521 = vmatprep.subr.mxu0 0.0
    %6522 = vmatpush1.msra.mxu0 0.0
    %6523 = vmatprep.subr.mxu0 0.0
    %6524 = vmatpush1.msra.mxu0 0.0
    %6525 = vmatprep.subr.mxu0 0.0
    %6526 = vmatpush1.msra.mxu0 %v6191
    %6527 = vmatprep.subr.mxu0 0.0
    %6528 = vmatpush1.msra.mxu0 %v6184
    %6529 = vmatprep.subr.mxu0 0.0
    %6530 = vmatpush1.msra.mxu0 %v6177
    %6531 = vmatprep.subr.mxu0 0.0
    %6532 = vmatpush1.msra.mxu0 %v6170
    %6533 = vmatprep.subr.mxu0 0.0
    %6534 = vmatpush1.msra.mxu0 %v6163
    %6535 = vmatprep.subr.mxu0 0.0
    %6536 = vmatpush1.msra.mxu0 %v6156
    %6537 = vmatprep.subr.mxu0 0.0
    %6538 = vmatpush1.msra.mxu0 %v6149
    %6539 = vmatprep.subr.mxu0 0.0
    %6540 = vmatpush1.msra.mxu0 %v6142
    %6541 = vmatprep.subr.mxu0 0.0
    %6542 = vmatpush1.msra.mxu0 %v6135
    %6543 = vmatprep.subr.mxu0 0.0
    %6544 = vmatpush1.msra.mxu0 %v6128
    %6545 = vmatprep.subr.mxu0 0.0
    %6546 = vmatpush2.msra.mxu0 0.0
    %6547 = vmatprep.subr.mxu0 0.0
    %6548 = vmatpush2.msra.mxu0 0.0
    %6549 = vmatprep.subr.mxu0 0.0
    %6550 = vmatpush2.msra.mxu0 0.0
    %6551 = vmatprep.subr.mxu0 0.0
    %6552 = vmatpush2.msra.mxu0 0.0
    %6553 = vmatprep.subr.mxu0 0.0
    %6554 = vmatpush2.msra.mxu0 0.0
    %6555 = vmatprep.subr.mxu0 0.0
    %6556 = vmatpush2.msra.mxu0 0.0
    %6557 = vmatprep.subr.mxu0 0.0
    %6558 = vmatpush2.msra.mxu0 0.0
    %6559 = vmatprep.subr.mxu0 0.0
    %6560 = vmatpush2.msra.mxu0 0.0
    %6561 = vmatprep.subr.mxu0 0.0
    %6562 = vmatpush2.msra.mxu0 0.0
    %6563 = vmatprep.subr.mxu0 0.0
    %6564 = vmatpush2.msra.mxu0 0.0
    %6565 = vmatprep.subr.mxu0 0.0
    %6566 = vmatpush2.msra.mxu0 0.0
    %6567 = vmatprep.subr.mxu0 0.0
    %6568 = vmatpush2.msra.mxu0 0.0
    %6569 = vmatprep.subr.mxu0 0.0
    %6570 = vmatpush2.msra.mxu0 0.0
    %6571 = vmatprep.subr.mxu0 0.0
    %6572 = vmatpush2.msra.mxu0 0.0
    %6573 = vmatprep.subr.mxu0 0.0
    %6574 = vmatpush2.msra.mxu0 0.0
    %6575 = vmatprep.subr.mxu0 0.0
    %6576 = vmatpush2.msra.mxu0 0.0
    %6577 = vmatprep.mubr.f32.mxu0 0.0
    %6578 = vmatmul.mubr.f32.gmra.mxu0 %v6193
    %v6579 = vpop.f32.mrf.mxu0
    %v6580 = vadd.f32 0.0, %v6579
    %v6581 = vpop.f32.mrf.mxu0
    %6582 = vmatprep.mubr.f32.mxu0 0.0
    %6583 = vmatmul.mubr.f32.gmra.mxu0 %v6196
    %v6584 = vpop.f32.mrf.mxu0
    %v6585 = vadd.f32 0.0, %v6584
    %v6586 = vpop.f32.mrf.mxu0
    %6587 = vmatprep.mubr.f32.mxu0 0.0
    %6588 = vmatmul.mubr.f32.gmra.mxu0 %v6199
    %v6589 = vpop.f32.mrf.mxu0
    %v6590 = vadd.f32 0.0, %v6589
    %v6591 = vpop.f32.mrf.mxu0
    %6592 = vmatprep.mubr.f32.mxu0 0.0
    %6593 = vmatmul.mubr.f32.gmra.mxu0 %v6202
    %v6594 = vpop.f32.mrf.mxu0
    %v6595 = vadd.f32 0.0, %v6594
    %v6596 = vpop.f32.mrf.mxu0
    %6597 = vmatprep.mubr.f32.mxu0 0.0
    %6598 = vmatmul.mubr.f32.gmra.mxu0 %v6205
    %v6599 = vpop.f32.mrf.mxu0
    %v6600 = vadd.f32 0.0, %v6599
    %v6601 = vpop.f32.mrf.mxu0
    %6602 = vmatprep.mubr.f32.mxu0 0.0
    %6603 = vmatmul.mubr.f32.gmra.mxu0 %v6208
    %v6604 = vpop.f32.mrf.mxu0
    %v6605 = vadd.f32 0.0, %v6604
    %v6606 = vpop.f32.mrf.mxu0
    %6607 = vdwg.mxu0
    %v6608 = vld [vmem:[%s77] sm:$0xff]
    %v6609 = vld [vmem:[%s77 + $0x8] sm:$0xff]
    %v6610 = vld [vmem:[%s77 + $0x10] sm:$0xff]
    %v6611 = vld [vmem:[%s77 + $0x18] sm:$0xff]
    %v6612 = vld [vmem:[%s77 + $0x20] sm:$0xff]
    %v6613 = vld [vmem:[%s77 + $0x28] sm:$0xff]
    %v6614 = vld [vmem:[%s77 + $0x30] sm:$0xff]
    %v6615 = vld [vmem:[%s77 + $0x38] sm:$0x3]
    %v6616 = vld [vmem:[%s77 + $0x40] sm:$0x3]
    %v6617 = vld [vmem:[%s77 + $0x48] sm:$0x3]
    %v6618 = vld [vmem:[%s77 + $0x50] sm:$0x3]
    %v6619 = vld [vmem:[%s77 + $0x58] sm:$0x3]
    %v6620 = vld [vmem:[%s77 + $0x60] sm:$0x3]
    %v6621 = vld [vmem:[%s77 + $0x68] sm:$0x3]
    %v6623 = vsel %vm217, %v6021, 0
    %v6626 = vsel %vm217, %v6022, 0
    %v6629 = vsel %vm217, %v6023, 0
    %v6632 = vsel %vm217, %v6024, 0
    %v6635 = vsel %vm217, %v6025, 0
    %v6638 = vsel %vm217, %v6026, 0
    %v6641 = vsel %vm236, %v6615, 0
    %v6644 = vsel %vm236, %v6616, 0
    %v6647 = vsel %vm236, %v6617, 0
    %v6650 = vsel %vm236, %v6618, 0
    %v6653 = vsel %vm236, %v6619, 0
    %v6656 = vsel %vm236, %v6620, 0
    %v6659 = vsel %vm236, %v6621, 0
    %6661 = vmatprep.subr.mxu0 0.0
    %6662 = vmatpush1.msra.mxu0 0.0
    %6663 = vmatprep.subr.mxu0 0.0
    %6664 = vmatpush1.msra.mxu0 0.0
    %6665 = vmatprep.subr.mxu0 0.0
    %6666 = vmatpush1.msra.mxu0 0.0
    %6667 = vmatprep.subr.mxu0 0.0
    %6668 = vmatpush1.msra.mxu0 0.0
    %6669 = vmatprep.subr.mxu0 0.0
    %6670 = vmatpush1.msra.mxu0 0.0
    %6671 = vmatprep.subr.mxu0 0.0
    %6672 = vmatpush1.msra.mxu0 0.0
    %6673 = vmatprep.subr.mxu0 0.0
    %6674 = vmatpush1.msra.mxu0 0.0
    %6675 = vmatprep.subr.mxu0 0.0
    %6676 = vmatpush1.msra.mxu0 0.0
    %6677 = vmatprep.subr.mxu0 0.0
    %6678 = vmatpush1.msra.mxu0 0.0
    %6679 = vmatprep.subr.mxu0 0.0
    %6680 = vmatpush1.msra.mxu0 0.0
    %6681 = vmatprep.subr.mxu0 0.0
    %6682 = vmatpush1.msra.mxu0 0.0
    %6683 = vmatprep.subr.mxu0 0.0
    %6684 = vmatpush1.msra.mxu0 0.0
    %6685 = vmatprep.subr.mxu0 0.0
    %6686 = vmatpush1.msra.mxu0 0.0
    %6687 = vmatprep.subr.mxu0 0.0
    %6688 = vmatpush1.msra.mxu0 0.0
    %6689 = vmatprep.subr.mxu0 %v6644
    %6690 = vmatpush1.msra.mxu0 %v6641
    %6691 = vmatprep.subr.mxu0 %v6609
    %6692 = vmatpush1.msra.mxu0 %v6608
    %6693 = vmatprep.subr.mxu0 0.0
    %6694 = vmatpush2.msra.mxu0 0.0
    %6695 = vmatprep.subr.mxu0 0.0
    %6696 = vmatpush2.msra.mxu0 0.0
    %6697 = vmatprep.subr.mxu0 0.0
    %6698 = vmatpush2.msra.mxu0 0.0
    %6699 = vmatprep.subr.mxu0 0.0
    %6700 = vmatpush2.msra.mxu0 0.0
    %6701 = vmatprep.subr.mxu0 0.0
    %6702 = vmatpush2.msra.mxu0 0.0
    %6703 = vmatprep.subr.mxu0 0.0
    %6704 = vmatpush2.msra.mxu0 0.0
    %6705 = vmatprep.subr.mxu0 0.0
    %6706 = vmatpush2.msra.mxu0 0.0
    %6707 = vmatprep.subr.mxu0 0.0
    %6708 = vmatpush2.msra.mxu0 0.0
    %6709 = vmatprep.subr.mxu0 0.0
    %6710 = vmatpush2.msra.mxu0 0.0
    %6711 = vmatprep.subr.mxu0 0.0
    %6712 = vmatpush2.msra.mxu0 0.0
    %6713 = vmatprep.subr.mxu0 0.0
    %6714 = vmatpush2.msra.mxu0 0.0
    %6715 = vmatprep.subr.mxu0 0.0
    %6716 = vmatpush2.msra.mxu0 0.0
    %6717 = vmatprep.subr.mxu0 0.0
    %6718 = vmatpush2.msra.mxu0 0.0
    %6719 = vmatprep.subr.mxu0 0.0
    %6720 = vmatpush2.msra.mxu0 0.0
    %6721 = vmatprep.subr.mxu0 0.0
    %6722 = vmatpush2.msra.mxu0 0.0
    %6723 = vmatprep.subr.mxu0 0.0
    %6724 = vmatpush2.msra.mxu0 0.0
    %6725 = vmatprep.mubr.f32.mxu0 0.0
    %6726 = vmatmul.mubr.f32.gmra.mxu0 %v6623
    %v6727 = vpop.f32.mrf.mxu0
    %v6728 = vadd.f32 0.0, %v6727
    %v6729 = vpop.f32.mrf.mxu0
    %v6730 = vadd.f32 0.0, %v6729
    %6731 = vmatprep.mubr.f32.mxu0 0.0
    %6732 = vmatmul.mubr.f32.gmra.mxu0 %v6626
    %v6733 = vpop.f32.mrf.mxu0
    %v6734 = vadd.f32 0.0, %v6733
    %v6735 = vpop.f32.mrf.mxu0
    %v6736 = vadd.f32 0.0, %v6735
    %6737 = vmatprep.mubr.f32.mxu0 0.0
    %6738 = vmatmul.mubr.f32.gmra.mxu0 %v6629
    %v6739 = vpop.f32.mrf.mxu0
    %v6740 = vadd.f32 0.0, %v6739
    %v6741 = vpop.f32.mrf.mxu0
    %v6742 = vadd.f32 0.0, %v6741
    %6743 = vmatprep.mubr.f32.mxu0 0.0
    %6744 = vmatmul.mubr.f32.gmra.mxu0 %v6632
    %v6745 = vpop.f32.mrf.mxu0
    %v6746 = vadd.f32 0.0, %v6745
    %v6747 = vpop.f32.mrf.mxu0
    %v6748 = vadd.f32 0.0, %v6747
    %6749 = vmatprep.mubr.f32.mxu0 0.0
    %6750 = vmatmul.mubr.f32.gmra.mxu0 %v6635
    %v6751 = vpop.f32.mrf.mxu0
    %v6752 = vadd.f32 0.0, %v6751
    %v6753 = vpop.f32.mrf.mxu0
    %v6754 = vadd.f32 0.0, %v6753
    %6755 = vmatprep.mubr.f32.mxu0 0.0
    %6756 = vmatmul.mubr.f32.gmra.mxu0 %v6638
    %v6757 = vpop.f32.mrf.mxu0
    %v6758 = vadd.f32 0.0, %v6757
    %v6759 = vpop.f32.mrf.mxu0
    %v6760 = vadd.f32 0.0, %v6759
    %6761 = vdwg.mxu0
    %6762 = vmatprep.subr.mxu0 0.0
    %6763 = vmatpush1.msra.mxu0 0.0
    %6764 = vmatprep.subr.mxu0 0.0
    %6765 = vmatpush1.msra.mxu0 0.0
    %6766 = vmatprep.subr.mxu0 0.0
    %6767 = vmatpush1.msra.mxu0 0.0
    %6768 = vmatprep.subr.mxu0 0.0
    %6769 = vmatpush1.msra.mxu0 0.0
    %6770 = vmatprep.subr.mxu0 0.0
    %6771 = vmatpush1.msra.mxu0 0.0
    %6772 = vmatprep.subr.mxu0 0.0
    %6773 = vmatpush1.msra.mxu0 0.0
    %6774 = vmatprep.subr.mxu0 0.0
    %6775 = vmatpush1.msra.mxu0 0.0
    %6776 = vmatprep.subr.mxu0 0.0
    %6777 = vmatpush1.msra.mxu0 0.0
    %6778 = vmatprep.subr.mxu0 0.0
    %6779 = vmatpush1.msra.mxu0 0.0
    %6780 = vmatprep.subr.mxu0 0.0
    %6781 = vmatpush1.msra.mxu0 0.0
    %6782 = vmatprep.subr.mxu0 0.0
    %6783 = vmatpush1.msra.mxu0 0.0
    %6784 = vmatprep.subr.mxu0 0.0
    %6785 = vmatpush1.msra.mxu0 0.0
    %6786 = vmatprep.subr.mxu0 0.0
    %6787 = vmatpush1.msra.mxu0 0.0
    %6788 = vmatprep.subr.mxu0 0.0
    %6789 = vmatpush1.msra.mxu0 0.0
    %6790 = vmatprep.subr.mxu0 %v6650
    %6791 = vmatpush1.msra.mxu0 %v6647
    %6792 = vmatprep.subr.mxu0 %v6611
    %6793 = vmatpush1.msra.mxu0 %v6610
    %6794 = vmatprep.subr.mxu0 0.0
    %6795 = vmatpush2.msra.mxu0 0.0
    %6796 = vmatprep.subr.mxu0 0.0
    %6797 = vmatpush2.msra.mxu0 0.0
    %6798 = vmatprep.subr.mxu0 0.0
    %6799 = vmatpush2.msra.mxu0 0.0
    %6800 = vmatprep.subr.mxu0 0.0
    %6801 = vmatpush2.msra.mxu0 0.0
    %6802 = vmatprep.subr.mxu0 0.0
    %6803 = vmatpush2.msra.mxu0 0.0
    %6804 = vmatprep.subr.mxu0 0.0
    %6805 = vmatpush2.msra.mxu0 0.0
    %6806 = vmatprep.subr.mxu0 0.0
    %6807 = vmatpush2.msra.mxu0 0.0
    %6808 = vmatprep.subr.mxu0 0.0
    %6809 = vmatpush2.msra.mxu0 0.0
    %6810 = vmatprep.subr.mxu0 0.0
    %6811 = vmatpush2.msra.mxu0 0.0
    %6812 = vmatprep.subr.mxu0 0.0
    %6813 = vmatpush2.msra.mxu0 0.0
    %6814 = vmatprep.subr.mxu0 0.0
    %6815 = vmatpush2.msra.mxu0 0.0
    %6816 = vmatprep.subr.mxu0 0.0
    %6817 = vmatpush2.msra.mxu0 0.0
    %6818 = vmatprep.subr.mxu0 0.0
    %6819 = vmatpush2.msra.mxu0 0.0
    %6820 = vmatprep.subr.mxu0 0.0
    %6821 = vmatpush2.msra.mxu0 0.0
    %6822 = vmatprep.subr.mxu0 0.0
    %6823 = vmatpush2.msra.mxu0 0.0
    %6824 = vmatprep.subr.mxu0 0.0
    %6825 = vmatpush2.msra.mxu0 0.0
    %6826 = vmatprep.mubr.f32.mxu0 0.0
    %6827 = vmatmul.mubr.f32.gmra.mxu0 %v6623
    %v6828 = vpop.f32.mrf.mxu0
    %v6829 = vadd.f32 0.0, %v6828
    %v6830 = vpop.f32.mrf.mxu0
    %v6831 = vadd.f32 0.0, %v6830
    %6832 = vmatprep.mubr.f32.mxu0 0.0
    %6833 = vmatmul.mubr.f32.gmra.mxu0 %v6626
    %v6834 = vpop.f32.mrf.mxu0
    %v6835 = vadd.f32 0.0, %v6834
    %v6836 = vpop.f32.mrf.mxu0
    %v6837 = vadd.f32 0.0, %v6836
    %6838 = vmatprep.mubr.f32.mxu0 0.0
    %6839 = vmatmul.mubr.f32.gmra.mxu0 %v6629
    %v6840 = vpop.f32.mrf.mxu0
    %v6841 = vadd.f32 0.0, %v6840
    %v6842 = vpop.f32.mrf.mxu0
    %v6843 = vadd.f32 0.0, %v6842
    %6844 = vmatprep.mubr.f32.mxu0 0.0
    %6845 = vmatmul.mubr.f32.gmra.mxu0 %v6632
    %v6846 = vpop.f32.mrf.mxu0
    %v6847 = vadd.f32 0.0, %v6846
    %v6848 = vpop.f32.mrf.mxu0
    %v6849 = vadd.f32 0.0, %v6848
    %6850 = vmatprep.mubr.f32.mxu0 0.0
    %6851 = vmatmul.mubr.f32.gmra.mxu0 %v6635
    %v6852 = vpop.f32.mrf.mxu0
    %v6853 = vadd.f32 0.0, %v6852
    %v6854 = vpop.f32.mrf.mxu0
    %v6855 = vadd.f32 0.0, %v6854
    %6856 = vmatprep.mubr.f32.mxu0 0.0
    %6857 = vmatmul.mubr.f32.gmra.mxu0 %v6638
    %v6858 = vpop.f32.mrf.mxu0
    %v6859 = vadd.f32 0.0, %v6858
    %v6860 = vpop.f32.mrf.mxu0
    %v6861 = vadd.f32 0.0, %v6860
    %6862 = vdwg.mxu0
    %6863 = vmatprep.subr.mxu0 0.0
    %6864 = vmatpush1.msra.mxu0 0.0
    %6865 = vmatprep.subr.mxu0 0.0
    %6866 = vmatpush1.msra.mxu0 0.0
    %6867 = vmatprep.subr.mxu0 0.0
    %6868 = vmatpush1.msra.mxu0 0.0
    %6869 = vmatprep.subr.mxu0 0.0
    %6870 = vmatpush1.msra.mxu0 0.0
    %6871 = vmatprep.subr.mxu0 0.0
    %6872 = vmatpush1.msra.mxu0 0.0
    %6873 = vmatprep.subr.mxu0 0.0
    %6874 = vmatpush1.msra.mxu0 0.0
    %6875 = vmatprep.subr.mxu0 0.0
    %6876 = vmatpush1.msra.mxu0 0.0
    %6877 = vmatprep.subr.mxu0 0.0
    %6878 = vmatpush1.msra.mxu0 0.0
    %6879 = vmatprep.subr.mxu0 0.0
    %6880 = vmatpush1.msra.mxu0 0.0
    %6881 = vmatprep.subr.mxu0 0.0
    %6882 = vmatpush1.msra.mxu0 0.0
    %6883 = vmatprep.subr.mxu0 0.0
    %6884 = vmatpush1.msra.mxu0 0.0
    %6885 = vmatprep.subr.mxu0 0.0
    %6886 = vmatpush1.msra.mxu0 0.0
    %6887 = vmatprep.subr.mxu0 0.0
    %6888 = vmatpush1.msra.mxu0 0.0
    %6889 = vmatprep.subr.mxu0 0.0
    %6890 = vmatpush1.msra.mxu0 0.0
    %6891 = vmatprep.subr.mxu0 %v6656
    %6892 = vmatpush1.msra.mxu0 %v6653
    %6893 = vmatprep.subr.mxu0 %v6613
    %6894 = vmatpush1.msra.mxu0 %v6612
    %6895 = vmatprep.subr.mxu0 0.0
    %6896 = vmatpush2.msra.mxu0 0.0
    %6897 = vmatprep.subr.mxu0 0.0
    %6898 = vmatpush2.msra.mxu0 0.0
    %6899 = vmatprep.subr.mxu0 0.0
    %6900 = vmatpush2.msra.mxu0 0.0
    %6901 = vmatprep.subr.mxu0 0.0
    %6902 = vmatpush2.msra.mxu0 0.0
    %6903 = vmatprep.subr.mxu0 0.0
    %6904 = vmatpush2.msra.mxu0 0.0
    %6905 = vmatprep.subr.mxu0 0.0
    %6906 = vmatpush2.msra.mxu0 0.0
    %6907 = vmatprep.subr.mxu0 0.0
    %6908 = vmatpush2.msra.mxu0 0.0
    %6909 = vmatprep.subr.mxu0 0.0
    %6910 = vmatpush2.msra.mxu0 0.0
    %6911 = vmatprep.subr.mxu0 0.0
    %6912 = vmatpush2.msra.mxu0 0.0
    %6913 = vmatprep.subr.mxu0 0.0
    %6914 = vmatpush2.msra.mxu0 0.0
    %6915 = vmatprep.subr.mxu0 0.0
    %6916 = vmatpush2.msra.mxu0 0.0
    %6917 = vmatprep.subr.mxu0 0.0
    %6918 = vmatpush2.msra.mxu0 0.0
    %6919 = vmatprep.subr.mxu0 0.0
    %6920 = vmatpush2.msra.mxu0 0.0
    %6921 = vmatprep.subr.mxu0 0.0
    %6922 = vmatpush2.msra.mxu0 0.0
    %6923 = vmatprep.subr.mxu0 0.0
    %6924 = vmatpush2.msra.mxu0 0.0
    %6925 = vmatprep.subr.mxu0 0.0
    %6926 = vmatpush2.msra.mxu0 0.0
    %6927 = vmatprep.mubr.f32.mxu0 0.0
    %6928 = vmatmul.mubr.f32.gmra.mxu0 %v6623
    %v6929 = vpop.f32.mrf.mxu0
    %v6930 = vadd.f32 0.0, %v6929
    %v6931 = vpop.f32.mrf.mxu0
    %v6932 = vadd.f32 0.0, %v6931
    %6933 = vmatprep.mubr.f32.mxu0 0.0
    %6934 = vmatmul.mubr.f32.gmra.mxu0 %v6626
    %v6935 = vpop.f32.mrf.mxu0
    %v6936 = vadd.f32 0.0, %v6935
    %v6937 = vpop.f32.mrf.mxu0
    %v6938 = vadd.f32 0.0, %v6937
    %6939 = vmatprep.mubr.f32.mxu0 0.0
    %6940 = vmatmul.mubr.f32.gmra.mxu0 %v6629
    %v6941 = vpop.f32.mrf.mxu0
    %v6942 = vadd.f32 0.0, %v6941
    %v6943 = vpop.f32.mrf.mxu0
    %v6944 = vadd.f32 0.0, %v6943
    %6945 = vmatprep.mubr.f32.mxu0 0.0
    %6946 = vmatmul.mubr.f32.gmra.mxu0 %v6632
    %v6947 = vpop.f32.mrf.mxu0
    %v6948 = vadd.f32 0.0, %v6947
    %v6949 = vpop.f32.mrf.mxu0
    %v6950 = vadd.f32 0.0, %v6949
    %6951 = vmatprep.mubr.f32.mxu0 0.0
    %6952 = vmatmul.mubr.f32.gmra.mxu0 %v6635
    %v6953 = vpop.f32.mrf.mxu0
    %v6954 = vadd.f32 0.0, %v6953
    %v6955 = vpop.f32.mrf.mxu0
    %v6956 = vadd.f32 0.0, %v6955
    %6957 = vmatprep.mubr.f32.mxu0 0.0
    %6958 = vmatmul.mubr.f32.gmra.mxu0 %v6638
    %v6959 = vpop.f32.mrf.mxu0
    %v6960 = vadd.f32 0.0, %v6959
    %v6961 = vpop.f32.mrf.mxu0
    %v6962 = vadd.f32 0.0, %v6961
    %6963 = vdwg.mxu0
    %6964 = vmatprep.subr.mxu0 0.0
    %6965 = vmatpush1.msra.mxu0 0.0
    %6966 = vmatprep.subr.mxu0 0.0
    %6967 = vmatpush1.msra.mxu0 0.0
    %6968 = vmatprep.subr.mxu0 0.0
    %6969 = vmatpush1.msra.mxu0 0.0
    %6970 = vmatprep.subr.mxu0 0.0
    %6971 = vmatpush1.msra.mxu0 0.0
    %6972 = vmatprep.subr.mxu0 0.0
    %6973 = vmatpush1.msra.mxu0 0.0
    %6974 = vmatprep.subr.mxu0 0.0
    %6975 = vmatpush1.msra.mxu0 0.0
    %6976 = vmatprep.subr.mxu0 0.0
    %6977 = vmatpush1.msra.mxu0 0.0
    %6978 = vmatprep.subr.mxu0 0.0
    %6979 = vmatpush1.msra.mxu0 0.0
    %6980 = vmatprep.subr.mxu0 0.0
    %6981 = vmatpush1.msra.mxu0 0.0
    %6982 = vmatprep.subr.mxu0 0.0
    %6983 = vmatpush1.msra.mxu0 0.0
    %6984 = vmatprep.subr.mxu0 0.0
    %6985 = vmatpush1.msra.mxu0 0.0
    %6986 = vmatprep.subr.mxu0 0.0
    %6987 = vmatpush1.msra.mxu0 0.0
    %6988 = vmatprep.subr.mxu0 0.0
    %6989 = vmatpush1.msra.mxu0 0.0
    %6990 = vmatprep.subr.mxu0 0.0
    %6991 = vmatpush1.msra.mxu0 0.0
    %6992 = vmatprep.subr.mxu0 0.0
    %6993 = vmatpush1.msra.mxu0 %v6659
    %6994 = vmatprep.subr.mxu0 0.0
    %6995 = vmatpush1.msra.mxu0 %v6614
    %6996 = vmatprep.subr.mxu0 0.0
    %6997 = vmatpush2.msra.mxu0 0.0
    %6998 = vmatprep.subr.mxu0 0.0
    %6999 = vmatpush2.msra.mxu0 0.0
    %7000 = vmatprep.subr.mxu0 0.0
    %7001 = vmatpush2.msra.mxu0 0.0
    %7002 = vmatprep.subr.mxu0 0.0
    %7003 = vmatpush2.msra.mxu0 0.0
    %7004 = vmatprep.subr.mxu0 0.0
    %7005 = vmatpush2.msra.mxu0 0.0
    %7006 = vmatprep.subr.mxu0 0.0
    %7007 = vmatpush2.msra.mxu0 0.0
    %7008 = vmatprep.subr.mxu0 0.0
    %7009 = vmatpush2.msra.mxu0 0.0
    %7010 = vmatprep.subr.mxu0 0.0
    %7011 = vmatpush2.msra.mxu0 0.0
    %7012 = vmatprep.subr.mxu0 0.0
    %7013 = vmatpush2.msra.mxu0 0.0
    %7014 = vmatprep.subr.mxu0 0.0
    %7015 = vmatpush2.msra.mxu0 0.0
    %7016 = vmatprep.subr.mxu0 0.0
    %7017 = vmatpush2.msra.mxu0 0.0
    %7018 = vmatprep.subr.mxu0 0.0
    %7019 = vmatpush2.msra.mxu0 0.0
    %7020 = vmatprep.subr.mxu0 0.0
    %7021 = vmatpush2.msra.mxu0 0.0
    %7022 = vmatprep.subr.mxu0 0.0
    %7023 = vmatpush2.msra.mxu0 0.0
    %7024 = vmatprep.subr.mxu0 0.0
    %7025 = vmatpush2.msra.mxu0 0.0
    %7026 = vmatprep.subr.mxu0 0.0
    %7027 = vmatpush2.msra.mxu0 0.0
    %7028 = vmatprep.mubr.f32.mxu0 0.0
    %7029 = vmatmul.mubr.f32.gmra.mxu0 %v6623
    %v7030 = vpop.f32.mrf.mxu0
    %v7031 = vadd.f32 0.0, %v7030
    %v7032 = vpop.f32.mrf.mxu0
    %7033 = vmatprep.mubr.f32.mxu0 0.0
    %7034 = vmatmul.mubr.f32.gmra.mxu0 %v6626
    %v7035 = vpop.f32.mrf.mxu0
    %v7036 = vadd.f32 0.0, %v7035
    %v7037 = vpop.f32.mrf.mxu0
    %7038 = vmatprep.mubr.f32.mxu0 0.0
    %7039 = vmatmul.mubr.f32.gmra.mxu0 %v6629
    %v7040 = vpop.f32.mrf.mxu0
    %v7041 = vadd.f32 0.0, %v7040
    %v7042 = vpop.f32.mrf.mxu0
    %7043 = vmatprep.mubr.f32.mxu0 0.0
    %7044 = vmatmul.mubr.f32.gmra.mxu0 %v6632
    %v7045 = vpop.f32.mrf.mxu0
    %v7046 = vadd.f32 0.0, %v7045
    %v7047 = vpop.f32.mrf.mxu0
    %7048 = vmatprep.mubr.f32.mxu0 0.0
    %7049 = vmatmul.mubr.f32.gmra.mxu0 %v6635
    %v7050 = vpop.f32.mrf.mxu0
    %v7051 = vadd.f32 0.0, %v7050
    %v7052 = vpop.f32.mrf.mxu0
    %7053 = vmatprep.mubr.f32.mxu0 0.0
    %7054 = vmatmul.mubr.f32.gmra.mxu0 %v6638
    %v7055 = vpop.f32.mrf.mxu0
    %v7056 = vadd.f32 0.0, %v7055
    %v7057 = vpop.f32.mrf.mxu0
    %7058 = vdwg.mxu0
    %v7059 = vmul.f32 %v6277, %v6728
    %v7060 = vmul.f32 %v6279, %v6730
    %v7061 = vmul.f32 %v6378, %v6829
    %v7062 = vmul.f32 %v6380, %v6831
    %v7063 = vmul.f32 %v6479, %v6930
    %v7064 = vmul.f32 %v6481, %v6932
    %v7065 = vmul.f32 %v6580, %v7031
    %v7066 = vmul.f32 %v6283, %v6734
    %v7067 = vmul.f32 %v6285, %v6736
    %v7068 = vmul.f32 %v6384, %v6835
    %v7069 = vmul.f32 %v6386, %v6837
    %v7070 = vmul.f32 %v6485, %v6936
    %v7071 = vmul.f32 %v6487, %v6938
    %v7072 = vmul.f32 %v6585, %v7036
    %v7073 = vmul.f32 %v6289, %v6740
    %v7074 = vmul.f32 %v6291, %v6742
    %v7075 = vmul.f32 %v6390, %v6841
    %v7076 = vmul.f32 %v6392, %v6843
    %v7077 = vmul.f32 %v6491, %v6942
    %v7078 = vmul.f32 %v6493, %v6944
    %v7079 = vmul.f32 %v6590, %v7041
    %v7080 = vmul.f32 %v6295, %v6746
    %v7081 = vmul.f32 %v6297, %v6748
    %v7082 = vmul.f32 %v6396, %v6847
    %v7083 = vmul.f32 %v6398, %v6849
    %v7084 = vmul.f32 %v6497, %v6948
    %v7085 = vmul.f32 %v6499, %v6950
    %v7086 = vmul.f32 %v6595, %v7046
    %v7087 = vmul.f32 %v6301, %v6752
    %v7088 = vmul.f32 %v6303, %v6754
    %v7089 = vmul.f32 %v6402, %v6853
    %v7090 = vmul.f32 %v6404, %v6855
    %v7091 = vmul.f32 %v6503, %v6954
    %v7092 = vmul.f32 %v6505, %v6956
    %v7093 = vmul.f32 %v6600, %v7051
    %v7094 = vmul.f32 %v6307, %v6758
    %v7095 = vmul.f32 %v6309, %v6760
    %v7096 = vmul.f32 %v6408, %v6859
    %v7097 = vmul.f32 %v6410, %v6861
    %v7098 = vmul.f32 %v6509, %v6960
    %v7099 = vmul.f32 %v6511, %v6962
    %v7100 = vmul.f32 %v6605, %v7056
    %v7101 = vld [vmem:[%s79] sm:$0xff]
    %v7102 = vld [vmem:[%s79 + $0x8] sm:$0xff]
    %v7103 = vld [vmem:[%s79 + $0x10] sm:$0xff]
    %v7104 = vld [vmem:[%s79 + $0x18] sm:$0xff]
    %v7105 = vld [vmem:[%s79 + $0x20] sm:$0xff]
    %v7106 = vld [vmem:[%s79 + $0x28] sm:$0xff]
    %v7107 = vld [vmem:[%s79 + $0x30] sm:$0xff]
    %v7108 = vld [vmem:[%s79 + $0x38] sm:$0xff]
    %v7109 = vld [vmem:[%s79 + $0x40] sm:$0xff]
    %v7110 = vld [vmem:[%s79 + $0x48] sm:$0xff]
    %v7111 = vld [vmem:[%s79 + $0x50] sm:$0xff]
    %v7112 = vld [vmem:[%s79 + $0x58] sm:$0xff]
    %v7113 = vld [vmem:[%s79 + $0x60] sm:$0xff]
    %v7114 = vld [vmem:[%s79 + $0x68] sm:$0xff]
    %v7115 = vld [vmem:[%s79 + $0x70] sm:$0xff]
    %v7116 = vld [vmem:[%s79 + $0x78] sm:$0xff]
    %v7117 = vld [vmem:[%s79 + $0x80] sm:$0xff]
    %v7118 = vld [vmem:[%s79 + $0x88] sm:$0xff]
    %v7119 = vld [vmem:[%s79 + $0x90] sm:$0xff]
    %v7120 = vld [vmem:[%s79 + $0x98] sm:$0xff]
    %v7121 = vld [vmem:[%s79 + $0xa0] sm:$0xff]
    %v7122 = vld [vmem:[%s79 + $0xa8] sm:$0xff]
    %v7123 = vld [vmem:[%s79 + $0xb0] sm:$0xff]
    %v7124 = vld [vmem:[%s79 + $0xb8] sm:$0xff]
    %v7125 = vld [vmem:[%s79 + $0xc0] sm:$0xff]
    %v7126 = vld [vmem:[%s79 + $0xc8] sm:$0xff]
    %v7127 = vld [vmem:[%s79 + $0xd0] sm:$0xff]
    %v7128 = vld [vmem:[%s79 + $0xd8] sm:$0xff]
    %v7129 = vld [vmem:[%s79 + $0xe0] sm:$0xff]
    %v7130 = vld [vmem:[%s79 + $0xe8] sm:$0xff]
    %v7131 = vld [vmem:[%s79 + $0xf0] sm:$0xff]
    %v7132 = vld [vmem:[%s79 + $0xf8] sm:$0xff]
    %v7133 = vld [vmem:[%s79 + $0x100] sm:$0xff]
    %v7134 = vld [vmem:[%s79 + $0x108] sm:$0xff]
    %v7135 = vld [vmem:[%s79 + $0x110] sm:$0xff]
    %v7136 = vld [vmem:[%s79 + $0x118] sm:$0xff]
    %v7137 = vld [vmem:[%s79 + $0x120] sm:$0xff]
    %v7138 = vld [vmem:[%s79 + $0x128] sm:$0xff]
    %v7139 = vld [vmem:[%s79 + $0x130] sm:$0xff]
    %v7140 = vld [vmem:[%s79 + $0x138] sm:$0xff]
    %v7141 = vld [vmem:[%s79 + $0x140] sm:$0xff]
    %v7142 = vld [vmem:[%s79 + $0x148] sm:$0xff]
    %v7143 = vld [vmem:[%s79 + $0x150] sm:$0xff]
    %v7144 = vld [vmem:[%s79 + $0x158] sm:$0xff]
    %v7145 = vld [vmem:[%s79 + $0x160] sm:$0xff]
    %v7146 = vld [vmem:[%s79 + $0x168] sm:$0xff]
    %v7147 = vld [vmem:[%s79 + $0x170] sm:$0xff]
    %v7148 = vld [vmem:[%s79 + $0x178] sm:$0xff]
    %v7149 = vld [vmem:[%s79 + $0x180] sm:$0xff]
    %v7150 = vld [vmem:[%s79 + $0x188] sm:$0xff]
    %v7151 = vld [vmem:[%s79 + $0x190] sm:$0xff]
    %v7152 = vld [vmem:[%s79 + $0x198] sm:$0xff]
    %v7153 = vld [vmem:[%s79 + $0x1a0] sm:$0xff]
    %v7154 = vld [vmem:[%s79 + $0x1a8] sm:$0xff]
    %v7155 = vld [vmem:[%s79 + $0x1b0] sm:$0xff]
    %v7156 = vld [vmem:[%s79 + $0x1b8] sm:$0xff]
    %v7157 = vld [vmem:[%s79 + $0x1c0] sm:$0xff]
    %v7158 = vld [vmem:[%s79 + $0x1c8] sm:$0xff]
    %v7159 = vld [vmem:[%s79 + $0x1d0] sm:$0xff]
    %v7160 = vld [vmem:[%s79 + $0x1d8] sm:$0xff]
    %v7161 = vld [vmem:[%s79 + $0x1e0] sm:$0xff]
    %v7162 = vld [vmem:[%s79 + $0x1e8] sm:$0xff]
    %v7163 = vld [vmem:[%s79 + $0x1f0] sm:$0xff]
    %v7164 = vld [vmem:[%s79 + $0x1f8] sm:$0xff]
    %v7165 = vld [vmem:[%s79 + $0x200] sm:$0xff]
    %v7166 = vld [vmem:[%s79 + $0x208] sm:$0xff]
    %v7167 = vld [vmem:[%s79 + $0x210] sm:$0xff]
    %v7168 = vld [vmem:[%s79 + $0x218] sm:$0xff]
    %v7169 = vld [vmem:[%s79 + $0x220] sm:$0xff]
    %v7170 = vld [vmem:[%s79 + $0x228] sm:$0xff]
    %v7171 = vld [vmem:[%s79 + $0x230] sm:$0xff]
    %v7172 = vld [vmem:[%s79 + $0x238] sm:$0xff]
    %v7173 = vld [vmem:[%s79 + $0x240] sm:$0xff]
    %v7174 = vld [vmem:[%s79 + $0x248] sm:$0xff]
    %v7175 = vld [vmem:[%s79 + $0x250] sm:$0xff]
    %v7176 = vld [vmem:[%s79 + $0x258] sm:$0xff]
    %v7177 = vld [vmem:[%s79 + $0x260] sm:$0xff]
    %v7178 = vld [vmem:[%s79 + $0x268] sm:$0xff]
    %v7179 = vld [vmem:[%s79 + $0x270] sm:$0xff]
    %v7180 = vld [vmem:[%s79 + $0x278] sm:$0xff]
    %v7181 = vld [vmem:[%s79 + $0x280] sm:$0xff]
    %v7182 = vld [vmem:[%s79 + $0x288] sm:$0xff]
    %v7183 = vld [vmem:[%s79 + $0x290] sm:$0xff]
    %v7184 = vld [vmem:[%s79 + $0x298] sm:$0xff]
    %v7185 = vld [vmem:[%s79 + $0x2a0] sm:$0xff]
    %v7186 = vld [vmem:[%s79 + $0x2a8] sm:$0xff]
    %v7187 = vld [vmem:[%s79 + $0x2b0] sm:$0xff]
    %v7188 = vld [vmem:[%s79 + $0x2b8] sm:$0xff]
    %v7189 = vld [vmem:[%s79 + $0x2c0] sm:$0xff]
    %v7190 = vld [vmem:[%s79 + $0x2c8] sm:$0xff]
    %v7191 = vld [vmem:[%s79 + $0x2d0] sm:$0xff]
    %v7192 = vld [vmem:[%s79 + $0x2d8] sm:$0xff]
    %v7193 = vld [vmem:[%s79 + $0x2e0] sm:$0xff]
    %v7194 = vld [vmem:[%s79 + $0x2e8] sm:$0xff]
    %v7195 = vld [vmem:[%s79 + $0x2f0] sm:$0xff]
    %v7196 = vld [vmem:[%s79 + $0x2f8] sm:$0xff]
    %v7197 = vld [vmem:[%s79 + $0x300] sm:$0xff]
    %v7198 = vld [vmem:[%s79 + $0x308] sm:$0xff]
    %v7199 = vld [vmem:[%s79 + $0x310] sm:$0xff]
    %v7200 = vld [vmem:[%s79 + $0x318] sm:$0xff]
    %v7202 = vsel %vm2868, %v7065, 0
    %v7205 = vsel %vm2868, %v7072, 0
    %v7208 = vsel %vm2868, %v7079, 0
    %v7211 = vsel %vm2868, %v7086, 0
    %v7214 = vsel %vm2868, %v7093, 0
    %v7217 = vsel %vm2868, %v7100, 0
    %7219 = vmatprep.subr.mxu0 0.0
    %7220 = vmatpush1.msra.mxu0 %v7116
    %7221 = vmatprep.subr.mxu0 0.0
    %7222 = vmatpush1.msra.mxu0 %v7115
    %7223 = vmatprep.subr.mxu0 0.0
    %7224 = vmatpush1.msra.mxu0 %v7114
    %7225 = vmatprep.subr.mxu0 0.0
    %7226 = vmatpush1.msra.mxu0 %v7113
    %7227 = vmatprep.subr.mxu0 0.0
    %7228 = vmatpush1.msra.mxu0 %v7112
    %7229 = vmatprep.subr.mxu0 0.0
    %7230 = vmatpush1.msra.mxu0 %v7111
    %7231 = vmatprep.subr.mxu0 0.0
    %7232 = vmatpush1.msra.mxu0 %v7110
    %7233 = vmatprep.subr.mxu0 0.0
    %7234 = vmatpush1.msra.mxu0 %v7109
    %7235 = vmatprep.subr.mxu0 0.0
    %7236 = vmatpush1.msra.mxu0 %v7108
    %7237 = vmatprep.subr.mxu0 0.0
    %7238 = vmatpush1.msra.mxu0 %v7107
    %7239 = vmatprep.subr.mxu0 0.0
    %7240 = vmatpush1.msra.mxu0 %v7106
    %7241 = vmatprep.subr.mxu0 0.0
    %7242 = vmatpush1.msra.mxu0 %v7105
    %7243 = vmatprep.subr.mxu0 0.0
    %7244 = vmatpush1.msra.mxu0 %v7104
    %7245 = vmatprep.subr.mxu0 0.0
    %7246 = vmatpush1.msra.mxu0 %v7103
    %7247 = vmatprep.subr.mxu0 0.0
    %7248 = vmatpush1.msra.mxu0 %v7102
    %7249 = vmatprep.subr.mxu0 0.0
    %7250 = vmatpush1.msra.mxu0 %v7101
    %7251 = vmatprep.subr.mxu0 0.0
    %7252 = vmatpush2.msra.mxu0 %v7132
    %7253 = vmatprep.subr.mxu0 0.0
    %7254 = vmatpush2.msra.mxu0 %v7131
    %7255 = vmatprep.subr.mxu0 0.0
    %7256 = vmatpush2.msra.mxu0 %v7130
    %7257 = vmatprep.subr.mxu0 0.0
    %7258 = vmatpush2.msra.mxu0 %v7129
    %7259 = vmatprep.subr.mxu0 0.0
    %7260 = vmatpush2.msra.mxu0 %v7128
    %7261 = vmatprep.subr.mxu0 0.0
    %7262 = vmatpush2.msra.mxu0 %v7127
    %7263 = vmatprep.subr.mxu0 0.0
    %7264 = vmatpush2.msra.mxu0 %v7126
    %7265 = vmatprep.subr.mxu0 0.0
    %7266 = vmatpush2.msra.mxu0 %v7125
    %7267 = vmatprep.subr.mxu0 0.0
    %7268 = vmatpush2.msra.mxu0 %v7124
    %7269 = vmatprep.subr.mxu0 0.0
    %7270 = vmatpush2.msra.mxu0 %v7123
    %7271 = vmatprep.subr.mxu0 0.0
    %7272 = vmatpush2.msra.mxu0 %v7122
    %7273 = vmatprep.subr.mxu0 0.0
    %7274 = vmatpush2.msra.mxu0 %v7121
    %7275 = vmatprep.subr.mxu0 0.0
    %7276 = vmatpush2.msra.mxu0 %v7120
    %7277 = vmatprep.subr.mxu0 0.0
    %7278 = vmatpush2.msra.mxu0 %v7119
    %7279 = vmatprep.subr.mxu0 0.0
    %7280 = vmatpush2.msra.mxu0 %v7118
    %7281 = vmatprep.subr.mxu0 0.0
    %7282 = vmatpush2.msra.mxu0 %v7117
    %7283 = vmatprep.mubr.f32.mxu0 %v7060
    %7284 = vmatmul.mubr.f32.gmra.mxu0 %v7059
    %v7285 = vpop.f32.mrf.mxu0
    %v7286 = vadd.f32 0.0, %v7285
    %v7287 = vpop.f32.mrf.mxu0
    %7288 = vmatprep.mubr.f32.mxu0 %v7067
    %7289 = vmatmul.mubr.f32.gmra.mxu0 %v7066
    %v7290 = vpop.f32.mrf.mxu0
    %v7291 = vadd.f32 0.0, %v7290
    %v7292 = vpop.f32.mrf.mxu0
    %7293 = vmatprep.mubr.f32.mxu0 %v7074
    %7294 = vmatmul.mubr.f32.gmra.mxu0 %v7073
    %v7295 = vpop.f32.mrf.mxu0
    %v7296 = vadd.f32 0.0, %v7295
    %v7297 = vpop.f32.mrf.mxu0
    %7298 = vmatprep.mubr.f32.mxu0 %v7081
    %7299 = vmatmul.mubr.f32.gmra.mxu0 %v7080
    %v7300 = vpop.f32.mrf.mxu0
    %v7301 = vadd.f32 0.0, %v7300
    %v7302 = vpop.f32.mrf.mxu0
    %7303 = vmatprep.mubr.f32.mxu0 %v7088
    %7304 = vmatmul.mubr.f32.gmra.mxu0 %v7087
    %v7305 = vpop.f32.mrf.mxu0
    %v7306 = vadd.f32 0.0, %v7305
    %v7307 = vpop.f32.mrf.mxu0
    %7308 = vmatprep.mubr.f32.mxu0 %v7095
    %7309 = vmatmul.mubr.f32.gmra.mxu0 %v7094
    %v7310 = vpop.f32.mrf.mxu0
    %v7311 = vadd.f32 0.0, %v7310
    %v7312 = vpop.f32.mrf.mxu0
    %7313 = vdwg.mxu0
    %7314 = vmatprep.subr.mxu0 0.0
    %7315 = vmatpush1.msra.mxu0 %v7148
    %7316 = vmatprep.subr.mxu0 0.0
    %7317 = vmatpush1.msra.mxu0 %v7147
    %7318 = vmatprep.subr.mxu0 0.0
    %7319 = vmatpush1.msra.mxu0 %v7146
    %7320 = vmatprep.subr.mxu0 0.0
    %7321 = vmatpush1.msra.mxu0 %v7145
    %7322 = vmatprep.subr.mxu0 0.0
    %7323 = vmatpush1.msra.mxu0 %v7144
    %7324 = vmatprep.subr.mxu0 0.0
    %7325 = vmatpush1.msra.mxu0 %v7143
    %7326 = vmatprep.subr.mxu0 0.0
    %7327 = vmatpush1.msra.mxu0 %v7142
    %7328 = vmatprep.subr.mxu0 0.0
    %7329 = vmatpush1.msra.mxu0 %v7141
    %7330 = vmatprep.subr.mxu0 0.0
    %7331 = vmatpush1.msra.mxu0 %v7140
    %7332 = vmatprep.subr.mxu0 0.0
    %7333 = vmatpush1.msra.mxu0 %v7139
    %7334 = vmatprep.subr.mxu0 0.0
    %7335 = vmatpush1.msra.mxu0 %v7138
    %7336 = vmatprep.subr.mxu0 0.0
    %7337 = vmatpush1.msra.mxu0 %v7137
    %7338 = vmatprep.subr.mxu0 0.0
    %7339 = vmatpush1.msra.mxu0 %v7136
    %7340 = vmatprep.subr.mxu0 0.0
    %7341 = vmatpush1.msra.mxu0 %v7135
    %7342 = vmatprep.subr.mxu0 0.0
    %7343 = vmatpush1.msra.mxu0 %v7134
    %7344 = vmatprep.subr.mxu0 0.0
    %7345 = vmatpush1.msra.mxu0 %v7133
    %7346 = vmatprep.subr.mxu0 0.0
    %7347 = vmatpush2.msra.mxu0 %v7164
    %7348 = vmatprep.subr.mxu0 0.0
    %7349 = vmatpush2.msra.mxu0 %v7163
    %7350 = vmatprep.subr.mxu0 0.0
    %7351 = vmatpush2.msra.mxu0 %v7162
    %7352 = vmatprep.subr.mxu0 0.0
    %7353 = vmatpush2.msra.mxu0 %v7161
    %7354 = vmatprep.subr.mxu0 0.0
    %7355 = vmatpush2.msra.mxu0 %v7160
    %7356 = vmatprep.subr.mxu0 0.0
    %7357 = vmatpush2.msra.mxu0 %v7159
    %7358 = vmatprep.subr.mxu0 0.0
    %7359 = vmatpush2.msra.mxu0 %v7158
    %7360 = vmatprep.subr.mxu0 0.0
    %7361 = vmatpush2.msra.mxu0 %v7157
    %7362 = vmatprep.subr.mxu0 0.0
    %7363 = vmatpush2.msra.mxu0 %v7156
    %7364 = vmatprep.subr.mxu0 0.0
    %7365 = vmatpush2.msra.mxu0 %v7155
    %7366 = vmatprep.subr.mxu0 0.0
    %7367 = vmatpush2.msra.mxu0 %v7154
    %7368 = vmatprep.subr.mxu0 0.0
    %7369 = vmatpush2.msra.mxu0 %v7153
    %7370 = vmatprep.subr.mxu0 0.0
    %7371 = vmatpush2.msra.mxu0 %v7152
    %7372 = vmatprep.subr.mxu0 0.0
    %7373 = vmatpush2.msra.mxu0 %v7151
    %7374 = vmatprep.subr.mxu0 0.0
    %7375 = vmatpush2.msra.mxu0 %v7150
    %7376 = vmatprep.subr.mxu0 0.0
    %7377 = vmatpush2.msra.mxu0 %v7149
    %7378 = vmatprep.mubr.f32.mxu0 %v7062
    %7379 = vmatmul.mubr.f32.gmra.mxu0 %v7061
    %v7380 = vpop.f32.mrf.mxu0
    %v7381 = vadd.f32 %v7286, %v7380
    %v7382 = vpop.f32.mrf.mxu0
    %7383 = vmatprep.mubr.f32.mxu0 %v7069
    %7384 = vmatmul.mubr.f32.gmra.mxu0 %v7068
    %v7385 = vpop.f32.mrf.mxu0
    %v7386 = vadd.f32 %v7291, %v7385
    %v7387 = vpop.f32.mrf.mxu0
    %7388 = vmatprep.mubr.f32.mxu0 %v7076
    %7389 = vmatmul.mubr.f32.gmra.mxu0 %v7075
    %v7390 = vpop.f32.mrf.mxu0
    %v7391 = vadd.f32 %v7296, %v7390
    %v7392 = vpop.f32.mrf.mxu0
    %7393 = vmatprep.mubr.f32.mxu0 %v7083
    %7394 = vmatmul.mubr.f32.gmra.mxu0 %v7082
    %v7395 = vpop.f32.mrf.mxu0
    %v7396 = vadd.f32 %v7301, %v7395
    %v7397 = vpop.f32.mrf.mxu0
    %7398 = vmatprep.mubr.f32.mxu0 %v7090
    %7399 = vmatmul.mubr.f32.gmra.mxu0 %v7089
    %v7400 = vpop.f32.mrf.mxu0
    %v7401 = vadd.f32 %v7306, %v7400
    %v7402 = vpop.f32.mrf.mxu0
    %7403 = vmatprep.mubr.f32.mxu0 %v7097
    %7404 = vmatmul.mubr.f32.gmra.mxu0 %v7096
    %v7405 = vpop.f32.mrf.mxu0
    %v7406 = vadd.f32 %v7311, %v7405
    %v7407 = vpop.f32.mrf.mxu0
    %7408 = vdwg.mxu0
    %7409 = vmatprep.subr.mxu0 0.0
    %7410 = vmatpush1.msra.mxu0 %v7180
    %7411 = vmatprep.subr.mxu0 0.0
    %7412 = vmatpush1.msra.mxu0 %v7179
    %7413 = vmatprep.subr.mxu0 0.0
    %7414 = vmatpush1.msra.mxu0 %v7178
    %7415 = vmatprep.subr.mxu0 0.0
    %7416 = vmatpush1.msra.mxu0 %v7177
    %7417 = vmatprep.subr.mxu0 0.0
    %7418 = vmatpush1.msra.mxu0 %v7176
    %7419 = vmatprep.subr.mxu0 0.0
    %7420 = vmatpush1.msra.mxu0 %v7175
    %7421 = vmatprep.subr.mxu0 0.0
    %7422 = vmatpush1.msra.mxu0 %v7174
    %7423 = vmatprep.subr.mxu0 0.0
    %7424 = vmatpush1.msra.mxu0 %v7173
    %7425 = vmatprep.subr.mxu0 0.0
    %7426 = vmatpush1.msra.mxu0 %v7172
    %7427 = vmatprep.subr.mxu0 0.0
    %7428 = vmatpush1.msra.mxu0 %v7171
    %7429 = vmatprep.subr.mxu0 0.0
    %7430 = vmatpush1.msra.mxu0 %v7170
    %7431 = vmatprep.subr.mxu0 0.0
    %7432 = vmatpush1.msra.mxu0 %v7169
    %7433 = vmatprep.subr.mxu0 0.0
    %7434 = vmatpush1.msra.mxu0 %v7168
    %7435 = vmatprep.subr.mxu0 0.0
    %7436 = vmatpush1.msra.mxu0 %v7167
    %7437 = vmatprep.subr.mxu0 0.0
    %7438 = vmatpush1.msra.mxu0 %v7166
    %7439 = vmatprep.subr.mxu0 0.0
    %7440 = vmatpush1.msra.mxu0 %v7165
    %7441 = vmatprep.subr.mxu0 0.0
    %7442 = vmatpush2.msra.mxu0 %v7196
    %7443 = vmatprep.subr.mxu0 0.0
    %7444 = vmatpush2.msra.mxu0 %v7195
    %7445 = vmatprep.subr.mxu0 0.0
    %7446 = vmatpush2.msra.mxu0 %v7194
    %7447 = vmatprep.subr.mxu0 0.0
    %7448 = vmatpush2.msra.mxu0 %v7193
    %7449 = vmatprep.subr.mxu0 0.0
    %7450 = vmatpush2.msra.mxu0 %v7192
    %7451 = vmatprep.subr.mxu0 0.0
    %7452 = vmatpush2.msra.mxu0 %v7191
    %7453 = vmatprep.subr.mxu0 0.0
    %7454 = vmatpush2.msra.mxu0 %v7190
    %7455 = vmatprep.subr.mxu0 0.0
    %7456 = vmatpush2.msra.mxu0 %v7189
    %7457 = vmatprep.subr.mxu0 0.0
    %7458 = vmatpush2.msra.mxu0 %v7188
    %7459 = vmatprep.subr.mxu0 0.0
    %7460 = vmatpush2.msra.mxu0 %v7187
    %7461 = vmatprep.subr.mxu0 0.0
    %7462 = vmatpush2.msra.mxu0 %v7186
    %7463 = vmatprep.subr.mxu0 0.0
    %7464 = vmatpush2.msra.mxu0 %v7185
    %7465 = vmatprep.subr.mxu0 0.0
    %7466 = vmatpush2.msra.mxu0 %v7184
    %7467 = vmatprep.subr.mxu0 0.0
    %7468 = vmatpush2.msra.mxu0 %v7183
    %7469 = vmatprep.subr.mxu0 0.0
    %7470 = vmatpush2.msra.mxu0 %v7182
    %7471 = vmatprep.subr.mxu0 0.0
    %7472 = vmatpush2.msra.mxu0 %v7181
    %7473 = vmatprep.mubr.f32.mxu0 %v7064
    %7474 = vmatmul.mubr.f32.gmra.mxu0 %v7063
    %v7475 = vpop.f32.mrf.mxu0
    %v7476 = vadd.f32 %v7381, %v7475
    %v7477 = vpop.f32.mrf.mxu0
    %7478 = vmatprep.mubr.f32.mxu0 %v7071
    %7479 = vmatmul.mubr.f32.gmra.mxu0 %v7070
    %v7480 = vpop.f32.mrf.mxu0
    %v7481 = vadd.f32 %v7386, %v7480
    %v7482 = vpop.f32.mrf.mxu0
    %7483 = vmatprep.mubr.f32.mxu0 %v7078
    %7484 = vmatmul.mubr.f32.gmra.mxu0 %v7077
    %v7485 = vpop.f32.mrf.mxu0
    %v7486 = vadd.f32 %v7391, %v7485
    %v7487 = vpop.f32.mrf.mxu0
    %7488 = vmatprep.mubr.f32.mxu0 %v7085
    %7489 = vmatmul.mubr.f32.gmra.mxu0 %v7084
    %v7490 = vpop.f32.mrf.mxu0
    %v7491 = vadd.f32 %v7396, %v7490
    %v7492 = vpop.f32.mrf.mxu0
    %7493 = vmatprep.mubr.f32.mxu0 %v7092
    %7494 = vmatmul.mubr.f32.gmra.mxu0 %v7091
    %v7495 = vpop.f32.mrf.mxu0
    %v7496 = vadd.f32 %v7401, %v7495
    %v7497 = vpop.f32.mrf.mxu0
    %7498 = vmatprep.mubr.f32.mxu0 %v7099
    %7499 = vmatmul.mubr.f32.gmra.mxu0 %v7098
    %v7500 = vpop.f32.mrf.mxu0
    %v7501 = vadd.f32 %v7406, %v7500
    %v7502 = vpop.f32.mrf.mxu0
    %7503 = vdwg.mxu0
    %7504 = vmatprep.subr.mxu0 0.0
    %7505 = vmatpush1.msra.mxu0 0.0
    %7506 = vmatprep.subr.mxu0 0.0
    %7507 = vmatpush1.msra.mxu0 0.0
    %7508 = vmatprep.subr.mxu0 0.0
    %7509 = vmatpush1.msra.mxu0 0.0
    %7510 = vmatprep.subr.mxu0 0.0
    %7511 = vmatpush1.msra.mxu0 0.0
    %7512 = vmatprep.subr.mxu0 0.0
    %7513 = vmatpush1.msra.mxu0 0.0
    %7514 = vmatprep.subr.mxu0 0.0
    %7515 = vmatpush1.msra.mxu0 0.0
    %7516 = vmatprep.subr.mxu0 0.0
    %7517 = vmatpush1.msra.mxu0 0.0
    %7518 = vmatprep.subr.mxu0 0.0
    %7519 = vmatpush1.msra.mxu0 0.0
    %7520 = vmatprep.subr.mxu0 0.0
    %7521 = vmatpush1.msra.mxu0 0.0
    %7522 = vmatprep.subr.mxu0 0.0
    %7523 = vmatpush1.msra.mxu0 0.0
    %7524 = vmatprep.subr.mxu0 0.0
    %7525 = vmatpush1.msra.mxu0 0.0
    %7526 = vmatprep.subr.mxu0 0.0
    %7527 = vmatpush1.msra.mxu0 0.0
    %7528 = vmatprep.subr.mxu0 0.0
    %7529 = vmatpush1.msra.mxu0 %v7200
    %7530 = vmatprep.subr.mxu0 0.0
    %7531 = vmatpush1.msra.mxu0 %v7199
    %7532 = vmatprep.subr.mxu0 0.0
    %7533 = vmatpush1.msra.mxu0 %v7198
    %7534 = vmatprep.subr.mxu0 0.0
    %7535 = vmatpush1.msra.mxu0 %v7197
    %7536 = vmatprep.subr.mxu0 0.0
    %7537 = vmatpush2.msra.mxu0 0.0
    %7538 = vmatprep.subr.mxu0 0.0
    %7539 = vmatpush2.msra.mxu0 0.0
    %7540 = vmatprep.subr.mxu0 0.0
    %7541 = vmatpush2.msra.mxu0 0.0
    %7542 = vmatprep.subr.mxu0 0.0
    %7543 = vmatpush2.msra.mxu0 0.0
    %7544 = vmatprep.subr.mxu0 0.0
    %7545 = vmatpush2.msra.mxu0 0.0
    %7546 = vmatprep.subr.mxu0 0.0
    %7547 = vmatpush2.msra.mxu0 0.0
    %7548 = vmatprep.subr.mxu0 0.0
    %7549 = vmatpush2.msra.mxu0 0.0
    %7550 = vmatprep.subr.mxu0 0.0
    %7551 = vmatpush2.msra.mxu0 0.0
    %7552 = vmatprep.subr.mxu0 0.0
    %7553 = vmatpush2.msra.mxu0 0.0
    %7554 = vmatprep.subr.mxu0 0.0
    %7555 = vmatpush2.msra.mxu0 0.0
    %7556 = vmatprep.subr.mxu0 0.0
    %7557 = vmatpush2.msra.mxu0 0.0
    %7558 = vmatprep.subr.mxu0 0.0
    %7559 = vmatpush2.msra.mxu0 0.0
    %7560 = vmatprep.subr.mxu0 0.0
    %7561 = vmatpush2.msra.mxu0 0.0
    %7562 = vmatprep.subr.mxu0 0.0
    %7563 = vmatpush2.msra.mxu0 0.0
    %7564 = vmatprep.subr.mxu0 0.0
    %7565 = vmatpush2.msra.mxu0 0.0
    %7566 = vmatprep.subr.mxu0 0.0
    %7567 = vmatpush2.msra.mxu0 0.0
    %7568 = vmatprep.mubr.f32.mxu0 0.0
    %7569 = vmatmul.mubr.f32.gmra.mxu0 %v7202
    %v7570 = vpop.f32.mrf.mxu0
    %v7571 = vadd.f32 %v7476, %v7570
    %v7572 = vpop.f32.mrf.mxu0
    %7573 = vmatprep.mubr.f32.mxu0 0.0
    %7574 = vmatmul.mubr.f32.gmra.mxu0 %v7205
    %v7575 = vpop.f32.mrf.mxu0
    %v7576 = vadd.f32 %v7481, %v7575
    %v7577 = vpop.f32.mrf.mxu0
    %7578 = vmatprep.mubr.f32.mxu0 0.0
    %7579 = vmatmul.mubr.f32.gmra.mxu0 %v7208
    %v7580 = vpop.f32.mrf.mxu0
    %v7581 = vadd.f32 %v7486, %v7580
    %v7582 = vpop.f32.mrf.mxu0
    %7583 = vmatprep.mubr.f32.mxu0 0.0
    %7584 = vmatmul.mubr.f32.gmra.mxu0 %v7211
    %v7585 = vpop.f32.mrf.mxu0
    %v7586 = vadd.f32 %v7491, %v7585
    %v7587 = vpop.f32.mrf.mxu0
    %7588 = vmatprep.mubr.f32.mxu0 0.0
    %7589 = vmatmul.mubr.f32.gmra.mxu0 %v7214
    %v7590 = vpop.f32.mrf.mxu0
    %v7591 = vadd.f32 %v7496, %v7590
    %v7592 = vpop.f32.mrf.mxu0
    %7593 = vmatprep.mubr.f32.mxu0 0.0
    %7594 = vmatmul.mubr.f32.gmra.mxu0 %v7217
    %v7595 = vpop.f32.mrf.mxu0
    %v7596 = vadd.f32 %v7501, %v7595
    %v7597 = vpop.f32.mrf.mxu0
    %7598 = vdwg.mxu0
    %v7599 = vld [vmem:[%s81] sm:$0x1]
    %v7601 = vlaneseq
    %v7602 = vshrl.u32 %v7601, 7
    %v7603 = vsub.s32 0, %v7602
    %v7604 = vrot.slane %v7599, %v7603
    %7606 = vmatprep.subr.mxu0 0.0
    %7607 = vmatpush1.msra.mxu0 0.0
    %7608 = vmatprep.subr.mxu0 0.0
    %7609 = vmatpush1.msra.mxu0 0.0
    %7610 = vmatprep.subr.mxu0 0.0
    %7611 = vmatpush1.msra.mxu0 0.0
    %7612 = vmatprep.subr.mxu0 0.0
    %7613 = vmatpush1.msra.mxu0 0.0
    %7614 = vmatprep.subr.mxu0 0.0
    %7615 = vmatpush1.msra.mxu0 0.0
    %7616 = vmatprep.subr.mxu0 0.0
    %7617 = vmatpush1.msra.mxu0 0.0
    %7618 = vmatprep.subr.mxu0 0.0
    %7619 = vmatpush1.msra.mxu0 0.0
    %7620 = vmatprep.subr.mxu0 0.0
    %7621 = vmatpush1.msra.mxu0 0.0
    %7622 = vmatprep.subr.mxu0 0.0
    %7623 = vmatpush1.msra.mxu0 0.0
    %7624 = vmatprep.subr.mxu0 0.0
    %7625 = vmatpush1.msra.mxu0 0.0
    %7626 = vmatprep.subr.mxu0 0.0
    %7627 = vmatpush1.msra.mxu0 %v7596
    %7628 = vmatprep.subr.mxu0 0.0
    %7629 = vmatpush1.msra.mxu0 %v7591
    %7630 = vmatprep.subr.mxu0 0.0
    %7631 = vmatpush1.msra.mxu0 %v7586
    %7632 = vmatprep.subr.mxu0 0.0
    %7633 = vmatpush1.msra.mxu0 %v7581
    %7634 = vmatprep.subr.mxu0 0.0
    %7635 = vmatpush1.msra.mxu0 %v7576
    %7636 = vmatprep.subr.mxu0 0.0
    %7637 = vmatpush1.msra.mxu0 %v7571
    %7638 = vmatprep.subr.mxu0 0.0
    %7639 = vmatpush2.msra.mxu0 0.0
    %7640 = vmatprep.subr.mxu0 0.0
    %7641 = vmatpush2.msra.mxu0 0.0
    %7642 = vmatprep.subr.mxu0 0.0
    %7643 = vmatpush2.msra.mxu0 0.0
    %7644 = vmatprep.subr.mxu0 0.0
    %7645 = vmatpush2.msra.mxu0 0.0
    %7646 = vmatprep.subr.mxu0 0.0
    %7647 = vmatpush2.msra.mxu0 0.0
    %7648 = vmatprep.subr.mxu0 0.0
    %7649 = vmatpush2.msra.mxu0 0.0
    %7650 = vmatprep.subr.mxu0 0.0
    %7651 = vmatpush2.msra.mxu0 0.0
    %7652 = vmatprep.subr.mxu0 0.0
    %7653 = vmatpush2.msra.mxu0 0.0
    %7654 = vmatprep.subr.mxu0 0.0
    %7655 = vmatpush2.msra.mxu0 0.0
    %7656 = vmatprep.subr.mxu0 0.0
    %7657 = vmatpush2.msra.mxu0 0.0
    %7658 = vmatprep.subr.mxu0 0.0
    %7659 = vmatpush2.msra.mxu0 0.0
    %7660 = vmatprep.subr.mxu0 0.0
    %7661 = vmatpush2.msra.mxu0 0.0
    %7662 = vmatprep.subr.mxu0 0.0
    %7663 = vmatpush2.msra.mxu0 0.0
    %7664 = vmatprep.subr.mxu0 0.0
    %7665 = vmatpush2.msra.mxu0 0.0
    %7666 = vmatprep.subr.mxu0 0.0
    %7667 = vmatpush2.msra.mxu0 0.0
    %7668 = vmatprep.subr.mxu0 0.0
    %7669 = vmatpush2.msra.mxu0 0.0
    %7670 = vmatprep.mubr.f32.mxu0 0.0
    %7671 = vmatmul.mubr.f32.gmra.mxu0 %v1109
    %v7672 = vpop.f32.mrf.mxu0
    %v7673 = vadd.f32 %v7604, %v7672
    %v7674 = vpop.f32.mrf.mxu0
    %7675 = vmatprep.mubr.f32.mxu0 0.0
    %7676 = vmatmul.mubr.f32.gmra.mxu0 %v1112
    %v7677 = vpop.f32.mrf.mxu0
    %v7678 = vadd.f32 %v7604, %v7677
    %v7679 = vpop.f32.mrf.mxu0
    %7680 = vdwg.mxu0
    %v7681 = vmax.f32 %v7673, 0.0
    %v7682 = vmax.f32 %v7678, 0.0
    %v7683 = vld [vmem:[%s83] sm:$0xff]
    %v7684 = vld [vmem:[%s83 + $0x8] sm:$0xff]
    %v7685 = vld [vmem:[%s83 + $0x10] sm:$0xff]
    %v7686 = vld [vmem:[%s83 + $0x18] sm:$0xff]
    %v7687 = vld [vmem:[%s83 + $0x20] sm:$0xff]
    %v7688 = vld [vmem:[%s83 + $0x28] sm:$0xff]
    %v7689 = vld [vmem:[%s83 + $0x30] sm:$0xff]
    %v7690 = vld [vmem:[%s83 + $0x38] sm:$0xff]
    %v7691 = vld [vmem:[%s83 + $0x40] sm:$0xff]
    %v7692 = vld [vmem:[%s83 + $0x48] sm:$0xff]
    %v7693 = vld [vmem:[%s85] sm:$0x1]
    %v7695 = vlaneseq
    %v7696 = vshrl.u32 %v7695, 7
    %v7697 = vsub.s32 0, %v7696
    %v7698 = vrot.slane %v7693, %v7697
    %v7701 = vsel %vm986, %v5639, 0
    %v7704 = vsel %vm986, %v5640, 0
    %7706 = vmatprep.subr.mxu0 0.0
    %7707 = vmatpush1.msra.mxu0 0.0
    %7708 = vmatprep.subr.mxu0 0.0
    %7709 = vmatpush1.msra.mxu0 0.0
    %7710 = vmatprep.subr.mxu0 0.0
    %7711 = vmatpush1.msra.mxu0 0.0
    %7712 = vmatprep.subr.mxu0 0.0
    %7713 = vmatpush1.msra.mxu0 0.0
    %7714 = vmatprep.subr.mxu0 0.0
    %7715 = vmatpush1.msra.mxu0 0.0
    %7716 = vmatprep.subr.mxu0 0.0
    %7717 = vmatpush1.msra.mxu0 0.0
    %7718 = vmatprep.subr.mxu0 0.0
    %7719 = vmatpush1.msra.mxu0 %v7692
    %7720 = vmatprep.subr.mxu0 0.0
    %7721 = vmatpush1.msra.mxu0 %v7691
    %7722 = vmatprep.subr.mxu0 0.0
    %7723 = vmatpush1.msra.mxu0 %v7690
    %7724 = vmatprep.subr.mxu0 0.0
    %7725 = vmatpush1.msra.mxu0 %v7689
    %7726 = vmatprep.subr.mxu0 0.0
    %7727 = vmatpush1.msra.mxu0 %v7688
    %7728 = vmatprep.subr.mxu0 0.0
    %7729 = vmatpush1.msra.mxu0 %v7687
    %7730 = vmatprep.subr.mxu0 0.0
    %7731 = vmatpush1.msra.mxu0 %v7686
    %7732 = vmatprep.subr.mxu0 0.0
    %7733 = vmatpush1.msra.mxu0 %v7685
    %7734 = vmatprep.subr.mxu0 0.0
    %7735 = vmatpush1.msra.mxu0 %v7684
    %7736 = vmatprep.subr.mxu0 0.0
    %7737 = vmatpush1.msra.mxu0 %v7683
    %7738 = vmatprep.subr.mxu0 0.0
    %7739 = vmatpush2.msra.mxu0 0.0
    %7740 = vmatprep.subr.mxu0 0.0
    %7741 = vmatpush2.msra.mxu0 0.0
    %7742 = vmatprep.subr.mxu0 0.0
    %7743 = vmatpush2.msra.mxu0 0.0
    %7744 = vmatprep.subr.mxu0 0.0
    %7745 = vmatpush2.msra.mxu0 0.0
    %7746 = vmatprep.subr.mxu0 0.0
    %7747 = vmatpush2.msra.mxu0 0.0
    %7748 = vmatprep.subr.mxu0 0.0
    %7749 = vmatpush2.msra.mxu0 0.0
    %7750 = vmatprep.subr.mxu0 0.0
    %7751 = vmatpush2.msra.mxu0 0.0
    %7752 = vmatprep.subr.mxu0 0.0
    %7753 = vmatpush2.msra.mxu0 0.0
    %7754 = vmatprep.subr.mxu0 0.0
    %7755 = vmatpush2.msra.mxu0 0.0
    %7756 = vmatprep.subr.mxu0 0.0
    %7757 = vmatpush2.msra.mxu0 0.0
    %7758 = vmatprep.subr.mxu0 0.0
    %7759 = vmatpush2.msra.mxu0 0.0
    %7760 = vmatprep.subr.mxu0 0.0
    %7761 = vmatpush2.msra.mxu0 0.0
    %7762 = vmatprep.subr.mxu0 0.0
    %7763 = vmatpush2.msra.mxu0 0.0
    %7764 = vmatprep.subr.mxu0 0.0
    %7765 = vmatpush2.msra.mxu0 0.0
    %7766 = vmatprep.subr.mxu0 0.0
    %7767 = vmatpush2.msra.mxu0 0.0
    %7768 = vmatprep.subr.mxu0 0.0
    %7769 = vmatpush2.msra.mxu0 0.0
    %7770 = vmatprep.mubr.f32.mxu0 0.0
    %7771 = vmatmul.mubr.f32.gmra.mxu0 %v7701
    %v7772 = vpop.f32.mrf.mxu0
    %v7773 = vadd.f32 %v7698, %v7772
    %v7774 = vpop.f32.mrf.mxu0
    %7775 = vmatprep.mubr.f32.mxu0 0.0
    %7776 = vmatmul.mubr.f32.gmra.mxu0 %v7704
    %v7777 = vpop.f32.mrf.mxu0
    %v7778 = vadd.f32 %v7698, %v7777
    %v7779 = vpop.f32.mrf.mxu0
    %7780 = vdwg.mxu0
    %v7781 = vtanh.pop %v7773
    %v7782 = vtanh.pop %v7778
    %7785 = vrot.lane.b32.xlu0 %v7781, 112
    %v7786 = vpop.permute.xlu0 %7785
    %7787 = vrot.lane.b32.xlu0 %v7782, 112
    %v7788 = vpop.permute.xlu0 %7787
    %v7791 = vmul.f32 %v7781, %v7786
    %v7792 = vmul.f32 %v7782, %v7788
    %7793 = vst.msk [vmem:[#allocation2] sm:$0xff] %vm1292, %v7681
    %7794 = vst.msk [vmem:[#allocation2 + $0x8] sm:$0xff] %vm1292, %v7682
    %7797 = vrot.lane.b32.xlu0 %v7791, 64
    %v7798 = vpop.permute.xlu0 %7797
    %7799 = vrot.lane.b32.xlu0 %v7792, 64
    %v7800 = vpop.permute.xlu0 %7799
    %7803 = vst.msk [vmem:[#allocation2] sm:$0xff] %vm1303, %v7798
    %7804 = vst.msk [vmem:[#allocation2 + $0x8] sm:$0xff] %vm1303, %v7800
    %v7805 = vld [vmem:[#allocation2] sm:$0xff]
    %v7806 = vld [vmem:[#allocation2 + $0x8] sm:$0xff]
    %v7807 = vld [vmem:[%s9] sm:$0x3]
    %v7808 = vld [vmem:[%s11] sm:$0xff]
    %v7809 = vld [vmem:[%s11 + $0x8] sm:$0xff]
    %v7811 = vsel %vm623, %v7807, 0
    %7813 = vmatprep.subr.mxu0 0.0
    %7814 = vmatpush1.msra.mxu0 0.0
    %7815 = vmatprep.subr.mxu0 0.0
    %7816 = vmatpush1.msra.mxu0 0.0
    %7817 = vmatprep.subr.mxu0 0.0
    %7818 = vmatpush1.msra.mxu0 0.0
    %7819 = vmatprep.subr.mxu0 0.0
    %7820 = vmatpush1.msra.mxu0 0.0
    %7821 = vmatprep.subr.mxu0 0.0
    %7822 = vmatpush1.msra.mxu0 0.0
    %7823 = vmatprep.subr.mxu0 0.0
    %7824 = vmatpush1.msra.mxu0 0.0
    %7825 = vmatprep.subr.mxu0 0.0
    %7826 = vmatpush1.msra.mxu0 0.0
    %7827 = vmatprep.subr.mxu0 0.0
    %7828 = vmatpush1.msra.mxu0 0.0
    %7829 = vmatprep.subr.mxu0 0.0
    %7830 = vmatpush1.msra.mxu0 0.0
    %7831 = vmatprep.subr.mxu0 0.0
    %7832 = vmatpush1.msra.mxu0 0.0
    %7833 = vmatprep.subr.mxu0 0.0
    %7834 = vmatpush1.msra.mxu0 0.0
    %7835 = vmatprep.subr.mxu0 0.0
    %7836 = vmatpush1.msra.mxu0 0.0
    %7837 = vmatprep.subr.mxu0 0.0
    %7838 = vmatpush1.msra.mxu0 0.0
    %7839 = vmatprep.subr.mxu0 0.0
    %7840 = vmatpush1.msra.mxu0 0.0
    %7841 = vmatprep.subr.mxu0 0.0
    %7842 = vmatpush1.msra.mxu0 %v7806
    %7843 = vmatprep.subr.mxu0 0.0
    %7844 = vmatpush1.msra.mxu0 %v7805
    %7845 = vmatprep.subr.mxu0 0.0
    %7846 = vmatpush2.msra.mxu0 0.0
    %7847 = vmatprep.subr.mxu0 0.0
    %7848 = vmatpush2.msra.mxu0 0.0
    %7849 = vmatprep.subr.mxu0 0.0
    %7850 = vmatpush2.msra.mxu0 0.0
    %7851 = vmatprep.subr.mxu0 0.0
    %7852 = vmatpush2.msra.mxu0 0.0
    %7853 = vmatprep.subr.mxu0 0.0
    %7854 = vmatpush2.msra.mxu0 0.0
    %7855 = vmatprep.subr.mxu0 0.0
    %7856 = vmatpush2.msra.mxu0 0.0
    %7857 = vmatprep.subr.mxu0 0.0
    %7858 = vmatpush2.msra.mxu0 0.0
    %7859 = vmatprep.subr.mxu0 0.0
    %7860 = vmatpush2.msra.mxu0 0.0
    %7861 = vmatprep.subr.mxu0 0.0
    %7862 = vmatpush2.msra.mxu0 0.0
    %7863 = vmatprep.subr.mxu0 0.0
    %7864 = vmatpush2.msra.mxu0 0.0
    %7865 = vmatprep.subr.mxu0 0.0
    %7866 = vmatpush2.msra.mxu0 0.0
    %7867 = vmatprep.subr.mxu0 0.0
    %7868 = vmatpush2.msra.mxu0 0.0
    %7869 = vmatprep.subr.mxu0 0.0
    %7870 = vmatpush2.msra.mxu0 0.0
    %7871 = vmatprep.subr.mxu0 0.0
    %7872 = vmatpush2.msra.mxu0 0.0
    %7873 = vmatprep.subr.mxu0 0.0
    %7874 = vmatpush2.msra.mxu0 0.0
    %7875 = vmatprep.subr.mxu0 0.0
    %7876 = vmatpush2.msra.mxu0 0.0
    %7877 = vmatprep.mubr.f32.mxu0 0.0
    %7878 = vmatmul.mubr.f32.gmra.mxu0 %v7811
    %v7879 = vpop.f32.mrf.mxu0
    %v7880 = vadd.f32 0.0, %v7879
    %v7881 = vpop.f32.mrf.mxu0
    %7882 = vdwg.mxu0
    %v7883 = vld [vmem:[%s13] sm:$0x3]
    %7885 = vset.pattern.permute.xlu0 0
    %7886 = vperm.xlu0 %7885, %v7883
    %v7887 = vpop.permute.xlu0 %7886
    %v7889 = vmul.f32 %v7880, %v7887
    %vm7890 = vcmp.gt.f32.partialorder %v7808, 0.5
    %vm7891 = vcmp.gt.f32.partialorder %v7809, 0.5
    %v7892 = vsel %vm7890, 1, 0
    %v7893 = vsel %vm7891, 1, 0
    %7894 = vset.pattern.permute.xlu0 0
    %7895 = vperm.xlu0 %7894, %v7892
    %v7896 = vpop.permute.xlu0 %7895
    %7897 = vset.pattern.permute.xlu0 0
    %7898 = vperm.xlu0 %7897, %v7893
    %v7899 = vpop.permute.xlu0 %7898
    %vm7900 = vcmp.eq.s32.totalorder %v7896, 1
    %vm7901 = vcmp.eq.s32.totalorder %v7899, 1
    %v7902 = vsel %vm7900, %v7805, -inf
    %v7903 = vsel %vm7901, %v7806, -inf
    %v7904 = vsel %vm986, %v7902, -inf
    %v7905 = vsel %vm986, %v7903, -inf
    %v7906 = vmax.f32 %v7904, %v7905
    %v7907 = vrot.slane %v7906, 4
    %v7908 = vmax.f32 %v7906, %v7907
    %v7909 = vrot.slane %v7908, 2
    %v7910 = vmax.f32 %v7908, %v7909
    %v7911 = vrot.slane %v7910, 1
    %v7912 = vmax.f32 %v7910, %v7911
    %7913 = vset.pattern.permute.xlu0 1
    %7914 = vperm.xlu0 %7913, %v7892
    %v7915 = vpop.permute.xlu0 %7914
    %7916 = vset.pattern.permute.xlu0 1
    %7917 = vperm.xlu0 %7916, %v7893
    %v7918 = vpop.permute.xlu0 %7917
    %vm7919 = vcmp.eq.s32.totalorder %v7915, 1
    %vm7920 = vcmp.eq.s32.totalorder %v7918, 1
    %v7921 = vsel %vm7919, %v7805, -inf
    %v7922 = vsel %vm7920, %v7806, -inf
    %v7923 = vsel %vm986, %v7921, -inf
    %v7924 = vsel %vm986, %v7922, -inf
    %v7925 = vmax.f32 %v7923, %v7924
    %v7926 = vrot.slane %v7925, 4
    %v7927 = vmax.f32 %v7925, %v7926
    %v7928 = vrot.slane %v7927, 2
    %v7929 = vmax.f32 %v7927, %v7928
    %v7930 = vrot.slane %v7929, 1
    %v7931 = vmax.f32 %v7929, %v7930
    %vm7932 = vcmask 1040384
    %v7933 = vsel %vm7932, %v7912, %v7931
    %v7934 = vld [vmem:[%s87] sm:$0xff]
    %v7935 = vld [vmem:[%s87 + $0x8] sm:$0xff]
    %v7936 = vld [vmem:[%s87 + $0x10] sm:$0xff]
    %v7937 = vld [vmem:[%s87 + $0x18] sm:$0xff]
    %v7938 = vld [vmem:[%s87 + $0x20] sm:$0xff]
    %v7939 = vld [vmem:[%s87 + $0x28] sm:$0xff]
    %v7940 = vld [vmem:[%s87 + $0x30] sm:$0xff]
    %v7941 = vld [vmem:[%s87 + $0x38] sm:$0xff]
    %v7942 = vld [vmem:[%s87 + $0x40] sm:$0xff]
    %v7943 = vld [vmem:[%s87 + $0x48] sm:$0xff]
    %v7944 = vld [vmem:[%s89] sm:$0xff]
    %v7945 = vld [vmem:[%s89 + $0x8] sm:$0xff]
    %v7946 = vld [vmem:[%s89 + $0x10] sm:$0xff]
    %v7947 = vld [vmem:[%s89 + $0x18] sm:$0xff]
    %v7948 = vld [vmem:[%s89 + $0x20] sm:$0xff]
    %v7949 = vld [vmem:[%s89 + $0x28] sm:$0xff]
    %v7950 = vld [vmem:[%s89 + $0x30] sm:$0xff]
    %v7951 = vld [vmem:[%s89 + $0x38] sm:$0xff]
    %v7952 = vld [vmem:[%s89 + $0x40] sm:$0xff]
    %v7953 = vld [vmem:[%s89 + $0x48] sm:$0xff]
    %v7955 = vsel %vm986, %v7933, 0
    %7957 = vmatprep.subr.mxu0 0.0
    %7958 = vmatpush1.msra.mxu0 0.0
    %7959 = vmatprep.subr.mxu0 0.0
    %7960 = vmatpush1.msra.mxu0 0.0
    %7961 = vmatprep.subr.mxu0 0.0
    %7962 = vmatpush1.msra.mxu0 0.0
    %7963 = vmatprep.subr.mxu0 0.0
    %7964 = vmatpush1.msra.mxu0 0.0
    %7965 = vmatprep.subr.mxu0 0.0
    %7966 = vmatpush1.msra.mxu0 0.0
    %7967 = vmatprep.subr.mxu0 0.0
    %7968 = vmatpush1.msra.mxu0 0.0
    %7969 = vmatprep.subr.mxu0 0.0
    %7970 = vmatpush1.msra.mxu0 %v7953
    %7971 = vmatprep.subr.mxu0 0.0
    %7972 = vmatpush1.msra.mxu0 %v7952
    %7973 = vmatprep.subr.mxu0 0.0
    %7974 = vmatpush1.msra.mxu0 %v7951
    %7975 = vmatprep.subr.mxu0 0.0
    %7976 = vmatpush1.msra.mxu0 %v7950
    %7977 = vmatprep.subr.mxu0 0.0
    %7978 = vmatpush1.msra.mxu0 %v7949
    %7979 = vmatprep.subr.mxu0 0.0
    %7980 = vmatpush1.msra.mxu0 %v7948
    %7981 = vmatprep.subr.mxu0 0.0
    %7982 = vmatpush1.msra.mxu0 %v7947
    %7983 = vmatprep.subr.mxu0 0.0
    %7984 = vmatpush1.msra.mxu0 %v7946
    %7985 = vmatprep.subr.mxu0 0.0
    %7986 = vmatpush1.msra.mxu0 %v7945
    %7987 = vmatprep.subr.mxu0 0.0
    %7988 = vmatpush1.msra.mxu0 %v7944
    %7989 = vmatprep.subr.mxu0 0.0
    %7990 = vmatpush2.msra.mxu0 0.0
    %7991 = vmatprep.subr.mxu0 0.0
    %7992 = vmatpush2.msra.mxu0 0.0
    %7993 = vmatprep.subr.mxu0 0.0
    %7994 = vmatpush2.msra.mxu0 0.0
    %7995 = vmatprep.subr.mxu0 0.0
    %7996 = vmatpush2.msra.mxu0 0.0
    %7997 = vmatprep.subr.mxu0 0.0
    %7998 = vmatpush2.msra.mxu0 0.0
    %7999 = vmatprep.subr.mxu0 0.0
    %8000 = vmatpush2.msra.mxu0 0.0
    %8001 = vmatprep.subr.mxu0 0.0
    %8002 = vmatpush2.msra.mxu0 0.0
    %8003 = vmatprep.subr.mxu0 0.0
    %8004 = vmatpush2.msra.mxu0 0.0
    %8005 = vmatprep.subr.mxu0 0.0
    %8006 = vmatpush2.msra.mxu0 0.0
    %8007 = vmatprep.subr.mxu0 0.0
    %8008 = vmatpush2.msra.mxu0 0.0
    %8009 = vmatprep.subr.mxu0 0.0
    %8010 = vmatpush2.msra.mxu0 0.0
    %8011 = vmatprep.subr.mxu0 0.0
    %8012 = vmatpush2.msra.mxu0 0.0
    %8013 = vmatprep.subr.mxu0 0.0
    %8014 = vmatpush2.msra.mxu0 0.0
    %8015 = vmatprep.subr.mxu0 0.0
    %8016 = vmatpush2.msra.mxu0 0.0
    %8017 = vmatprep.subr.mxu0 0.0
    %8018 = vmatpush2.msra.mxu0 0.0
    %8019 = vmatprep.subr.mxu0 0.0
    %8020 = vmatpush2.msra.mxu0 0.0
    %8021 = vmatprep.mubr.f32.mxu0 0.0
    %8022 = vmatmul.mubr.f32.gmra.mxu0 %v7955
    %v8023 = vpop.f32.mrf.mxu0
    %v8024 = vadd.f32 0.0, %v8023
    %v8025 = vpop.f32.mrf.mxu0
    %8026 = vdwg.mxu0
    %v8028 = vsel %vm986, %v7889, 0
    %8030 = vmatprep.subr.mxu0 0.0
    %8031 = vmatpush1.msra.mxu0 0.0
    %8032 = vmatprep.subr.mxu0 0.0
    %8033 = vmatpush1.msra.mxu0 0.0
    %8034 = vmatprep.subr.mxu0 0.0
    %8035 = vmatpush1.msra.mxu0 0.0
    %8036 = vmatprep.subr.mxu0 0.0
    %8037 = vmatpush1.msra.mxu0 0.0
    %8038 = vmatprep.subr.mxu0 0.0
    %8039 = vmatpush1.msra.mxu0 0.0
    %8040 = vmatprep.subr.mxu0 0.0
    %8041 = vmatpush1.msra.mxu0 0.0
    %8042 = vmatprep.subr.mxu0 0.0
    %8043 = vmatpush1.msra.mxu0 %v7943
    %8044 = vmatprep.subr.mxu0 0.0
    %8045 = vmatpush1.msra.mxu0 %v7942
    %8046 = vmatprep.subr.mxu0 0.0
    %8047 = vmatpush1.msra.mxu0 %v7941
    %8048 = vmatprep.subr.mxu0 0.0
    %8049 = vmatpush1.msra.mxu0 %v7940
    %8050 = vmatprep.subr.mxu0 0.0
    %8051 = vmatpush1.msra.mxu0 %v7939
    %8052 = vmatprep.subr.mxu0 0.0
    %8053 = vmatpush1.msra.mxu0 %v7938
    %8054 = vmatprep.subr.mxu0 0.0
    %8055 = vmatpush1.msra.mxu0 %v7937
    %8056 = vmatprep.subr.mxu0 0.0
    %8057 = vmatpush1.msra.mxu0 %v7936
    %8058 = vmatprep.subr.mxu0 0.0
    %8059 = vmatpush1.msra.mxu0 %v7935
    %8060 = vmatprep.subr.mxu0 0.0
    %8061 = vmatpush1.msra.mxu0 %v7934
    %8062 = vmatprep.subr.mxu0 0.0
    %8063 = vmatpush2.msra.mxu0 0.0
    %8064 = vmatprep.subr.mxu0 0.0
    %8065 = vmatpush2.msra.mxu0 0.0
    %8066 = vmatprep.subr.mxu0 0.0
    %8067 = vmatpush2.msra.mxu0 0.0
    %8068 = vmatprep.subr.mxu0 0.0
    %8069 = vmatpush2.msra.mxu0 0.0
    %8070 = vmatprep.subr.mxu0 0.0
    %8071 = vmatpush2.msra.mxu0 0.0
    %8072 = vmatprep.subr.mxu0 0.0
    %8073 = vmatpush2.msra.mxu0 0.0
    %8074 = vmatprep.subr.mxu0 0.0
    %8075 = vmatpush2.msra.mxu0 0.0
    %8076 = vmatprep.subr.mxu0 0.0
    %8077 = vmatpush2.msra.mxu0 0.0
    %8078 = vmatprep.subr.mxu0 0.0
    %8079 = vmatpush2.msra.mxu0 0.0
    %8080 = vmatprep.subr.mxu0 0.0
    %8081 = vmatpush2.msra.mxu0 0.0
    %8082 = vmatprep.subr.mxu0 0.0
    %8083 = vmatpush2.msra.mxu0 0.0
    %8084 = vmatprep.subr.mxu0 0.0
    %8085 = vmatpush2.msra.mxu0 0.0
    %8086 = vmatprep.subr.mxu0 0.0
    %8087 = vmatpush2.msra.mxu0 0.0
    %8088 = vmatprep.subr.mxu0 0.0
    %8089 = vmatpush2.msra.mxu0 0.0
    %8090 = vmatprep.subr.mxu0 0.0
    %8091 = vmatpush2.msra.mxu0 0.0
    %8092 = vmatprep.subr.mxu0 0.0
    %8093 = vmatpush2.msra.mxu0 0.0
    %8094 = vmatprep.mubr.f32.mxu0 0.0
    %8095 = vmatmul.mubr.f32.gmra.mxu0 %v8028
    %v8096 = vpop.f32.mrf.mxu0
    %v8097 = vadd.f32 %v8024, %v8096
    %v8098 = vpop.f32.mrf.mxu0
    %8099 = vdwg.mxu0
    %v8100 = vld [vmem:[%s91] sm:$0x1]
    %v8102 = vlaneseq
    %v8103 = vshrl.u32 %v8102, 7
    %v8104 = vsub.s32 0, %v8103
    %v8105 = vrot.slane %v8100, %v8104
    %v8107 = vadd.f32 %v8097, %v8105
    %v8108 = vmax.f32 %v8107, 0.0
    %v8109 = vld [vmem:[%s93] sm:$0xff]
    %v8110 = vld [vmem:[%s93 + $0x8] sm:$0xff]
    %v8111 = vld [vmem:[%s93 + $0x10] sm:$0xff]
    %v8112 = vld [vmem:[%s93 + $0x18] sm:$0xff]
    %v8113 = vld [vmem:[%s93 + $0x20] sm:$0xff]
    %v8114 = vld [vmem:[%s93 + $0x28] sm:$0xff]
    %v8115 = vld [vmem:[%s93 + $0x30] sm:$0xff]
    %v8116 = vld [vmem:[%s93 + $0x38] sm:$0xff]
    %v8117 = vld [vmem:[%s93 + $0x40] sm:$0xff]
    %v8118 = vld [vmem:[%s93 + $0x48] sm:$0xff]
    %v8119 = vld [vmem:[%s93 + $0x50] sm:$0xff]
    %v8120 = vld [vmem:[%s93 + $0x58] sm:$0xff]
    %v8121 = vld [vmem:[%s93 + $0x60] sm:$0xf]
    %v8122 = vld [vmem:[%s95] sm:$0x1]
    %v8124 = vlaneseq
    %v8125 = vshrl.u32 %v8124, 7
    %v8126 = vsub.s32 0, %v8125
    %v8127 = vrot.slane %v8122, %v8126
    %vm8129 = vcmask 818176
    %v8131 = vsel %vm8129, %v8108, 0
    %v8134 = vsel %vm408, %v8121, 0
    %8136 = vmatprep.subr.mxu0 0.0
    %8137 = vmatpush1.msra.mxu0 0.0
    %8138 = vmatprep.subr.mxu0 0.0
    %8139 = vmatpush1.msra.mxu0 0.0
    %8140 = vmatprep.subr.mxu0 0.0
    %8141 = vmatpush1.msra.mxu0 0.0
    %8142 = vmatprep.subr.mxu0 0.0
    %8143 = vmatpush1.msra.mxu0 %v8134
    %8144 = vmatprep.subr.mxu0 0.0
    %8145 = vmatpush1.msra.mxu0 %v8120
    %8146 = vmatprep.subr.mxu0 0.0
    %8147 = vmatpush1.msra.mxu0 %v8119
    %8148 = vmatprep.subr.mxu0 0.0
    %8149 = vmatpush1.msra.mxu0 %v8118
    %8150 = vmatprep.subr.mxu0 0.0
    %8151 = vmatpush1.msra.mxu0 %v8117
    %8152 = vmatprep.subr.mxu0 0.0
    %8153 = vmatpush1.msra.mxu0 %v8116
    %8154 = vmatprep.subr.mxu0 0.0
    %8155 = vmatpush1.msra.mxu0 %v8115
    %8156 = vmatprep.subr.mxu0 0.0
    %8157 = vmatpush1.msra.mxu0 %v8114
    %8158 = vmatprep.subr.mxu0 0.0
    %8159 = vmatpush1.msra.mxu0 %v8113
    %8160 = vmatprep.subr.mxu0 0.0
    %8161 = vmatpush1.msra.mxu0 %v8112
    %8162 = vmatprep.subr.mxu0 0.0
    %8163 = vmatpush1.msra.mxu0 %v8111
    %8164 = vmatprep.subr.mxu0 0.0
    %8165 = vmatpush1.msra.mxu0 %v8110
    %8166 = vmatprep.subr.mxu0 0.0
    %8167 = vmatpush1.msra.mxu0 %v8109
    %8168 = vmatprep.subr.mxu0 0.0
    %8169 = vmatpush2.msra.mxu0 0.0
    %8170 = vmatprep.subr.mxu0 0.0
    %8171 = vmatpush2.msra.mxu0 0.0
    %8172 = vmatprep.subr.mxu0 0.0
    %8173 = vmatpush2.msra.mxu0 0.0
    %8174 = vmatprep.subr.mxu0 0.0
    %8175 = vmatpush2.msra.mxu0 0.0
    %8176 = vmatprep.subr.mxu0 0.0
    %8177 = vmatpush2.msra.mxu0 0.0
    %8178 = vmatprep.subr.mxu0 0.0
    %8179 = vmatpush2.msra.mxu0 0.0
    %8180 = vmatprep.subr.mxu0 0.0
    %8181 = vmatpush2.msra.mxu0 0.0
    %8182 = vmatprep.subr.mxu0 0.0
    %8183 = vmatpush2.msra.mxu0 0.0
    %8184 = vmatprep.subr.mxu0 0.0
    %8185 = vmatpush2.msra.mxu0 0.0
    %8186 = vmatprep.subr.mxu0 0.0
    %8187 = vmatpush2.msra.mxu0 0.0
    %8188 = vmatprep.subr.mxu0 0.0
    %8189 = vmatpush2.msra.mxu0 0.0
    %8190 = vmatprep.subr.mxu0 0.0
    %8191 = vmatpush2.msra.mxu0 0.0
    %8192 = vmatprep.subr.mxu0 0.0
    %8193 = vmatpush2.msra.mxu0 0.0
    %8194 = vmatprep.subr.mxu0 0.0
    %8195 = vmatpush2.msra.mxu0 0.0
    %8196 = vmatprep.subr.mxu0 0.0
    %8197 = vmatpush2.msra.mxu0 0.0
    %8198 = vmatprep.subr.mxu0 0.0
    %8199 = vmatpush2.msra.mxu0 0.0
    %8200 = vmatprep.mubr.f32.mxu0 0.0
    %8201 = vmatmul.mubr.f32.gmra.mxu0 %v8131
    %v8202 = vpop.f32.mrf.mxu0
    %v8203 = vadd.f32 %v8127, %v8202
    %v8204 = vpop.f32.mrf.mxu0
    %8205 = vdwg.mxu0
    %vm8206 = vcmask 9216
    %v8207 = vsel %vm8206, %v8203, -inf
    %8208 = vmax.xlane.f32.xlu0 %v8207
    %v8209 = vpop.xlane.xlu0 %8208
    %v8210 = vsub.f32 %v8203, %v8209
    %v8211 = vmul.f32 %v8210, 1.442695
    %v8212 = vpow.pop %v8211
    %v8213 = vsel %vm8206, %v8212, 0.0
    %8214 = vadd.xlane.f32.xlu0 %v8213
    %v8215 = vpop.xlane.xlu0 %8214
    %v8216 = vlog2.pop %v8215
    %v8217 = vmul.f32 %v8216, 0.6931472
    %v8218 = vadd.f32 %v8209, %v8217
    %v8219 = vsub.f32 %v8203, %v8218
    %8220 = vst.msk [vmem:[#allocation3] sm:$0x3] %vm8206, %v8219
    // Predicated region
    $region194: #{gnnml3_forward.1} parent=1 // pred_check
      _
    $region195: #{gnnml3_forward.1} parent=1 // pred_check_branch
      %8222 = sbr.rel (0) target = $region197
    $region196: #{gnnml3_forward.1} parent=1 // pred_region
      %s8224 = ssub.s32 32, 32
      %8225 = vsyncadd [#allocation4], %s8224
      %s8227 = sshll.u32 [#allocation3], 4
      %s8228 = int_to_ptr.vmem [resolvable:$true] %s8227
      %8230 = dma.vmem_to_hbm [thread:$0]  %s8228, 32, %s97, [#allocation4]
    $region197: #{gnnml3_forward.1} parent=1 // pred_fallthru
      _
    // Predicated region
    $region198: #{gnnml3_forward.1} parent=1 // pred_check
      _
    $region199: #{gnnml3_forward.1} parent=1 // pred_check_branch
      %8232 = sbr.rel (0) target = $region201
    $region200: #{gnnml3_forward.1} parent=1 // pred_region
      %8233 = dma.done [#allocation4], 32
    $region201: #{gnnml3_forward.1} parent=1 // pred_fallthru
      _
    %8234 = vsyncpa [#allocation4], 1

</llo_original>
